<compile_context>
chip_gen: v5e
topology: v5e:2x2
jax: 0.10.0
libtpu: 0.0.40
codegen_flags: <defaults>
</compile_context>

<pallas_src>
import jax
import jax.numpy as jnp
from jax.experimental import pallas as pl
from jax.experimental.pallas import tpu as pltpu

EPS = 1e-5
PALLAS_MIN_HW = 256  # levels with H*W below this run as plain XLA (launch-bound)


def _round_up(x, m):
    return -(-x // m) * m


# ------------------------- fused DoubleConv Pallas kernel ------------------------- #

def _make_double_conv_kernel(cps, c_mid, c_out, H, W, fuse_out, G, mid_size):
    """[conv3x3 -> InstanceNorm -> ReLU] x2 (+ optional fused 1x1 + bias + tanh).

    Per-sample activations arrive as (Cp, S) slabs: channels on sublanes, the
    flattened spatially padded grid (S = (H+6)*(W+2)) on lanes.  Each conv is one
    big-K matmul against an in-kernel staged (9*C, Sc) im2col operand.
    """
    Hp, Wp = H + 2, W + 2
    Sc = Hp * Wp                        # conv output grid (padded-by-1), masked border
    inv_n = 1.0 / float(H * W)
    n_in = len(cps)
    K1 = 9 * sum(cps)
    K2 = 9 * c_mid
    # conv1 taps: input slab has the image at row offset 3, col offset 1
    tap1 = [(ky + 1) * Wp + (kx - 1) for ky in range(3) for kx in range(3)]
    # conv2 taps: y1 grid stored at 128-aligned lane offset G inside the mid slab
    tap2 = [G + (ky - 1) * Wp + (kx - 1) for ky in range(3) for kx in range(3)]
    tail = mid_size - G - Sc            # >= Wp + 1 by construction

    def inorm_relu(acc, mask):
        # two-pass masked InstanceNorm (biased var, f32) + ReLU; border stays zero
        xm = acc * mask
        mean = jnp.sum(xm, axis=1, keepdims=True) * inv_n
        d = (acc - mean) * mask
        var = jnp.sum(d * d, axis=1, keepdims=True) * inv_n
        return jnp.maximum(d * jax.lax.rsqrt(var + EPS), 0.0)

    def kernel(*refs):
        idx = 0
        x_refs = refs[idx:idx + n_in]; idx += n_in          # (1, Cp_i, S) bf16 each
        w1_ref = refs[idx]                                  # (c_mid, K1) bf16
        w2_ref = refs[idx + 1]                              # (c_out, K2) bf16
        mask_ref = refs[idx + 2]                            # (1, Sc) f32
        idx += 3
        if fuse_out:
            ow_ref = refs[idx]; ob_ref = refs[idx + 1]; idx += 2
        o_ref = refs[idx]; idx += 1                         # (1, c_fin, Sc)
        col_ref = refs[idx]                                 # VMEM (Kcol, Sc) bf16
        mid_ref = refs[idx + 1]                             # VMEM (c_mid, mid_size) bf16

        mask = mask_ref[...]                                # (1, Sc) f32

        # ---- conv1: stage all taps of all inputs into one im2col operand, 1 matmul
        base = 0
        for i in range(n_in):
            cp = cps[i]
            for t, off in enumerate(tap1):
                col_ref[pl.ds(base + t * cp, cp), :] = x_refs[i][0, :, pl.ds(off, Sc)]
            base += 9 * cp
        acc1 = jnp.dot(w1_ref[...], col_ref[pl.ds(0, K1), :],
                       preferred_element_type=jnp.float32)
        y1 = inorm_relu(acc1, mask)

        # ---- stage y1 (padded grid) at a 128-aligned offset; zero only the small
        #      guard regions (they feed masked border outputs and must stay finite)
        mid_ref[:, pl.ds(0, G)] = jnp.zeros((c_mid, G), jnp.bfloat16)
        mid_ref[:, pl.ds(G + Sc, tail)] = jnp.zeros((c_mid, tail), jnp.bfloat16)
        mid_ref[:, pl.ds(G, Sc)] = y1.astype(jnp.bfloat16)

        # ---- conv2: im2col of the staged intermediate, 1 matmul
        for t, off in enumerate(tap2):
            col_ref[pl.ds(t * c_mid, c_mid), :] = mid_ref[:, pl.ds(off, Sc)]
        acc2 = jnp.dot(w2_ref[...], col_ref[pl.ds(0, K2), :],
                       preferred_element_type=jnp.float32)
        y2 = inorm_relu(acc2, mask)

        if fuse_out:                                        # fused OutConv + tanh
            z = jnp.dot(ow_ref[...], y2.astype(jnp.bfloat16),
                        preferred_element_type=jnp.float32) + ob_ref[...]
            o_ref[0] = jnp.tanh(z)
        else:
            o_ref[0] = y2.astype(o_ref.dtype)

    return kernel


def pallas_double_conv(xs, w1, w2, out_w=None, out_b=None):
    """Fused DoubleConv on TPU.

    xs: list of NCHW inputs at the same (N, H, W) -- the channel concat of the
        Up blocks is realized by stacking taps of every input in the im2col.
    w1: (c_mid, sum(Ci), 3, 3), w2: (c_out, c_mid, 3, 3)  (torch OIHW layout, f32).
    Optional out_w (c_fin, c_out) / out_b (c_fin,) fuse the final 1x1 conv + tanh.
    """
    N, _, H, W = xs[0].shape
    Hp, Wp = H + 2, W + 2
    Sc = Hp * Wp
    S = (Hp + 4) * Wp                       # +3 guard rows top/bottom (flattened)
    c_mid, c_out = w1.shape[0], w2.shape[0]
    fuse_out = out_w is not None
    c_fin = out_w.shape[0] if fuse_out else c_out

    G = _round_up(Wp + 1, 128)              # 128-lane-aligned left guard (>= Wp+1)
    mid_size = _round_up(G + Sc + Wp + 1, 128)

    # split the first conv weight along its input-channel axis (torch.cat order)
    cins = [x.shape[1] for x in xs]
    chunks, off = [], 0
    for c in cins:
        chunks.append(w1[:, off:off + c])
        off += c

    slabs, w1_mats, cps = [], [], []
    for x, wc, c in zip(xs, chunks, cins):
        cp = _round_up(c, 8)                # keep im2col row offsets sublane-aligned
        if cp != c:
            x = jnp.pad(x, ((0, 0), (0, cp - c), (0, 0), (0, 0)))
            wc = jnp.pad(wc, ((0, 0), (0, cp - c), (0, 0), (0, 0)))
        # conv zero-pad (+1) plus guard rows, flatten the padded spatial grid
        xp = jnp.pad(x, ((0, 0), (0, 0), (3, 3), (1, 1)))
        slabs.append(xp.reshape(N, cp, S).astype(jnp.bfloat16))
        # (c_mid, cp, 3, 3) -> (c_mid, ky, kx, cp) -> (c_mid, 9*cp): matches im2col rows
        w1_mats.append(jnp.transpose(wc, (0, 2, 3, 1)).reshape(c_mid, 9 * cp))
        cps.append(cp)

    w1_mat = jnp.concatenate(w1_mats, axis=1).astype(jnp.bfloat16)          # (c_mid, K1)
    w2_mat = (jnp.transpose(w2, (0, 2, 3, 1))
              .reshape(c_out, 9 * c_mid).astype(jnp.bfloat16))              # (c_out, K2)
    mask = jnp.pad(jnp.ones((H, W), jnp.float32), ((1, 1), (1, 1))).reshape(1, Sc)

    K1, K2 = w1_mat.shape[1], w2_mat.shape[1]
    Kcol = max(K1, K2)

    in_specs = [pl.BlockSpec((1, cp, S), lambda n: (n, 0, 0)) for cp in cps]
    in_specs += [pl.BlockSpec((c_mid, K1), lambda n: (0, 0)),
                 pl.BlockSpec((c_out, K2), lambda n: (0, 0)),
                 pl.BlockSpec((1, Sc), lambda n: (0, 0))]
    args = slabs + [w1_mat, w2_mat, mask]
    if fuse_out:
        in_specs += [pl.BlockSpec((c_fin, c_out), lambda n: (0, 0)),
                     pl.BlockSpec((c_fin, 1), lambda n: (0, 0))]
        args += [out_w.astype(jnp.bfloat16),
                 out_b.reshape(c_fin, 1).astype(jnp.float32)]

    # intermediate levels emit bf16 (next level re-casts anyway); final level f32
    out_dtype = jnp.float32 if fuse_out else jnp.bfloat16

    kernel = _make_double_conv_kernel(tuple(cps), c_mid, c_out, H, W,
                                      fuse_out, G, mid_size)
    out = pl.pallas_call(
        kernel,
        out_shape=jax.ShapeDtypeStruct((N, c_fin, Sc), out_dtype),
        grid=(N,),
        in_specs=in_specs,
        out_specs=pl.BlockSpec((1, c_fin, Sc), lambda n: (n, 0, 0)),
        scratch_shapes=[pltpu.VMEM((Kcol, Sc), jnp.bfloat16),      # im2col staging
                        pltpu.VMEM((c_mid, mid_size), jnp.bfloat16)],  # padded y1
        compiler_params=pltpu.CompilerParams(
            dimension_semantics=("parallel",),            # batch across v7x's 2 TCs
            vmem_limit_bytes=48 * 1024 * 1024),
    )(*args)
    # crop the padded conv grid back to NCHW
    return out.reshape(N, c_fin, Hp, Wp)[:, :, 1:-1, 1:-1]


# ----------------------- tiny-level fallback + JAX glue --------------------------- #

def _instance_norm_relu_nchw(y):
    m = jnp.mean(y, axis=(2, 3), keepdims=True)
    v = jnp.mean(jnp.square(y - m), axis=(2, 3), keepdims=True)
    return jnp.maximum((y - m) * jax.lax.rsqrt(v + EPS), 0.0)


def _jnp_double_conv(x, w1, w2):
    x = x.astype(jnp.float32)
    conv = lambda a, w: jax.lax.conv_general_dilated(
        a, w, window_strides=(1, 1), padding="SAME",
        dimension_numbers=("NCHW", "OIHW", "NCHW"))
    return _instance_norm_relu_nchw(conv(_instance_norm_relu_nchw(conv(x, w1)), w2))


def double_conv(xs, w1, w2, out_w=None, out_b=None):
    """DoubleConv dispatcher: Pallas for big levels, plain XLA for tiny ones."""
    if not isinstance(xs, (list, tuple)):
        xs = [xs]
    H, W = xs[0].shape[2], xs[0].shape[3]
    if H * W >= PALLAS_MIN_HW:
        return pallas_double_conv(list(xs), w1, w2, out_w, out_b)
    # tiny bottleneck levels: separate Pallas launches are pure fixed overhead here
    x = xs[0] if len(xs) == 1 else jnp.concatenate(
        [a.astype(jnp.float32) for a in xs], axis=1)
    y = _jnp_double_conv(x, w1, w2)
    if out_w is not None:
        y = jnp.einsum("oc,nchw->nohw", out_w, y) + out_b.reshape(1, -1, 1, 1)
        y = jnp.tanh(y)
    return y


def maxpool2(x):  # nn.MaxPool2d(2), NCHW
    N, C, H, W = x.shape
    return x.reshape(N, C, H // 2, 2, W // 2, 2).max(axis=(3, 5))


def upsample_bilinear_x2(x):  # nn.Upsample(scale_factor=2, bilinear, align_corners=True)
    N, C, H, W = x.shape
    Ho, Wo = 2 * H, 2 * W

    def coords(inp, out):
        if inp == 1:
            return jnp.zeros((out,), jnp.float32)
        return jnp.arange(out, dtype=jnp.float32) * (inp - 1) / (out - 1)

    ys, xs = coords(H, Ho), coords(W, Wo)
    y0 = jnp.floor(ys).astype(jnp.int32)
    x0 = jnp.floor(xs).astype(jnp.int32)
    y1 = jnp.minimum(y0 + 1, H - 1)
    x1 = jnp.minimum(x0 + 1, W - 1)
    wy = (ys - y0)[None, None, :, None]
    wx = (xs - x0)[None, None, None, :]
    g = lambda yi, xi: x[:, :, yi][:, :, :, xi]
    top = g(y0, x0) * (1 - wx) + g(y0, x1) * wx
    bot = g(y1, x0) * (1 - wx) + g(y1, x1) * wx
    return top * (1 - wy) + bot * wy


def up_block(x1, x2, w1, w2, out_w=None, out_b=None):
    x1u = upsample_bilinear_x2(x1)
    dY = x2.shape[2] - x1u.shape[2]
    dX = x2.shape[3] - x1u.shape[3]
    x1u = jnp.pad(x1u, ((0, 0), (0, 0),
                        (dY // 2, dY - dY // 2), (dX // 2, dX - dX // 2)))
    # torch.cat([x2, x1], dim=1) realized as stacked-tap split-K inside the kernel
    return double_conv([x2, x1u], w1, w2, out_w, out_b)


# --------------------------- parameters & forward pass ---------------------------- #

def make_params(key, input_nc=1, output_nc=1, ngf=8):
    keys = iter(jax.random.split(key, 32))

    def w3(cin, cout):  # torch OIHW layout
        return (jax.random.normal(next(keys), (cout, cin, 3, 3), jnp.float32)
                * (2.0 / (9 * cin)) ** 0.5)

    p = {}
    p["inc"] = (w3(input_nc, ngf), w3(ngf, ngf))
    p["down1"] = (w3(ngf, 2 * ngf), w3(2 * ngf, 2 * ngf))
    p["down2"] = (w3(2 * ngf, 4 * ngf), w3(4 * ngf, 4 * ngf))
    p["down3"] = (w3(4 * ngf, 8 * ngf), w3(8 * ngf, 8 * ngf))
    p["down4"] = (w3(8 * ngf, 8 * ngf), w3(8 * ngf, 8 * ngf))        # ngf*16//2 (bilinear)
    p["up1"] = (w3(16 * ngf, 8 * ngf), w3(8 * ngf, 4 * ngf))         # mid = in//2
    p["up2"] = (w3(8 * ngf, 4 * ngf), w3(4 * ngf, 2 * ngf))
    p["up3"] = (w3(4 * ngf, 2 * ngf), w3(2 * ngf, ngf))
    p["up4"] = (w3(2 * ngf, ngf), w3(ngf, ngf))
    p["outc_w"] = (jax.random.normal(next(keys), (output_nc, ngf), jnp.float32)
                   * (1.0 / ngf) ** 0.5)
    p["outc_b"] = jax.random.normal(next(keys), (output_nc,), jnp.float32) * 0.01
    return p


def unet_forward(x_nchw, params):
    x = x_nchw.astype(jnp.float32)
    x1 = double_conv(x, *params["inc"])
    x2 = double_conv(maxpool2(x1), *params["down1"])
    x3 = double_conv(maxpool2(x2), *params["down2"])
    x4 = double_conv(maxpool2(x3), *params["down3"])
    x5 = double_conv(maxpool2(x4), *params["down4"])
    y = up_block(x5, x4, *params["up1"])
    y = up_block(y, x3, *params["up2"])
    y = up_block(y, x2, *params["up3"])
    # last up-block carries the fused OutConv (1x1 + bias) + tanh epilogue
    y = up_block(y, x1, *params["up4"],
                 out_w=params["outc_w"], out_b=params["outc_b"])
    return y  # (N, output_nc, H, W), NCHW, f32


# ----------------------------------------- main ----------------------------------- #

if __name__ == "__main__":
    key = jax.random.PRNGKey(0)
    kx, kp = jax.random.split(key)

    # Small shapes consistent with the module: batch=2, input_nc=1, 32x32 spatial,
    # ngf=8 (four 2x downs bottom out at 2x2 spatial).
    x = jax.random.normal(kx, (2, 1, 32, 32), jnp.float32)
    params = make_params(kp, input_nc=1, output_nc=1, ngf=8)

    fwd = jax.jit(unet_forward)
    out = fwd(x, params)
    jax.block_until_ready(out)

    assert out.shape == (2, 1, 32, 32), out.shape
    assert bool(jnp.all(jnp.isfinite(out)))
    print("KERNEL_OK")
</pallas_src>

<mosaic_0001>
module attributes {stable_mosaic.version = 11 : i64} {
  func.func @kernel(%arg0: i32, %arg1: memref<1x8x1292xbf16, #tpu.memory_space<vmem>>, %arg2: memref<8x72xbf16, #tpu.memory_space<vmem>>, %arg3: memref<8x72xbf16, #tpu.memory_space<vmem>>, %arg4: memref<1x1156xf32, #tpu.memory_space<vmem>>, %arg5: memref<1x8x1156xbf16, #tpu.memory_space<vmem>>, %arg6: memref<72x1156xbf16, #tpu.memory_space<vmem>>, %arg7: memref<8x1408xbf16, #tpu.memory_space<vmem>>) attributes {dimension_semantics = [#tpu.dimension_semantics<parallel>], iteration_bounds = array<i64: 2>, scalar_prefetch = 0 : i64, scratch_operands = 2 : i64, tpu.core_type = #tpu.core_type<tc>, window_params = [{transform_indices = @transform_0, window_bounds = array<i64: 1, 8, 1292>}, {pipeline_mode = #tpu.pipeline_mode<synchronous>, transform_indices = @transform_1, window_bounds = array<i64: 8, 72>}, {pipeline_mode = #tpu.pipeline_mode<synchronous>, transform_indices = @transform_2, window_bounds = array<i64: 8, 72>}, {pipeline_mode = #tpu.pipeline_mode<synchronous>, transform_indices = @transform_3, window_bounds = array<i64: 1, 1156>}, {transform_indices = @transform_4, window_bounds = array<i64: 1, 8, 1156>}]} {
    %c0 = arith.constant 0 : index
    %c0_0 = arith.constant 0 : index
    %0 = vector.load %arg4[%c0, %c0_0] : memref<1x1156xf32, #tpu.memory_space<vmem>>, vector<1x1156xf32>
    %c0_1 = arith.constant 0 : index
    %c0_2 = arith.constant 0 : index
    %c33 = arith.constant 33 : index
    %1 = vector.load %arg1[%c0_1, %c0_2, %c33] : memref<1x8x1292xbf16, #tpu.memory_space<vmem>>, vector<1x8x1156xbf16>
    %2 = vector.shape_cast %1 : vector<1x8x1156xbf16> to vector<8x1156xbf16>
    %c0_3 = arith.constant 0 : index
    %c0_4 = arith.constant 0 : index
    %3 = vector.load %arg6[%c0_3, %c0_4] : memref<72x1156xbf16, #tpu.memory_space<vmem>>, vector<8x1156xbf16>
    tpu.vector_store %arg6[%c0_3, %c0_4], %2 {strides = array<i32>} : memref<72x1156xbf16, #tpu.memory_space<vmem>>, vector<8x1156xbf16>,
    %c0_5 = arith.constant 0 : index
    %c0_6 = arith.constant 0 : index
    %c34 = arith.constant 34 : index
    %4 = vector.load %arg1[%c0_5, %c0_6, %c34] : memref<1x8x1292xbf16, #tpu.memory_space<vmem>>, vector<1x8x1156xbf16>
    %5 = vector.shape_cast %4 : vector<1x8x1156xbf16> to vector<8x1156xbf16>
    %c8 = arith.constant 8 : index
    %c0_7 = arith.constant 0 : index
    %6 = vector.load %arg6[%c8, %c0_7] : memref<72x1156xbf16, #tpu.memory_space<vmem>>, vector<8x1156xbf16>
    tpu.vector_store %arg6[%c8, %c0_7], %5 {strides = array<i32>} : memref<72x1156xbf16, #tpu.memory_space<vmem>>, vector<8x1156xbf16>,
    %c0_8 = arith.constant 0 : index
    %c0_9 = arith.constant 0 : index
    %c35 = arith.constant 35 : index
    %7 = vector.load %arg1[%c0_8, %c0_9, %c35] : memref<1x8x1292xbf16, #tpu.memory_space<vmem>>, vector<1x8x1156xbf16>
    %8 = vector.shape_cast %7 : vector<1x8x1156xbf16> to vector<8x1156xbf16>
    %c16 = arith.constant 16 : index
    %c0_10 = arith.constant 0 : index
    %9 = vector.load %arg6[%c16, %c0_10] : memref<72x1156xbf16, #tpu.memory_space<vmem>>, vector<8x1156xbf16>
    tpu.vector_store %arg6[%c16, %c0_10], %8 {strides = array<i32>} : memref<72x1156xbf16, #tpu.memory_space<vmem>>, vector<8x1156xbf16>,
    %c0_11 = arith.constant 0 : index
    %c0_12 = arith.constant 0 : index
    %c67 = arith.constant 67 : index
    %10 = vector.load %arg1[%c0_11, %c0_12, %c67] : memref<1x8x1292xbf16, #tpu.memory_space<vmem>>, vector<1x8x1156xbf16>
    %11 = vector.shape_cast %10 : vector<1x8x1156xbf16> to vector<8x1156xbf16>
    %c24 = arith.constant 24 : index
    %c0_13 = arith.constant 0 : index
    %12 = vector.load %arg6[%c24, %c0_13] : memref<72x1156xbf16, #tpu.memory_space<vmem>>, vector<8x1156xbf16>
    tpu.vector_store %arg6[%c24, %c0_13], %11 {strides = array<i32>} : memref<72x1156xbf16, #tpu.memory_space<vmem>>, vector<8x1156xbf16>,
    %c0_14 = arith.constant 0 : index
    %c0_15 = arith.constant 0 : index
    %c68 = arith.constant 68 : index
    %13 = vector.load %arg1[%c0_14, %c0_15, %c68] : memref<1x8x1292xbf16, #tpu.memory_space<vmem>>, vector<1x8x1156xbf16>
    %14 = vector.shape_cast %13 : vector<1x8x1156xbf16> to vector<8x1156xbf16>
    %c32 = arith.constant 32 : index
    %c0_16 = arith.constant 0 : index
    %15 = vector.load %arg6[%c32, %c0_16] : memref<72x1156xbf16, #tpu.memory_space<vmem>>, vector<8x1156xbf16>
    tpu.vector_store %arg6[%c32, %c0_16], %14 {strides = array<i32>} : memref<72x1156xbf16, #tpu.memory_space<vmem>>, vector<8x1156xbf16>,
    %c0_17 = arith.constant 0 : index
    %c0_18 = arith.constant 0 : index
    %c69 = arith.constant 69 : index
    %16 = vector.load %arg1[%c0_17, %c0_18, %c69] : memref<1x8x1292xbf16, #tpu.memory_space<vmem>>, vector<1x8x1156xbf16>
    %17 = vector.shape_cast %16 : vector<1x8x1156xbf16> to vector<8x1156xbf16>
    %c40 = arith.constant 40 : index
    %c0_19 = arith.constant 0 : index
    %18 = vector.load %arg6[%c40, %c0_19] : memref<72x1156xbf16, #tpu.memory_space<vmem>>, vector<8x1156xbf16>
    tpu.vector_store %arg6[%c40, %c0_19], %17 {strides = array<i32>} : memref<72x1156xbf16, #tpu.memory_space<vmem>>, vector<8x1156xbf16>,
    %c0_20 = arith.constant 0 : index
    %c0_21 = arith.constant 0 : index
    %c101 = arith.constant 101 : index
    %19 = vector.load %arg1[%c0_20, %c0_21, %c101] : memref<1x8x1292xbf16, #tpu.memory_space<vmem>>, vector<1x8x1156xbf16>
    %20 = vector.shape_cast %19 : vector<1x8x1156xbf16> to vector<8x1156xbf16>
    %c48 = arith.constant 48 : index
    %c0_22 = arith.constant 0 : index
    %21 = vector.load %arg6[%c48, %c0_22] : memref<72x1156xbf16, #tpu.memory_space<vmem>>, vector<8x1156xbf16>
    tpu.vector_store %arg6[%c48, %c0_22], %20 {strides = array<i32>} : memref<72x1156xbf16, #tpu.memory_space<vmem>>, vector<8x1156xbf16>,
    %c0_23 = arith.constant 0 : index
    %c0_24 = arith.constant 0 : index
    %c102 = arith.constant 102 : index
    %22 = vector.load %arg1[%c0_23, %c0_24, %c102] : memref<1x8x1292xbf16, #tpu.memory_space<vmem>>, vector<1x8x1156xbf16>
    %23 = vector.shape_cast %22 : vector<1x8x1156xbf16> to vector<8x1156xbf16>
    %c56 = arith.constant 56 : index
    %c0_25 = arith.constant 0 : index
    %24 = vector.load %arg6[%c56, %c0_25] : memref<72x1156xbf16, #tpu.memory_space<vmem>>, vector<8x1156xbf16>
    tpu.vector_store %arg6[%c56, %c0_25], %23 {strides = array<i32>} : memref<72x1156xbf16, #tpu.memory_space<vmem>>, vector<8x1156xbf16>,
    %c0_26 = arith.constant 0 : index
    %c0_27 = arith.constant 0 : index
    %c103 = arith.constant 103 : index
    %25 = vector.load %arg1[%c0_26, %c0_27, %c103] : memref<1x8x1292xbf16, #tpu.memory_space<vmem>>, vector<1x8x1156xbf16>
    %26 = vector.shape_cast %25 : vector<1x8x1156xbf16> to vector<8x1156xbf16>
    %c64 = arith.constant 64 : index
    %c0_28 = arith.constant 0 : index
    %27 = vector.load %arg6[%c64, %c0_28] : memref<72x1156xbf16, #tpu.memory_space<vmem>>, vector<8x1156xbf16>
    tpu.vector_store %arg6[%c64, %c0_28], %26 {strides = array<i32>} : memref<72x1156xbf16, #tpu.memory_space<vmem>>, vector<8x1156xbf16>,
    %c0_29 = arith.constant 0 : index
    %c0_30 = arith.constant 0 : index
    %28 = vector.load %arg2[%c0_29, %c0_30] : memref<8x72xbf16, #tpu.memory_space<vmem>>, vector<8x72xbf16>
    %c0_31 = arith.constant 0 : index
    %c0_32 = arith.constant 0 : index
    %29 = vector.load %arg6[%c0_31, %c0_32] : memref<72x1156xbf16, #tpu.memory_space<vmem>>, vector<72x1156xbf16>
    %cst = arith.constant dense<0.000000e+00> : vector<8x1156xf32>
    %30 = tpu.matmul %28, %29, %cst {dimension_numbers = #tpu.dot_dimension_numbers<[1], [0], [0], [1], [0, 0, 1, 1], [], []>} : vector<8x72xbf16>, vector<72x1156xbf16>, vector<8x1156xf32> -> vector<8x1156xf32>
    %31 = vector.broadcast %0 : vector<1x1156xf32> to vector<8x1156xf32>
    %32 = arith.mulf %30, %31 : vector<8x1156xf32>
    %cst_33 = arith.constant dense<0.000000e+00> : vector<8xf32>
    %33 = vector.multi_reduction <add>, %32, %cst_33 [1] : vector<8x1156xf32> to vector<8xf32>
    %34 = vector.shape_cast %33 : vector<8xf32> to vector<8x1xf32>
    %cst_34 = arith.constant 9.765625E-4 : f32
    %35 = vector.broadcast %cst_34 : f32 to vector<8x1xf32>
    %36 = arith.mulf %34, %35 : vector<8x1xf32>
    %37 = vector.broadcast %36 : vector<8x1xf32> to vector<8x1156xf32>
    %38 = arith.subf %30, %37 : vector<8x1156xf32>
    %39 = vector.broadcast %0 : vector<1x1156xf32> to vector<8x1156xf32>
    %40 = arith.mulf %38, %39 : vector<8x1156xf32>
    %41 = arith.mulf %40, %40 : vector<8x1156xf32>
    %cst_35 = arith.constant dense<0.000000e+00> : vector<8xf32>
    %42 = vector.multi_reduction <add>, %41, %cst_35 [1] : vector<8x1156xf32> to vector<8xf32>
    %43 = vector.shape_cast %42 : vector<8xf32> to vector<8x1xf32>
    %cst_36 = arith.constant 9.765625E-4 : f32
    %44 = vector.broadcast %cst_36 : f32 to vector<8x1xf32>
    %45 = arith.mulf %43, %44 : vector<8x1xf32>
    %cst_37 = arith.constant 9.99999974E-6 : f32
    %46 = vector.broadcast %cst_37 : f32 to vector<8x1xf32>
    %47 = arith.addf %45, %46 : vector<8x1xf32>
    %48 = math.rsqrt %47 : vector<8x1xf32>
    %49 = vector.broadcast %48 : vector<8x1xf32> to vector<8x1156xf32>
    %50 = arith.mulf %40, %49 : vector<8x1156xf32>
    %cst_38 = arith.constant 0.000000e+00 : f32
    %51 = vector.broadcast %cst_38 : f32 to vector<8x1156xf32>
    %52 = arith.maximumf %50, %51 : vector<8x1156xf32>
    %cst_39 = arith.constant 0.000000e+00 : bf16
    %53 = vector.broadcast %cst_39 : bf16 to vector<8x128xbf16>
    %c0_40 = arith.constant 0 : index
    %c0_41 = arith.constant 0 : index
    %54 = vector.load %arg7[%c0_40, %c0_41] : memref<8x1408xbf16, #tpu.memory_space<vmem>>, vector<8x128xbf16>
    tpu.vector_store %arg7[%c0_40, %c0_41], %53 {strides = array<i32>} : memref<8x1408xbf16, #tpu.memory_space<vmem>>, vector<8x128xbf16>,
    %cst_42 = arith.constant 0.000000e+00 : bf16
    %55 = vector.broadcast %cst_42 : bf16 to vector<8x124xbf16>
    %c0_43 = arith.constant 0 : index
    %c1284 = arith.constant 1284 : index
    %56 = vector.load %arg7[%c0_43, %c1284] : memref<8x1408xbf16, #tpu.memory_space<vmem>>, vector<8x124xbf16>
    tpu.vector_store %arg7[%c0_43, %c1284], %55 {strides = array<i32>} : memref<8x1408xbf16, #tpu.memory_space<vmem>>, vector<8x124xbf16>,
    %57 = arith.truncf %52 : vector<8x1156xf32> to vector<8x1156xbf16>
    %c0_44 = arith.constant 0 : index
    %c128 = arith.constant 128 : index
    %58 = vector.load %arg7[%c0_44, %c128] : memref<8x1408xbf16, #tpu.memory_space<vmem>>, vector<8x1156xbf16>
    tpu.vector_store %arg7[%c0_44, %c128], %57 {strides = array<i32>} : memref<8x1408xbf16, #tpu.memory_space<vmem>>, vector<8x1156xbf16>,
    %c0_45 = arith.constant 0 : index
    %c93 = arith.constant 93 : index
    %59 = vector.load %arg7[%c0_45, %c93] : memref<8x1408xbf16, #tpu.memory_space<vmem>>, vector<8x1156xbf16>
    %c0_46 = arith.constant 0 : index
    %c0_47 = arith.constant 0 : index
    %60 = vector.load %arg6[%c0_46, %c0_47] : memref<72x1156xbf16, #tpu.memory_space<vmem>>, vector<8x1156xbf16>
    tpu.vector_store %arg6[%c0_46, %c0_47], %59 {strides = array<i32>} : memref<72x1156xbf16, #tpu.memory_space<vmem>>, vector<8x1156xbf16>,
    %c0_48 = arith.constant 0 : index
    %c94 = arith.constant 94 : index
    %61 = vector.load %arg7[%c0_48, %c94] : memref<8x1408xbf16, #tpu.memory_space<vmem>>, vector<8x1156xbf16>
    %c8_49 = arith.constant 8 : index
    %c0_50 = arith.constant 0 : index
    %62 = vector.load %arg6[%c8_49, %c0_50] : memref<72x1156xbf16, #tpu.memory_space<vmem>>, vector<8x1156xbf16>
    tpu.vector_store %arg6[%c8_49, %c0_50], %61 {strides = array<i32>} : memref<72x1156xbf16, #tpu.memory_space<vmem>>, vector<8x1156xbf16>,
    %c0_51 = arith.constant 0 : index
    %c95 = arith.constant 95 : index
    %63 = vector.load %arg7[%c0_51, %c95] : memref<8x1408xbf16, #tpu.memory_space<vmem>>, vector<8x1156xbf16>
    %c16_52 = arith.constant 16 : index
    %c0_53 = arith.constant 0 : index
    %64 = vector.load %arg6[%c16_52, %c0_53] : memref<72x1156xbf16, #tpu.memory_space<vmem>>, vector<8x1156xbf16>
    tpu.vector_store %arg6[%c16_52, %c0_53], %63 {strides = array<i32>} : memref<72x1156xbf16, #tpu.memory_space<vmem>>, vector<8x1156xbf16>,
    %c0_54 = arith.constant 0 : index
    %c127 = arith.constant 127 : index
    %65 = vector.load %arg7[%c0_54, %c127] : memref<8x1408xbf16, #tpu.memory_space<vmem>>, vector<8x1156xbf16>
    %c24_55 = arith.constant 24 : index
    %c0_56 = arith.constant 0 : index
    %66 = vector.load %arg6[%c24_55, %c0_56] : memref<72x1156xbf16, #tpu.memory_space<vmem>>, vector<8x1156xbf16>
    tpu.vector_store %arg6[%c24_55, %c0_56], %65 {strides = array<i32>} : memref<72x1156xbf16, #tpu.memory_space<vmem>>, vector<8x1156xbf16>,
    %c0_57 = arith.constant 0 : index
    %c128_58 = arith.constant 128 : index
    %67 = vector.load %arg7[%c0_57, %c128_58] : memref<8x1408xbf16, #tpu.memory_space<vmem>>, vector<8x1156xbf16>
    %c32_59 = arith.constant 32 : index
    %c0_60 = arith.constant 0 : index
    %68 = vector.load %arg6[%c32_59, %c0_60] : memref<72x1156xbf16, #tpu.memory_space<vmem>>, vector<8x1156xbf16>
    tpu.vector_store %arg6[%c32_59, %c0_60], %67 {strides = array<i32>} : memref<72x1156xbf16, #tpu.memory_space<vmem>>, vector<8x1156xbf16>,
    %c0_61 = arith.constant 0 : index
    %c129 = arith.constant 129 : index
    %69 = vector.load %arg7[%c0_61, %c129] : memref<8x1408xbf16, #tpu.memory_space<vmem>>, vector<8x1156xbf16>
    %c40_62 = arith.constant 40 : index
    %c0_63 = arith.constant 0 : index
    %70 = vector.load %arg6[%c40_62, %c0_63] : memref<72x1156xbf16, #tpu.memory_space<vmem>>, vector<8x1156xbf16>
    tpu.vector_store %arg6[%c40_62, %c0_63], %69 {strides = array<i32>} : memref<72x1156xbf16, #tpu.memory_space<vmem>>, vector<8x1156xbf16>,
    %c0_64 = arith.constant 0 : index
    %c161 = arith.constant 161 : index
    %71 = vector.load %arg7[%c0_64, %c161] : memref<8x1408xbf16, #tpu.memory_space<vmem>>, vector<8x1156xbf16>
    %c48_65 = arith.constant 48 : index
    %c0_66 = arith.constant 0 : index
    %72 = vector.load %arg6[%c48_65, %c0_66] : memref<72x1156xbf16, #tpu.memory_space<vmem>>, vector<8x1156xbf16>
    tpu.vector_store %arg6[%c48_65, %c0_66], %71 {strides = array<i32>} : memref<72x1156xbf16, #tpu.memory_space<vmem>>, vector<8x1156xbf16>,
    %c0_67 = arith.constant 0 : index
    %c162 = arith.constant 162 : index
    %73 = vector.load %arg7[%c0_67, %c162] : memref<8x1408xbf16, #tpu.memory_space<vmem>>, vector<8x1156xbf16>
    %c56_68 = arith.constant 56 : index
    %c0_69 = arith.constant 0 : index
    %74 = vector.load %arg6[%c56_68, %c0_69] : memref<72x1156xbf16, #tpu.memory_space<vmem>>, vector<8x1156xbf16>
    tpu.vector_store %arg6[%c56_68, %c0_69], %73 {strides = array<i32>} : memref<72x1156xbf16, #tpu.memory_space<vmem>>, vector<8x1156xbf16>,
    %c0_70 = arith.constant 0 : index
    %c163 = arith.constant 163 : index
    %75 = vector.load %arg7[%c0_70, %c163] : memref<8x1408xbf16, #tpu.memory_space<vmem>>, vector<8x1156xbf16>
    %c64_71 = arith.constant 64 : index
    %c0_72 = arith.constant 0 : index
    %76 = vector.load %arg6[%c64_71, %c0_72] : memref<72x1156xbf16, #tpu.memory_space<vmem>>, vector<8x1156xbf16>
    tpu.vector_store %arg6[%c64_71, %c0_72], %75 {strides = array<i32>} : memref<72x1156xbf16, #tpu.memory_space<vmem>>, vector<8x1156xbf16>,
    %c0_73 = arith.constant 0 : index
    %c0_74 = arith.constant 0 : index
    %77 = vector.load %arg3[%c0_73, %c0_74] : memref<8x72xbf16, #tpu.memory_space<vmem>>, vector<8x72xbf16>
    %c0_75 = arith.constant 0 : index
    %c0_76 = arith.constant 0 : index
    %78 = vector.load %arg6[%c0_75, %c0_76] : memref<72x1156xbf16, #tpu.memory_space<vmem>>, vector<72x1156xbf16>
    %cst_77 = arith.constant dense<0.000000e+00> : vector<8x1156xf32>
    %79 = tpu.matmul %77, %78, %cst_77 {dimension_numbers = #tpu.dot_dimension_numbers<[1], [0], [0], [1], [0, 0, 1, 1], [], []>} : vector<8x72xbf16>, vector<72x1156xbf16>, vector<8x1156xf32> -> vector<8x1156xf32>
    %80 = vector.broadcast %0 : vector<1x1156xf32> to vector<8x1156xf32>
    %81 = arith.mulf %79, %80 : vector<8x1156xf32>
    %cst_78 = arith.constant dense<0.000000e+00> : vector<8xf32>
    %82 = vector.multi_reduction <add>, %81, %cst_78 [1] : vector<8x1156xf32> to vector<8xf32>
    %83 = vector.shape_cast %82 : vector<8xf32> to vector<8x1xf32>
    %cst_79 = arith.constant 9.765625E-4 : f32
    %84 = vector.broadcast %cst_79 : f32 to vector<8x1xf32>
    %85 = arith.mulf %83, %84 : vector<8x1xf32>
    %86 = vector.broadcast %85 : vector<8x1xf32> to vector<8x1156xf32>
    %87 = arith.subf %79, %86 : vector<8x1156xf32>
    %88 = vector.broadcast %0 : vector<1x1156xf32> to vector<8x1156xf32>
    %89 = arith.mulf %87, %88 : vector<8x1156xf32>
    %90 = arith.mulf %89, %89 : vector<8x1156xf32>
    %cst_80 = arith.constant dense<0.000000e+00> : vector<8xf32>
    %91 = vector.multi_reduction <add>, %90, %cst_80 [1] : vector<8x1156xf32> to vector<8xf32>
    %92 = vector.shape_cast %91 : vector<8xf32> to vector<8x1xf32>
    %cst_81 = arith.constant 9.765625E-4 : f32
    %93 = vector.broadcast %cst_81 : f32 to vector<8x1xf32>
    %94 = arith.mulf %92, %93 : vector<8x1xf32>
    %cst_82 = arith.constant 9.99999974E-6 : f32
    %95 = vector.broadcast %cst_82 : f32 to vector<8x1xf32>
    %96 = arith.addf %94, %95 : vector<8x1xf32>
    %97 = math.rsqrt %96 : vector<8x1xf32>
    %98 = vector.broadcast %97 : vector<8x1xf32> to vector<8x1156xf32>
    %99 = arith.mulf %89, %98 : vector<8x1156xf32>
    %cst_83 = arith.constant 0.000000e+00 : f32
    %100 = vector.broadcast %cst_83 : f32 to vector<8x1156xf32>
    %101 = arith.maximumf %99, %100 : vector<8x1156xf32>
    %102 = arith.truncf %101 : vector<8x1156xf32> to vector<8x1156xbf16>
    %c0_84 = arith.constant 0 : index
    %c0_85 = arith.constant 0 : index
    %c0_86 = arith.constant 0 : index
    %103 = vector.load %arg5[%c0_84, %c0_85, %c0_86] : memref<1x8x1156xbf16, #tpu.memory_space<vmem>>, vector<1x8x1156xbf16>
    %104 = vector.shape_cast %103 : vector<1x8x1156xbf16> to vector<8x1156xbf16>
    %105 = vector.shape_cast %102 : vector<8x1156xbf16> to vector<1x8x1156xbf16>
    tpu.vector_store %arg5[%c0_84, %c0_85, %c0_86], %105 {strides = array<i32>} : memref<1x8x1156xbf16, #tpu.memory_space<vmem>>, vector<1x8x1156xbf16>,
    return
  }
  func.func @transform_0(%arg0: i32) -> (i32, i32, i32) {
    %c0_i32 = arith.constant 0 : i32
    %c0_i32_0 = arith.constant 0 : i32
    %c0_i32_1 = arith.constant 0 : i32
    return %arg0, %c0_i32, %c0_i32_0 : i32, i32, i32
  }
  func.func @transform_1(%arg0: i32) -> (i32, i32) {
    %c0_i32 = arith.constant 0 : i32
    %c0_i32_0 = arith.constant 0 : i32
    %c0_i32_1 = arith.constant 0 : i32
    return %c0_i32, %c0_i32_0 : i32, i32
  }
  func.func @transform_2(%arg0: i32) -> (i32, i32) {
    %c0_i32 = arith.constant 0 : i32
    %c0_i32_0 = arith.constant 0 : i32
    %c0_i32_1 = arith.constant 0 : i32
    return %c0_i32, %c0_i32_0 : i32, i32
  }
  func.func @transform_3(%arg0: i32) -> (i32, i32) {
    %c0_i32 = arith.constant 0 : i32
    %c0_i32_0 = arith.constant 0 : i32
    %c0_i32_1 = arith.constant 0 : i32
    return %c0_i32, %c0_i32_0 : i32, i32
  }
  func.func @transform_4(%arg0: i32) -> (i32, i32, i32) {
    %c0_i32 = arith.constant 0 : i32
    %c0_i32_0 = arith.constant 0 : i32
    %c0_i32_1 = arith.constant 0 : i32
    return %arg0, %c0_i32, %c0_i32_0 : i32, i32, i32
  }
}

module attributes {stable_mosaic.version = 11 : i64} {
  func.func @kernel(%arg0: i32, %arg1: memref<1x8x396xbf16, #tpu.memory_space<vmem>>, %arg2: memref<16x72xbf16, #tpu.memory_space<vmem>>, %arg3: memref<16x144xbf16, #tpu.memory_space<vmem>>, %arg4: memref<1x324xf32, #tpu.memory_space<vmem>>, %arg5: memref<1x16x324xbf16, #tpu.memory_space<vmem>>, %arg6: memref<144x324xbf16, #tpu.memory_space<vmem>>, %arg7: memref<16x512xbf16, #tpu.memory_space<vmem>>) attributes {dimension_semantics = [#tpu.dimension_semantics<parallel>], iteration_bounds = array<i64: 2>, scalar_prefetch = 0 : i64, scratch_operands = 2 : i64, tpu.core_type = #tpu.core_type<tc>, window_params = [{transform_indices = @transform_0, window_bounds = array<i64: 1, 8, 396>}, {pipeline_mode = #tpu.pipeline_mode<synchronous>, transform_indices = @transform_1, window_bounds = array<i64: 16, 72>}, {pipeline_mode = #tpu.pipeline_mode<synchronous>, transform_indices = @transform_2, window_bounds = array<i64: 16, 144>}, {pipeline_mode = #tpu.pipeline_mode<synchronous>, transform_indices = @transform_3, window_bounds = array<i64: 1, 324>}, {transform_indices = @transform_4, window_bounds = array<i64: 1, 16, 324>}]} {
    %c0 = arith.constant 0 : index
    %c0_0 = arith.constant 0 : index
    %0 = vector.load %arg4[%c0, %c0_0] : memref<1x324xf32, #tpu.memory_space<vmem>>, vector<1x324xf32>
    %c0_1 = arith.constant 0 : index
    %c0_2 = arith.constant 0 : index
    %c17 = arith.constant 17 : index
    %1 = vector.load %arg1[%c0_1, %c0_2, %c17] : memref<1x8x396xbf16, #tpu.memory_space<vmem>>, vector<1x8x324xbf16>
    %2 = vector.shape_cast %1 : vector<1x8x324xbf16> to vector<8x324xbf16>
    %c0_3 = arith.constant 0 : index
    %c0_4 = arith.constant 0 : index
    %3 = vector.load %arg6[%c0_3, %c0_4] : memref<144x324xbf16, #tpu.memory_space<vmem>>, vector<8x324xbf16>
    tpu.vector_store %arg6[%c0_3, %c0_4], %2 {strides = array<i32>} : memref<144x324xbf16, #tpu.memory_space<vmem>>, vector<8x324xbf16>,
    %c0_5 = arith.constant 0 : index
    %c0_6 = arith.constant 0 : index
    %c18 = arith.constant 18 : index
    %4 = vector.load %arg1[%c0_5, %c0_6, %c18] : memref<1x8x396xbf16, #tpu.memory_space<vmem>>, vector<1x8x324xbf16>
    %5 = vector.shape_cast %4 : vector<1x8x324xbf16> to vector<8x324xbf16>
    %c8 = arith.constant 8 : index
    %c0_7 = arith.constant 0 : index
    %6 = vector.load %arg6[%c8, %c0_7] : memref<144x324xbf16, #tpu.memory_space<vmem>>, vector<8x324xbf16>
    tpu.vector_store %arg6[%c8, %c0_7], %5 {strides = array<i32>} : memref<144x324xbf16, #tpu.memory_space<vmem>>, vector<8x324xbf16>,
    %c0_8 = arith.constant 0 : index
    %c0_9 = arith.constant 0 : index
    %c19 = arith.constant 19 : index
    %7 = vector.load %arg1[%c0_8, %c0_9, %c19] : memref<1x8x396xbf16, #tpu.memory_space<vmem>>, vector<1x8x324xbf16>
    %8 = vector.shape_cast %7 : vector<1x8x324xbf16> to vector<8x324xbf16>
    %c16 = arith.constant 16 : index
    %c0_10 = arith.constant 0 : index
    %9 = vector.load %arg6[%c16, %c0_10] : memref<144x324xbf16, #tpu.memory_space<vmem>>, vector<8x324xbf16>
    tpu.vector_store %arg6[%c16, %c0_10], %8 {strides = array<i32>} : memref<144x324xbf16, #tpu.memory_space<vmem>>, vector<8x324xbf16>,
    %c0_11 = arith.constant 0 : index
    %c0_12 = arith.constant 0 : index
    %c35 = arith.constant 35 : index
    %10 = vector.load %arg1[%c0_11, %c0_12, %c35] : memref<1x8x396xbf16, #tpu.memory_space<vmem>>, vector<1x8x324xbf16>
    %11 = vector.shape_cast %10 : vector<1x8x324xbf16> to vector<8x324xbf16>
    %c24 = arith.constant 24 : index
    %c0_13 = arith.constant 0 : index
    %12 = vector.load %arg6[%c24, %c0_13] : memref<144x324xbf16, #tpu.memory_space<vmem>>, vector<8x324xbf16>
    tpu.vector_store %arg6[%c24, %c0_13], %11 {strides = array<i32>} : memref<144x324xbf16, #tpu.memory_space<vmem>>, vector<8x324xbf16>,
    %c0_14 = arith.constant 0 : index
    %c0_15 = arith.constant 0 : index
    %c36 = arith.constant 36 : index
    %13 = vector.load %arg1[%c0_14, %c0_15, %c36] : memref<1x8x396xbf16, #tpu.memory_space<vmem>>, vector<1x8x324xbf16>
    %14 = vector.shape_cast %13 : vector<1x8x324xbf16> to vector<8x324xbf16>
    %c32 = arith.constant 32 : index
    %c0_16 = arith.constant 0 : index
    %15 = vector.load %arg6[%c32, %c0_16] : memref<144x324xbf16, #tpu.memory_space<vmem>>, vector<8x324xbf16>
    tpu.vector_store %arg6[%c32, %c0_16], %14 {strides = array<i32>} : memref<144x324xbf16, #tpu.memory_space<vmem>>, vector<8x324xbf16>,
    %c0_17 = arith.constant 0 : index
    %c0_18 = arith.constant 0 : index
    %c37 = arith.constant 37 : index
    %16 = vector.load %arg1[%c0_17, %c0_18, %c37] : memref<1x8x396xbf16, #tpu.memory_space<vmem>>, vector<1x8x324xbf16>
    %17 = vector.shape_cast %16 : vector<1x8x324xbf16> to vector<8x324xbf16>
    %c40 = arith.constant 40 : index
    %c0_19 = arith.constant 0 : index
    %18 = vector.load %arg6[%c40, %c0_19] : memref<144x324xbf16, #tpu.memory_space<vmem>>, vector<8x324xbf16>
    tpu.vector_store %arg6[%c40, %c0_19], %17 {strides = array<i32>} : memref<144x324xbf16, #tpu.memory_space<vmem>>, vector<8x324xbf16>,
    %c0_20 = arith.constant 0 : index
    %c0_21 = arith.constant 0 : index
    %c53 = arith.constant 53 : index
    %19 = vector.load %arg1[%c0_20, %c0_21, %c53] : memref<1x8x396xbf16, #tpu.memory_space<vmem>>, vector<1x8x324xbf16>
    %20 = vector.shape_cast %19 : vector<1x8x324xbf16> to vector<8x324xbf16>
    %c48 = arith.constant 48 : index
    %c0_22 = arith.constant 0 : index
    %21 = vector.load %arg6[%c48, %c0_22] : memref<144x324xbf16, #tpu.memory_space<vmem>>, vector<8x324xbf16>
    tpu.vector_store %arg6[%c48, %c0_22], %20 {strides = array<i32>} : memref<144x324xbf16, #tpu.memory_space<vmem>>, vector<8x324xbf16>,
    %c0_23 = arith.constant 0 : index
    %c0_24 = arith.constant 0 : index
    %c54 = arith.constant 54 : index
    %22 = vector.load %arg1[%c0_23, %c0_24, %c54] : memref<1x8x396xbf16, #tpu.memory_space<vmem>>, vector<1x8x324xbf16>
    %23 = vector.shape_cast %22 : vector<1x8x324xbf16> to vector<8x324xbf16>
    %c56 = arith.constant 56 : index
    %c0_25 = arith.constant 0 : index
    %24 = vector.load %arg6[%c56, %c0_25] : memref<144x324xbf16, #tpu.memory_space<vmem>>, vector<8x324xbf16>
    tpu.vector_store %arg6[%c56, %c0_25], %23 {strides = array<i32>} : memref<144x324xbf16, #tpu.memory_space<vmem>>, vector<8x324xbf16>,
    %c0_26 = arith.constant 0 : index
    %c0_27 = arith.constant 0 : index
    %c55 = arith.constant 55 : index
    %25 = vector.load %arg1[%c0_26, %c0_27, %c55] : memref<1x8x396xbf16, #tpu.memory_space<vmem>>, vector<1x8x324xbf16>
    %26 = vector.shape_cast %25 : vector<1x8x324xbf16> to vector<8x324xbf16>
    %c64 = arith.constant 64 : index
    %c0_28 = arith.constant 0 : index
    %27 = vector.load %arg6[%c64, %c0_28] : memref<144x324xbf16, #tpu.memory_space<vmem>>, vector<8x324xbf16>
    tpu.vector_store %arg6[%c64, %c0_28], %26 {strides = array<i32>} : memref<144x324xbf16, #tpu.memory_space<vmem>>, vector<8x324xbf16>,
    %c0_29 = arith.constant 0 : index
    %c0_30 = arith.constant 0 : index
    %28 = vector.load %arg2[%c0_29, %c0_30] : memref<16x72xbf16, #tpu.memory_space<vmem>>, vector<16x72xbf16>
    %c0_31 = arith.constant 0 : index
    %c0_32 = arith.constant 0 : index
    %29 = vector.load %arg6[%c0_31, %c0_32] : memref<144x324xbf16, #tpu.memory_space<vmem>>, vector<72x324xbf16>
    %cst = arith.constant dense<0.000000e+00> : vector<16x324xf32>
    %30 = tpu.matmul %28, %29, %cst {dimension_numbers = #tpu.dot_dimension_numbers<[1], [0], [0], [1], [0, 0, 1, 1], [], []>} : vector<16x72xbf16>, vector<72x324xbf16>, vector<16x324xf32> -> vector<16x324xf32>
    %31 = vector.broadcast %0 : vector<1x324xf32> to vector<16x324xf32>
    %32 = arith.mulf %30, %31 : vector<16x324xf32>
    %cst_33 = arith.constant dense<0.000000e+00> : vector<16xf32>
    %33 = vector.multi_reduction <add>, %32, %cst_33 [1] : vector<16x324xf32> to vector<16xf32>
    %34 = vector.shape_cast %33 : vector<16xf32> to vector<16x1xf32>
    %cst_34 = arith.constant 3.906250e-03 : f32
    %35 = vector.broadcast %cst_34 : f32 to vector<16x1xf32>
    %36 = arith.mulf %34, %35 : vector<16x1xf32>
    %37 = vector.broadcast %36 : vector<16x1xf32> to vector<16x324xf32>
    %38 = arith.subf %30, %37 : vector<16x324xf32>
    %39 = vector.broadcast %0 : vector<1x324xf32> to vector<16x324xf32>
    %40 = arith.mulf %38, %39 : vector<16x324xf32>
    %41 = arith.mulf %40, %40 : vector<16x324xf32>
    %cst_35 = arith.constant dense<0.000000e+00> : vector<16xf32>
    %42 = vector.multi_reduction <add>, %41, %cst_35 [1] : vector<16x324xf32> to vector<16xf32>
    %43 = vector.shape_cast %42 : vector<16xf32> to vector<16x1xf32>
    %cst_36 = arith.constant 3.906250e-03 : f32
    %44 = vector.broadcast %cst_36 : f32 to vector<16x1xf32>
    %45 = arith.mulf %43, %44 : vector<16x1xf32>
    %cst_37 = arith.constant 9.99999974E-6 : f32
    %46 = vector.broadcast %cst_37 : f32 to vector<16x1xf32>
    %47 = arith.addf %45, %46 : vector<16x1xf32>
    %48 = math.rsqrt %47 : vector<16x1xf32>
    %49 = vector.broadcast %48 : vector<16x1xf32> to vector<16x324xf32>
    %50 = arith.mulf %40, %49 : vector<16x324xf32>
    %cst_38 = arith.constant 0.000000e+00 : f32
    %51 = vector.broadcast %cst_38 : f32 to vector<16x324xf32>
    %52 = arith.maximumf %50, %51 : vector<16x324xf32>
    %cst_39 = arith.constant 0.000000e+00 : bf16
    %53 = vector.broadcast %cst_39 : bf16 to vector<16x128xbf16>
    %c0_40 = arith.constant 0 : index
    %c0_41 = arith.constant 0 : index
    %54 = vector.load %arg7[%c0_40, %c0_41] : memref<16x512xbf16, #tpu.memory_space<vmem>>, vector<16x128xbf16>
    tpu.vector_store %arg7[%c0_40, %c0_41], %53 {strides = array<i32>} : memref<16x512xbf16, #tpu.memory_space<vmem>>, vector<16x128xbf16>,
    %cst_42 = arith.constant 0.000000e+00 : bf16
    %55 = vector.broadcast %cst_42 : bf16 to vector<16x60xbf16>
    %c0_43 = arith.constant 0 : index
    %c452 = arith.constant 452 : index
    %56 = vector.load %arg7[%c0_43, %c452] : memref<16x512xbf16, #tpu.memory_space<vmem>>, vector<16x60xbf16>
    tpu.vector_store %arg7[%c0_43, %c452], %55 {strides = array<i32>} : memref<16x512xbf16, #tpu.memory_space<vmem>>, vector<16x60xbf16>,
    %57 = arith.truncf %52 : vector<16x324xf32> to vector<16x324xbf16>
    %c0_44 = arith.constant 0 : index
    %c128 = arith.constant 128 : index
    %58 = vector.load %arg7[%c0_44, %c128] : memref<16x512xbf16, #tpu.memory_space<vmem>>, vector<16x324xbf16>
    tpu.vector_store %arg7[%c0_44, %c128], %57 {strides = array<i32>} : memref<16x512xbf16, #tpu.memory_space<vmem>>, vector<16x324xbf16>,
    %c0_45 = arith.constant 0 : index
    %c109 = arith.constant 109 : index
    %59 = vector.load %arg7[%c0_45, %c109] : memref<16x512xbf16, #tpu.memory_space<vmem>>, vector<16x324xbf16>
    %c0_46 = arith.constant 0 : index
    %c0_47 = arith.constant 0 : index
    %60 = vector.load %arg6[%c0_46, %c0_47] : memref<144x324xbf16, #tpu.memory_space<vmem>>, vector<16x324xbf16>
    tpu.vector_store %arg6[%c0_46, %c0_47], %59 {strides = array<i32>} : memref<144x324xbf16, #tpu.memory_space<vmem>>, vector<16x324xbf16>,
    %c0_48 = arith.constant 0 : index
    %c110 = arith.constant 110 : index
    %61 = vector.load %arg7[%c0_48, %c110] : memref<16x512xbf16, #tpu.memory_space<vmem>>, vector<16x324xbf16>
    %c16_49 = arith.constant 16 : index
    %c0_50 = arith.constant 0 : index
    %62 = vector.load %arg6[%c16_49, %c0_50] : memref<144x324xbf16, #tpu.memory_space<vmem>>, vector<16x324xbf16>
    tpu.vector_store %arg6[%c16_49, %c0_50], %61 {strides = array<i32>} : memref<144x324xbf16, #tpu.memory_space<vmem>>, vector<16x324xbf16>,
    %c0_51 = arith.constant 0 : index
    %c111 = arith.constant 111 : index
    %63 = vector.load %arg7[%c0_51, %c111] : memref<16x512xbf16, #tpu.memory_space<vmem>>, vector<16x324xbf16>
    %c32_52 = arith.constant 32 : index
    %c0_53 = arith.constant 0 : index
    %64 = vector.load %arg6[%c32_52, %c0_53] : memref<144x324xbf16, #tpu.memory_space<vmem>>, vector<16x324xbf16>
    tpu.vector_store %arg6[%c32_52, %c0_53], %63 {strides = array<i32>} : memref<144x324xbf16, #tpu.memory_space<vmem>>, vector<16x324xbf16>,
    %c0_54 = arith.constant 0 : index
    %c127 = arith.constant 127 : index
    %65 = vector.load %arg7[%c0_54, %c127] : memref<16x512xbf16, #tpu.memory_space<vmem>>, vector<16x324xbf16>
    %c48_55 = arith.constant 48 : index
    %c0_56 = arith.constant 0 : index
    %66 = vector.load %arg6[%c48_55, %c0_56] : memref<144x324xbf16, #tpu.memory_space<vmem>>, vector<16x324xbf16>
    tpu.vector_store %arg6[%c48_55, %c0_56], %65 {strides = array<i32>} : memref<144x324xbf16, #tpu.memory_space<vmem>>, vector<16x324xbf16>,
    %c0_57 = arith.constant 0 : index
    %c128_58 = arith.constant 128 : index
    %67 = vector.load %arg7[%c0_57, %c128_58] : memref<16x512xbf16, #tpu.memory_space<vmem>>, vector<16x324xbf16>
    %c64_59 = arith.constant 64 : index
    %c0_60 = arith.constant 0 : index
    %68 = vector.load %arg6[%c64_59, %c0_60] : memref<144x324xbf16, #tpu.memory_space<vmem>>, vector<16x324xbf16>
    tpu.vector_store %arg6[%c64_59, %c0_60], %67 {strides = array<i32>} : memref<144x324xbf16, #tpu.memory_space<vmem>>, vector<16x324xbf16>,
    %c0_61 = arith.constant 0 : index
    %c129 = arith.constant 129 : index
    %69 = vector.load %arg7[%c0_61, %c129] : memref<16x512xbf16, #tpu.memory_space<vmem>>, vector<16x324xbf16>
    %c80 = arith.constant 80 : index
    %c0_62 = arith.constant 0 : index
    %70 = vector.load %arg6[%c80, %c0_62] : memref<144x324xbf16, #tpu.memory_space<vmem>>, vector<16x324xbf16>
    tpu.vector_store %arg6[%c80, %c0_62], %69 {strides = array<i32>} : memref<144x324xbf16, #tpu.memory_space<vmem>>, vector<16x324xbf16>,
    %c0_63 = arith.constant 0 : index
    %c145 = arith.constant 145 : index
    %71 = vector.load %arg7[%c0_63, %c145] : memref<16x512xbf16, #tpu.memory_space<vmem>>, vector<16x324xbf16>
    %c96 = arith.constant 96 : index
    %c0_64 = arith.constant 0 : index
    %72 = vector.load %arg6[%c96, %c0_64] : memref<144x324xbf16, #tpu.memory_space<vmem>>, vector<16x324xbf16>
    tpu.vector_store %arg6[%c96, %c0_64], %71 {strides = array<i32>} : memref<144x324xbf16, #tpu.memory_space<vmem>>, vector<16x324xbf16>,
    %c0_65 = arith.constant 0 : index
    %c146 = arith.constant 146 : index
    %73 = vector.load %arg7[%c0_65, %c146] : memref<16x512xbf16, #tpu.memory_space<vmem>>, vector<16x324xbf16>
    %c112 = arith.constant 112 : index
    %c0_66 = arith.constant 0 : index
    %74 = vector.load %arg6[%c112, %c0_66] : memref<144x324xbf16, #tpu.memory_space<vmem>>, vector<16x324xbf16>
    tpu.vector_store %arg6[%c112, %c0_66], %73 {strides = array<i32>} : memref<144x324xbf16, #tpu.memory_space<vmem>>, vector<16x324xbf16>,
    %c0_67 = arith.constant 0 : index
    %c147 = arith.constant 147 : index
    %75 = vector.load %arg7[%c0_67, %c147] : memref<16x512xbf16, #tpu.memory_space<vmem>>, vector<16x324xbf16>
    %c128_68 = arith.constant 128 : index
    %c0_69 = arith.constant 0 : index
    %76 = vector.load %arg6[%c128_68, %c0_69] : memref<144x324xbf16, #tpu.memory_space<vmem>>, vector<16x324xbf16>
    tpu.vector_store %arg6[%c128_68, %c0_69], %75 {strides = array<i32>} : memref<144x324xbf16, #tpu.memory_space<vmem>>, vector<16x324xbf16>,
    %c0_70 = arith.constant 0 : index
    %c0_71 = arith.constant 0 : index
    %77 = vector.load %arg3[%c0_70, %c0_71] : memref<16x144xbf16, #tpu.memory_space<vmem>>, vector<16x144xbf16>
    %c0_72 = arith.constant 0 : index
    %c0_73 = arith.constant 0 : index
    %78 = vector.load %arg6[%c0_72, %c0_73] : memref<144x324xbf16, #tpu.memory_space<vmem>>, vector<144x324xbf16>
    %cst_74 = arith.constant dense<0.000000e+00> : vector<16x324xf32>
    %79 = tpu.matmul %77, %78, %cst_74 {dimension_numbers = #tpu.dot_dimension_numbers<[1], [0], [0], [1], [0, 0, 1, 1], [], []>} : vector<16x144xbf16>, vector<144x324xbf16>, vector<16x324xf32> -> vector<16x324xf32>
    %80 = vector.broadcast %0 : vector<1x324xf32> to vector<16x324xf32>
    %81 = arith.mulf %79, %80 : vector<16x324xf32>
    %cst_75 = arith.constant dense<0.000000e+00> : vector<16xf32>
    %82 = vector.multi_reduction <add>, %81, %cst_75 [1] : vector<16x324xf32> to vector<16xf32>
    %83 = vector.shape_cast %82 : vector<16xf32> to vector<16x1xf32>
    %cst_76 = arith.constant 3.906250e-03 : f32
    %84 = vector.broadcast %cst_76 : f32 to vector<16x1xf32>
    %85 = arith.mulf %83, %84 : vector<16x1xf32>
    %86 = vector.broadcast %85 : vector<16x1xf32> to vector<16x324xf32>
    %87 = arith.subf %79, %86 : vector<16x324xf32>
    %88 = vector.broadcast %0 : vector<1x324xf32> to vector<16x324xf32>
    %89 = arith.mulf %87, %88 : vector<16x324xf32>
    %90 = arith.mulf %89, %89 : vector<16x324xf32>
    %cst_77 = arith.constant dense<0.000000e+00> : vector<16xf32>
    %91 = vector.multi_reduction <add>, %90, %cst_77 [1] : vector<16x324xf32> to vector<16xf32>
    %92 = vector.shape_cast %91 : vector<16xf32> to vector<16x1xf32>
    %cst_78 = arith.constant 3.906250e-03 : f32
    %93 = vector.broadcast %cst_78 : f32 to vector<16x1xf32>
    %94 = arith.mulf %92, %93 : vector<16x1xf32>
    %cst_79 = arith.constant 9.99999974E-6 : f32
    %95 = vector.broadcast %cst_79 : f32 to vector<16x1xf32>
    %96 = arith.addf %94, %95 : vector<16x1xf32>
    %97 = math.rsqrt %96 : vector<16x1xf32>
    %98 = vector.broadcast %97 : vector<16x1xf32> to vector<16x324xf32>
    %99 = arith.mulf %89, %98 : vector<16x324xf32>
    %cst_80 = arith.constant 0.000000e+00 : f32
    %100 = vector.broadcast %cst_80 : f32 to vector<16x324xf32>
    %101 = arith.maximumf %99, %100 : vector<16x324xf32>
    %102 = arith.truncf %101 : vector<16x324xf32> to vector<16x324xbf16>
    %c0_81 = arith.constant 0 : index
    %c0_82 = arith.constant 0 : index
    %c0_83 = arith.constant 0 : index
    %103 = vector.load %arg5[%c0_81, %c0_82, %c0_83] : memref<1x16x324xbf16, #tpu.memory_space<vmem>>, vector<1x16x324xbf16>
    %104 = vector.shape_cast %103 : vector<1x16x324xbf16> to vector<16x324xbf16>
    %105 = vector.shape_cast %102 : vector<16x324xbf16> to vector<1x16x324xbf16>
    tpu.vector_store %arg5[%c0_81, %c0_82, %c0_83], %105 {strides = array<i32>} : memref<1x16x324xbf16, #tpu.memory_space<vmem>>, vector<1x16x324xbf16>,
    return
  }
  func.func @transform_0(%arg0: i32) -> (i32, i32, i32) {
    %c0_i32 = arith.constant 0 : i32
    %c0_i32_0 = arith.constant 0 : i32
    %c0_i32_1 = arith.constant 0 : i32
    return %arg0, %c0_i32, %c0_i32_0 : i32, i32, i32
  }
  func.func @transform_1(%arg0: i32) -> (i32, i32) {
    %c0_i32 = arith.constant 0 : i32
    %c0_i32_0 = arith.constant 0 : i32
    %c0_i32_1 = arith.constant 0 : i32
    return %c0_i32, %c0_i32_0 : i32, i32
  }
  func.func @transform_2(%arg0: i32) -> (i32, i32) {
    %c0_i32 = arith.constant 0 : i32
    %c0_i32_0 = arith.constant 0 : i32
    %c0_i32_1 = arith.constant 0 : i32
    return %c0_i32, %c0_i32_0 : i32, i32
  }
  func.func @transform_3(%arg0: i32) -> (i32, i32) {
    %c0_i32 = arith.constant 0 : i32
    %c0_i32_0 = arith.constant 0 : i32
    %c0_i32_1 = arith.constant 0 : i32
    return %c0_i32, %c0_i32_0 : i32, i32
  }
  func.func @transform_4(%arg0: i32) -> (i32, i32, i32) {
    %c0_i32 = arith.constant 0 : i32
    %c0_i32_0 = arith.constant 0 : i32
    %c0_i32_1 = arith.constant 0 : i32
    return %arg0, %c0_i32, %c0_i32_0 : i32, i32, i32
  }
}

module attributes {stable_mosaic.version = 11 : i64} {
  func.func @kernel(%arg0: i32, %arg1: memref<1x16x396xbf16, #tpu.memory_space<vmem>>, %arg2: memref<1x16x396xbf16, #tpu.memory_space<vmem>>, %arg3: memref<16x288xbf16, #tpu.memory_space<vmem>>, %arg4: memref<8x144xbf16, #tpu.memory_space<vmem>>, %arg5: memref<1x324xf32, #tpu.memory_space<vmem>>, %arg6: memref<1x8x324xbf16, #tpu.memory_space<vmem>>, %arg7: memref<288x324xbf16, #tpu.memory_space<vmem>>, %arg8: memref<16x512xbf16, #tpu.memory_space<vmem>>) attributes {dimension_semantics = [#tpu.dimension_semantics<parallel>], iteration_bounds = array<i64: 2>, scalar_prefetch = 0 : i64, scratch_operands = 2 : i64, tpu.core_type = #tpu.core_type<tc>, window_params = [{transform_indices = @transform_0, window_bounds = array<i64: 1, 16, 396>}, {transform_indices = @transform_1, window_bounds = array<i64: 1, 16, 396>}, {pipeline_mode = #tpu.pipeline_mode<synchronous>, transform_indices = @transform_2, window_bounds = array<i64: 16, 288>}, {pipeline_mode = #tpu.pipeline_mode<synchronous>, transform_indices = @transform_3, window_bounds = array<i64: 8, 144>}, {pipeline_mode = #tpu.pipeline_mode<synchronous>, transform_indices = @transform_4, window_bounds = array<i64: 1, 324>}, {transform_indices = @transform_5, window_bounds = array<i64: 1, 8, 324>}]} {
    %c0 = arith.constant 0 : index
    %c0_0 = arith.constant 0 : index
    %0 = vector.load %arg5[%c0, %c0_0] : memref<1x324xf32, #tpu.memory_space<vmem>>, vector<1x324xf32>
    %c0_1 = arith.constant 0 : index
    %c0_2 = arith.constant 0 : index
    %c17 = arith.constant 17 : index
    %1 = vector.load %arg1[%c0_1, %c0_2, %c17] : memref<1x16x396xbf16, #tpu.memory_space<vmem>>, vector<1x16x324xbf16>
    %2 = vector.shape_cast %1 : vector<1x16x324xbf16> to vector<16x324xbf16>
    %c0_3 = arith.constant 0 : index
    %c0_4 = arith.constant 0 : index
    %3 = vector.load %arg7[%c0_3, %c0_4] : memref<288x324xbf16, #tpu.memory_space<vmem>>, vector<16x324xbf16>
    tpu.vector_store %arg7[%c0_3, %c0_4], %2 {strides = array<i32>} : memref<288x324xbf16, #tpu.memory_space<vmem>>, vector<16x324xbf16>,
    %c0_5 = arith.constant 0 : index
    %c0_6 = arith.constant 0 : index
    %c18 = arith.constant 18 : index
    %4 = vector.load %arg1[%c0_5, %c0_6, %c18] : memref<1x16x396xbf16, #tpu.memory_space<vmem>>, vector<1x16x324xbf16>
    %5 = vector.shape_cast %4 : vector<1x16x324xbf16> to vector<16x324xbf16>
    %c16 = arith.constant 16 : index
    %c0_7 = arith.constant 0 : index
    %6 = vector.load %arg7[%c16, %c0_7] : memref<288x324xbf16, #tpu.memory_space<vmem>>, vector<16x324xbf16>
    tpu.vector_store %arg7[%c16, %c0_7], %5 {strides = array<i32>} : memref<288x324xbf16, #tpu.memory_space<vmem>>, vector<16x324xbf16>,
    %c0_8 = arith.constant 0 : index
    %c0_9 = arith.constant 0 : index
    %c19 = arith.constant 19 : index
    %7 = vector.load %arg1[%c0_8, %c0_9, %c19] : memref<1x16x396xbf16, #tpu.memory_space<vmem>>, vector<1x16x324xbf16>
    %8 = vector.shape_cast %7 : vector<1x16x324xbf16> to vector<16x324xbf16>
    %c32 = arith.constant 32 : index
    %c0_10 = arith.constant 0 : index
    %9 = vector.load %arg7[%c32, %c0_10] : memref<288x324xbf16, #tpu.memory_space<vmem>>, vector<16x324xbf16>
    tpu.vector_store %arg7[%c32, %c0_10], %8 {strides = array<i32>} : memref<288x324xbf16, #tpu.memory_space<vmem>>, vector<16x324xbf16>,
    %c0_11 = arith.constant 0 : index
    %c0_12 = arith.constant 0 : index
    %c35 = arith.constant 35 : index
    %10 = vector.load %arg1[%c0_11, %c0_12, %c35] : memref<1x16x396xbf16, #tpu.memory_space<vmem>>, vector<1x16x324xbf16>
    %11 = vector.shape_cast %10 : vector<1x16x324xbf16> to vector<16x324xbf16>
    %c48 = arith.constant 48 : index
    %c0_13 = arith.constant 0 : index
    %12 = vector.load %arg7[%c48, %c0_13] : memref<288x324xbf16, #tpu.memory_space<vmem>>, vector<16x324xbf16>
    tpu.vector_store %arg7[%c48, %c0_13], %11 {strides = array<i32>} : memref<288x324xbf16, #tpu.memory_space<vmem>>, vector<16x324xbf16>,
    %c0_14 = arith.constant 0 : index
    %c0_15 = arith.constant 0 : index
    %c36 = arith.constant 36 : index
    %13 = vector.load %arg1[%c0_14, %c0_15, %c36] : memref<1x16x396xbf16, #tpu.memory_space<vmem>>, vector<1x16x324xbf16>
    %14 = vector.shape_cast %13 : vector<1x16x324xbf16> to vector<16x324xbf16>
    %c64 = arith.constant 64 : index
    %c0_16 = arith.constant 0 : index
    %15 = vector.load %arg7[%c64, %c0_16] : memref<288x324xbf16, #tpu.memory_space<vmem>>, vector<16x324xbf16>
    tpu.vector_store %arg7[%c64, %c0_16], %14 {strides = array<i32>} : memref<288x324xbf16, #tpu.memory_space<vmem>>, vector<16x324xbf16>,
    %c0_17 = arith.constant 0 : index
    %c0_18 = arith.constant 0 : index
    %c37 = arith.constant 37 : index
    %16 = vector.load %arg1[%c0_17, %c0_18, %c37] : memref<1x16x396xbf16, #tpu.memory_space<vmem>>, vector<1x16x324xbf16>
    %17 = vector.shape_cast %16 : vector<1x16x324xbf16> to vector<16x324xbf16>
    %c80 = arith.constant 80 : index
    %c0_19 = arith.constant 0 : index
    %18 = vector.load %arg7[%c80, %c0_19] : memref<288x324xbf16, #tpu.memory_space<vmem>>, vector<16x324xbf16>
    tpu.vector_store %arg7[%c80, %c0_19], %17 {strides = array<i32>} : memref<288x324xbf16, #tpu.memory_space<vmem>>, vector<16x324xbf16>,
    %c0_20 = arith.constant 0 : index
    %c0_21 = arith.constant 0 : index
    %c53 = arith.constant 53 : index
    %19 = vector.load %arg1[%c0_20, %c0_21, %c53] : memref<1x16x396xbf16, #tpu.memory_space<vmem>>, vector<1x16x324xbf16>
    %20 = vector.shape_cast %19 : vector<1x16x324xbf16> to vector<16x324xbf16>
    %c96 = arith.constant 96 : index
    %c0_22 = arith.constant 0 : index
    %21 = vector.load %arg7[%c96, %c0_22] : memref<288x324xbf16, #tpu.memory_space<vmem>>, vector<16x324xbf16>
    tpu.vector_store %arg7[%c96, %c0_22], %20 {strides = array<i32>} : memref<288x324xbf16, #tpu.memory_space<vmem>>, vector<16x324xbf16>,
    %c0_23 = arith.constant 0 : index
    %c0_24 = arith.constant 0 : index
    %c54 = arith.constant 54 : index
    %22 = vector.load %arg1[%c0_23, %c0_24, %c54] : memref<1x16x396xbf16, #tpu.memory_space<vmem>>, vector<1x16x324xbf16>
    %23 = vector.shape_cast %22 : vector<1x16x324xbf16> to vector<16x324xbf16>
    %c112 = arith.constant 112 : index
    %c0_25 = arith.constant 0 : index
    %24 = vector.load %arg7[%c112, %c0_25] : memref<288x324xbf16, #tpu.memory_space<vmem>>, vector<16x324xbf16>
    tpu.vector_store %arg7[%c112, %c0_25], %23 {strides = array<i32>} : memref<288x324xbf16, #tpu.memory_space<vmem>>, vector<16x324xbf16>,
    %c0_26 = arith.constant 0 : index
    %c0_27 = arith.constant 0 : index
    %c55 = arith.constant 55 : index
    %25 = vector.load %arg1[%c0_26, %c0_27, %c55] : memref<1x16x396xbf16, #tpu.memory_space<vmem>>, vector<1x16x324xbf16>
    %26 = vector.shape_cast %25 : vector<1x16x324xbf16> to vector<16x324xbf16>
    %c128 = arith.constant 128 : index
    %c0_28 = arith.constant 0 : index
    %27 = vector.load %arg7[%c128, %c0_28] : memref<288x324xbf16, #tpu.memory_space<vmem>>, vector<16x324xbf16>
    tpu.vector_store %arg7[%c128, %c0_28], %26 {strides = array<i32>} : memref<288x324xbf16, #tpu.memory_space<vmem>>, vector<16x324xbf16>,
    %c0_29 = arith.constant 0 : index
    %c0_30 = arith.constant 0 : index
    %c17_31 = arith.constant 17 : index
    %28 = vector.load %arg2[%c0_29, %c0_30, %c17_31] : memref<1x16x396xbf16, #tpu.memory_space<vmem>>, vector<1x16x324xbf16>
    %29 = vector.shape_cast %28 : vector<1x16x324xbf16> to vector<16x324xbf16>
    %c144 = arith.constant 144 : index
    %c0_32 = arith.constant 0 : index
    %30 = vector.load %arg7[%c144, %c0_32] : memref<288x324xbf16, #tpu.memory_space<vmem>>, vector<16x324xbf16>
    tpu.vector_store %arg7[%c144, %c0_32], %29 {strides = array<i32>} : memref<288x324xbf16, #tpu.memory_space<vmem>>, vector<16x324xbf16>,
    %c0_33 = arith.constant 0 : index
    %c0_34 = arith.constant 0 : index
    %c18_35 = arith.constant 18 : index
    %31 = vector.load %arg2[%c0_33, %c0_34, %c18_35] : memref<1x16x396xbf16, #tpu.memory_space<vmem>>, vector<1x16x324xbf16>
    %32 = vector.shape_cast %31 : vector<1x16x324xbf16> to vector<16x324xbf16>
    %c160 = arith.constant 160 : index
    %c0_36 = arith.constant 0 : index
    %33 = vector.load %arg7[%c160, %c0_36] : memref<288x324xbf16, #tpu.memory_space<vmem>>, vector<16x324xbf16>
    tpu.vector_store %arg7[%c160, %c0_36], %32 {strides = array<i32>} : memref<288x324xbf16, #tpu.memory_space<vmem>>, vector<16x324xbf16>,
    %c0_37 = arith.constant 0 : index
    %c0_38 = arith.constant 0 : index
    %c19_39 = arith.constant 19 : index
    %34 = vector.load %arg2[%c0_37, %c0_38, %c19_39] : memref<1x16x396xbf16, #tpu.memory_space<vmem>>, vector<1x16x324xbf16>
    %35 = vector.shape_cast %34 : vector<1x16x324xbf16> to vector<16x324xbf16>
    %c176 = arith.constant 176 : index
    %c0_40 = arith.constant 0 : index
    %36 = vector.load %arg7[%c176, %c0_40] : memref<288x324xbf16, #tpu.memory_space<vmem>>, vector<16x324xbf16>
    tpu.vector_store %arg7[%c176, %c0_40], %35 {strides = array<i32>} : memref<288x324xbf16, #tpu.memory_space<vmem>>, vector<16x324xbf16>,
    %c0_41 = arith.constant 0 : index
    %c0_42 = arith.constant 0 : index
    %c35_43 = arith.constant 35 : index
    %37 = vector.load %arg2[%c0_41, %c0_42, %c35_43] : memref<1x16x396xbf16, #tpu.memory_space<vmem>>, vector<1x16x324xbf16>
    %38 = vector.shape_cast %37 : vector<1x16x324xbf16> to vector<16x324xbf16>
    %c192 = arith.constant 192 : index
    %c0_44 = arith.constant 0 : index
    %39 = vector.load %arg7[%c192, %c0_44] : memref<288x324xbf16, #tpu.memory_space<vmem>>, vector<16x324xbf16>
    tpu.vector_store %arg7[%c192, %c0_44], %38 {strides = array<i32>} : memref<288x324xbf16, #tpu.memory_space<vmem>>, vector<16x324xbf16>,
    %c0_45 = arith.constant 0 : index
    %c0_46 = arith.constant 0 : index
    %c36_47 = arith.constant 36 : index
    %40 = vector.load %arg2[%c0_45, %c0_46, %c36_47] : memref<1x16x396xbf16, #tpu.memory_space<vmem>>, vector<1x16x324xbf16>
    %41 = vector.shape_cast %40 : vector<1x16x324xbf16> to vector<16x324xbf16>
    %c208 = arith.constant 208 : index
    %c0_48 = arith.constant 0 : index
    %42 = vector.load %arg7[%c208, %c0_48] : memref<288x324xbf16, #tpu.memory_space<vmem>>, vector<16x324xbf16>
    tpu.vector_store %arg7[%c208, %c0_48], %41 {strides = array<i32>} : memref<288x324xbf16, #tpu.memory_space<vmem>>, vector<16x324xbf16>,
    %c0_49 = arith.constant 0 : index
    %c0_50 = arith.constant 0 : index
    %c37_51 = arith.constant 37 : index
    %43 = vector.load %arg2[%c0_49, %c0_50, %c37_51] : memref<1x16x396xbf16, #tpu.memory_space<vmem>>, vector<1x16x324xbf16>
    %44 = vector.shape_cast %43 : vector<1x16x324xbf16> to vector<16x324xbf16>
    %c224 = arith.constant 224 : index
    %c0_52 = arith.constant 0 : index
    %45 = vector.load %arg7[%c224, %c0_52] : memref<288x324xbf16, #tpu.memory_space<vmem>>, vector<16x324xbf16>
    tpu.vector_store %arg7[%c224, %c0_52], %44 {strides = array<i32>} : memref<288x324xbf16, #tpu.memory_space<vmem>>, vector<16x324xbf16>,
    %c0_53 = arith.constant 0 : index
    %c0_54 = arith.constant 0 : index
    %c53_55 = arith.constant 53 : index
    %46 = vector.load %arg2[%c0_53, %c0_54, %c53_55] : memref<1x16x396xbf16, #tpu.memory_space<vmem>>, vector<1x16x324xbf16>
    %47 = vector.shape_cast %46 : vector<1x16x324xbf16> to vector<16x324xbf16>
    %c240 = arith.constant 240 : index
    %c0_56 = arith.constant 0 : index
    %48 = vector.load %arg7[%c240, %c0_56] : memref<288x324xbf16, #tpu.memory_space<vmem>>, vector<16x324xbf16>
    tpu.vector_store %arg7[%c240, %c0_56], %47 {strides = array<i32>} : memref<288x324xbf16, #tpu.memory_space<vmem>>, vector<16x324xbf16>,
    %c0_57 = arith.constant 0 : index
    %c0_58 = arith.constant 0 : index
    %c54_59 = arith.constant 54 : index
    %49 = vector.load %arg2[%c0_57, %c0_58, %c54_59] : memref<1x16x396xbf16, #tpu.memory_space<vmem>>, vector<1x16x324xbf16>
    %50 = vector.shape_cast %49 : vector<1x16x324xbf16> to vector<16x324xbf16>
    %c256 = arith.constant 256 : index
    %c0_60 = arith.constant 0 : index
    %51 = vector.load %arg7[%c256, %c0_60] : memref<288x324xbf16, #tpu.memory_space<vmem>>, vector<16x324xbf16>
    tpu.vector_store %arg7[%c256, %c0_60], %50 {strides = array<i32>} : memref<288x324xbf16, #tpu.memory_space<vmem>>, vector<16x324xbf16>,
    %c0_61 = arith.constant 0 : index
    %c0_62 = arith.constant 0 : index
    %c55_63 = arith.constant 55 : index
    %52 = vector.load %arg2[%c0_61, %c0_62, %c55_63] : memref<1x16x396xbf16, #tpu.memory_space<vmem>>, vector<1x16x324xbf16>
    %53 = vector.shape_cast %52 : vector<1x16x324xbf16> to vector<16x324xbf16>
    %c272 = arith.constant 272 : index
    %c0_64 = arith.constant 0 : index
    %54 = vector.load %arg7[%c272, %c0_64] : memref<288x324xbf16, #tpu.memory_space<vmem>>, vector<16x324xbf16>
    tpu.vector_store %arg7[%c272, %c0_64], %53 {strides = array<i32>} : memref<288x324xbf16, #tpu.memory_space<vmem>>, vector<16x324xbf16>,
    %c0_65 = arith.constant 0 : index
    %c0_66 = arith.constant 0 : index
    %55 = vector.load %arg3[%c0_65, %c0_66] : memref<16x288xbf16, #tpu.memory_space<vmem>>, vector<16x288xbf16>
    %c0_67 = arith.constant 0 : index
    %c0_68 = arith.constant 0 : index
    %56 = vector.load %arg7[%c0_67, %c0_68] : memref<288x324xbf16, #tpu.memory_space<vmem>>, vector<288x324xbf16>
    %cst = arith.constant dense<0.000000e+00> : vector<16x324xf32>
    %57 = tpu.matmul %55, %56, %cst {dimension_numbers = #tpu.dot_dimension_numbers<[1], [0], [0], [1], [0, 0, 1, 1], [], []>} : vector<16x288xbf16>, vector<288x324xbf16>, vector<16x324xf32> -> vector<16x324xf32>
    %58 = vector.broadcast %0 : vector<1x324xf32> to vector<16x324xf32>
    %59 = arith.mulf %57, %58 : vector<16x324xf32>
    %cst_69 = arith.constant dense<0.000000e+00> : vector<16xf32>
    %60 = vector.multi_reduction <add>, %59, %cst_69 [1] : vector<16x324xf32> to vector<16xf32>
    %61 = vector.shape_cast %60 : vector<16xf32> to vector<16x1xf32>
    %cst_70 = arith.constant 3.906250e-03 : f32
    %62 = vector.broadcast %cst_70 : f32 to vector<16x1xf32>
    %63 = arith.mulf %61, %62 : vector<16x1xf32>
    %64 = vector.broadcast %63 : vector<16x1xf32> to vector<16x324xf32>
    %65 = arith.subf %57, %64 : vector<16x324xf32>
    %66 = vector.broadcast %0 : vector<1x324xf32> to vector<16x324xf32>
    %67 = arith.mulf %65, %66 : vector<16x324xf32>
    %68 = arith.mulf %67, %67 : vector<16x324xf32>
    %cst_71 = arith.constant dense<0.000000e+00> : vector<16xf32>
    %69 = vector.multi_reduction <add>, %68, %cst_71 [1] : vector<16x324xf32> to vector<16xf32>
    %70 = vector.shape_cast %69 : vector<16xf32> to vector<16x1xf32>
    %cst_72 = arith.constant 3.906250e-03 : f32
    %71 = vector.broadcast %cst_72 : f32 to vector<16x1xf32>
    %72 = arith.mulf %70, %71 : vector<16x1xf32>
    %cst_73 = arith.constant 9.99999974E-6 : f32
    %73 = vector.broadcast %cst_73 : f32 to vector<16x1xf32>
    %74 = arith.addf %72, %73 : vector<16x1xf32>
    %75 = math.rsqrt %74 : vector<16x1xf32>
    %76 = vector.broadcast %75 : vector<16x1xf32> to vector<16x324xf32>
    %77 = arith.mulf %67, %76 : vector<16x324xf32>
    %cst_74 = arith.constant 0.000000e+00 : f32
    %78 = vector.broadcast %cst_74 : f32 to vector<16x324xf32>
    %79 = arith.maximumf %77, %78 : vector<16x324xf32>
    %cst_75 = arith.constant 0.000000e+00 : bf16
    %80 = vector.broadcast %cst_75 : bf16 to vector<16x128xbf16>
    %c0_76 = arith.constant 0 : index
    %c0_77 = arith.constant 0 : index
    %81 = vector.load %arg8[%c0_76, %c0_77] : memref<16x512xbf16, #tpu.memory_space<vmem>>, vector<16x128xbf16>
    tpu.vector_store %arg8[%c0_76, %c0_77], %80 {strides = array<i32>} : memref<16x512xbf16, #tpu.memory_space<vmem>>, vector<16x128xbf16>,
    %cst_78 = arith.constant 0.000000e+00 : bf16
    %82 = vector.broadcast %cst_78 : bf16 to vector<16x60xbf16>
    %c0_79 = arith.constant 0 : index
    %c452 = arith.constant 452 : index
    %83 = vector.load %arg8[%c0_79, %c452] : memref<16x512xbf16, #tpu.memory_space<vmem>>, vector<16x60xbf16>
    tpu.vector_store %arg8[%c0_79, %c452], %82 {strides = array<i32>} : memref<16x512xbf16, #tpu.memory_space<vmem>>, vector<16x60xbf16>,
    %84 = arith.truncf %79 : vector<16x324xf32> to vector<16x324xbf16>
    %c0_80 = arith.constant 0 : index
    %c128_81 = arith.constant 128 : index
    %85 = vector.load %arg8[%c0_80, %c128_81] : memref<16x512xbf16, #tpu.memory_space<vmem>>, vector<16x324xbf16>
    tpu.vector_store %arg8[%c0_80, %c128_81], %84 {strides = array<i32>} : memref<16x512xbf16, #tpu.memory_space<vmem>>, vector<16x324xbf16>,
    %c0_82 = arith.constant 0 : index
    %c109 = arith.constant 109 : index
    %86 = vector.load %arg8[%c0_82, %c109] : memref<16x512xbf16, #tpu.memory_space<vmem>>, vector<16x324xbf16>
    %c0_83 = arith.constant 0 : index
    %c0_84 = arith.constant 0 : index
    %87 = vector.load %arg7[%c0_83, %c0_84] : memref<288x324xbf16, #tpu.memory_space<vmem>>, vector<16x324xbf16>
    tpu.vector_store %arg7[%c0_83, %c0_84], %86 {strides = array<i32>} : memref<288x324xbf16, #tpu.memory_space<vmem>>, vector<16x324xbf16>,
    %c0_85 = arith.constant 0 : index
    %c110 = arith.constant 110 : index
    %88 = vector.load %arg8[%c0_85, %c110] : memref<16x512xbf16, #tpu.memory_space<vmem>>, vector<16x324xbf16>
    %c16_86 = arith.constant 16 : index
    %c0_87 = arith.constant 0 : index
    %89 = vector.load %arg7[%c16_86, %c0_87] : memref<288x324xbf16, #tpu.memory_space<vmem>>, vector<16x324xbf16>
    tpu.vector_store %arg7[%c16_86, %c0_87], %88 {strides = array<i32>} : memref<288x324xbf16, #tpu.memory_space<vmem>>, vector<16x324xbf16>,
    %c0_88 = arith.constant 0 : index
    %c111 = arith.constant 111 : index
    %90 = vector.load %arg8[%c0_88, %c111] : memref<16x512xbf16, #tpu.memory_space<vmem>>, vector<16x324xbf16>
    %c32_89 = arith.constant 32 : index
    %c0_90 = arith.constant 0 : index
    %91 = vector.load %arg7[%c32_89, %c0_90] : memref<288x324xbf16, #tpu.memory_space<vmem>>, vector<16x324xbf16>
    tpu.vector_store %arg7[%c32_89, %c0_90], %90 {strides = array<i32>} : memref<288x324xbf16, #tpu.memory_space<vmem>>, vector<16x324xbf16>,
    %c0_91 = arith.constant 0 : index
    %c127 = arith.constant 127 : index
    %92 = vector.load %arg8[%c0_91, %c127] : memref<16x512xbf16, #tpu.memory_space<vmem>>, vector<16x324xbf16>
    %c48_92 = arith.constant 48 : index
    %c0_93 = arith.constant 0 : index
    %93 = vector.load %arg7[%c48_92, %c0_93] : memref<288x324xbf16, #tpu.memory_space<vmem>>, vector<16x324xbf16>
    tpu.vector_store %arg7[%c48_92, %c0_93], %92 {strides = array<i32>} : memref<288x324xbf16, #tpu.memory_space<vmem>>, vector<16x324xbf16>,
    %c0_94 = arith.constant 0 : index
    %c128_95 = arith.constant 128 : index
    %94 = vector.load %arg8[%c0_94, %c128_95] : memref<16x512xbf16, #tpu.memory_space<vmem>>, vector<16x324xbf16>
    %c64_96 = arith.constant 64 : index
    %c0_97 = arith.constant 0 : index
    %95 = vector.load %arg7[%c64_96, %c0_97] : memref<288x324xbf16, #tpu.memory_space<vmem>>, vector<16x324xbf16>
    tpu.vector_store %arg7[%c64_96, %c0_97], %94 {strides = array<i32>} : memref<288x324xbf16, #tpu.memory_space<vmem>>, vector<16x324xbf16>,
    %c0_98 = arith.constant 0 : index
    %c129 = arith.constant 129 : index
    %96 = vector.load %arg8[%c0_98, %c129] : memref<16x512xbf16, #tpu.memory_space<vmem>>, vector<16x324xbf16>
    %c80_99 = arith.constant 80 : index
    %c0_100 = arith.constant 0 : index
    %97 = vector.load %arg7[%c80_99, %c0_100] : memref<288x324xbf16, #tpu.memory_space<vmem>>, vector<16x324xbf16>
    tpu.vector_store %arg7[%c80_99, %c0_100], %96 {strides = array<i32>} : memref<288x324xbf16, #tpu.memory_space<vmem>>, vector<16x324xbf16>,
    %c0_101 = arith.constant 0 : index
    %c145 = arith.constant 145 : index
    %98 = vector.load %arg8[%c0_101, %c145] : memref<16x512xbf16, #tpu.memory_space<vmem>>, vector<16x324xbf16>
    %c96_102 = arith.constant 96 : index
    %c0_103 = arith.constant 0 : index
    %99 = vector.load %arg7[%c96_102, %c0_103] : memref<288x324xbf16, #tpu.memory_space<vmem>>, vector<16x324xbf16>
    tpu.vector_store %arg7[%c96_102, %c0_103], %98 {strides = array<i32>} : memref<288x324xbf16, #tpu.memory_space<vmem>>, vector<16x324xbf16>,
    %c0_104 = arith.constant 0 : index
    %c146 = arith.constant 146 : index
    %100 = vector.load %arg8[%c0_104, %c146] : memref<16x512xbf16, #tpu.memory_space<vmem>>, vector<16x324xbf16>
    %c112_105 = arith.constant 112 : index
    %c0_106 = arith.constant 0 : index
    %101 = vector.load %arg7[%c112_105, %c0_106] : memref<288x324xbf16, #tpu.memory_space<vmem>>, vector<16x324xbf16>
    tpu.vector_store %arg7[%c112_105, %c0_106], %100 {strides = array<i32>} : memref<288x324xbf16, #tpu.memory_space<vmem>>, vector<16x324xbf16>,
    %c0_107 = arith.constant 0 : index
    %c147 = arith.constant 147 : index
    %102 = vector.load %arg8[%c0_107, %c147] : memref<16x512xbf16, #tpu.memory_space<vmem>>, vector<16x324xbf16>
    %c128_108 = arith.constant 128 : index
    %c0_109 = arith.constant 0 : index
    %103 = vector.load %arg7[%c128_108, %c0_109] : memref<288x324xbf16, #tpu.memory_space<vmem>>, vector<16x324xbf16>
    tpu.vector_store %arg7[%c128_108, %c0_109], %102 {strides = array<i32>} : memref<288x324xbf16, #tpu.memory_space<vmem>>, vector<16x324xbf16>,
    %c0_110 = arith.constant 0 : index
    %c0_111 = arith.constant 0 : index
    %104 = vector.load %arg4[%c0_110, %c0_111] : memref<8x144xbf16, #tpu.memory_space<vmem>>, vector<8x144xbf16>
    %c0_112 = arith.constant 0 : index
    %c0_113 = arith.constant 0 : index
    %105 = vector.load %arg7[%c0_112, %c0_113] : memref<288x324xbf16, #tpu.memory_space<vmem>>, vector<144x324xbf16>
    %cst_114 = arith.constant dense<0.000000e+00> : vector<8x324xf32>
    %106 = tpu.matmul %104, %105, %cst_114 {dimension_numbers = #tpu.dot_dimension_numbers<[1], [0], [0], [1], [0, 0, 1, 1], [], []>} : vector<8x144xbf16>, vector<144x324xbf16>, vector<8x324xf32> -> vector<8x324xf32>
    %107 = vector.broadcast %0 : vector<1x324xf32> to vector<8x324xf32>
    %108 = arith.mulf %106, %107 : vector<8x324xf32>
    %cst_115 = arith.constant dense<0.000000e+00> : vector<8xf32>
    %109 = vector.multi_reduction <add>, %108, %cst_115 [1] : vector<8x324xf32> to vector<8xf32>
    %110 = vector.shape_cast %109 : vector<8xf32> to vector<8x1xf32>
    %cst_116 = arith.constant 3.906250e-03 : f32
    %111 = vector.broadcast %cst_116 : f32 to vector<8x1xf32>
    %112 = arith.mulf %110, %111 : vector<8x1xf32>
    %113 = vector.broadcast %112 : vector<8x1xf32> to vector<8x324xf32>
    %114 = arith.subf %106, %113 : vector<8x324xf32>
    %115 = vector.broadcast %0 : vector<1x324xf32> to vector<8x324xf32>
    %116 = arith.mulf %114, %115 : vector<8x324xf32>
    %117 = arith.mulf %116, %116 : vector<8x324xf32>
    %cst_117 = arith.constant dense<0.000000e+00> : vector<8xf32>
    %118 = vector.multi_reduction <add>, %117, %cst_117 [1] : vector<8x324xf32> to vector<8xf32>
    %119 = vector.shape_cast %118 : vector<8xf32> to vector<8x1xf32>
    %cst_118 = arith.constant 3.906250e-03 : f32
    %120 = vector.broadcast %cst_118 : f32 to vector<8x1xf32>
    %121 = arith.mulf %119, %120 : vector<8x1xf32>
    %cst_119 = arith.constant 9.99999974E-6 : f32
    %122 = vector.broadcast %cst_119 : f32 to vector<8x1xf32>
    %123 = arith.addf %121, %122 : vector<8x1xf32>
    %124 = math.rsqrt %123 : vector<8x1xf32>
    %125 = vector.broadcast %124 : vector<8x1xf32> to vector<8x324xf32>
    %126 = arith.mulf %116, %125 : vector<8x324xf32>
    %cst_120 = arith.constant 0.000000e+00 : f32
    %127 = vector.broadcast %cst_120 : f32 to vector<8x324xf32>
    %128 = arith.maximumf %126, %127 : vector<8x324xf32>
    %129 = arith.truncf %128 : vector<8x324xf32> to vector<8x324xbf16>
    %c0_121 = arith.constant 0 : index
    %c0_122 = arith.constant 0 : index
    %c0_123 = arith.constant 0 : index
    %130 = vector.load %arg6[%c0_121, %c0_122, %c0_123] : memref<1x8x324xbf16, #tpu.memory_space<vmem>>, vector<1x8x324xbf16>
    %131 = vector.shape_cast %130 : vector<1x8x324xbf16> to vector<8x324xbf16>
    %132 = vector.shape_cast %129 : vector<8x324xbf16> to vector<1x8x324xbf16>
    tpu.vector_store %arg6[%c0_121, %c0_122, %c0_123], %132 {strides = array<i32>} : memref<1x8x324xbf16, #tpu.memory_space<vmem>>, vector<1x8x324xbf16>,
    return
  }
  func.func @transform_0(%arg0: i32) -> (i32, i32, i32) {
    %c0_i32 = arith.constant 0 : i32
    %c0_i32_0 = arith.constant 0 : i32
    %c0_i32_1 = arith.constant 0 : i32
    return %arg0, %c0_i32, %c0_i32_0 : i32, i32, i32
  }
  func.func @transform_1(%arg0: i32) -> (i32, i32, i32) {
    %c0_i32 = arith.constant 0 : i32
    %c0_i32_0 = arith.constant 0 : i32
    %c0_i32_1 = arith.constant 0 : i32
    return %arg0, %c0_i32, %c0_i32_0 : i32, i32, i32
  }
  func.func @transform_2(%arg0: i32) -> (i32, i32) {
    %c0_i32 = arith.constant 0 : i32
    %c0_i32_0 = arith.constant 0 : i32
    %c0_i32_1 = arith.constant 0 : i32
    return %c0_i32, %c0_i32_0 : i32, i32
  }
  func.func @transform_3(%arg0: i32) -> (i32, i32) {
    %c0_i32 = arith.constant 0 : i32
    %c0_i32_0 = arith.constant 0 : i32
    %c0_i32_1 = arith.constant 0 : i32
    return %c0_i32, %c0_i32_0 : i32, i32
  }
  func.func @transform_4(%arg0: i32) -> (i32, i32) {
    %c0_i32 = arith.constant 0 : i32
    %c0_i32_0 = arith.constant 0 : i32
    %c0_i32_1 = arith.constant 0 : i32
    return %c0_i32, %c0_i32_0 : i32, i32
  }
  func.func @transform_5(%arg0: i32) -> (i32, i32, i32) {
    %c0_i32 = arith.constant 0 : i32
    %c0_i32_0 = arith.constant 0 : i32
    %c0_i32_1 = arith.constant 0 : i32
    return %arg0, %c0_i32, %c0_i32_0 : i32, i32, i32
  }
}

module attributes {stable_mosaic.version = 11 : i64} {
  func.func @kernel(%arg0: i32, %arg1: memref<1x8x1292xbf16, #tpu.memory_space<vmem>>, %arg2: memref<1x8x1292xbf16, #tpu.memory_space<vmem>>, %arg3: memref<8x144xbf16, #tpu.memory_space<vmem>>, %arg4: memref<8x72xbf16, #tpu.memory_space<vmem>>, %arg5: memref<1x1156xf32, #tpu.memory_space<vmem>>, %arg6: memref<1x8xbf16, #tpu.memory_space<vmem>>, %arg7: memref<1x1xf32, #tpu.memory_space<vmem>>, %arg8: memref<1x1x1156xf32, #tpu.memory_space<vmem>>, %arg9: memref<144x1156xbf16, #tpu.memory_space<vmem>>, %arg10: memref<8x1408xbf16, #tpu.memory_space<vmem>>) attributes {dimension_semantics = [#tpu.dimension_semantics<parallel>], iteration_bounds = array<i64: 2>, scalar_prefetch = 0 : i64, scratch_operands = 2 : i64, tpu.core_type = #tpu.core_type<tc>, window_params = [{transform_indices = @transform_0, window_bounds = array<i64: 1, 8, 1292>}, {transform_indices = @transform_1, window_bounds = array<i64: 1, 8, 1292>}, {pipeline_mode = #tpu.pipeline_mode<synchronous>, transform_indices = @transform_2, window_bounds = array<i64: 8, 144>}, {pipeline_mode = #tpu.pipeline_mode<synchronous>, transform_indices = @transform_3, window_bounds = array<i64: 8, 72>}, {pipeline_mode = #tpu.pipeline_mode<synchronous>, transform_indices = @transform_4, window_bounds = array<i64: 1, 1156>}, {pipeline_mode = #tpu.pipeline_mode<synchronous>, transform_indices = @transform_5, window_bounds = array<i64: 1, 8>}, {pipeline_mode = #tpu.pipeline_mode<synchronous>, transform_indices = @transform_6, window_bounds = array<i64: 1, 1>}, {transform_indices = @transform_7, window_bounds = array<i64: 1, 1, 1156>}]} {
    %c0 = arith.constant 0 : index
    %c0_0 = arith.constant 0 : index
    %0 = vector.load %arg5[%c0, %c0_0] : memref<1x1156xf32, #tpu.memory_space<vmem>>, vector<1x1156xf32>
    %c0_1 = arith.constant 0 : index
    %c0_2 = arith.constant 0 : index
    %c33 = arith.constant 33 : index
    %1 = vector.load %arg1[%c0_1, %c0_2, %c33] : memref<1x8x1292xbf16, #tpu.memory_space<vmem>>, vector<1x8x1156xbf16>
    %2 = vector.shape_cast %1 : vector<1x8x1156xbf16> to vector<8x1156xbf16>
    %c0_3 = arith.constant 0 : index
    %c0_4 = arith.constant 0 : index
    %3 = vector.load %arg9[%c0_3, %c0_4] : memref<144x1156xbf16, #tpu.memory_space<vmem>>, vector<8x1156xbf16>
    tpu.vector_store %arg9[%c0_3, %c0_4], %2 {strides = array<i32>} : memref<144x1156xbf16, #tpu.memory_space<vmem>>, vector<8x1156xbf16>,
    %c0_5 = arith.constant 0 : index
    %c0_6 = arith.constant 0 : index
    %c34 = arith.constant 34 : index
    %4 = vector.load %arg1[%c0_5, %c0_6, %c34] : memref<1x8x1292xbf16, #tpu.memory_space<vmem>>, vector<1x8x1156xbf16>
    %5 = vector.shape_cast %4 : vector<1x8x1156xbf16> to vector<8x1156xbf16>
    %c8 = arith.constant 8 : index
    %c0_7 = arith.constant 0 : index
    %6 = vector.load %arg9[%c8, %c0_7] : memref<144x1156xbf16, #tpu.memory_space<vmem>>, vector<8x1156xbf16>
    tpu.vector_store %arg9[%c8, %c0_7], %5 {strides = array<i32>} : memref<144x1156xbf16, #tpu.memory_space<vmem>>, vector<8x1156xbf16>,
    %c0_8 = arith.constant 0 : index
    %c0_9 = arith.constant 0 : index
    %c35 = arith.constant 35 : index
    %7 = vector.load %arg1[%c0_8, %c0_9, %c35] : memref<1x8x1292xbf16, #tpu.memory_space<vmem>>, vector<1x8x1156xbf16>
    %8 = vector.shape_cast %7 : vector<1x8x1156xbf16> to vector<8x1156xbf16>
    %c16 = arith.constant 16 : index
    %c0_10 = arith.constant 0 : index
    %9 = vector.load %arg9[%c16, %c0_10] : memref<144x1156xbf16, #tpu.memory_space<vmem>>, vector<8x1156xbf16>
    tpu.vector_store %arg9[%c16, %c0_10], %8 {strides = array<i32>} : memref<144x1156xbf16, #tpu.memory_space<vmem>>, vector<8x1156xbf16>,
    %c0_11 = arith.constant 0 : index
    %c0_12 = arith.constant 0 : index
    %c67 = arith.constant 67 : index
    %10 = vector.load %arg1[%c0_11, %c0_12, %c67] : memref<1x8x1292xbf16, #tpu.memory_space<vmem>>, vector<1x8x1156xbf16>
    %11 = vector.shape_cast %10 : vector<1x8x1156xbf16> to vector<8x1156xbf16>
    %c24 = arith.constant 24 : index
    %c0_13 = arith.constant 0 : index
    %12 = vector.load %arg9[%c24, %c0_13] : memref<144x1156xbf16, #tpu.memory_space<vmem>>, vector<8x1156xbf16>
    tpu.vector_store %arg9[%c24, %c0_13], %11 {strides = array<i32>} : memref<144x1156xbf16, #tpu.memory_space<vmem>>, vector<8x1156xbf16>,
    %c0_14 = arith.constant 0 : index
    %c0_15 = arith.constant 0 : index
    %c68 = arith.constant 68 : index
    %13 = vector.load %arg1[%c0_14, %c0_15, %c68] : memref<1x8x1292xbf16, #tpu.memory_space<vmem>>, vector<1x8x1156xbf16>
    %14 = vector.shape_cast %13 : vector<1x8x1156xbf16> to vector<8x1156xbf16>
    %c32 = arith.constant 32 : index
    %c0_16 = arith.constant 0 : index
    %15 = vector.load %arg9[%c32, %c0_16] : memref<144x1156xbf16, #tpu.memory_space<vmem>>, vector<8x1156xbf16>
    tpu.vector_store %arg9[%c32, %c0_16], %14 {strides = array<i32>} : memref<144x1156xbf16, #tpu.memory_space<vmem>>, vector<8x1156xbf16>,
    %c0_17 = arith.constant 0 : index
    %c0_18 = arith.constant 0 : index
    %c69 = arith.constant 69 : index
    %16 = vector.load %arg1[%c0_17, %c0_18, %c69] : memref<1x8x1292xbf16, #tpu.memory_space<vmem>>, vector<1x8x1156xbf16>
    %17 = vector.shape_cast %16 : vector<1x8x1156xbf16> to vector<8x1156xbf16>
    %c40 = arith.constant 40 : index
    %c0_19 = arith.constant 0 : index
    %18 = vector.load %arg9[%c40, %c0_19] : memref<144x1156xbf16, #tpu.memory_space<vmem>>, vector<8x1156xbf16>
    tpu.vector_store %arg9[%c40, %c0_19], %17 {strides = array<i32>} : memref<144x1156xbf16, #tpu.memory_space<vmem>>, vector<8x1156xbf16>,
    %c0_20 = arith.constant 0 : index
    %c0_21 = arith.constant 0 : index
    %c101 = arith.constant 101 : index
    %19 = vector.load %arg1[%c0_20, %c0_21, %c101] : memref<1x8x1292xbf16, #tpu.memory_space<vmem>>, vector<1x8x1156xbf16>
    %20 = vector.shape_cast %19 : vector<1x8x1156xbf16> to vector<8x1156xbf16>
    %c48 = arith.constant 48 : index
    %c0_22 = arith.constant 0 : index
    %21 = vector.load %arg9[%c48, %c0_22] : memref<144x1156xbf16, #tpu.memory_space<vmem>>, vector<8x1156xbf16>
    tpu.vector_store %arg9[%c48, %c0_22], %20 {strides = array<i32>} : memref<144x1156xbf16, #tpu.memory_space<vmem>>, vector<8x1156xbf16>,
    %c0_23 = arith.constant 0 : index
    %c0_24 = arith.constant 0 : index
    %c102 = arith.constant 102 : index
    %22 = vector.load %arg1[%c0_23, %c0_24, %c102] : memref<1x8x1292xbf16, #tpu.memory_space<vmem>>, vector<1x8x1156xbf16>
    %23 = vector.shape_cast %22 : vector<1x8x1156xbf16> to vector<8x1156xbf16>
    %c56 = arith.constant 56 : index
    %c0_25 = arith.constant 0 : index
    %24 = vector.load %arg9[%c56, %c0_25] : memref<144x1156xbf16, #tpu.memory_space<vmem>>, vector<8x1156xbf16>
    tpu.vector_store %arg9[%c56, %c0_25], %23 {strides = array<i32>} : memref<144x1156xbf16, #tpu.memory_space<vmem>>, vector<8x1156xbf16>,
    %c0_26 = arith.constant 0 : index
    %c0_27 = arith.constant 0 : index
    %c103 = arith.constant 103 : index
    %25 = vector.load %arg1[%c0_26, %c0_27, %c103] : memref<1x8x1292xbf16, #tpu.memory_space<vmem>>, vector<1x8x1156xbf16>
    %26 = vector.shape_cast %25 : vector<1x8x1156xbf16> to vector<8x1156xbf16>
    %c64 = arith.constant 64 : index
    %c0_28 = arith.constant 0 : index
    %27 = vector.load %arg9[%c64, %c0_28] : memref<144x1156xbf16, #tpu.memory_space<vmem>>, vector<8x1156xbf16>
    tpu.vector_store %arg9[%c64, %c0_28], %26 {strides = array<i32>} : memref<144x1156xbf16, #tpu.memory_space<vmem>>, vector<8x1156xbf16>,
    %c0_29 = arith.constant 0 : index
    %c0_30 = arith.constant 0 : index
    %c33_31 = arith.constant 33 : index
    %28 = vector.load %arg2[%c0_29, %c0_30, %c33_31] : memref<1x8x1292xbf16, #tpu.memory_space<vmem>>, vector<1x8x1156xbf16>
    %29 = vector.shape_cast %28 : vector<1x8x1156xbf16> to vector<8x1156xbf16>
    %c72 = arith.constant 72 : index
    %c0_32 = arith.constant 0 : index
    %30 = vector.load %arg9[%c72, %c0_32] : memref<144x1156xbf16, #tpu.memory_space<vmem>>, vector<8x1156xbf16>
    tpu.vector_store %arg9[%c72, %c0_32], %29 {strides = array<i32>} : memref<144x1156xbf16, #tpu.memory_space<vmem>>, vector<8x1156xbf16>,
    %c0_33 = arith.constant 0 : index
    %c0_34 = arith.constant 0 : index
    %c34_35 = arith.constant 34 : index
    %31 = vector.load %arg2[%c0_33, %c0_34, %c34_35] : memref<1x8x1292xbf16, #tpu.memory_space<vmem>>, vector<1x8x1156xbf16>
    %32 = vector.shape_cast %31 : vector<1x8x1156xbf16> to vector<8x1156xbf16>
    %c80 = arith.constant 80 : index
    %c0_36 = arith.constant 0 : index
    %33 = vector.load %arg9[%c80, %c0_36] : memref<144x1156xbf16, #tpu.memory_space<vmem>>, vector<8x1156xbf16>
    tpu.vector_store %arg9[%c80, %c0_36], %32 {strides = array<i32>} : memref<144x1156xbf16, #tpu.memory_space<vmem>>, vector<8x1156xbf16>,
    %c0_37 = arith.constant 0 : index
    %c0_38 = arith.constant 0 : index
    %c35_39 = arith.constant 35 : index
    %34 = vector.load %arg2[%c0_37, %c0_38, %c35_39] : memref<1x8x1292xbf16, #tpu.memory_space<vmem>>, vector<1x8x1156xbf16>
    %35 = vector.shape_cast %34 : vector<1x8x1156xbf16> to vector<8x1156xbf16>
    %c88 = arith.constant 88 : index
    %c0_40 = arith.constant 0 : index
    %36 = vector.load %arg9[%c88, %c0_40] : memref<144x1156xbf16, #tpu.memory_space<vmem>>, vector<8x1156xbf16>
    tpu.vector_store %arg9[%c88, %c0_40], %35 {strides = array<i32>} : memref<144x1156xbf16, #tpu.memory_space<vmem>>, vector<8x1156xbf16>,
    %c0_41 = arith.constant 0 : index
    %c0_42 = arith.constant 0 : index
    %c67_43 = arith.constant 67 : index
    %37 = vector.load %arg2[%c0_41, %c0_42, %c67_43] : memref<1x8x1292xbf16, #tpu.memory_space<vmem>>, vector<1x8x1156xbf16>
    %38 = vector.shape_cast %37 : vector<1x8x1156xbf16> to vector<8x1156xbf16>
    %c96 = arith.constant 96 : index
    %c0_44 = arith.constant 0 : index
    %39 = vector.load %arg9[%c96, %c0_44] : memref<144x1156xbf16, #tpu.memory_space<vmem>>, vector<8x1156xbf16>
    tpu.vector_store %arg9[%c96, %c0_44], %38 {strides = array<i32>} : memref<144x1156xbf16, #tpu.memory_space<vmem>>, vector<8x1156xbf16>,
    %c0_45 = arith.constant 0 : index
    %c0_46 = arith.constant 0 : index
    %c68_47 = arith.constant 68 : index
    %40 = vector.load %arg2[%c0_45, %c0_46, %c68_47] : memref<1x8x1292xbf16, #tpu.memory_space<vmem>>, vector<1x8x1156xbf16>
    %41 = vector.shape_cast %40 : vector<1x8x1156xbf16> to vector<8x1156xbf16>
    %c104 = arith.constant 104 : index
    %c0_48 = arith.constant 0 : index
    %42 = vector.load %arg9[%c104, %c0_48] : memref<144x1156xbf16, #tpu.memory_space<vmem>>, vector<8x1156xbf16>
    tpu.vector_store %arg9[%c104, %c0_48], %41 {strides = array<i32>} : memref<144x1156xbf16, #tpu.memory_space<vmem>>, vector<8x1156xbf16>,
    %c0_49 = arith.constant 0 : index
    %c0_50 = arith.constant 0 : index
    %c69_51 = arith.constant 69 : index
    %43 = vector.load %arg2[%c0_49, %c0_50, %c69_51] : memref<1x8x1292xbf16, #tpu.memory_space<vmem>>, vector<1x8x1156xbf16>
    %44 = vector.shape_cast %43 : vector<1x8x1156xbf16> to vector<8x1156xbf16>
    %c112 = arith.constant 112 : index
    %c0_52 = arith.constant 0 : index
    %45 = vector.load %arg9[%c112, %c0_52] : memref<144x1156xbf16, #tpu.memory_space<vmem>>, vector<8x1156xbf16>
    tpu.vector_store %arg9[%c112, %c0_52], %44 {strides = array<i32>} : memref<144x1156xbf16, #tpu.memory_space<vmem>>, vector<8x1156xbf16>,
    %c0_53 = arith.constant 0 : index
    %c0_54 = arith.constant 0 : index
    %c101_55 = arith.constant 101 : index
    %46 = vector.load %arg2[%c0_53, %c0_54, %c101_55] : memref<1x8x1292xbf16, #tpu.memory_space<vmem>>, vector<1x8x1156xbf16>
    %47 = vector.shape_cast %46 : vector<1x8x1156xbf16> to vector<8x1156xbf16>
    %c120 = arith.constant 120 : index
    %c0_56 = arith.constant 0 : index
    %48 = vector.load %arg9[%c120, %c0_56] : memref<144x1156xbf16, #tpu.memory_space<vmem>>, vector<8x1156xbf16>
    tpu.vector_store %arg9[%c120, %c0_56], %47 {strides = array<i32>} : memref<144x1156xbf16, #tpu.memory_space<vmem>>, vector<8x1156xbf16>,
    %c0_57 = arith.constant 0 : index
    %c0_58 = arith.constant 0 : index
    %c102_59 = arith.constant 102 : index
    %49 = vector.load %arg2[%c0_57, %c0_58, %c102_59] : memref<1x8x1292xbf16, #tpu.memory_space<vmem>>, vector<1x8x1156xbf16>
    %50 = vector.shape_cast %49 : vector<1x8x1156xbf16> to vector<8x1156xbf16>
    %c128 = arith.constant 128 : index
    %c0_60 = arith.constant 0 : index
    %51 = vector.load %arg9[%c128, %c0_60] : memref<144x1156xbf16, #tpu.memory_space<vmem>>, vector<8x1156xbf16>
    tpu.vector_store %arg9[%c128, %c0_60], %50 {strides = array<i32>} : memref<144x1156xbf16, #tpu.memory_space<vmem>>, vector<8x1156xbf16>,
    %c0_61 = arith.constant 0 : index
    %c0_62 = arith.constant 0 : index
    %c103_63 = arith.constant 103 : index
    %52 = vector.load %arg2[%c0_61, %c0_62, %c103_63] : memref<1x8x1292xbf16, #tpu.memory_space<vmem>>, vector<1x8x1156xbf16>
    %53 = vector.shape_cast %52 : vector<1x8x1156xbf16> to vector<8x1156xbf16>
    %c136 = arith.constant 136 : index
    %c0_64 = arith.constant 0 : index
    %54 = vector.load %arg9[%c136, %c0_64] : memref<144x1156xbf16, #tpu.memory_space<vmem>>, vector<8x1156xbf16>
    tpu.vector_store %arg9[%c136, %c0_64], %53 {strides = array<i32>} : memref<144x1156xbf16, #tpu.memory_space<vmem>>, vector<8x1156xbf16>,
    %c0_65 = arith.constant 0 : index
    %c0_66 = arith.constant 0 : index
    %55 = vector.load %arg3[%c0_65, %c0_66] : memref<8x144xbf16, #tpu.memory_space<vmem>>, vector<8x144xbf16>
    %c0_67 = arith.constant 0 : index
    %c0_68 = arith.constant 0 : index
    %56 = vector.load %arg9[%c0_67, %c0_68] : memref<144x1156xbf16, #tpu.memory_space<vmem>>, vector<144x1156xbf16>
    %cst = arith.constant dense<0.000000e+00> : vector<8x1156xf32>
    %57 = tpu.matmul %55, %56, %cst {dimension_numbers = #tpu.dot_dimension_numbers<[1], [0], [0], [1], [0, 0, 1, 1], [], []>} : vector<8x144xbf16>, vector<144x1156xbf16>, vector<8x1156xf32> -> vector<8x1156xf32>
    %58 = vector.broadcast %0 : vector<1x1156xf32> to vector<8x1156xf32>
    %59 = arith.mulf %57, %58 : vector<8x1156xf32>
    %cst_69 = arith.constant dense<0.000000e+00> : vector<8xf32>
    %60 = vector.multi_reduction <add>, %59, %cst_69 [1] : vector<8x1156xf32> to vector<8xf32>
    %61 = vector.shape_cast %60 : vector<8xf32> to vector<8x1xf32>
    %cst_70 = arith.constant 9.765625E-4 : f32
    %62 = vector.broadcast %cst_70 : f32 to vector<8x1xf32>
    %63 = arith.mulf %61, %62 : vector<8x1xf32>
    %64 = vector.broadcast %63 : vector<8x1xf32> to vector<8x1156xf32>
    %65 = arith.subf %57, %64 : vector<8x1156xf32>
    %66 = vector.broadcast %0 : vector<1x1156xf32> to vector<8x1156xf32>
    %67 = arith.mulf %65, %66 : vector<8x1156xf32>
    %68 = arith.mulf %67, %67 : vector<8x1156xf32>
    %cst_71 = arith.constant dense<0.000000e+00> : vector<8xf32>
    %69 = vector.multi_reduction <add>, %68, %cst_71 [1] : vector<8x1156xf32> to vector<8xf32>
    %70 = vector.shape_cast %69 : vector<8xf32> to vector<8x1xf32>
    %cst_72 = arith.constant 9.765625E-4 : f32
    %71 = vector.broadcast %cst_72 : f32 to vector<8x1xf32>
    %72 = arith.mulf %70, %71 : vector<8x1xf32>
    %cst_73 = arith.constant 9.99999974E-6 : f32
    %73 = vector.broadcast %cst_73 : f32 to vector<8x1xf32>
    %74 = arith.addf %72, %73 : vector<8x1xf32>
    %75 = math.rsqrt %74 : vector<8x1xf32>
    %76 = vector.broadcast %75 : vector<8x1xf32> to vector<8x1156xf32>
    %77 = arith.mulf %67, %76 : vector<8x1156xf32>
    %cst_74 = arith.constant 0.000000e+00 : f32
    %78 = vector.broadcast %cst_74 : f32 to vector<8x1156xf32>
    %79 = arith.maximumf %77, %78 : vector<8x1156xf32>
    %cst_75 = arith.constant 0.000000e+00 : bf16
    %80 = vector.broadcast %cst_75 : bf16 to vector<8x128xbf16>
    %c0_76 = arith.constant 0 : index
    %c0_77 = arith.constant 0 : index
    %81 = vector.load %arg10[%c0_76, %c0_77] : memref<8x1408xbf16, #tpu.memory_space<vmem>>, vector<8x128xbf16>
    tpu.vector_store %arg10[%c0_76, %c0_77], %80 {strides = array<i32>} : memref<8x1408xbf16, #tpu.memory_space<vmem>>, vector<8x128xbf16>,
    %cst_78 = arith.constant 0.000000e+00 : bf16
    %82 = vector.broadcast %cst_78 : bf16 to vector<8x124xbf16>
    %c0_79 = arith.constant 0 : index
    %c1284 = arith.constant 1284 : index
    %83 = vector.load %arg10[%c0_79, %c1284] : memref<8x1408xbf16, #tpu.memory_space<vmem>>, vector<8x124xbf16>
    tpu.vector_store %arg10[%c0_79, %c1284], %82 {strides = array<i32>} : memref<8x1408xbf16, #tpu.memory_space<vmem>>, vector<8x124xbf16>,
    %84 = arith.truncf %79 : vector<8x1156xf32> to vector<8x1156xbf16>
    %c0_80 = arith.constant 0 : index
    %c128_81 = arith.constant 128 : index
    %85 = vector.load %arg10[%c0_80, %c128_81] : memref<8x1408xbf16, #tpu.memory_space<vmem>>, vector<8x1156xbf16>
    tpu.vector_store %arg10[%c0_80, %c128_81], %84 {strides = array<i32>} : memref<8x1408xbf16, #tpu.memory_space<vmem>>, vector<8x1156xbf16>,
    %c0_82 = arith.constant 0 : index
    %c93 = arith.constant 93 : index
    %86 = vector.load %arg10[%c0_82, %c93] : memref<8x1408xbf16, #tpu.memory_space<vmem>>, vector<8x1156xbf16>
    %c0_83 = arith.constant 0 : index
    %c0_84 = arith.constant 0 : index
    %87 = vector.load %arg9[%c0_83, %c0_84] : memref<144x1156xbf16, #tpu.memory_space<vmem>>, vector<8x1156xbf16>
    tpu.vector_store %arg9[%c0_83, %c0_84], %86 {strides = array<i32>} : memref<144x1156xbf16, #tpu.memory_space<vmem>>, vector<8x1156xbf16>,
    %c0_85 = arith.constant 0 : index
    %c94 = arith.constant 94 : index
    %88 = vector.load %arg10[%c0_85, %c94] : memref<8x1408xbf16, #tpu.memory_space<vmem>>, vector<8x1156xbf16>
    %c8_86 = arith.constant 8 : index
    %c0_87 = arith.constant 0 : index
    %89 = vector.load %arg9[%c8_86, %c0_87] : memref<144x1156xbf16, #tpu.memory_space<vmem>>, vector<8x1156xbf16>
    tpu.vector_store %arg9[%c8_86, %c0_87], %88 {strides = array<i32>} : memref<144x1156xbf16, #tpu.memory_space<vmem>>, vector<8x1156xbf16>,
    %c0_88 = arith.constant 0 : index
    %c95 = arith.constant 95 : index
    %90 = vector.load %arg10[%c0_88, %c95] : memref<8x1408xbf16, #tpu.memory_space<vmem>>, vector<8x1156xbf16>
    %c16_89 = arith.constant 16 : index
    %c0_90 = arith.constant 0 : index
    %91 = vector.load %arg9[%c16_89, %c0_90] : memref<144x1156xbf16, #tpu.memory_space<vmem>>, vector<8x1156xbf16>
    tpu.vector_store %arg9[%c16_89, %c0_90], %90 {strides = array<i32>} : memref<144x1156xbf16, #tpu.memory_space<vmem>>, vector<8x1156xbf16>,
    %c0_91 = arith.constant 0 : index
    %c127 = arith.constant 127 : index
    %92 = vector.load %arg10[%c0_91, %c127] : memref<8x1408xbf16, #tpu.memory_space<vmem>>, vector<8x1156xbf16>
    %c24_92 = arith.constant 24 : index
    %c0_93 = arith.constant 0 : index
    %93 = vector.load %arg9[%c24_92, %c0_93] : memref<144x1156xbf16, #tpu.memory_space<vmem>>, vector<8x1156xbf16>
    tpu.vector_store %arg9[%c24_92, %c0_93], %92 {strides = array<i32>} : memref<144x1156xbf16, #tpu.memory_space<vmem>>, vector<8x1156xbf16>,
    %c0_94 = arith.constant 0 : index
    %c128_95 = arith.constant 128 : index
    %94 = vector.load %arg10[%c0_94, %c128_95] : memref<8x1408xbf16, #tpu.memory_space<vmem>>, vector<8x1156xbf16>
    %c32_96 = arith.constant 32 : index
    %c0_97 = arith.constant 0 : index
    %95 = vector.load %arg9[%c32_96, %c0_97] : memref<144x1156xbf16, #tpu.memory_space<vmem>>, vector<8x1156xbf16>
    tpu.vector_store %arg9[%c32_96, %c0_97], %94 {strides = array<i32>} : memref<144x1156xbf16, #tpu.memory_space<vmem>>, vector<8x1156xbf16>,
    %c0_98 = arith.constant 0 : index
    %c129 = arith.constant 129 : index
    %96 = vector.load %arg10[%c0_98, %c129] : memref<8x1408xbf16, #tpu.memory_space<vmem>>, vector<8x1156xbf16>
    %c40_99 = arith.constant 40 : index
    %c0_100 = arith.constant 0 : index
    %97 = vector.load %arg9[%c40_99, %c0_100] : memref<144x1156xbf16, #tpu.memory_space<vmem>>, vector<8x1156xbf16>
    tpu.vector_store %arg9[%c40_99, %c0_100], %96 {strides = array<i32>} : memref<144x1156xbf16, #tpu.memory_space<vmem>>, vector<8x1156xbf16>,
    %c0_101 = arith.constant 0 : index
    %c161 = arith.constant 161 : index
    %98 = vector.load %arg10[%c0_101, %c161] : memref<8x1408xbf16, #tpu.memory_space<vmem>>, vector<8x1156xbf16>
    %c48_102 = arith.constant 48 : index
    %c0_103 = arith.constant 0 : index
    %99 = vector.load %arg9[%c48_102, %c0_103] : memref<144x1156xbf16, #tpu.memory_space<vmem>>, vector<8x1156xbf16>
    tpu.vector_store %arg9[%c48_102, %c0_103], %98 {strides = array<i32>} : memref<144x1156xbf16, #tpu.memory_space<vmem>>, vector<8x1156xbf16>,
    %c0_104 = arith.constant 0 : index
    %c162 = arith.constant 162 : index
    %100 = vector.load %arg10[%c0_104, %c162] : memref<8x1408xbf16, #tpu.memory_space<vmem>>, vector<8x1156xbf16>
    %c56_105 = arith.constant 56 : index
    %c0_106 = arith.constant 0 : index
    %101 = vector.load %arg9[%c56_105, %c0_106] : memref<144x1156xbf16, #tpu.memory_space<vmem>>, vector<8x1156xbf16>
    tpu.vector_store %arg9[%c56_105, %c0_106], %100 {strides = array<i32>} : memref<144x1156xbf16, #tpu.memory_space<vmem>>, vector<8x1156xbf16>,
    %c0_107 = arith.constant 0 : index
    %c163 = arith.constant 163 : index
    %102 = vector.load %arg10[%c0_107, %c163] : memref<8x1408xbf16, #tpu.memory_space<vmem>>, vector<8x1156xbf16>
    %c64_108 = arith.constant 64 : index
    %c0_109 = arith.constant 0 : index
    %103 = vector.load %arg9[%c64_108, %c0_109] : memref<144x1156xbf16, #tpu.memory_space<vmem>>, vector<8x1156xbf16>
    tpu.vector_store %arg9[%c64_108, %c0_109], %102 {strides = array<i32>} : memref<144x1156xbf16, #tpu.memory_space<vmem>>, vector<8x1156xbf16>,
    %c0_110 = arith.constant 0 : index
    %c0_111 = arith.constant 0 : index
    %104 = vector.load %arg4[%c0_110, %c0_111] : memref<8x72xbf16, #tpu.memory_space<vmem>>, vector<8x72xbf16>
    %c0_112 = arith.constant 0 : index
    %c0_113 = arith.constant 0 : index
    %105 = vector.load %arg9[%c0_112, %c0_113] : memref<144x1156xbf16, #tpu.memory_space<vmem>>, vector<72x1156xbf16>
    %cst_114 = arith.constant dense<0.000000e+00> : vector<8x1156xf32>
    %106 = tpu.matmul %104, %105, %cst_114 {dimension_numbers = #tpu.dot_dimension_numbers<[1], [0], [0], [1], [0, 0, 1, 1], [], []>} : vector<8x72xbf16>, vector<72x1156xbf16>, vector<8x1156xf32> -> vector<8x1156xf32>
    %107 = vector.broadcast %0 : vector<1x1156xf32> to vector<8x1156xf32>
    %108 = arith.mulf %106, %107 : vector<8x1156xf32>
    %cst_115 = arith.constant dense<0.000000e+00> : vector<8xf32>
    %109 = vector.multi_reduction <add>, %108, %cst_115 [1] : vector<8x1156xf32> to vector<8xf32>
    %110 = vector.shape_cast %109 : vector<8xf32> to vector<8x1xf32>
    %cst_116 = arith.constant 9.765625E-4 : f32
    %111 = vector.broadcast %cst_116 : f32 to vector<8x1xf32>
    %112 = arith.mulf %110, %111 : vector<8x1xf32>
    %113 = vector.broadcast %112 : vector<8x1xf32> to vector<8x1156xf32>
    %114 = arith.subf %106, %113 : vector<8x1156xf32>
    %115 = vector.broadcast %0 : vector<1x1156xf32> to vector<8x1156xf32>
    %116 = arith.mulf %114, %115 : vector<8x1156xf32>
    %117 = arith.mulf %116, %116 : vector<8x1156xf32>
    %cst_117 = arith.constant dense<0.000000e+00> : vector<8xf32>
    %118 = vector.multi_reduction <add>, %117, %cst_117 [1] : vector<8x1156xf32> to vector<8xf32>
    %119 = vector.shape_cast %118 : vector<8xf32> to vector<8x1xf32>
    %cst_118 = arith.constant 9.765625E-4 : f32
    %120 = vector.broadcast %cst_118 : f32 to vector<8x1xf32>
    %121 = arith.mulf %119, %120 : vector<8x1xf32>
    %cst_119 = arith.constant 9.99999974E-6 : f32
    %122 = vector.broadcast %cst_119 : f32 to vector<8x1xf32>
    %123 = arith.addf %121, %122 : vector<8x1xf32>
    %124 = math.rsqrt %123 : vector<8x1xf32>
    %125 = vector.broadcast %124 : vector<8x1xf32> to vector<8x1156xf32>
    %126 = arith.mulf %116, %125 : vector<8x1156xf32>
    %cst_120 = arith.constant 0.000000e+00 : f32
    %127 = vector.broadcast %cst_120 : f32 to vector<8x1156xf32>
    %128 = arith.maximumf %126, %127 : vector<8x1156xf32>
    %c0_121 = arith.constant 0 : index
    %c0_122 = arith.constant 0 : index
    %129 = vector.load %arg6[%c0_121, %c0_122] : memref<1x8xbf16, #tpu.memory_space<vmem>>, vector<1x8xbf16>
    %130 = arith.truncf %128 : vector<8x1156xf32> to vector<8x1156xbf16>
    %cst_123 = arith.constant dense<0.000000e+00> : vector<1x1156xf32>
    %131 = tpu.matmul %129, %130, %cst_123 {dimension_numbers = #tpu.dot_dimension_numbers<[1], [0], [0], [1], [0, 0, 1, 1], [], []>} : vector<1x8xbf16>, vector<8x1156xbf16>, vector<1x1156xf32> -> vector<1x1156xf32>
    %c0_124 = arith.constant 0 : index
    %c0_125 = arith.constant 0 : index
    %132 = vector.load %arg7[%c0_124, %c0_125] : memref<1x1xf32, #tpu.memory_space<vmem>>, vector<1x1xf32>
    %133 = vector.broadcast %132 : vector<1x1xf32> to vector<1x1156xf32>
    %134 = arith.addf %131, %133 : vector<1x1156xf32>
    %135 = math.tanh %134 : vector<1x1156xf32>
    %c0_126 = arith.constant 0 : index
    %c0_127 = arith.constant 0 : index
    %c0_128 = arith.constant 0 : index
    %136 = vector.load %arg8[%c0_126, %c0_127, %c0_128] : memref<1x1x1156xf32, #tpu.memory_space<vmem>>, vector<1x1x1156xf32>
    %137 = vector.shape_cast %136 : vector<1x1x1156xf32> to vector<1x1156xf32>
    %138 = vector.shape_cast %135 : vector<1x1156xf32> to vector<1x1x1156xf32>
    tpu.vector_store %arg8[%c0_126, %c0_127, %c0_128], %138 {strides = array<i32>} : memref<1x1x1156xf32, #tpu.memory_space<vmem>>, vector<1x1x1156xf32>,
    return
  }
  func.func @transform_0(%arg0: i32) -> (i32, i32, i32) {
    %c0_i32 = arith.constant 0 : i32
    %c0_i32_0 = arith.constant 0 : i32
    %c0_i32_1 = arith.constant 0 : i32
    return %arg0, %c0_i32, %c0_i32_0 : i32, i32, i32
  }
  func.func @transform_1(%arg0: i32) -> (i32, i32, i32) {
    %c0_i32 = arith.constant 0 : i32
    %c0_i32_0 = arith.constant 0 : i32
    %c0_i32_1 = arith.constant 0 : i32
    return %arg0, %c0_i32, %c0_i32_0 : i32, i32, i32
  }
  func.func @transform_2(%arg0: i32) -> (i32, i32) {
    %c0_i32 = arith.constant 0 : i32
    %c0_i32_0 = arith.constant 0 : i32
    %c0_i32_1 = arith.constant 0 : i32
    return %c0_i32, %c0_i32_0 : i32, i32
  }
  func.func @transform_3(%arg0: i32) -> (i32, i32) {
    %c0_i32 = arith.constant 0 : i32
    %c0_i32_0 = arith.constant 0 : i32
    %c0_i32_1 = arith.constant 0 : i32
    return %c0_i32, %c0_i32_0 : i32, i32
  }
  func.func @transform_4(%arg0: i32) -> (i32, i32) {
    %c0_i32 = arith.constant 0 : i32
    %c0_i32_0 = arith.constant 0 : i32
    %c0_i32_1 = arith.constant 0 : i32
    return %c0_i32, %c0_i32_0 : i32, i32
  }
  func.func @transform_5(%arg0: i32) -> (i32, i32) {
    %c0_i32 = arith.constant 0 : i32
    %c0_i32_0 = arith.constant 0 : i32
    %c0_i32_1 = arith.constant 0 : i32
    return %c0_i32, %c0_i32_0 : i32, i32
  }
  func.func @transform_6(%arg0: i32) -> (i32, i32) {
    %c0_i32 = arith.constant 0 : i32
    %c0_i32_0 = arith.constant 0 : i32
    %c0_i32_1 = arith.constant 0 : i32
    return %c0_i32, %c0_i32_0 : i32, i32
  }
  func.func @transform_7(%arg0: i32) -> (i32, i32, i32) {
    %c0_i32 = arith.constant 0 : i32
    %c0_i32_0 = arith.constant 0 : i32
    %c0_i32_1 = arith.constant 0 : i32
    return %arg0, %c0_i32, %c0_i32_0 : i32, i32, i32
  }
}

</mosaic_0001>

<llo_original>
// kernel: unet_forward.4
$region0: #{unet_forward.4}
  #allocation0 [shape = 'u32[]', space=smem, size = 0x4, offset = 0x4, fixed_abs, tag = 'smem constant byte address 0x4 - core index']
  #allocation1 [shape = 'u32[72,128]{1,0:T(1,128)}', space=vmem, size = 0x9000, scoped, tag = 'internal scratch']
  #allocation2 [shape = 'bf16[72,1156]{1,0:T(8,128)(2,1)}', space=vmem, size = 0x2d000, scoped, tag = 'scratch operand']
  #allocation3 [shape = 'bf16[8,1408]{1,0:T(8,128)(2,1)}', space=vmem, size = 0x5800, scoped, tag = 'scratch operand']
  %s0 = inlined_call_operand.vmem [shape: bf16[2,8,1292], index: 0, kind: input, shape index: {}]
  %s1 = inlined_call_operand.vmem [shape: bf16[8,72], index: 1, kind: input, shape index: {}]
  %s2 = inlined_call_operand.vmem [shape: bf16[8,72], index: 2, kind: input, shape index: {}]
  %s3 = inlined_call_operand.vmem [shape: f32[1,1156], index: 3, kind: input, shape index: {}]
  %s4 = inlined_call_operand.vmem [shape: bf16[2,8,1156], index: 4, kind: output, shape index: {}]
  %s5 = sld [smem:[#allocation0]]
  $region49: #{unet_forward.4} parent=0
    _
  %s7 = ssub.s32 1, %s5
  %s8 = scalar_select 0, %s7, %s5
  loop: start=0, step=1, limit=4
  $region2: #{unet_forward.4} parent=0 // loop_pre_header
    _
  $region3: #{unet_forward.4} parent=0 // loop_header
    %s10 = sphi 0, %s14
    %p11 = scmp.ge.s32.totalorder %s10, 4
    %s20 = sphi 0, %s22
    %s23 = sphi 0, %s20
    %s24 = sphi 0, %s23
    %s40 = sphi 0, %s24
    %s44 = sphi 0, %s44
    %s46 = sphi 0, %s44
    %s47 = sphi 0, %s46
    %s61 = sphi 0, %s47
    %s65 = sphi 0, %s65
    %s67 = sphi 0, %s65
    %s68 = sphi 0, %s67
    %s82 = sphi 0, %s68
    %s86 = sphi 0, %s86
    %s88 = sphi 0, %s86
    %s89 = sphi 0, %s88
    %s103 = sphi 0, %s89
    %s109 = sphi 0, %s111
    %s112 = sphi 0, %s109
    %s113 = sphi 0, %s112
    %s129 = sphi 0, %s113
  $region4: #{unet_forward.4} parent=0 // loop_header_branch
    %13 = sbr.rel (%p11) target = $region8
  $region5: #{unet_forward.4} parent=0 // loop_body
    %s15 = ssub.s32 %s10, 1
    %s16 = ssub.s32 %s10, 2
    %s17 = sadd.s32 %s10, 1
    %s18 = ssub.s32 %s10, %s17
    %p19 = scmp.eq.s32.totalorder %s18, 0
    %s21 = sadd.s32 %s20, 1
    %s22 = scalar_select %p19, %s20, %s21
    %p25 = pneg %p19
    %p26 = scmp.eq.s32.totalorder %s10, 1
    %p27 = por %p25, %p26
    %p28 = scmp.ne.s32.totalorder %s20, %s23
    %p29 = scmp.eq.s32.totalorder %s10, 0
    %p30 = por %p28, %p29
    %p31 = scmp.ne.s32.totalorder %s20, %s23
    %p32 = scmp.eq.s32.totalorder %s15, 1
    %p33 = por %p31, %p32
    %p34 = scmp.ne.s32.totalorder %s23, %s24
    %p35 = scmp.eq.s32.totalorder %s15, 0
    %p36 = por %p34, %p35
    %p37 = scmp.ne.s32.totalorder %s23, %s24
    %p38 = scmp.eq.s32.totalorder %s16, 1
    %p39 = por %p37, %p38
    %p41 = scmp.ne.s32.totalorder %s24, %s40
    %p42 = scmp.eq.s32.totalorder %s16, 0
    %p43 = por %p41, %p42
    %s45 = sadd.s32 %s44, 1
    %p48 = scmp.eq.s32.totalorder %s10, 1
    %p49 = scmp.ne.s32.totalorder %s44, %s46
    %p50 = scmp.eq.s32.totalorder %s10, 0
    %p51 = por %p49, %p50
    %p52 = scmp.ne.s32.totalorder %s44, %s46
    %p53 = scmp.eq.s32.totalorder %s15, 1
    %p54 = por %p52, %p53
    %p55 = scmp.ne.s32.totalorder %s46, %s47
    %p56 = scmp.eq.s32.totalorder %s15, 0
    %p57 = por %p55, %p56
    %p58 = scmp.ne.s32.totalorder %s46, %s47
    %p59 = scmp.eq.s32.totalorder %s16, 1
    %p60 = por %p58, %p59
    %p62 = scmp.ne.s32.totalorder %s47, %s61
    %p63 = scmp.eq.s32.totalorder %s16, 0
    %p64 = por %p62, %p63
    %s66 = sadd.s32 %s65, 1
    %p69 = scmp.eq.s32.totalorder %s10, 1
    %p70 = scmp.ne.s32.totalorder %s65, %s67
    %p71 = scmp.eq.s32.totalorder %s10, 0
    %p72 = por %p70, %p71
    %p73 = scmp.ne.s32.totalorder %s65, %s67
    %p74 = scmp.eq.s32.totalorder %s15, 1
    %p75 = por %p73, %p74
    %p76 = scmp.ne.s32.totalorder %s67, %s68
    %p77 = scmp.eq.s32.totalorder %s15, 0
    %p78 = por %p76, %p77
    %p79 = scmp.ne.s32.totalorder %s67, %s68
    %p80 = scmp.eq.s32.totalorder %s16, 1
    %p81 = por %p79, %p80
    %p83 = scmp.ne.s32.totalorder %s68, %s82
    %p84 = scmp.eq.s32.totalorder %s16, 0
    %p85 = por %p83, %p84
    %s87 = sadd.s32 %s86, 1
    %p90 = scmp.eq.s32.totalorder %s10, 1
    %p91 = scmp.ne.s32.totalorder %s86, %s88
    %p92 = scmp.eq.s32.totalorder %s10, 0
    %p93 = por %p91, %p92
    %p94 = scmp.ne.s32.totalorder %s86, %s88
    %p95 = scmp.eq.s32.totalorder %s15, 1
    %p96 = por %p94, %p95
    %p97 = scmp.ne.s32.totalorder %s88, %s89
    %p98 = scmp.eq.s32.totalorder %s15, 0
    %p99 = por %p97, %p98
    %p100 = scmp.ne.s32.totalorder %s88, %s89
    %p101 = scmp.eq.s32.totalorder %s16, 1
    %p102 = por %p100, %p101
    %p104 = scmp.ne.s32.totalorder %s89, %s103
    %p105 = scmp.eq.s32.totalorder %s16, 0
    %p106 = por %p104, %p105
    %s107 = ssub.s32 %s10, %s17
    %p108 = scmp.eq.s32.totalorder %s107, 0
    %s110 = sadd.s32 %s109, 1
    %s111 = scalar_select %p108, %s109, %s110
    %p114 = pneg %p108
    %p115 = scmp.eq.s32.totalorder %s10, 1
    %p116 = por %p114, %p115
    %p117 = scmp.ne.s32.totalorder %s109, %s112
    %p118 = scmp.eq.s32.totalorder %s10, 0
    %p119 = por %p117, %p118
    %p120 = scmp.ne.s32.totalorder %s109, %s112
    %p121 = scmp.eq.s32.totalorder %s15, 1
    %p122 = por %p120, %p121
    %p123 = scmp.ne.s32.totalorder %s112, %s113
    %p124 = scmp.eq.s32.totalorder %s15, 0
    %p125 = por %p123, %p124
    %p126 = scmp.ne.s32.totalorder %s112, %s113
    %p127 = scmp.eq.s32.totalorder %s16, 1
    %p128 = por %p126, %p127
    %p130 = scmp.ne.s32.totalorder %s113, %s129
    %p131 = scmp.eq.s32.totalorder %s16, 0
    %p132 = por %p130, %p131
    %p133 = scmp.le.s32.totalorder 1, %s10
    %p134 = scmp.lt.s32.totalorder %s10, 3
    %p135 = pnand %p133, %p134
    %p136 = pneg %p135
    // Predicated region
    $region9: #{unet_forward.4} parent=5 // pred_check
      _
    $region10: #{unet_forward.4} parent=5 // pred_check_branch
      %138 = sbr.rel (%p135) target = $region12
    $region11: #{unet_forward.4} parent=5 // pred_region
      %s139 = ssub.s32 %s10, 1
      // Predicated region
      $region13: #{unet_forward.4} parent=11 // pred_check
        %p140 = pneg %p57
      $region14: #{unet_forward.4} parent=11 // pred_check_branch
        %142 = sbr.rel (%p140) target = $region16
      $region15: #{unet_forward.4} parent=11 // pred_region
        _
      $region16: #{unet_forward.4} parent=11 // pred_fallthru
        _
      // Predicated region
      $region17: #{unet_forward.4} parent=11 // pred_check
        %p143 = pneg %p78
      $region18: #{unet_forward.4} parent=11 // pred_check_branch
        %145 = sbr.rel (%p143) target = $region20
      $region19: #{unet_forward.4} parent=11 // pred_region
        _
      $region20: #{unet_forward.4} parent=11 // pred_fallthru
        _
      // Predicated region
      $region21: #{unet_forward.4} parent=11 // pred_check
        %p146 = pneg %p99
      $region22: #{unet_forward.4} parent=11 // pred_check_branch
        %148 = sbr.rel (%p146) target = $region24
      $region23: #{unet_forward.4} parent=11 // pred_region
        _
      $region24: #{unet_forward.4} parent=11 // pred_fallthru
        _
    $region12: #{unet_forward.4} parent=5 // pred_fallthru
      _
    %p149 = scmp.lt.s32.totalorder %s10, 2
    // Predicated region
    $region25: #{unet_forward.4} parent=5 // pred_check
      %p150 = pneg %p149
    $region26: #{unet_forward.4} parent=5 // pred_check_branch
      %152 = sbr.rel (%p150) target = $region28
    $region27: #{unet_forward.4} parent=5 // pred_region
      // Predicated region
      $region29: #{unet_forward.4} parent=27 // pred_check
        %p153 = pneg %p30
      $region30: #{unet_forward.4} parent=27 // pred_check_branch
        %155 = sbr.rel (%p153) target = $region32
      $region31: #{unet_forward.4} parent=27 // pred_region
        %p156 = scmp.lt.s32.totalorder %s10, 1
        %s157 = scalar_select %p156, %s10, 1
        %s158 = smul.addr %s157, 11
        %s159 = smul.addr %s158, 4
        %s160 = scalar_lea.vmem %s0, %s159
      $region32: #{unet_forward.4} parent=27 // pred_fallthru
        _
    $region28: #{unet_forward.4} parent=5 // pred_fallthru
      _
    %p161 = scmp.le.s32.totalorder 1, %s10
    %p162 = scmp.lt.s32.totalorder %s10, 3
    %p163 = pnand %p161, %p162
    %p164 = pneg %p163
    // Predicated region
    $region33: #{unet_forward.4} parent=5 // pred_check
      _
    $region34: #{unet_forward.4} parent=5 // pred_check_branch
      %166 = sbr.rel (%p163) target = $region36
    $region35: #{unet_forward.4} parent=5 // pred_region
      %s167 = ssub.s32 %s10, 1
      %p168 = scmp.lt.s32.totalorder %s15, 1
      %s169 = scalar_select %p168, %s15, 1
      %s170 = smul.addr %s169, 11
      %s171 = smul.addr %s170, 4
      %s172 = scalar_lea.vmem %s0, %s171
      %p173 = pneg %p36
      %p174 = pneg %p33
      %p175 = pneg %p57
      %p176 = pneg %p54
      %p177 = pneg %p78
      %p178 = pneg %p75
      %p179 = pneg %p99
      %p180 = pneg %p96
      %p181 = pneg %p125
      %p182 = pneg %p122
      %p183 = scmp.lt.s32.totalorder %s15, 1
      %s184 = scalar_select %p183, %s15, 1
      %s185 = smul.addr %s184, 10
      %s186 = smul.addr %s185, 4
      %s187 = scalar_lea.vmem %s4, %s186
      %p188 = scmp.lt.s32.totalorder %s15, 1
      %s189 = scalar_select %p188, %s15, 1
      %s190 = smul.addr %s189, 11
      %s191 = smul.addr %s190, 4
      %s192 = scalar_lea.vmem %s0, %s191
      %p193 = scmp.lt.s32.totalorder %s15, 1
      %s194 = scalar_select %p193, %s15, 1
      %s195 = smul.addr %s194, 10
      %s196 = smul.addr %s195, 4
      %s197 = scalar_lea.vmem %s4, %s196
      %v199 = vld [vmem:[%s3] sm:$0xff]
      %v200 = vld [vmem:[%s3 + $0x8] sm:$0x3]
      %v201 = vld [vmem:[%s192] sm:$0xff]
      %v202 = vld [vmem:[%s192 + $0x8] sm:$0xff]
      %v203 = vld [vmem:[%s192 + $0x10] sm:$0xff]
      %v204 = vld [vmem:[%s192 + $0x18] sm:$0xff]
      %v205 = vld [vmem:[%s192 + $0x20] sm:$0xff]
      %211 = vrot.lane.b32.xlu0 %v201, 95
      %v212 = vpop.permute.xlu0 %211
      %213 = vrot.lane.b32.xlu0 %v202, 95
      %v214 = vpop.permute.xlu0 %213
      %215 = vrot.lane.b32.xlu0 %v203, 95
      %v216 = vpop.permute.xlu0 %215
      %217 = vrot.lane.b32.xlu0 %v204, 95
      %v218 = vpop.permute.xlu0 %217
      %219 = vrot.lane.b32.xlu0 %v205, 95
      %v220 = vpop.permute.xlu0 %219
      %v221 = vrot.slane %v212, 4
      %v222 = vrot.slane %v214, 4
      %v223 = vrot.slane %v216, 4
      %v224 = vrot.slane %v218, 4
      %v225 = vrot.slane %v220, 4
      %vm226 = vcmask 1043456
      %v227 = vsel %vm226, %v221, %v222
      %vm228 = vcmask 777216
      %v229 = vsel %vm228, %v212, %v227
      %v230 = vsel %vm226, %v222, %v223
      %v231 = vsel %vm228, %v214, %v230
      %v232 = vsel %vm226, %v223, %v224
      %v233 = vsel %vm228, %v216, %v232
      %v234 = vsel %vm226, %v224, %v225
      %v235 = vsel %vm228, %v218, %v234
      %v236 = vsel %vm228, %v220, %v225
      %242 = vst [vmem:[#allocation2] sm:$0xff] %v229
      %243 = vst [vmem:[#allocation2 + $0x8] sm:$0xff] %v231
      %244 = vst [vmem:[#allocation2 + $0x10] sm:$0xff] %v233
      %245 = vst [vmem:[#allocation2 + $0x18] sm:$0xff] %v235
      %vm246 = vcmask 1043456
      %vm247 = vcmask 31748
      %vm248 = vmor %vm247, %vm246
      %249 = vst.msk [vmem:[#allocation2 + $0x20] sm:$0xff] %vm248, %v236
      %v250 = vld [vmem:[%s192] sm:$0xff]
      %v251 = vld [vmem:[%s192 + $0x8] sm:$0xff]
      %v252 = vld [vmem:[%s192 + $0x10] sm:$0xff]
      %v253 = vld [vmem:[%s192 + $0x18] sm:$0xff]
      %v254 = vld [vmem:[%s192 + $0x20] sm:$0xff]
      %260 = vrot.lane.b32.xlu0 %v250, 94
      %v261 = vpop.permute.xlu0 %260
      %262 = vrot.lane.b32.xlu0 %v251, 94
      %v263 = vpop.permute.xlu0 %262
      %264 = vrot.lane.b32.xlu0 %v252, 94
      %v265 = vpop.permute.xlu0 %264
      %266 = vrot.lane.b32.xlu0 %v253, 94
      %v267 = vpop.permute.xlu0 %266
      %268 = vrot.lane.b32.xlu0 %v254, 94
      %v269 = vpop.permute.xlu0 %268
      %v270 = vrot.slane %v261, 4
      %v271 = vrot.slane %v263, 4
      %v272 = vrot.slane %v265, 4
      %v273 = vrot.slane %v267, 4
      %v274 = vrot.slane %v269, 4
      %v275 = vsel %vm226, %v270, %v271
      %vm276 = vcmask 769024
      %v277 = vsel %vm276, %v261, %v275
      %v278 = vsel %vm226, %v271, %v272
      %v279 = vsel %vm276, %v263, %v278
      %v280 = vsel %vm226, %v272, %v273
      %v281 = vsel %vm276, %v265, %v280
      %v282 = vsel %vm226, %v273, %v274
      %v283 = vsel %vm276, %v267, %v282
      %v284 = vsel %vm276, %v269, %v274
      %290 = vst [vmem:[#allocation2 + $0x28] sm:$0xff] %v277
      %291 = vst [vmem:[#allocation2 + $0x30] sm:$0xff] %v279
      %292 = vst [vmem:[#allocation2 + $0x38] sm:$0xff] %v281
      %293 = vst [vmem:[#allocation2 + $0x40] sm:$0xff] %v283
      %294 = vst.msk [vmem:[#allocation2 + $0x48] sm:$0xff] %vm248, %v284
      %v295 = vld [vmem:[%s192] sm:$0xff]
      %v296 = vld [vmem:[%s192 + $0x8] sm:$0xff]
      %v297 = vld [vmem:[%s192 + $0x10] sm:$0xff]
      %v298 = vld [vmem:[%s192 + $0x18] sm:$0xff]
      %v299 = vld [vmem:[%s192 + $0x20] sm:$0xff]
      %305 = vrot.lane.b32.xlu0 %v295, 93
      %v306 = vpop.permute.xlu0 %305
      %307 = vrot.lane.b32.xlu0 %v296, 93
      %v308 = vpop.permute.xlu0 %307
      %309 = vrot.lane.b32.xlu0 %v297, 93
      %v310 = vpop.permute.xlu0 %309
      %311 = vrot.lane.b32.xlu0 %v298, 93
      %v312 = vpop.permute.xlu0 %311
      %313 = vrot.lane.b32.xlu0 %v299, 93
      %v314 = vpop.permute.xlu0 %313
      %v315 = vrot.slane %v306, 4
      %v316 = vrot.slane %v308, 4
      %v317 = vrot.slane %v310, 4
      %v318 = vrot.slane %v312, 4
      %v319 = vrot.slane %v314, 4
      %v320 = vsel %vm226, %v315, %v316
      %vm321 = vcmask 760832
      %v322 = vsel %vm321, %v306, %v320
      %v323 = vsel %vm226, %v316, %v317
      %v324 = vsel %vm321, %v308, %v323
      %v325 = vsel %vm226, %v317, %v318
      %v326 = vsel %vm321, %v310, %v325
      %v327 = vsel %vm226, %v318, %v319
      %v328 = vsel %vm321, %v312, %v327
      %v329 = vsel %vm321, %v314, %v319
      %335 = vst [vmem:[#allocation2 + $0x50] sm:$0xff] %v322
      %336 = vst [vmem:[#allocation2 + $0x58] sm:$0xff] %v324
      %337 = vst [vmem:[#allocation2 + $0x60] sm:$0xff] %v326
      %338 = vst [vmem:[#allocation2 + $0x68] sm:$0xff] %v328
      %339 = vst.msk [vmem:[#allocation2 + $0x70] sm:$0xff] %vm248, %v329
      %v340 = vld [vmem:[%s192] sm:$0xff]
      %v341 = vld [vmem:[%s192 + $0x8] sm:$0xff]
      %v342 = vld [vmem:[%s192 + $0x10] sm:$0xff]
      %v343 = vld [vmem:[%s192 + $0x18] sm:$0xff]
      %v344 = vld [vmem:[%s192 + $0x20] sm:$0xff]
      %350 = vrot.lane.b32.xlu0 %v340, 61
      %v351 = vpop.permute.xlu0 %350
      %352 = vrot.lane.b32.xlu0 %v341, 61
      %v353 = vpop.permute.xlu0 %352
      %354 = vrot.lane.b32.xlu0 %v342, 61
      %v355 = vpop.permute.xlu0 %354
      %356 = vrot.lane.b32.xlu0 %v343, 61
      %v357 = vpop.permute.xlu0 %356
      %358 = vrot.lane.b32.xlu0 %v344, 61
      %v359 = vpop.permute.xlu0 %358
      %v360 = vrot.slane %v351, 4
      %v361 = vrot.slane %v353, 4
      %v362 = vrot.slane %v355, 4
      %v363 = vrot.slane %v357, 4
      %v364 = vrot.slane %v359, 4
      %v365 = vsel %vm226, %v360, %v361
      %vm366 = vcmask 498688
      %v367 = vsel %vm366, %v351, %v365
      %v368 = vsel %vm226, %v361, %v362
      %v369 = vsel %vm366, %v353, %v368
      %v370 = vsel %vm226, %v362, %v363
      %v371 = vsel %vm366, %v355, %v370
      %v372 = vsel %vm226, %v363, %v364
      %v373 = vsel %vm366, %v357, %v372
      %v374 = vsel %vm366, %v359, %v364
      %380 = vst [vmem:[#allocation2 + $0x78] sm:$0xff] %v367
      %381 = vst [vmem:[#allocation2 + $0x80] sm:$0xff] %v369
      %382 = vst [vmem:[#allocation2 + $0x88] sm:$0xff] %v371
      %383 = vst [vmem:[#allocation2 + $0x90] sm:$0xff] %v373
      %384 = vst.msk [vmem:[#allocation2 + $0x98] sm:$0xff] %vm248, %v374
      %v385 = vld [vmem:[%s192] sm:$0xff]
      %v386 = vld [vmem:[%s192 + $0x8] sm:$0xff]
      %v387 = vld [vmem:[%s192 + $0x10] sm:$0xff]
      %v388 = vld [vmem:[%s192 + $0x18] sm:$0xff]
      %v389 = vld [vmem:[%s192 + $0x20] sm:$0xff]
      %395 = vrot.lane.b32.xlu0 %v385, 60
      %v396 = vpop.permute.xlu0 %395
      %397 = vrot.lane.b32.xlu0 %v386, 60
      %v398 = vpop.permute.xlu0 %397
      %399 = vrot.lane.b32.xlu0 %v387, 60
      %v400 = vpop.permute.xlu0 %399
      %401 = vrot.lane.b32.xlu0 %v388, 60
      %v402 = vpop.permute.xlu0 %401
      %403 = vrot.lane.b32.xlu0 %v389, 60
      %v404 = vpop.permute.xlu0 %403
      %v405 = vrot.slane %v396, 4
      %v406 = vrot.slane %v398, 4
      %v407 = vrot.slane %v400, 4
      %v408 = vrot.slane %v402, 4
      %v409 = vrot.slane %v404, 4
      %v410 = vsel %vm226, %v405, %v406
      %vm411 = vcmask 490496
      %v412 = vsel %vm411, %v396, %v410
      %v413 = vsel %vm226, %v406, %v407
      %v414 = vsel %vm411, %v398, %v413
      %v415 = vsel %vm226, %v407, %v408
      %v416 = vsel %vm411, %v400, %v415
      %v417 = vsel %vm226, %v408, %v409
      %v418 = vsel %vm411, %v402, %v417
      %v419 = vsel %vm411, %v404, %v409
      %425 = vst [vmem:[#allocation2 + $0xa0] sm:$0xff] %v412
      %426 = vst [vmem:[#allocation2 + $0xa8] sm:$0xff] %v414
      %427 = vst [vmem:[#allocation2 + $0xb0] sm:$0xff] %v416
      %428 = vst [vmem:[#allocation2 + $0xb8] sm:$0xff] %v418
      %429 = vst.msk [vmem:[#allocation2 + $0xc0] sm:$0xff] %vm248, %v419
      %v430 = vld [vmem:[%s192] sm:$0xff]
      %v431 = vld [vmem:[%s192 + $0x8] sm:$0xff]
      %v432 = vld [vmem:[%s192 + $0x10] sm:$0xff]
      %v433 = vld [vmem:[%s192 + $0x18] sm:$0xff]
      %v434 = vld [vmem:[%s192 + $0x20] sm:$0xff]
      %440 = vrot.lane.b32.xlu0 %v430, 59
      %v441 = vpop.permute.xlu0 %440
      %442 = vrot.lane.b32.xlu0 %v431, 59
      %v443 = vpop.permute.xlu0 %442
      %444 = vrot.lane.b32.xlu0 %v432, 59
      %v445 = vpop.permute.xlu0 %444
      %446 = vrot.lane.b32.xlu0 %v433, 59
      %v447 = vpop.permute.xlu0 %446
      %448 = vrot.lane.b32.xlu0 %v434, 59
      %v449 = vpop.permute.xlu0 %448
      %v450 = vrot.slane %v441, 4
      %v451 = vrot.slane %v443, 4
      %v452 = vrot.slane %v445, 4
      %v453 = vrot.slane %v447, 4
      %v454 = vrot.slane %v449, 4
      %v455 = vsel %vm226, %v450, %v451
      %vm456 = vcmask 482304
      %v457 = vsel %vm456, %v441, %v455
      %v458 = vsel %vm226, %v451, %v452
      %v459 = vsel %vm456, %v443, %v458
      %v460 = vsel %vm226, %v452, %v453
      %v461 = vsel %vm456, %v445, %v460
      %v462 = vsel %vm226, %v453, %v454
      %v463 = vsel %vm456, %v447, %v462
      %v464 = vsel %vm456, %v449, %v454
      %470 = vst [vmem:[#allocation2 + $0xc8] sm:$0xff] %v457
      %471 = vst [vmem:[#allocation2 + $0xd0] sm:$0xff] %v459
      %472 = vst [vmem:[#allocation2 + $0xd8] sm:$0xff] %v461
      %473 = vst [vmem:[#allocation2 + $0xe0] sm:$0xff] %v463
      %474 = vst.msk [vmem:[#allocation2 + $0xe8] sm:$0xff] %vm248, %v464
      %v475 = vld [vmem:[%s192] sm:$0xff]
      %v476 = vld [vmem:[%s192 + $0x8] sm:$0xff]
      %v477 = vld [vmem:[%s192 + $0x10] sm:$0xff]
      %v478 = vld [vmem:[%s192 + $0x18] sm:$0xff]
      %v479 = vld [vmem:[%s192 + $0x20] sm:$0xff]
      %485 = vrot.lane.b32.xlu0 %v475, 27
      %v486 = vpop.permute.xlu0 %485
      %487 = vrot.lane.b32.xlu0 %v476, 27
      %v488 = vpop.permute.xlu0 %487
      %489 = vrot.lane.b32.xlu0 %v477, 27
      %v490 = vpop.permute.xlu0 %489
      %491 = vrot.lane.b32.xlu0 %v478, 27
      %v492 = vpop.permute.xlu0 %491
      %493 = vrot.lane.b32.xlu0 %v479, 27
      %v494 = vpop.permute.xlu0 %493
      %v495 = vrot.slane %v486, 4
      %v496 = vrot.slane %v488, 4
      %v497 = vrot.slane %v490, 4
      %v498 = vrot.slane %v492, 4
      %v499 = vrot.slane %v494, 4
      %v500 = vsel %vm226, %v495, %v496
      %vm501 = vcmask 220160
      %v502 = vsel %vm501, %v486, %v500
      %v503 = vsel %vm226, %v496, %v497
      %v504 = vsel %vm501, %v488, %v503
      %v505 = vsel %vm226, %v497, %v498
      %v506 = vsel %vm501, %v490, %v505
      %v507 = vsel %vm226, %v498, %v499
      %v508 = vsel %vm501, %v492, %v507
      %v509 = vsel %vm501, %v494, %v499
      %515 = vst [vmem:[#allocation2 + $0xf0] sm:$0xff] %v502
      %516 = vst [vmem:[#allocation2 + $0xf8] sm:$0xff] %v504
      %517 = vst [vmem:[#allocation2 + $0x100] sm:$0xff] %v506
      %518 = vst [vmem:[#allocation2 + $0x108] sm:$0xff] %v508
      %519 = vst.msk [vmem:[#allocation2 + $0x110] sm:$0xff] %vm248, %v509
      %v520 = vld [vmem:[%s192] sm:$0xff]
      %v521 = vld [vmem:[%s192 + $0x8] sm:$0xff]
      %v522 = vld [vmem:[%s192 + $0x10] sm:$0xff]
      %v523 = vld [vmem:[%s192 + $0x18] sm:$0xff]
      %v524 = vld [vmem:[%s192 + $0x20] sm:$0xff]
      %530 = vrot.lane.b32.xlu0 %v520, 26
      %v531 = vpop.permute.xlu0 %530
      %532 = vrot.lane.b32.xlu0 %v521, 26
      %v533 = vpop.permute.xlu0 %532
      %534 = vrot.lane.b32.xlu0 %v522, 26
      %v535 = vpop.permute.xlu0 %534
      %536 = vrot.lane.b32.xlu0 %v523, 26
      %v537 = vpop.permute.xlu0 %536
      %538 = vrot.lane.b32.xlu0 %v524, 26
      %v539 = vpop.permute.xlu0 %538
      %v540 = vrot.slane %v531, 4
      %v541 = vrot.slane %v533, 4
      %v542 = vrot.slane %v535, 4
      %v543 = vrot.slane %v537, 4
      %v544 = vrot.slane %v539, 4
      %v545 = vsel %vm226, %v540, %v541
      %vm546 = vcmask 211968
      %v547 = vsel %vm546, %v531, %v545
      %v548 = vsel %vm226, %v541, %v542
      %v549 = vsel %vm546, %v533, %v548
      %v550 = vsel %vm226, %v542, %v543
      %v551 = vsel %vm546, %v535, %v550
      %v552 = vsel %vm226, %v543, %v544
      %v553 = vsel %vm546, %v537, %v552
      %v554 = vsel %vm546, %v539, %v544
      %560 = vst [vmem:[#allocation2 + $0x118] sm:$0xff] %v547
      %561 = vst [vmem:[#allocation2 + $0x120] sm:$0xff] %v549
      %562 = vst [vmem:[#allocation2 + $0x128] sm:$0xff] %v551
      %563 = vst [vmem:[#allocation2 + $0x130] sm:$0xff] %v553
      %564 = vst.msk [vmem:[#allocation2 + $0x138] sm:$0xff] %vm248, %v554
      %v565 = vld [vmem:[%s192] sm:$0xff]
      %v566 = vld [vmem:[%s192 + $0x8] sm:$0xff]
      %v567 = vld [vmem:[%s192 + $0x10] sm:$0xff]
      %v568 = vld [vmem:[%s192 + $0x18] sm:$0xff]
      %v569 = vld [vmem:[%s192 + $0x20] sm:$0xff]
      %575 = vrot.lane.b32.xlu0 %v565, 25
      %v576 = vpop.permute.xlu0 %575
      %577 = vrot.lane.b32.xlu0 %v566, 25
      %v578 = vpop.permute.xlu0 %577
      %579 = vrot.lane.b32.xlu0 %v567, 25
      %v580 = vpop.permute.xlu0 %579
      %581 = vrot.lane.b32.xlu0 %v568, 25
      %v582 = vpop.permute.xlu0 %581
      %583 = vrot.lane.b32.xlu0 %v569, 25
      %v584 = vpop.permute.xlu0 %583
      %v585 = vrot.slane %v576, 4
      %v586 = vrot.slane %v578, 4
      %v587 = vrot.slane %v580, 4
      %v588 = vrot.slane %v582, 4
      %v589 = vrot.slane %v584, 4
      %v590 = vsel %vm226, %v585, %v586
      %vm591 = vcmask 203776
      %v592 = vsel %vm591, %v576, %v590
      %v593 = vsel %vm226, %v586, %v587
      %v594 = vsel %vm591, %v578, %v593
      %v595 = vsel %vm226, %v587, %v588
      %v596 = vsel %vm591, %v580, %v595
      %v597 = vsel %vm226, %v588, %v589
      %v598 = vsel %vm591, %v582, %v597
      %v599 = vsel %vm591, %v584, %v589
      %605 = vst [vmem:[#allocation2 + $0x140] sm:$0xff] %v592
      %606 = vst [vmem:[#allocation2 + $0x148] sm:$0xff] %v594
      %607 = vst [vmem:[#allocation2 + $0x150] sm:$0xff] %v596
      %608 = vst [vmem:[#allocation2 + $0x158] sm:$0xff] %v598
      %609 = vst.msk [vmem:[#allocation2 + $0x160] sm:$0xff] %vm248, %v599
      %v610 = vld [vmem:[%s1] sm:$0xf]
      %v611 = vld [vmem:[#allocation2] sm:$0xff]
      %v612 = vld [vmem:[#allocation2 + $0x8] sm:$0xff]
      %v613 = vld [vmem:[#allocation2 + $0x10] sm:$0xff]
      %v614 = vld [vmem:[#allocation2 + $0x18] sm:$0xff]
      %v615 = vld [vmem:[#allocation2 + $0x20] sm:$0xff]
      %v616 = vld [vmem:[#allocation2 + $0x28] sm:$0xff]
      %v617 = vld [vmem:[#allocation2 + $0x30] sm:$0xff]
      %v618 = vld [vmem:[#allocation2 + $0x38] sm:$0xff]
      %v619 = vld [vmem:[#allocation2 + $0x40] sm:$0xff]
      %v620 = vld [vmem:[#allocation2 + $0x48] sm:$0xff]
      %v621 = vld [vmem:[#allocation2 + $0x50] sm:$0xff]
      %v622 = vld [vmem:[#allocation2 + $0x58] sm:$0xff]
      %v623 = vld [vmem:[#allocation2 + $0x60] sm:$0xff]
      %v624 = vld [vmem:[#allocation2 + $0x68] sm:$0xff]
      %v625 = vld [vmem:[#allocation2 + $0x70] sm:$0xff]
      %v626 = vld [vmem:[#allocation2 + $0x78] sm:$0xff]
      %v627 = vld [vmem:[#allocation2 + $0x80] sm:$0xff]
      %v628 = vld [vmem:[#allocation2 + $0x88] sm:$0xff]
      %v629 = vld [vmem:[#allocation2 + $0x90] sm:$0xff]
      %v630 = vld [vmem:[#allocation2 + $0x98] sm:$0xff]
      %v631 = vld [vmem:[#allocation2 + $0xa0] sm:$0xff]
      %v632 = vld [vmem:[#allocation2 + $0xa8] sm:$0xff]
      %v633 = vld [vmem:[#allocation2 + $0xb0] sm:$0xff]
      %v634 = vld [vmem:[#allocation2 + $0xb8] sm:$0xff]
      %v635 = vld [vmem:[#allocation2 + $0xc0] sm:$0xff]
      %v636 = vld [vmem:[#allocation2 + $0xc8] sm:$0xff]
      %v637 = vld [vmem:[#allocation2 + $0xd0] sm:$0xff]
      %v638 = vld [vmem:[#allocation2 + $0xd8] sm:$0xff]
      %v639 = vld [vmem:[#allocation2 + $0xe0] sm:$0xff]
      %v640 = vld [vmem:[#allocation2 + $0xe8] sm:$0xff]
      %v641 = vld [vmem:[#allocation2 + $0xf0] sm:$0xff]
      %v642 = vld [vmem:[#allocation2 + $0xf8] sm:$0xff]
      %v643 = vld [vmem:[#allocation2 + $0x100] sm:$0xff]
      %v644 = vld [vmem:[#allocation2 + $0x108] sm:$0xff]
      %v645 = vld [vmem:[#allocation2 + $0x110] sm:$0xff]
      %v646 = vld [vmem:[#allocation2 + $0x118] sm:$0xff]
      %v647 = vld [vmem:[#allocation2 + $0x120] sm:$0xff]
      %v648 = vld [vmem:[#allocation2 + $0x128] sm:$0xff]
      %v649 = vld [vmem:[#allocation2 + $0x130] sm:$0xff]
      %v650 = vld [vmem:[#allocation2 + $0x138] sm:$0xff]
      %v651 = vld [vmem:[#allocation2 + $0x140] sm:$0xff]
      %v652 = vld [vmem:[#allocation2 + $0x148] sm:$0xff]
      %v653 = vld [vmem:[#allocation2 + $0x150] sm:$0xff]
      %v654 = vld [vmem:[#allocation2 + $0x158] sm:$0xff]
      %v655 = vld [vmem:[#allocation2 + $0x160] sm:$0xff]
      %v701 = vunpack.c.l.b16 %v611
      %v702 = vunpack.c.h.b16 %v611
      %v703 = vunpack.c.l.b16 %v612
      %v704 = vunpack.c.h.b16 %v612
      %v705 = vunpack.c.l.b16 %v613
      %v706 = vunpack.c.h.b16 %v613
      %v707 = vunpack.c.l.b16 %v614
      %v708 = vunpack.c.h.b16 %v614
      %v709 = vunpack.c.l.b16 %v615
      %v710 = vunpack.c.h.b16 %v615
      %v711 = vunpack.c.l.b16 %v616
      %v712 = vunpack.c.h.b16 %v616
      %v713 = vunpack.c.l.b16 %v617
      %v714 = vunpack.c.h.b16 %v617
      %v715 = vunpack.c.l.b16 %v618
      %v716 = vunpack.c.h.b16 %v618
      %v717 = vunpack.c.l.b16 %v619
      %v718 = vunpack.c.h.b16 %v619
      %v719 = vunpack.c.l.b16 %v620
      %v720 = vunpack.c.h.b16 %v620
      %v721 = vunpack.c.l.b16 %v621
      %v722 = vunpack.c.h.b16 %v621
      %v723 = vunpack.c.l.b16 %v622
      %v724 = vunpack.c.h.b16 %v622
      %v725 = vunpack.c.l.b16 %v623
      %v726 = vunpack.c.h.b16 %v623
      %v727 = vunpack.c.l.b16 %v624
      %v728 = vunpack.c.h.b16 %v624
      %v729 = vunpack.c.l.b16 %v625
      %v730 = vunpack.c.h.b16 %v625
      %v731 = vunpack.c.l.b16 %v626
      %v732 = vunpack.c.h.b16 %v626
      %v733 = vunpack.c.l.b16 %v627
      %v734 = vunpack.c.h.b16 %v627
      %v735 = vunpack.c.l.b16 %v628
      %v736 = vunpack.c.h.b16 %v628
      %v737 = vunpack.c.l.b16 %v629
      %v738 = vunpack.c.h.b16 %v629
      %v739 = vunpack.c.l.b16 %v630
      %v740 = vunpack.c.h.b16 %v630
      %v741 = vunpack.c.l.b16 %v631
      %v742 = vunpack.c.h.b16 %v631
      %v743 = vunpack.c.l.b16 %v632
      %v744 = vunpack.c.h.b16 %v632
      %v745 = vunpack.c.l.b16 %v633
      %v746 = vunpack.c.h.b16 %v633
      %v747 = vunpack.c.l.b16 %v634
      %v748 = vunpack.c.h.b16 %v634
      %v749 = vunpack.c.l.b16 %v635
      %v750 = vunpack.c.h.b16 %v635
      %v751 = vunpack.c.l.b16 %v636
      %v752 = vunpack.c.h.b16 %v636
      %v753 = vunpack.c.l.b16 %v637
      %v754 = vunpack.c.h.b16 %v637
      %v755 = vunpack.c.l.b16 %v638
      %v756 = vunpack.c.h.b16 %v638
      %v757 = vunpack.c.l.b16 %v639
      %v758 = vunpack.c.h.b16 %v639
      %v759 = vunpack.c.l.b16 %v640
      %v760 = vunpack.c.h.b16 %v640
      %v761 = vunpack.c.l.b16 %v641
      %v762 = vunpack.c.h.b16 %v641
      %v763 = vunpack.c.l.b16 %v642
      %v764 = vunpack.c.h.b16 %v642
      %v765 = vunpack.c.l.b16 %v643
      %v766 = vunpack.c.h.b16 %v643
      %v767 = vunpack.c.l.b16 %v644
      %v768 = vunpack.c.h.b16 %v644
      %v769 = vunpack.c.l.b16 %v645
      %v770 = vunpack.c.h.b16 %v645
      %v771 = vunpack.c.l.b16 %v646
      %v772 = vunpack.c.h.b16 %v646
      %v773 = vunpack.c.l.b16 %v647
      %v774 = vunpack.c.h.b16 %v647
      %v775 = vunpack.c.l.b16 %v648
      %v776 = vunpack.c.h.b16 %v648
      %v777 = vunpack.c.l.b16 %v649
      %v778 = vunpack.c.h.b16 %v649
      %v779 = vunpack.c.l.b16 %v650
      %v780 = vunpack.c.h.b16 %v650
      %v781 = vunpack.c.l.b16 %v651
      %v782 = vunpack.c.h.b16 %v651
      %v783 = vunpack.c.l.b16 %v652
      %v784 = vunpack.c.h.b16 %v652
      %v785 = vunpack.c.l.b16 %v653
      %v786 = vunpack.c.h.b16 %v653
      %v787 = vunpack.c.l.b16 %v654
      %v788 = vunpack.c.h.b16 %v654
      %v789 = vunpack.c.l.b16 %v655
      %v790 = vunpack.c.h.b16 %v655
      %v791 = vpack.c.b16 %v711, %v701
      %v792 = vpack.c.b16 %v712, %v702
      %v793 = vpack.c.b16 %v713, %v703
      %v794 = vpack.c.b16 %v714, %v704
      %v795 = vpack.c.b16 %v715, %v705
      %v796 = vpack.c.b16 %v716, %v706
      %v797 = vpack.c.b16 %v717, %v707
      %v798 = vpack.c.b16 %v718, %v708
      %v799 = vpack.c.b16 %v719, %v709
      %v800 = vpack.c.b16 %v720, %v710
      %v801 = vpack.c.b16 %v731, %v721
      %v802 = vpack.c.b16 %v732, %v722
      %v803 = vpack.c.b16 %v733, %v723
      %v804 = vpack.c.b16 %v734, %v724
      %v805 = vpack.c.b16 %v735, %v725
      %v806 = vpack.c.b16 %v736, %v726
      %v807 = vpack.c.b16 %v737, %v727
      %v808 = vpack.c.b16 %v738, %v728
      %v809 = vpack.c.b16 %v739, %v729
      %v810 = vpack.c.b16 %v740, %v730
      %v811 = vpack.c.b16 %v751, %v741
      %v812 = vpack.c.b16 %v752, %v742
      %v813 = vpack.c.b16 %v753, %v743
      %v814 = vpack.c.b16 %v754, %v744
      %v815 = vpack.c.b16 %v755, %v745
      %v816 = vpack.c.b16 %v756, %v746
      %v817 = vpack.c.b16 %v757, %v747
      %v818 = vpack.c.b16 %v758, %v748
      %v819 = vpack.c.b16 %v759, %v749
      %v820 = vpack.c.b16 %v760, %v750
      %v821 = vpack.c.b16 %v771, %v761
      %v822 = vpack.c.b16 %v772, %v762
      %v823 = vpack.c.b16 %v773, %v763
      %v824 = vpack.c.b16 %v774, %v764
      %v825 = vpack.c.b16 %v775, %v765
      %v826 = vpack.c.b16 %v776, %v766
      %v827 = vpack.c.b16 %v777, %v767
      %v828 = vpack.c.b16 %v778, %v768
      %v829 = vpack.c.b16 %v779, %v769
      %v830 = vpack.c.b16 %v780, %v770
      %v831 = vpack.c.b16 %v781, %v781
      %v832 = vpack.c.b16 %v782, %v782
      %v833 = vpack.c.b16 %v783, %v783
      %v834 = vpack.c.b16 %v784, %v784
      %v835 = vpack.c.b16 %v785, %v785
      %v836 = vpack.c.b16 %v786, %v786
      %v837 = vpack.c.b16 %v787, %v787
      %v838 = vpack.c.b16 %v788, %v788
      %v839 = vpack.c.b16 %v789, %v789
      %v840 = vpack.c.b16 %v790, %v790
      %vm881 = vcmask 588800
      %v883 = vsel %vm881, %v610, 0
      %v886 = vsel %vm246, %v831, 0
      %v889 = vsel %vm246, %v832, 0
      %v892 = vsel %vm246, %v833, 0
      %v895 = vsel %vm246, %v834, 0
      %v898 = vsel %vm246, %v835, 0
      %v901 = vsel %vm246, %v836, 0
      %v904 = vsel %vm246, %v837, 0
      %v907 = vsel %vm246, %v838, 0
      %v910 = vsel %vm246, %v839, 0
      %v913 = vsel %vm246, %v840, 0
      %915 = vmatpush.bf16.msra.mxu0 0
      %916 = vmatpush.bf16.msra.mxu0 0
      %917 = vmatpush.bf16.msra.mxu0 0
      %918 = vmatpush.bf16.msra.mxu0 %v886
      %919 = vmatpush.bf16.msra.mxu0 %v821
      %920 = vmatpush.bf16.msra.mxu0 %v811
      %921 = vmatpush.bf16.msra.mxu0 %v801
      %922 = vmatpush.bf16.msra.mxu0 %v791
      %923 = vmatmul.bf16.gmra.mxu0 %v883
      %v924 = vpop.f32.mrf.mxu0
      %v925 = vadd.f32 0.0, %v924
      %v926 = vpop.f32.mrf.mxu0
      %927 = vdwg.mxu0
      %928 = vmatpush.bf16.msra.mxu0 0
      %929 = vmatpush.bf16.msra.mxu0 0
      %930 = vmatpush.bf16.msra.mxu0 0
      %931 = vmatpush.bf16.msra.mxu0 %v889
      %932 = vmatpush.bf16.msra.mxu0 %v822
      %933 = vmatpush.bf16.msra.mxu0 %v812
      %934 = vmatpush.bf16.msra.mxu0 %v802
      %935 = vmatpush.bf16.msra.mxu0 %v792
      %936 = vmatmul.bf16.gmra.mxu0 %v883
      %v937 = vpop.f32.mrf.mxu0
      %v938 = vadd.f32 0.0, %v937
      %v939 = vpop.f32.mrf.mxu0
      %940 = vdwg.mxu0
      %941 = vmatpush.bf16.msra.mxu0 0
      %942 = vmatpush.bf16.msra.mxu0 0
      %943 = vmatpush.bf16.msra.mxu0 0
      %944 = vmatpush.bf16.msra.mxu0 %v892
      %945 = vmatpush.bf16.msra.mxu0 %v823
      %946 = vmatpush.bf16.msra.mxu0 %v813
      %947 = vmatpush.bf16.msra.mxu0 %v803
      %948 = vmatpush.bf16.msra.mxu0 %v793
      %949 = vmatmul.bf16.gmra.mxu0 %v883
      %v950 = vpop.f32.mrf.mxu0
      %v951 = vadd.f32 0.0, %v950
      %v952 = vpop.f32.mrf.mxu0
      %953 = vdwg.mxu0
      %954 = vmatpush.bf16.msra.mxu0 0
      %955 = vmatpush.bf16.msra.mxu0 0
      %956 = vmatpush.bf16.msra.mxu0 0
      %957 = vmatpush.bf16.msra.mxu0 %v895
      %958 = vmatpush.bf16.msra.mxu0 %v824
      %959 = vmatpush.bf16.msra.mxu0 %v814
      %960 = vmatpush.bf16.msra.mxu0 %v804
      %961 = vmatpush.bf16.msra.mxu0 %v794
      %962 = vmatmul.bf16.gmra.mxu0 %v883
      %v963 = vpop.f32.mrf.mxu0
      %v964 = vadd.f32 0.0, %v963
      %v965 = vpop.f32.mrf.mxu0
      %966 = vdwg.mxu0
      %967 = vmatpush.bf16.msra.mxu0 0
      %968 = vmatpush.bf16.msra.mxu0 0
      %969 = vmatpush.bf16.msra.mxu0 0
      %970 = vmatpush.bf16.msra.mxu0 %v898
      %971 = vmatpush.bf16.msra.mxu0 %v825
      %972 = vmatpush.bf16.msra.mxu0 %v815
      %973 = vmatpush.bf16.msra.mxu0 %v805
      %974 = vmatpush.bf16.msra.mxu0 %v795
      %975 = vmatmul.bf16.gmra.mxu0 %v883
      %v976 = vpop.f32.mrf.mxu0
      %v977 = vadd.f32 0.0, %v976
      %v978 = vpop.f32.mrf.mxu0
      %979 = vdwg.mxu0
      %980 = vmatpush.bf16.msra.mxu0 0
      %981 = vmatpush.bf16.msra.mxu0 0
      %982 = vmatpush.bf16.msra.mxu0 0
      %983 = vmatpush.bf16.msra.mxu0 %v901
      %984 = vmatpush.bf16.msra.mxu0 %v826
      %985 = vmatpush.bf16.msra.mxu0 %v816
      %986 = vmatpush.bf16.msra.mxu0 %v806
      %987 = vmatpush.bf16.msra.mxu0 %v796
      %988 = vmatmul.bf16.gmra.mxu0 %v883
      %v989 = vpop.f32.mrf.mxu0
      %v990 = vadd.f32 0.0, %v989
      %v991 = vpop.f32.mrf.mxu0
      %992 = vdwg.mxu0
      %993 = vmatpush.bf16.msra.mxu0 0
      %994 = vmatpush.bf16.msra.mxu0 0
      %995 = vmatpush.bf16.msra.mxu0 0
      %996 = vmatpush.bf16.msra.mxu0 %v904
      %997 = vmatpush.bf16.msra.mxu0 %v827
      %998 = vmatpush.bf16.msra.mxu0 %v817
      %999 = vmatpush.bf16.msra.mxu0 %v807
      %1000 = vmatpush.bf16.msra.mxu0 %v797
      %1001 = vmatmul.bf16.gmra.mxu0 %v883
      %v1002 = vpop.f32.mrf.mxu0
      %v1003 = vadd.f32 0.0, %v1002
      %v1004 = vpop.f32.mrf.mxu0
      %1005 = vdwg.mxu0
      %1006 = vmatpush.bf16.msra.mxu0 0
      %1007 = vmatpush.bf16.msra.mxu0 0
      %1008 = vmatpush.bf16.msra.mxu0 0
      %1009 = vmatpush.bf16.msra.mxu0 %v907
      %1010 = vmatpush.bf16.msra.mxu0 %v828
      %1011 = vmatpush.bf16.msra.mxu0 %v818
      %1012 = vmatpush.bf16.msra.mxu0 %v808
      %1013 = vmatpush.bf16.msra.mxu0 %v798
      %1014 = vmatmul.bf16.gmra.mxu0 %v883
      %v1015 = vpop.f32.mrf.mxu0
      %v1016 = vadd.f32 0.0, %v1015
      %v1017 = vpop.f32.mrf.mxu0
      %1018 = vdwg.mxu0
      %1019 = vmatpush.bf16.msra.mxu0 0
      %1020 = vmatpush.bf16.msra.mxu0 0
      %1021 = vmatpush.bf16.msra.mxu0 0
      %1022 = vmatpush.bf16.msra.mxu0 %v910
      %1023 = vmatpush.bf16.msra.mxu0 %v829
      %1024 = vmatpush.bf16.msra.mxu0 %v819
      %1025 = vmatpush.bf16.msra.mxu0 %v809
      %1026 = vmatpush.bf16.msra.mxu0 %v799
      %1027 = vmatmul.bf16.gmra.mxu0 %v883
      %v1028 = vpop.f32.mrf.mxu0
      %v1029 = vadd.f32 0.0, %v1028
      %v1030 = vpop.f32.mrf.mxu0
      %1031 = vdwg.mxu0
      %1032 = vmatpush.bf16.msra.mxu0 0
      %1033 = vmatpush.bf16.msra.mxu0 0
      %1034 = vmatpush.bf16.msra.mxu0 0
      %1035 = vmatpush.bf16.msra.mxu0 %v913
      %1036 = vmatpush.bf16.msra.mxu0 %v830
      %1037 = vmatpush.bf16.msra.mxu0 %v820
      %1038 = vmatpush.bf16.msra.mxu0 %v810
      %1039 = vmatpush.bf16.msra.mxu0 %v800
      %1040 = vmatmul.bf16.gmra.mxu0 %v883
      %v1041 = vpop.f32.mrf.mxu0
      %v1042 = vadd.f32 0.0, %v1041
      %v1043 = vpop.f32.mrf.mxu0
      %1044 = vdwg.mxu0
      %v1047 = vperm.slane %v199, 0
      %v1048 = vperm.slane %v199, 1
      %v1049 = vperm.slane %v199, 2
      %v1050 = vperm.slane %v199, 3
      %v1051 = vperm.slane %v199, 4
      %v1052 = vperm.slane %v199, 5
      %v1053 = vperm.slane %v199, 6
      %v1054 = vperm.slane %v199, 7
      %v1055 = vperm.slane %v200, 0
      %v1056 = vperm.slane %v200, 1
      %v1067 = vmul.f32 %v925, %v1047
      %v1068 = vmul.f32 %v938, %v1048
      %v1069 = vmul.f32 %v951, %v1049
      %v1070 = vmul.f32 %v964, %v1050
      %v1071 = vmul.f32 %v977, %v1051
      %v1072 = vmul.f32 %v990, %v1052
      %v1073 = vmul.f32 %v1003, %v1053
      %v1074 = vmul.f32 %v1016, %v1054
      %v1075 = vmul.f32 %v1029, %v1055
      %v1076 = vmul.f32 %v1042, %v1056
      %v1077 = vadd.f32 %v1067, %v1068
      %v1078 = vadd.f32 %v1077, %v1069
      %v1079 = vadd.f32 %v1078, %v1070
      %v1080 = vadd.f32 %v1079, %v1071
      %v1081 = vadd.f32 %v1080, %v1072
      %v1082 = vadd.f32 %v1081, %v1073
      %v1083 = vadd.f32 %v1082, %v1074
      %v1084 = vadd.f32 %v1083, %v1075
      %vm1085 = vcmask 31744
      %v1086 = vsel %vm1085, %v1076, 0.0
      %v1087 = vadd.f32 %v1084, %v1086
      %1088 = vadd.xlane.f32.xlu0 %v1087
      %v1089 = vpop.xlane.xlu0 %1088
      %v1090 = vmul.f32 %v1089, 0.0009765625
      %v1091 = vsub.f32 %v925, %v1090
      %v1092 = vsub.f32 %v938, %v1090
      %v1093 = vsub.f32 %v951, %v1090
      %v1094 = vsub.f32 %v964, %v1090
      %v1095 = vsub.f32 %v977, %v1090
      %v1096 = vsub.f32 %v990, %v1090
      %v1097 = vsub.f32 %v1003, %v1090
      %v1098 = vsub.f32 %v1016, %v1090
      %v1099 = vsub.f32 %v1029, %v1090
      %v1100 = vsub.f32 %v1042, %v1090
      %v1101 = vmul.f32 %v1091, %v1047
      %v1102 = vmul.f32 %v1092, %v1048
      %v1103 = vmul.f32 %v1093, %v1049
      %v1104 = vmul.f32 %v1094, %v1050
      %v1105 = vmul.f32 %v1095, %v1051
      %v1106 = vmul.f32 %v1096, %v1052
      %v1107 = vmul.f32 %v1097, %v1053
      %v1108 = vmul.f32 %v1098, %v1054
      %v1109 = vmul.f32 %v1099, %v1055
      %v1110 = vmul.f32 %v1100, %v1056
      %v1111 = vmul.f32 %v1101, %v1101
      %v1112 = vmul.f32 %v1102, %v1102
      %v1113 = vmul.f32 %v1103, %v1103
      %v1114 = vmul.f32 %v1104, %v1104
      %v1115 = vmul.f32 %v1105, %v1105
      %v1116 = vmul.f32 %v1106, %v1106
      %v1117 = vmul.f32 %v1107, %v1107
      %v1118 = vmul.f32 %v1108, %v1108
      %v1119 = vmul.f32 %v1109, %v1109
      %v1120 = vmul.f32 %v1110, %v1110
      %v1121 = vadd.f32 %v1111, %v1112
      %v1122 = vadd.f32 %v1121, %v1113
      %v1123 = vadd.f32 %v1122, %v1114
      %v1124 = vadd.f32 %v1123, %v1115
      %v1125 = vadd.f32 %v1124, %v1116
      %v1126 = vadd.f32 %v1125, %v1117
      %v1127 = vadd.f32 %v1126, %v1118
      %v1128 = vadd.f32 %v1127, %v1119
      %v1129 = vsel %vm1085, %v1120, 0.0
      %v1130 = vadd.f32 %v1128, %v1129
      %1131 = vadd.xlane.f32.xlu0 %v1130
      %v1132 = vpop.xlane.xlu0 %1131
      %v1133 = vmul.f32 %v1132, 0.0009765625
      %v1134 = vadd.f32 %v1133, 1e-05
      %v1135 = vrsqrt.pop %v1134
      %v1136 = vmul.f32 %v1135, %v1134
      %v1137 = vmul.f32 %v1136, %v1135
      %v1138 = vmul.f32 0.5, %v1137
      %v1139 = vsub.f32 1.5, %v1138
      %v1140 = vmul.f32 %v1135, %v1139
      %vm1141 = vweird.f32 %v1134
      %vm1142 = vweird.f32 %v1135
      %vm1143 = vmor %vm1141, %vm1142
      %v1144 = vsel %vm1143, %v1135, %v1140
      %v1145 = vmul.f32 %v1101, %v1144
      %v1146 = vmul.f32 %v1102, %v1144
      %v1147 = vmul.f32 %v1103, %v1144
      %v1148 = vmul.f32 %v1104, %v1144
      %v1149 = vmul.f32 %v1105, %v1144
      %v1150 = vmul.f32 %v1106, %v1144
      %v1151 = vmul.f32 %v1107, %v1144
      %v1152 = vmul.f32 %v1108, %v1144
      %v1153 = vmul.f32 %v1109, %v1144
      %v1154 = vmul.f32 %v1110, %v1144
      %v1155 = vmax.f32 %v1145, 0.0
      %v1156 = vmax.f32 %v1146, 0.0
      %v1157 = vmax.f32 %v1147, 0.0
      %v1158 = vmax.f32 %v1148, 0.0
      %v1159 = vmax.f32 %v1149, 0.0
      %v1160 = vmax.f32 %v1150, 0.0
      %v1161 = vmax.f32 %v1151, 0.0
      %v1162 = vmax.f32 %v1152, 0.0
      %v1163 = vmax.f32 %v1153, 0.0
      %v1164 = vmax.f32 %v1154, 0.0
      %1165 = vst [vmem:[#allocation3] sm:$0xf] 0
      %vm1166 = vcmask 1043488
      %1167 = vst.msk [vmem:[#allocation3 + $0x28] sm:$0xf] %vm1166, 0
      %v1168 = vpack.c.bf16 %v1156, %v1155
      %v1169 = vpack.c.bf16 %v1158, %v1157
      %v1170 = vpack.c.bf16 %v1160, %v1159
      %v1171 = vpack.c.bf16 %v1162, %v1161
      %v1172 = vpack.c.bf16 %v1164, %v1163
      %1173 = vst [vmem:[#allocation3 + $0x4] sm:$0xff] %v1168
      %1174 = vst [vmem:[#allocation3 + $0xc] sm:$0xff] %v1169
      %1175 = vst [vmem:[#allocation3 + $0x14] sm:$0xff] %v1170
      %1176 = vst [vmem:[#allocation3 + $0x1c] sm:$0xff] %v1171
      %1177 = vst.msk [vmem:[#allocation3 + $0x24] sm:$0xff] %vm248, %v1172
      %v1178 = vld [vmem:[#allocation3] sm:$0xff]
      %v1179 = vld [vmem:[#allocation3 + $0x8] sm:$0xff]
      %v1180 = vld [vmem:[#allocation3 + $0x10] sm:$0xff]
      %v1181 = vld [vmem:[#allocation3 + $0x18] sm:$0xff]
      %v1182 = vld [vmem:[#allocation3 + $0x20] sm:$0xff]
      %1188 = vrot.lane.b32.xlu0 %v1178, 35
      %v1189 = vpop.permute.xlu0 %1188
      %1190 = vrot.lane.b32.xlu0 %v1179, 35
      %v1191 = vpop.permute.xlu0 %1190
      %1192 = vrot.lane.b32.xlu0 %v1180, 35
      %v1193 = vpop.permute.xlu0 %1192
      %1194 = vrot.lane.b32.xlu0 %v1181, 35
      %v1195 = vpop.permute.xlu0 %1194
      %1196 = vrot.lane.b32.xlu0 %v1182, 35
      %v1197 = vpop.permute.xlu0 %1196
      %v1198 = vrot.slane %v1189, 4
      %v1199 = vrot.slane %v1191, 4
      %v1200 = vrot.slane %v1193, 4
      %v1201 = vrot.slane %v1195, 4
      %v1202 = vrot.slane %v1197, 4
      %v1203 = vsel %vm226, %v1198, %v1199
      %vm1204 = vcmask 285696
      %v1205 = vsel %vm1204, %v1189, %v1203
      %v1206 = vsel %vm226, %v1199, %v1200
      %v1207 = vsel %vm1204, %v1191, %v1206
      %v1208 = vsel %vm226, %v1200, %v1201
      %v1209 = vsel %vm1204, %v1193, %v1208
      %v1210 = vsel %vm226, %v1201, %v1202
      %v1211 = vsel %vm1204, %v1195, %v1210
      %v1212 = vsel %vm1204, %v1197, %v1202
      %1218 = vst [vmem:[#allocation2] sm:$0xff] %v1205
      %1219 = vst [vmem:[#allocation2 + $0x8] sm:$0xff] %v1207
      %1220 = vst [vmem:[#allocation2 + $0x10] sm:$0xff] %v1209
      %1221 = vst [vmem:[#allocation2 + $0x18] sm:$0xff] %v1211
      %1222 = vst.msk [vmem:[#allocation2 + $0x20] sm:$0xff] %vm248, %v1212
      %v1223 = vld [vmem:[#allocation3] sm:$0xff]
      %v1224 = vld [vmem:[#allocation3 + $0x8] sm:$0xff]
      %v1225 = vld [vmem:[#allocation3 + $0x10] sm:$0xff]
      %v1226 = vld [vmem:[#allocation3 + $0x18] sm:$0xff]
      %v1227 = vld [vmem:[#allocation3 + $0x20] sm:$0xff]
      %1233 = vrot.lane.b32.xlu0 %v1223, 34
      %v1234 = vpop.permute.xlu0 %1233
      %1235 = vrot.lane.b32.xlu0 %v1224, 34
      %v1236 = vpop.permute.xlu0 %1235
      %1237 = vrot.lane.b32.xlu0 %v1225, 34
      %v1238 = vpop.permute.xlu0 %1237
      %1239 = vrot.lane.b32.xlu0 %v1226, 34
      %v1240 = vpop.permute.xlu0 %1239
      %1241 = vrot.lane.b32.xlu0 %v1227, 34
      %v1242 = vpop.permute.xlu0 %1241
      %v1243 = vrot.slane %v1234, 4
      %v1244 = vrot.slane %v1236, 4
      %v1245 = vrot.slane %v1238, 4
      %v1246 = vrot.slane %v1240, 4
      %v1247 = vrot.slane %v1242, 4
      %v1248 = vsel %vm226, %v1243, %v1244
      %vm1249 = vcmask 277504
      %v1250 = vsel %vm1249, %v1234, %v1248
      %v1251 = vsel %vm226, %v1244, %v1245
      %v1252 = vsel %vm1249, %v1236, %v1251
      %v1253 = vsel %vm226, %v1245, %v1246
      %v1254 = vsel %vm1249, %v1238, %v1253
      %v1255 = vsel %vm226, %v1246, %v1247
      %v1256 = vsel %vm1249, %v1240, %v1255
      %v1257 = vsel %vm1249, %v1242, %v1247
      %1263 = vst [vmem:[#allocation2 + $0x28] sm:$0xff] %v1250
      %1264 = vst [vmem:[#allocation2 + $0x30] sm:$0xff] %v1252
      %1265 = vst [vmem:[#allocation2 + $0x38] sm:$0xff] %v1254
      %1266 = vst [vmem:[#allocation2 + $0x40] sm:$0xff] %v1256
      %1267 = vst.msk [vmem:[#allocation2 + $0x48] sm:$0xff] %vm248, %v1257
      %v1268 = vld [vmem:[#allocation3] sm:$0xff]
      %v1269 = vld [vmem:[#allocation3 + $0x8] sm:$0xff]
      %v1270 = vld [vmem:[#allocation3 + $0x10] sm:$0xff]
      %v1271 = vld [vmem:[#allocation3 + $0x18] sm:$0xff]
      %v1272 = vld [vmem:[#allocation3 + $0x20] sm:$0xff]
      %1278 = vrot.lane.b32.xlu0 %v1268, 33
      %v1279 = vpop.permute.xlu0 %1278
      %1280 = vrot.lane.b32.xlu0 %v1269, 33
      %v1281 = vpop.permute.xlu0 %1280
      %1282 = vrot.lane.b32.xlu0 %v1270, 33
      %v1283 = vpop.permute.xlu0 %1282
      %1284 = vrot.lane.b32.xlu0 %v1271, 33
      %v1285 = vpop.permute.xlu0 %1284
      %1286 = vrot.lane.b32.xlu0 %v1272, 33
      %v1287 = vpop.permute.xlu0 %1286
      %v1288 = vrot.slane %v1279, 4
      %v1289 = vrot.slane %v1281, 4
      %v1290 = vrot.slane %v1283, 4
      %v1291 = vrot.slane %v1285, 4
      %v1292 = vrot.slane %v1287, 4
      %v1293 = vsel %vm226, %v1288, %v1289
      %vm1294 = vcmask 269312
      %v1295 = vsel %vm1294, %v1279, %v1293
      %v1296 = vsel %vm226, %v1289, %v1290
      %v1297 = vsel %vm1294, %v1281, %v1296
      %v1298 = vsel %vm226, %v1290, %v1291
      %v1299 = vsel %vm1294, %v1283, %v1298
      %v1300 = vsel %vm226, %v1291, %v1292
      %v1301 = vsel %vm1294, %v1285, %v1300
      %v1302 = vsel %vm1294, %v1287, %v1292
      %1308 = vst [vmem:[#allocation2 + $0x50] sm:$0xff] %v1295
      %1309 = vst [vmem:[#allocation2 + $0x58] sm:$0xff] %v1297
      %1310 = vst [vmem:[#allocation2 + $0x60] sm:$0xff] %v1299
      %1311 = vst [vmem:[#allocation2 + $0x68] sm:$0xff] %v1301
      %1312 = vst.msk [vmem:[#allocation2 + $0x70] sm:$0xff] %vm248, %v1302
      %v1313 = vld [vmem:[#allocation3] sm:$0xff]
      %v1314 = vld [vmem:[#allocation3 + $0x8] sm:$0xff]
      %v1315 = vld [vmem:[#allocation3 + $0x10] sm:$0xff]
      %v1316 = vld [vmem:[#allocation3 + $0x18] sm:$0xff]
      %v1317 = vld [vmem:[#allocation3 + $0x20] sm:$0xff]
      %v1318 = vld [vmem:[#allocation3 + $0x28] sm:$0xf]
      %1325 = vrot.lane.b32.xlu0 %v1313, 1
      %v1326 = vpop.permute.xlu0 %1325
      %1327 = vrot.lane.b32.xlu0 %v1314, 1
      %v1328 = vpop.permute.xlu0 %1327
      %1329 = vrot.lane.b32.xlu0 %v1315, 1
      %v1330 = vpop.permute.xlu0 %1329
      %1331 = vrot.lane.b32.xlu0 %v1316, 1
      %v1332 = vpop.permute.xlu0 %1331
      %1333 = vrot.lane.b32.xlu0 %v1317, 1
      %v1334 = vpop.permute.xlu0 %1333
      %1335 = vrot.lane.b32.xlu0 %v1318, 1
      %v1336 = vpop.permute.xlu0 %1335
      %v1337 = vrot.slane %v1326, 4
      %v1338 = vrot.slane %v1328, 4
      %v1339 = vrot.slane %v1330, 4
      %v1340 = vrot.slane %v1332, 4
      %v1341 = vrot.slane %v1334, 4
      %v1342 = vrot.slane %v1336, 4
      %v1343 = vsel %vm226, %v1337, %v1338
      %vm1344 = vcmask 7168
      %v1345 = vsel %vm1344, %v1326, %v1343
      %v1346 = vsel %vm226, %v1338, %v1339
      %v1347 = vsel %vm1344, %v1328, %v1346
      %v1348 = vsel %vm226, %v1339, %v1340
      %v1349 = vsel %vm1344, %v1330, %v1348
      %v1350 = vsel %vm226, %v1340, %v1341
      %v1351 = vsel %vm1344, %v1332, %v1350
      %v1352 = vsel %vm226, %v1341, %v1342
      %v1353 = vsel %vm1344, %v1334, %v1352
      %1359 = vst [vmem:[#allocation2 + $0x78] sm:$0xff] %v1345
      %1360 = vst [vmem:[#allocation2 + $0x80] sm:$0xff] %v1347
      %1361 = vst [vmem:[#allocation2 + $0x88] sm:$0xff] %v1349
      %1362 = vst [vmem:[#allocation2 + $0x90] sm:$0xff] %v1351
      %1363 = vst.msk [vmem:[#allocation2 + $0x98] sm:$0xff] %vm248, %v1353
      %v1364 = vld [vmem:[#allocation3 + $0x4] sm:$0xff]
      %v1365 = vld [vmem:[#allocation3 + $0xc] sm:$0xff]
      %v1366 = vld [vmem:[#allocation3 + $0x14] sm:$0xff]
      %v1367 = vld [vmem:[#allocation3 + $0x1c] sm:$0xff]
      %v1368 = vld [vmem:[#allocation3 + $0x24] sm:$0xff]
      %1369 = vst [vmem:[#allocation2 + $0xa0] sm:$0xff] %v1364
      %1370 = vst [vmem:[#allocation2 + $0xa8] sm:$0xff] %v1365
      %1371 = vst [vmem:[#allocation2 + $0xb0] sm:$0xff] %v1366
      %1372 = vst [vmem:[#allocation2 + $0xb8] sm:$0xff] %v1367
      %1373 = vst.msk [vmem:[#allocation2 + $0xc0] sm:$0xff] %vm248, %v1368
      %v1374 = vld [vmem:[#allocation3 + $0x4] sm:$0xff]
      %v1375 = vld [vmem:[#allocation3 + $0xc] sm:$0xff]
      %v1376 = vld [vmem:[#allocation3 + $0x14] sm:$0xff]
      %v1377 = vld [vmem:[#allocation3 + $0x1c] sm:$0xff]
      %v1378 = vld [vmem:[#allocation3 + $0x24] sm:$0xff]
      %1384 = vrot.lane.b32.xlu0 %v1374, 127
      %v1385 = vpop.permute.xlu0 %1384
      %1386 = vrot.lane.b32.xlu0 %v1375, 127
      %v1387 = vpop.permute.xlu0 %1386
      %1388 = vrot.lane.b32.xlu0 %v1376, 127
      %v1389 = vpop.permute.xlu0 %1388
      %1390 = vrot.lane.b32.xlu0 %v1377, 127
      %v1391 = vpop.permute.xlu0 %1390
      %1392 = vrot.lane.b32.xlu0 %v1378, 127
      %v1393 = vpop.permute.xlu0 %1392
      %v1394 = vrot.slane %v1385, 4
      %v1395 = vrot.slane %v1387, 4
      %v1396 = vrot.slane %v1389, 4
      %v1397 = vrot.slane %v1391, 4
      %v1398 = vrot.slane %v1393, 4
      %v1399 = vsel %vm226, %v1394, %v1395
      %vm1400 = vcmask 1039360
      %v1401 = vsel %vm1400, %v1385, %v1399
      %v1402 = vsel %vm226, %v1395, %v1396
      %v1403 = vsel %vm1400, %v1387, %v1402
      %v1404 = vsel %vm226, %v1396, %v1397
      %v1405 = vsel %vm1400, %v1389, %v1404
      %v1406 = vsel %vm226, %v1397, %v1398
      %v1407 = vsel %vm1400, %v1391, %v1406
      %v1408 = vsel %vm1400, %v1393, %v1398
      %1414 = vst [vmem:[#allocation2 + $0xc8] sm:$0xff] %v1401
      %1415 = vst [vmem:[#allocation2 + $0xd0] sm:$0xff] %v1403
      %1416 = vst [vmem:[#allocation2 + $0xd8] sm:$0xff] %v1405
      %1417 = vst [vmem:[#allocation2 + $0xe0] sm:$0xff] %v1407
      %1418 = vst.msk [vmem:[#allocation2 + $0xe8] sm:$0xff] %vm248, %v1408
      %v1419 = vld [vmem:[#allocation3 + $0x4] sm:$0xff]
      %v1420 = vld [vmem:[#allocation3 + $0xc] sm:$0xff]
      %v1421 = vld [vmem:[#allocation3 + $0x14] sm:$0xff]
      %v1422 = vld [vmem:[#allocation3 + $0x1c] sm:$0xff]
      %v1423 = vld [vmem:[#allocation3 + $0x24] sm:$0xff]
      %1429 = vrot.lane.b32.xlu0 %v1419, 95
      %v1430 = vpop.permute.xlu0 %1429
      %1431 = vrot.lane.b32.xlu0 %v1420, 95
      %v1432 = vpop.permute.xlu0 %1431
      %1433 = vrot.lane.b32.xlu0 %v1421, 95
      %v1434 = vpop.permute.xlu0 %1433
      %1435 = vrot.lane.b32.xlu0 %v1422, 95
      %v1436 = vpop.permute.xlu0 %1435
      %1437 = vrot.lane.b32.xlu0 %v1423, 95
      %v1438 = vpop.permute.xlu0 %1437
      %v1439 = vrot.slane %v1430, 4
      %v1440 = vrot.slane %v1432, 4
      %v1441 = vrot.slane %v1434, 4
      %v1442 = vrot.slane %v1436, 4
      %v1443 = vrot.slane %v1438, 4
      %v1444 = vsel %vm226, %v1439, %v1440
      %v1445 = vsel %vm228, %v1430, %v1444
      %v1446 = vsel %vm226, %v1440, %v1441
      %v1447 = vsel %vm228, %v1432, %v1446
      %v1448 = vsel %vm226, %v1441, %v1442
      %v1449 = vsel %vm228, %v1434, %v1448
      %v1450 = vsel %vm226, %v1442, %v1443
      %v1451 = vsel %vm228, %v1436, %v1450
      %v1452 = vsel %vm228, %v1438, %v1443
      %1458 = vst [vmem:[#allocation2 + $0xf0] sm:$0xff] %v1445
      %1459 = vst [vmem:[#allocation2 + $0xf8] sm:$0xff] %v1447
      %1460 = vst [vmem:[#allocation2 + $0x100] sm:$0xff] %v1449
      %1461 = vst [vmem:[#allocation2 + $0x108] sm:$0xff] %v1451
      %1462 = vst.msk [vmem:[#allocation2 + $0x110] sm:$0xff] %vm248, %v1452
      %v1463 = vld [vmem:[#allocation3 + $0x4] sm:$0xff]
      %v1464 = vld [vmem:[#allocation3 + $0xc] sm:$0xff]
      %v1465 = vld [vmem:[#allocation3 + $0x14] sm:$0xff]
      %v1466 = vld [vmem:[#allocation3 + $0x1c] sm:$0xff]
      %v1467 = vld [vmem:[#allocation3 + $0x24] sm:$0xff]
      %1473 = vrot.lane.b32.xlu0 %v1463, 94
      %v1474 = vpop.permute.xlu0 %1473
      %1475 = vrot.lane.b32.xlu0 %v1464, 94
      %v1476 = vpop.permute.xlu0 %1475
      %1477 = vrot.lane.b32.xlu0 %v1465, 94
      %v1478 = vpop.permute.xlu0 %1477
      %1479 = vrot.lane.b32.xlu0 %v1466, 94
      %v1480 = vpop.permute.xlu0 %1479
      %1481 = vrot.lane.b32.xlu0 %v1467, 94
      %v1482 = vpop.permute.xlu0 %1481
      %v1483 = vrot.slane %v1474, 4
      %v1484 = vrot.slane %v1476, 4
      %v1485 = vrot.slane %v1478, 4
      %v1486 = vrot.slane %v1480, 4
      %v1487 = vrot.slane %v1482, 4
      %v1488 = vsel %vm226, %v1483, %v1484
      %v1489 = vsel %vm276, %v1474, %v1488
      %v1490 = vsel %vm226, %v1484, %v1485
      %v1491 = vsel %vm276, %v1476, %v1490
      %v1492 = vsel %vm226, %v1485, %v1486
      %v1493 = vsel %vm276, %v1478, %v1492
      %v1494 = vsel %vm226, %v1486, %v1487
      %v1495 = vsel %vm276, %v1480, %v1494
      %v1496 = vsel %vm276, %v1482, %v1487
      %1502 = vst [vmem:[#allocation2 + $0x118] sm:$0xff] %v1489
      %1503 = vst [vmem:[#allocation2 + $0x120] sm:$0xff] %v1491
      %1504 = vst [vmem:[#allocation2 + $0x128] sm:$0xff] %v1493
      %1505 = vst [vmem:[#allocation2 + $0x130] sm:$0xff] %v1495
      %1506 = vst.msk [vmem:[#allocation2 + $0x138] sm:$0xff] %vm248, %v1496
      %v1507 = vld [vmem:[#allocation3 + $0x4] sm:$0xff]
      %v1508 = vld [vmem:[#allocation3 + $0xc] sm:$0xff]
      %v1509 = vld [vmem:[#allocation3 + $0x14] sm:$0xff]
      %v1510 = vld [vmem:[#allocation3 + $0x1c] sm:$0xff]
      %v1511 = vld [vmem:[#allocation3 + $0x24] sm:$0xff]
      %1517 = vrot.lane.b32.xlu0 %v1507, 93
      %v1518 = vpop.permute.xlu0 %1517
      %1519 = vrot.lane.b32.xlu0 %v1508, 93
      %v1520 = vpop.permute.xlu0 %1519
      %1521 = vrot.lane.b32.xlu0 %v1509, 93
      %v1522 = vpop.permute.xlu0 %1521
      %1523 = vrot.lane.b32.xlu0 %v1510, 93
      %v1524 = vpop.permute.xlu0 %1523
      %1525 = vrot.lane.b32.xlu0 %v1511, 93
      %v1526 = vpop.permute.xlu0 %1525
      %v1527 = vrot.slane %v1518, 4
      %v1528 = vrot.slane %v1520, 4
      %v1529 = vrot.slane %v1522, 4
      %v1530 = vrot.slane %v1524, 4
      %v1531 = vrot.slane %v1526, 4
      %v1532 = vsel %vm226, %v1527, %v1528
      %v1533 = vsel %vm321, %v1518, %v1532
      %v1534 = vsel %vm226, %v1528, %v1529
      %v1535 = vsel %vm321, %v1520, %v1534
      %v1536 = vsel %vm226, %v1529, %v1530
      %v1537 = vsel %vm321, %v1522, %v1536
      %v1538 = vsel %vm226, %v1530, %v1531
      %v1539 = vsel %vm321, %v1524, %v1538
      %v1540 = vsel %vm321, %v1526, %v1531
      %1546 = vst [vmem:[#allocation2 + $0x140] sm:$0xff] %v1533
      %1547 = vst [vmem:[#allocation2 + $0x148] sm:$0xff] %v1535
      %1548 = vst [vmem:[#allocation2 + $0x150] sm:$0xff] %v1537
      %1549 = vst [vmem:[#allocation2 + $0x158] sm:$0xff] %v1539
      %1550 = vst.msk [vmem:[#allocation2 + $0x160] sm:$0xff] %vm248, %v1540
      %v1551 = vld [vmem:[%s2] sm:$0xf]
      %v1552 = vld [vmem:[#allocation2] sm:$0xff]
      %v1553 = vld [vmem:[#allocation2 + $0x8] sm:$0xff]
      %v1554 = vld [vmem:[#allocation2 + $0x10] sm:$0xff]
      %v1555 = vld [vmem:[#allocation2 + $0x18] sm:$0xff]
      %v1556 = vld [vmem:[#allocation2 + $0x20] sm:$0xff]
      %v1557 = vld [vmem:[#allocation2 + $0x28] sm:$0xff]
      %v1558 = vld [vmem:[#allocation2 + $0x30] sm:$0xff]
      %v1559 = vld [vmem:[#allocation2 + $0x38] sm:$0xff]
      %v1560 = vld [vmem:[#allocation2 + $0x40] sm:$0xff]
      %v1561 = vld [vmem:[#allocation2 + $0x48] sm:$0xff]
      %v1562 = vld [vmem:[#allocation2 + $0x50] sm:$0xff]
      %v1563 = vld [vmem:[#allocation2 + $0x58] sm:$0xff]
      %v1564 = vld [vmem:[#allocation2 + $0x60] sm:$0xff]
      %v1565 = vld [vmem:[#allocation2 + $0x68] sm:$0xff]
      %v1566 = vld [vmem:[#allocation2 + $0x70] sm:$0xff]
      %v1567 = vld [vmem:[#allocation2 + $0x78] sm:$0xff]
      %v1568 = vld [vmem:[#allocation2 + $0x80] sm:$0xff]
      %v1569 = vld [vmem:[#allocation2 + $0x88] sm:$0xff]
      %v1570 = vld [vmem:[#allocation2 + $0x90] sm:$0xff]
      %v1571 = vld [vmem:[#allocation2 + $0x98] sm:$0xff]
      %v1572 = vld [vmem:[#allocation2 + $0xa0] sm:$0xff]
      %v1573 = vld [vmem:[#allocation2 + $0xa8] sm:$0xff]
      %v1574 = vld [vmem:[#allocation2 + $0xb0] sm:$0xff]
      %v1575 = vld [vmem:[#allocation2 + $0xb8] sm:$0xff]
      %v1576 = vld [vmem:[#allocation2 + $0xc0] sm:$0xff]
      %v1577 = vld [vmem:[#allocation2 + $0xc8] sm:$0xff]
      %v1578 = vld [vmem:[#allocation2 + $0xd0] sm:$0xff]
      %v1579 = vld [vmem:[#allocation2 + $0xd8] sm:$0xff]
      %v1580 = vld [vmem:[#allocation2 + $0xe0] sm:$0xff]
      %v1581 = vld [vmem:[#allocation2 + $0xe8] sm:$0xff]
      %v1582 = vld [vmem:[#allocation2 + $0xf0] sm:$0xff]
      %v1583 = vld [vmem:[#allocation2 + $0xf8] sm:$0xff]
      %v1584 = vld [vmem:[#allocation2 + $0x100] sm:$0xff]
      %v1585 = vld [vmem:[#allocation2 + $0x108] sm:$0xff]
      %v1586 = vld [vmem:[#allocation2 + $0x110] sm:$0xff]
      %v1587 = vld [vmem:[#allocation2 + $0x118] sm:$0xff]
      %v1588 = vld [vmem:[#allocation2 + $0x120] sm:$0xff]
      %v1589 = vld [vmem:[#allocation2 + $0x128] sm:$0xff]
      %v1590 = vld [vmem:[#allocation2 + $0x130] sm:$0xff]
      %v1591 = vld [vmem:[#allocation2 + $0x138] sm:$0xff]
      %v1592 = vld [vmem:[#allocation2 + $0x140] sm:$0xff]
      %v1593 = vld [vmem:[#allocation2 + $0x148] sm:$0xff]
      %v1594 = vld [vmem:[#allocation2 + $0x150] sm:$0xff]
      %v1595 = vld [vmem:[#allocation2 + $0x158] sm:$0xff]
      %v1596 = vld [vmem:[#allocation2 + $0x160] sm:$0xff]
      %v1642 = vunpack.c.l.b16 %v1552
      %v1643 = vunpack.c.h.b16 %v1552
      %v1644 = vunpack.c.l.b16 %v1553
      %v1645 = vunpack.c.h.b16 %v1553
      %v1646 = vunpack.c.l.b16 %v1554
      %v1647 = vunpack.c.h.b16 %v1554
      %v1648 = vunpack.c.l.b16 %v1555
      %v1649 = vunpack.c.h.b16 %v1555
      %v1650 = vunpack.c.l.b16 %v1556
      %v1651 = vunpack.c.h.b16 %v1556
      %v1652 = vunpack.c.l.b16 %v1557
      %v1653 = vunpack.c.h.b16 %v1557
      %v1654 = vunpack.c.l.b16 %v1558
      %v1655 = vunpack.c.h.b16 %v1558
      %v1656 = vunpack.c.l.b16 %v1559
      %v1657 = vunpack.c.h.b16 %v1559
      %v1658 = vunpack.c.l.b16 %v1560
      %v1659 = vunpack.c.h.b16 %v1560
      %v1660 = vunpack.c.l.b16 %v1561
      %v1661 = vunpack.c.h.b16 %v1561
      %v1662 = vunpack.c.l.b16 %v1562
      %v1663 = vunpack.c.h.b16 %v1562
      %v1664 = vunpack.c.l.b16 %v1563
      %v1665 = vunpack.c.h.b16 %v1563
      %v1666 = vunpack.c.l.b16 %v1564
      %v1667 = vunpack.c.h.b16 %v1564
      %v1668 = vunpack.c.l.b16 %v1565
      %v1669 = vunpack.c.h.b16 %v1565
      %v1670 = vunpack.c.l.b16 %v1566
      %v1671 = vunpack.c.h.b16 %v1566
      %v1672 = vunpack.c.l.b16 %v1567
      %v1673 = vunpack.c.h.b16 %v1567
      %v1674 = vunpack.c.l.b16 %v1568
      %v1675 = vunpack.c.h.b16 %v1568
      %v1676 = vunpack.c.l.b16 %v1569
      %v1677 = vunpack.c.h.b16 %v1569
      %v1678 = vunpack.c.l.b16 %v1570
      %v1679 = vunpack.c.h.b16 %v1570
      %v1680 = vunpack.c.l.b16 %v1571
      %v1681 = vunpack.c.h.b16 %v1571
      %v1682 = vunpack.c.l.b16 %v1572
      %v1683 = vunpack.c.h.b16 %v1572
      %v1684 = vunpack.c.l.b16 %v1573
      %v1685 = vunpack.c.h.b16 %v1573
      %v1686 = vunpack.c.l.b16 %v1574
      %v1687 = vunpack.c.h.b16 %v1574
      %v1688 = vunpack.c.l.b16 %v1575
      %v1689 = vunpack.c.h.b16 %v1575
      %v1690 = vunpack.c.l.b16 %v1576
      %v1691 = vunpack.c.h.b16 %v1576
      %v1692 = vunpack.c.l.b16 %v1577
      %v1693 = vunpack.c.h.b16 %v1577
      %v1694 = vunpack.c.l.b16 %v1578
      %v1695 = vunpack.c.h.b16 %v1578
      %v1696 = vunpack.c.l.b16 %v1579
      %v1697 = vunpack.c.h.b16 %v1579
      %v1698 = vunpack.c.l.b16 %v1580
      %v1699 = vunpack.c.h.b16 %v1580
      %v1700 = vunpack.c.l.b16 %v1581
      %v1701 = vunpack.c.h.b16 %v1581
      %v1702 = vunpack.c.l.b16 %v1582
      %v1703 = vunpack.c.h.b16 %v1582
      %v1704 = vunpack.c.l.b16 %v1583
      %v1705 = vunpack.c.h.b16 %v1583
      %v1706 = vunpack.c.l.b16 %v1584
      %v1707 = vunpack.c.h.b16 %v1584
      %v1708 = vunpack.c.l.b16 %v1585
      %v1709 = vunpack.c.h.b16 %v1585
      %v1710 = vunpack.c.l.b16 %v1586
      %v1711 = vunpack.c.h.b16 %v1586
      %v1712 = vunpack.c.l.b16 %v1587
      %v1713 = vunpack.c.h.b16 %v1587
      %v1714 = vunpack.c.l.b16 %v1588
      %v1715 = vunpack.c.h.b16 %v1588
      %v1716 = vunpack.c.l.b16 %v1589
      %v1717 = vunpack.c.h.b16 %v1589
      %v1718 = vunpack.c.l.b16 %v1590
      %v1719 = vunpack.c.h.b16 %v1590
      %v1720 = vunpack.c.l.b16 %v1591
      %v1721 = vunpack.c.h.b16 %v1591
      %v1722 = vunpack.c.l.b16 %v1592
      %v1723 = vunpack.c.h.b16 %v1592
      %v1724 = vunpack.c.l.b16 %v1593
      %v1725 = vunpack.c.h.b16 %v1593
      %v1726 = vunpack.c.l.b16 %v1594
      %v1727 = vunpack.c.h.b16 %v1594
      %v1728 = vunpack.c.l.b16 %v1595
      %v1729 = vunpack.c.h.b16 %v1595
      %v1730 = vunpack.c.l.b16 %v1596
      %v1731 = vunpack.c.h.b16 %v1596
      %v1732 = vpack.c.b16 %v1652, %v1642
      %v1733 = vpack.c.b16 %v1653, %v1643
      %v1734 = vpack.c.b16 %v1654, %v1644
      %v1735 = vpack.c.b16 %v1655, %v1645
      %v1736 = vpack.c.b16 %v1656, %v1646
      %v1737 = vpack.c.b16 %v1657, %v1647
      %v1738 = vpack.c.b16 %v1658, %v1648
      %v1739 = vpack.c.b16 %v1659, %v1649
      %v1740 = vpack.c.b16 %v1660, %v1650
      %v1741 = vpack.c.b16 %v1661, %v1651
      %v1742 = vpack.c.b16 %v1672, %v1662
      %v1743 = vpack.c.b16 %v1673, %v1663
      %v1744 = vpack.c.b16 %v1674, %v1664
      %v1745 = vpack.c.b16 %v1675, %v1665
      %v1746 = vpack.c.b16 %v1676, %v1666
      %v1747 = vpack.c.b16 %v1677, %v1667
      %v1748 = vpack.c.b16 %v1678, %v1668
      %v1749 = vpack.c.b16 %v1679, %v1669
      %v1750 = vpack.c.b16 %v1680, %v1670
      %v1751 = vpack.c.b16 %v1681, %v1671
      %v1752 = vpack.c.b16 %v1692, %v1682
      %v1753 = vpack.c.b16 %v1693, %v1683
      %v1754 = vpack.c.b16 %v1694, %v1684
      %v1755 = vpack.c.b16 %v1695, %v1685
      %v1756 = vpack.c.b16 %v1696, %v1686
      %v1757 = vpack.c.b16 %v1697, %v1687
      %v1758 = vpack.c.b16 %v1698, %v1688
      %v1759 = vpack.c.b16 %v1699, %v1689
      %v1760 = vpack.c.b16 %v1700, %v1690
      %v1761 = vpack.c.b16 %v1701, %v1691
      %v1762 = vpack.c.b16 %v1712, %v1702
      %v1763 = vpack.c.b16 %v1713, %v1703
      %v1764 = vpack.c.b16 %v1714, %v1704
      %v1765 = vpack.c.b16 %v1715, %v1705
      %v1766 = vpack.c.b16 %v1716, %v1706
      %v1767 = vpack.c.b16 %v1717, %v1707
      %v1768 = vpack.c.b16 %v1718, %v1708
      %v1769 = vpack.c.b16 %v1719, %v1709
      %v1770 = vpack.c.b16 %v1720, %v1710
      %v1771 = vpack.c.b16 %v1721, %v1711
      %v1772 = vpack.c.b16 %v1722, %v1722
      %v1773 = vpack.c.b16 %v1723, %v1723
      %v1774 = vpack.c.b16 %v1724, %v1724
      %v1775 = vpack.c.b16 %v1725, %v1725
      %v1776 = vpack.c.b16 %v1726, %v1726
      %v1777 = vpack.c.b16 %v1727, %v1727
      %v1778 = vpack.c.b16 %v1728, %v1728
      %v1779 = vpack.c.b16 %v1729, %v1729
      %v1780 = vpack.c.b16 %v1730, %v1730
      %v1781 = vpack.c.b16 %v1731, %v1731
      %v1823 = vsel %vm881, %v1551, 0
      %v1826 = vsel %vm246, %v1772, 0
      %v1829 = vsel %vm246, %v1773, 0
      %v1832 = vsel %vm246, %v1774, 0
      %v1835 = vsel %vm246, %v1775, 0
      %v1838 = vsel %vm246, %v1776, 0
      %v1841 = vsel %vm246, %v1777, 0
      %v1844 = vsel %vm246, %v1778, 0
      %v1847 = vsel %vm246, %v1779, 0
      %v1850 = vsel %vm246, %v1780, 0
      %v1853 = vsel %vm246, %v1781, 0
      %1855 = vmatpush.bf16.msra.mxu0 0
      %1856 = vmatpush.bf16.msra.mxu0 0
      %1857 = vmatpush.bf16.msra.mxu0 0
      %1858 = vmatpush.bf16.msra.mxu0 %v1826
      %1859 = vmatpush.bf16.msra.mxu0 %v1762
      %1860 = vmatpush.bf16.msra.mxu0 %v1752
      %1861 = vmatpush.bf16.msra.mxu0 %v1742
      %1862 = vmatpush.bf16.msra.mxu0 %v1732
      %1863 = vmatmul.bf16.gmra.mxu0 %v1823
      %v1864 = vpop.f32.mrf.mxu0
      %v1865 = vadd.f32 0.0, %v1864
      %v1866 = vpop.f32.mrf.mxu0
      %1867 = vdwg.mxu0
      %1868 = vmatpush.bf16.msra.mxu0 0
      %1869 = vmatpush.bf16.msra.mxu0 0
      %1870 = vmatpush.bf16.msra.mxu0 0
      %1871 = vmatpush.bf16.msra.mxu0 %v1829
      %1872 = vmatpush.bf16.msra.mxu0 %v1763
      %1873 = vmatpush.bf16.msra.mxu0 %v1753
      %1874 = vmatpush.bf16.msra.mxu0 %v1743
      %1875 = vmatpush.bf16.msra.mxu0 %v1733
      %1876 = vmatmul.bf16.gmra.mxu0 %v1823
      %v1877 = vpop.f32.mrf.mxu0
      %v1878 = vadd.f32 0.0, %v1877
      %v1879 = vpop.f32.mrf.mxu0
      %1880 = vdwg.mxu0
      %1881 = vmatpush.bf16.msra.mxu0 0
      %1882 = vmatpush.bf16.msra.mxu0 0
      %1883 = vmatpush.bf16.msra.mxu0 0
      %1884 = vmatpush.bf16.msra.mxu0 %v1832
      %1885 = vmatpush.bf16.msra.mxu0 %v1764
      %1886 = vmatpush.bf16.msra.mxu0 %v1754
      %1887 = vmatpush.bf16.msra.mxu0 %v1744
      %1888 = vmatpush.bf16.msra.mxu0 %v1734
      %1889 = vmatmul.bf16.gmra.mxu0 %v1823
      %v1890 = vpop.f32.mrf.mxu0
      %v1891 = vadd.f32 0.0, %v1890
      %v1892 = vpop.f32.mrf.mxu0
      %1893 = vdwg.mxu0
      %1894 = vmatpush.bf16.msra.mxu0 0
      %1895 = vmatpush.bf16.msra.mxu0 0
      %1896 = vmatpush.bf16.msra.mxu0 0
      %1897 = vmatpush.bf16.msra.mxu0 %v1835
      %1898 = vmatpush.bf16.msra.mxu0 %v1765
      %1899 = vmatpush.bf16.msra.mxu0 %v1755
      %1900 = vmatpush.bf16.msra.mxu0 %v1745
      %1901 = vmatpush.bf16.msra.mxu0 %v1735
      %1902 = vmatmul.bf16.gmra.mxu0 %v1823
      %v1903 = vpop.f32.mrf.mxu0
      %v1904 = vadd.f32 0.0, %v1903
      %v1905 = vpop.f32.mrf.mxu0
      %1906 = vdwg.mxu0
      %1907 = vmatpush.bf16.msra.mxu0 0
      %1908 = vmatpush.bf16.msra.mxu0 0
      %1909 = vmatpush.bf16.msra.mxu0 0
      %1910 = vmatpush.bf16.msra.mxu0 %v1838
      %1911 = vmatpush.bf16.msra.mxu0 %v1766
      %1912 = vmatpush.bf16.msra.mxu0 %v1756
      %1913 = vmatpush.bf16.msra.mxu0 %v1746
      %1914 = vmatpush.bf16.msra.mxu0 %v1736
      %1915 = vmatmul.bf16.gmra.mxu0 %v1823
      %v1916 = vpop.f32.mrf.mxu0
      %v1917 = vadd.f32 0.0, %v1916
      %v1918 = vpop.f32.mrf.mxu0
      %1919 = vdwg.mxu0
      %1920 = vmatpush.bf16.msra.mxu0 0
      %1921 = vmatpush.bf16.msra.mxu0 0
      %1922 = vmatpush.bf16.msra.mxu0 0
      %1923 = vmatpush.bf16.msra.mxu0 %v1841
      %1924 = vmatpush.bf16.msra.mxu0 %v1767
      %1925 = vmatpush.bf16.msra.mxu0 %v1757
      %1926 = vmatpush.bf16.msra.mxu0 %v1747
      %1927 = vmatpush.bf16.msra.mxu0 %v1737
      %1928 = vmatmul.bf16.gmra.mxu0 %v1823
      %v1929 = vpop.f32.mrf.mxu0
      %v1930 = vadd.f32 0.0, %v1929
      %v1931 = vpop.f32.mrf.mxu0
      %1932 = vdwg.mxu0
      %1933 = vmatpush.bf16.msra.mxu0 0
      %1934 = vmatpush.bf16.msra.mxu0 0
      %1935 = vmatpush.bf16.msra.mxu0 0
      %1936 = vmatpush.bf16.msra.mxu0 %v1844
      %1937 = vmatpush.bf16.msra.mxu0 %v1768
      %1938 = vmatpush.bf16.msra.mxu0 %v1758
      %1939 = vmatpush.bf16.msra.mxu0 %v1748
      %1940 = vmatpush.bf16.msra.mxu0 %v1738
      %1941 = vmatmul.bf16.gmra.mxu0 %v1823
      %v1942 = vpop.f32.mrf.mxu0
      %v1943 = vadd.f32 0.0, %v1942
      %v1944 = vpop.f32.mrf.mxu0
      %1945 = vdwg.mxu0
      %1946 = vmatpush.bf16.msra.mxu0 0
      %1947 = vmatpush.bf16.msra.mxu0 0
      %1948 = vmatpush.bf16.msra.mxu0 0
      %1949 = vmatpush.bf16.msra.mxu0 %v1847
      %1950 = vmatpush.bf16.msra.mxu0 %v1769
      %1951 = vmatpush.bf16.msra.mxu0 %v1759
      %1952 = vmatpush.bf16.msra.mxu0 %v1749
      %1953 = vmatpush.bf16.msra.mxu0 %v1739
      %1954 = vmatmul.bf16.gmra.mxu0 %v1823
      %v1955 = vpop.f32.mrf.mxu0
      %v1956 = vadd.f32 0.0, %v1955
      %v1957 = vpop.f32.mrf.mxu0
      %1958 = vdwg.mxu0
      %1959 = vmatpush.bf16.msra.mxu0 0
      %1960 = vmatpush.bf16.msra.mxu0 0
      %1961 = vmatpush.bf16.msra.mxu0 0
      %1962 = vmatpush.bf16.msra.mxu0 %v1850
      %1963 = vmatpush.bf16.msra.mxu0 %v1770
      %1964 = vmatpush.bf16.msra.mxu0 %v1760
      %1965 = vmatpush.bf16.msra.mxu0 %v1750
      %1966 = vmatpush.bf16.msra.mxu0 %v1740
      %1967 = vmatmul.bf16.gmra.mxu0 %v1823
      %v1968 = vpop.f32.mrf.mxu0
      %v1969 = vadd.f32 0.0, %v1968
      %v1970 = vpop.f32.mrf.mxu0
      %1971 = vdwg.mxu0
      %1972 = vmatpush.bf16.msra.mxu0 0
      %1973 = vmatpush.bf16.msra.mxu0 0
      %1974 = vmatpush.bf16.msra.mxu0 0
      %1975 = vmatpush.bf16.msra.mxu0 %v1853
      %1976 = vmatpush.bf16.msra.mxu0 %v1771
      %1977 = vmatpush.bf16.msra.mxu0 %v1761
      %1978 = vmatpush.bf16.msra.mxu0 %v1751
      %1979 = vmatpush.bf16.msra.mxu0 %v1741
      %1980 = vmatmul.bf16.gmra.mxu0 %v1823
      %v1981 = vpop.f32.mrf.mxu0
      %v1982 = vadd.f32 0.0, %v1981
      %v1983 = vpop.f32.mrf.mxu0
      %1984 = vdwg.mxu0
      %v1985 = vmul.f32 %v1865, %v1047
      %v1986 = vmul.f32 %v1878, %v1048
      %v1987 = vmul.f32 %v1891, %v1049
      %v1988 = vmul.f32 %v1904, %v1050
      %v1989 = vmul.f32 %v1917, %v1051
      %v1990 = vmul.f32 %v1930, %v1052
      %v1991 = vmul.f32 %v1943, %v1053
      %v1992 = vmul.f32 %v1956, %v1054
      %v1993 = vmul.f32 %v1969, %v1055
      %v1994 = vmul.f32 %v1982, %v1056
      %v1995 = vadd.f32 %v1985, %v1986
      %v1996 = vadd.f32 %v1995, %v1987
      %v1997 = vadd.f32 %v1996, %v1988
      %v1998 = vadd.f32 %v1997, %v1989
      %v1999 = vadd.f32 %v1998, %v1990
      %v2000 = vadd.f32 %v1999, %v1991
      %v2001 = vadd.f32 %v2000, %v1992
      %v2002 = vadd.f32 %v2001, %v1993
      %v2003 = vsel %vm1085, %v1994, 0.0
      %v2004 = vadd.f32 %v2002, %v2003
      %2005 = vadd.xlane.f32.xlu0 %v2004
      %v2006 = vpop.xlane.xlu0 %2005
      %v2007 = vmul.f32 %v2006, 0.0009765625
      %v2008 = vsub.f32 %v1865, %v2007
      %v2009 = vsub.f32 %v1878, %v2007
      %v2010 = vsub.f32 %v1891, %v2007
      %v2011 = vsub.f32 %v1904, %v2007
      %v2012 = vsub.f32 %v1917, %v2007
      %v2013 = vsub.f32 %v1930, %v2007
      %v2014 = vsub.f32 %v1943, %v2007
      %v2015 = vsub.f32 %v1956, %v2007
      %v2016 = vsub.f32 %v1969, %v2007
      %v2017 = vsub.f32 %v1982, %v2007
      %v2018 = vmul.f32 %v2008, %v1047
      %v2019 = vmul.f32 %v2009, %v1048
      %v2020 = vmul.f32 %v2010, %v1049
      %v2021 = vmul.f32 %v2011, %v1050
      %v2022 = vmul.f32 %v2012, %v1051
      %v2023 = vmul.f32 %v2013, %v1052
      %v2024 = vmul.f32 %v2014, %v1053
      %v2025 = vmul.f32 %v2015, %v1054
      %v2026 = vmul.f32 %v2016, %v1055
      %v2027 = vmul.f32 %v2017, %v1056
      %v2028 = vmul.f32 %v2018, %v2018
      %v2029 = vmul.f32 %v2019, %v2019
      %v2030 = vmul.f32 %v2020, %v2020
      %v2031 = vmul.f32 %v2021, %v2021
      %v2032 = vmul.f32 %v2022, %v2022
      %v2033 = vmul.f32 %v2023, %v2023
      %v2034 = vmul.f32 %v2024, %v2024
      %v2035 = vmul.f32 %v2025, %v2025
      %v2036 = vmul.f32 %v2026, %v2026
      %v2037 = vmul.f32 %v2027, %v2027
      %v2038 = vadd.f32 %v2028, %v2029
      %v2039 = vadd.f32 %v2038, %v2030
      %v2040 = vadd.f32 %v2039, %v2031
      %v2041 = vadd.f32 %v2040, %v2032
      %v2042 = vadd.f32 %v2041, %v2033
      %v2043 = vadd.f32 %v2042, %v2034
      %v2044 = vadd.f32 %v2043, %v2035
      %v2045 = vadd.f32 %v2044, %v2036
      %v2046 = vsel %vm1085, %v2037, 0.0
      %v2047 = vadd.f32 %v2045, %v2046
      %2048 = vadd.xlane.f32.xlu0 %v2047
      %v2049 = vpop.xlane.xlu0 %2048
      %v2050 = vmul.f32 %v2049, 0.0009765625
      %v2051 = vadd.f32 %v2050, 1e-05
      %v2052 = vrsqrt.pop %v2051
      %v2053 = vmul.f32 %v2052, %v2051
      %v2054 = vmul.f32 %v2053, %v2052
      %v2055 = vmul.f32 0.5, %v2054
      %v2056 = vsub.f32 1.5, %v2055
      %v2057 = vmul.f32 %v2052, %v2056
      %vm2058 = vweird.f32 %v2051
      %vm2059 = vweird.f32 %v2052
      %vm2060 = vmor %vm2058, %vm2059
      %v2061 = vsel %vm2060, %v2052, %v2057
      %v2062 = vmul.f32 %v2018, %v2061
      %v2063 = vmul.f32 %v2019, %v2061
      %v2064 = vmul.f32 %v2020, %v2061
      %v2065 = vmul.f32 %v2021, %v2061
      %v2066 = vmul.f32 %v2022, %v2061
      %v2067 = vmul.f32 %v2023, %v2061
      %v2068 = vmul.f32 %v2024, %v2061
      %v2069 = vmul.f32 %v2025, %v2061
      %v2070 = vmul.f32 %v2026, %v2061
      %v2071 = vmul.f32 %v2027, %v2061
      %v2072 = vmax.f32 %v2062, 0.0
      %v2073 = vmax.f32 %v2063, 0.0
      %v2074 = vmax.f32 %v2064, 0.0
      %v2075 = vmax.f32 %v2065, 0.0
      %v2076 = vmax.f32 %v2066, 0.0
      %v2077 = vmax.f32 %v2067, 0.0
      %v2078 = vmax.f32 %v2068, 0.0
      %v2079 = vmax.f32 %v2069, 0.0
      %v2080 = vmax.f32 %v2070, 0.0
      %v2081 = vmax.f32 %v2071, 0.0
      %v2082 = vpack.c.bf16 %v2073, %v2072
      %v2083 = vpack.c.bf16 %v2075, %v2074
      %v2084 = vpack.c.bf16 %v2077, %v2076
      %v2085 = vpack.c.bf16 %v2079, %v2078
      %v2086 = vpack.c.bf16 %v2081, %v2080
      %2087 = vst [vmem:[%s197] sm:$0xff] %v2082
      %2088 = vst [vmem:[%s197 + $0x8] sm:$0xff] %v2083
      %2089 = vst [vmem:[%s197 + $0x10] sm:$0xff] %v2084
      %2090 = vst [vmem:[%s197 + $0x18] sm:$0xff] %v2085
      %2091 = vst.msk [vmem:[%s197 + $0x20] sm:$0xff] %vm248, %v2086
      %p2092 = scmp.lt.s32.totalorder %s15, 1
      %s2093 = scalar_select %p2092, %s15, 1
      %s2094 = smul.addr %s2093, 10
      %s2095 = smul.addr %s2094, 4
      %s2096 = scalar_lea.vmem %s4, %s2095
      // Predicated region
      $region37: #{unet_forward.4} parent=35 // pred_check
        %p2097 = pneg %p122
      $region38: #{unet_forward.4} parent=35 // pred_check_branch
        %2099 = sbr.rel (%p2097) target = $region40
      $region39: #{unet_forward.4} parent=35 // pred_region
        _
      $region40: #{unet_forward.4} parent=35 // pred_fallthru
        _
    $region36: #{unet_forward.4} parent=5 // pred_fallthru
      _
    %p2100 = scmp.le.s32.totalorder 2, %s10
    // Predicated region
    $region41: #{unet_forward.4} parent=5 // pred_check
      %p2101 = pneg %p2100
    $region42: #{unet_forward.4} parent=5 // pred_check_branch
      %2103 = sbr.rel (%p2101) target = $region44
    $region43: #{unet_forward.4} parent=5 // pred_region
      %s2104 = ssub.s32 %s10, 2
      // Predicated region
      $region45: #{unet_forward.4} parent=43 // pred_check
        %p2105 = pneg %p128
      $region46: #{unet_forward.4} parent=43 // pred_check_branch
        %2107 = sbr.rel (%p2105) target = $region48
      $region47: #{unet_forward.4} parent=43 // pred_region
        %p2108 = scmp.lt.s32.totalorder %s16, 1
        %s2109 = scalar_select %p2108, %s16, 1
        %s2110 = smul.addr %s2109, 10
        %s2111 = smul.addr %s2110, 4
        %s2112 = scalar_lea.vmem %s4, %s2111
      $region48: #{unet_forward.4} parent=43 // pred_fallthru
        _
    $region44: #{unet_forward.4} parent=5 // pred_fallthru
      _
  $region6: #{unet_forward.4} parent=0 // loop_footer
    %s14 = sadd.s32 1, %s10
  $region7: #{unet_forward.4} parent=0 // loop_footer_branch
    %9 = sbr.rel target = $region3
  $region8: #{unet_forward.4} parent=0 // loop_exit
    _

// kernel: reverse.1
$region0: #{reverse.1}
  #allocation0 [shape = 's32[1]{0}', space=sflag, size = 0x4, scoped, tag = 'scoped memory for reverse.1']
  %s0 = inlined_call_operand.vmem [shape: f32[64,64,3,3], index: 0, kind: input, shape index: {}]
  %s1 = inlined_call_operand.vmem [shape: bf16[64,64,3,3], index: 1, kind: output, shape index: {}]
  %s2 = scalar_lea.vmem %s0, 512
  %v3 = vld [vmem:[%s2] sm:$0xff]
  %v4 = vpack.c.bf16 0.0, %v3
  %5 = vst [vmem:[%s1] sm:$0xf] %v4
  %s6 = scalar_lea.vmem %s0, 320
  %v7 = vld [vmem:[%s6] sm:$0xff]
  %s8 = scalar_lea.vmem %s1, 96
  %v9 = vpack.c.bf16 0.0, %v7
  %10 = vst [vmem:[%s8] sm:$0xf] %v9
  %s11 = scalar_lea.vmem %s0, 128
  %v12 = vld [vmem:[%s11] sm:$0xff]
  %s13 = scalar_lea.vmem %s1, 192
  %v14 = vpack.c.bf16 0.0, %v12
  %15 = vst [vmem:[%s13] sm:$0xf] %v14
  %s16 = scalar_lea.vmem %s0, 448
  %v17 = vld [vmem:[%s16] sm:$0xff]
  %s18 = scalar_lea.vmem %s1, 32
  %v19 = vpack.c.bf16 0.0, %v17
  %20 = vst [vmem:[%s18] sm:$0xf] %v19
  %s21 = scalar_lea.vmem %s0, 256
  %v22 = vld [vmem:[%s21] sm:$0xff]
  %s23 = scalar_lea.vmem %s1, 128
  %v24 = vpack.c.bf16 0.0, %v22
  %25 = vst [vmem:[%s23] sm:$0xf] %v24
  %s26 = scalar_lea.vmem %s0, 64
  %v27 = vld [vmem:[%s26] sm:$0xff]
  %s28 = scalar_lea.vmem %s1, 224
  %v29 = vpack.c.bf16 0.0, %v27
  %30 = vst [vmem:[%s28] sm:$0xf] %v29
  %s31 = scalar_lea.vmem %s0, 384
  %v32 = vld [vmem:[%s31] sm:$0xff]
  %s33 = scalar_lea.vmem %s1, 64
  %v34 = vpack.c.bf16 0.0, %v32
  %35 = vst [vmem:[%s33] sm:$0xf] %v34
  %s36 = scalar_lea.vmem %s0, 192
  %v37 = vld [vmem:[%s36] sm:$0xff]
  %s38 = scalar_lea.vmem %s1, 160
  %v39 = vpack.c.bf16 0.0, %v37
  %40 = vst [vmem:[%s38] sm:$0xf] %v39
  %v41 = vld [vmem:[%s0] sm:$0xff]
  %s42 = scalar_lea.vmem %s1, 256
  %v43 = vpack.c.bf16 0.0, %v41
  %44 = vst [vmem:[%s42] sm:$0xf] %v43
  %s45 = scalar_lea.vmem %s0, 520
  %v46 = vld [vmem:[%s45] sm:$0xff]
  %s47 = scalar_lea.vmem %s1, 4
  %v48 = vpack.c.bf16 0.0, %v46
  %49 = vst [vmem:[%s47] sm:$0xf] %v48
  %s50 = scalar_lea.vmem %s0, 328
  %v51 = vld [vmem:[%s50] sm:$0xff]
  %s52 = scalar_lea.vmem %s1, 100
  %v53 = vpack.c.bf16 0.0, %v51
  %54 = vst [vmem:[%s52] sm:$0xf] %v53
  %s55 = scalar_lea.vmem %s0, 136
  %v56 = vld [vmem:[%s55] sm:$0xff]
  %s57 = scalar_lea.vmem %s1, 196
  %v58 = vpack.c.bf16 0.0, %v56
  %59 = vst [vmem:[%s57] sm:$0xf] %v58
  %s60 = scalar_lea.vmem %s0, 456
  %v61 = vld [vmem:[%s60] sm:$0xff]
  %s62 = scalar_lea.vmem %s1, 36
  %v63 = vpack.c.bf16 0.0, %v61
  %64 = vst [vmem:[%s62] sm:$0xf] %v63
  %s65 = scalar_lea.vmem %s0, 264
  %v66 = vld [vmem:[%s65] sm:$0xff]
  %s67 = scalar_lea.vmem %s1, 132
  %v68 = vpack.c.bf16 0.0, %v66
  %69 = vst [vmem:[%s67] sm:$0xf] %v68
  %s70 = scalar_lea.vmem %s0, 72
  %v71 = vld [vmem:[%s70] sm:$0xff]
  %s72 = scalar_lea.vmem %s1, 228
  %v73 = vpack.c.bf16 0.0, %v71
  %74 = vst [vmem:[%s72] sm:$0xf] %v73
  %s75 = scalar_lea.vmem %s0, 392
  %v76 = vld [vmem:[%s75] sm:$0xff]
  %s77 = scalar_lea.vmem %s1, 68
  %v78 = vpack.c.bf16 0.0, %v76
  %79 = vst [vmem:[%s77] sm:$0xf] %v78
  %s80 = scalar_lea.vmem %s0, 200
  %v81 = vld [vmem:[%s80] sm:$0xff]
  %s82 = scalar_lea.vmem %s1, 164
  %v83 = vpack.c.bf16 0.0, %v81
  %84 = vst [vmem:[%s82] sm:$0xf] %v83
  %s85 = scalar_lea.vmem %s0, 8
  %v86 = vld [vmem:[%s85] sm:$0xff]
  %s87 = scalar_lea.vmem %s1, 260
  %v88 = vpack.c.bf16 0.0, %v86
  %89 = vst [vmem:[%s87] sm:$0xf] %v88
  %s90 = scalar_lea.vmem %s0, 528
  %v91 = vld [vmem:[%s90] sm:$0xff]
  %s92 = scalar_lea.vmem %s1, 8
  %v93 = vpack.c.bf16 0.0, %v91
  %94 = vst [vmem:[%s92] sm:$0xf] %v93
  %s95 = scalar_lea.vmem %s0, 336
  %v96 = vld [vmem:[%s95] sm:$0xff]
  %s97 = scalar_lea.vmem %s1, 104
  %v98 = vpack.c.bf16 0.0, %v96
  %99 = vst [vmem:[%s97] sm:$0xf] %v98
  %s100 = scalar_lea.vmem %s0, 144
  %v101 = vld [vmem:[%s100] sm:$0xff]
  %s102 = scalar_lea.vmem %s1, 200
  %v103 = vpack.c.bf16 0.0, %v101
  %104 = vst [vmem:[%s102] sm:$0xf] %v103
  %s105 = scalar_lea.vmem %s0, 464
  %v106 = vld [vmem:[%s105] sm:$0xff]
  %s107 = scalar_lea.vmem %s1, 40
  %v108 = vpack.c.bf16 0.0, %v106
  %109 = vst [vmem:[%s107] sm:$0xf] %v108
  %s110 = scalar_lea.vmem %s0, 272
  %v111 = vld [vmem:[%s110] sm:$0xff]
  %s112 = scalar_lea.vmem %s1, 136
  %v113 = vpack.c.bf16 0.0, %v111
  %114 = vst [vmem:[%s112] sm:$0xf] %v113
  %s115 = scalar_lea.vmem %s0, 80
  %v116 = vld [vmem:[%s115] sm:$0xff]
  %s117 = scalar_lea.vmem %s1, 232
  %v118 = vpack.c.bf16 0.0, %v116
  %119 = vst [vmem:[%s117] sm:$0xf] %v118
  %s120 = scalar_lea.vmem %s0, 400
  %v121 = vld [vmem:[%s120] sm:$0xff]
  %s122 = scalar_lea.vmem %s1, 72
  %v123 = vpack.c.bf16 0.0, %v121
  %124 = vst [vmem:[%s122] sm:$0xf] %v123
  %s125 = scalar_lea.vmem %s0, 208
  %v126 = vld [vmem:[%s125] sm:$0xff]
  %s127 = scalar_lea.vmem %s1, 168
  %v128 = vpack.c.bf16 0.0, %v126
  %129 = vst [vmem:[%s127] sm:$0xf] %v128
  %s130 = scalar_lea.vmem %s0, 16
  %v131 = vld [vmem:[%s130] sm:$0xff]
  %s132 = scalar_lea.vmem %s1, 264
  %v133 = vpack.c.bf16 0.0, %v131
  %134 = vst [vmem:[%s132] sm:$0xf] %v133
  %s135 = scalar_lea.vmem %s0, 536
  %v136 = vld [vmem:[%s135] sm:$0xff]
  %s137 = scalar_lea.vmem %s1, 12
  %v138 = vpack.c.bf16 0.0, %v136
  %139 = vst [vmem:[%s137] sm:$0xf] %v138
  %s140 = scalar_lea.vmem %s0, 344
  %v141 = vld [vmem:[%s140] sm:$0xff]
  %s142 = scalar_lea.vmem %s1, 108
  %v143 = vpack.c.bf16 0.0, %v141
  %144 = vst [vmem:[%s142] sm:$0xf] %v143
  %s145 = scalar_lea.vmem %s0, 152
  %v146 = vld [vmem:[%s145] sm:$0xff]
  %s147 = scalar_lea.vmem %s1, 204
  %v148 = vpack.c.bf16 0.0, %v146
  %149 = vst [vmem:[%s147] sm:$0xf] %v148
  %s150 = scalar_lea.vmem %s0, 472
  %v151 = vld [vmem:[%s150] sm:$0xff]
  %s152 = scalar_lea.vmem %s1, 44
  %v153 = vpack.c.bf16 0.0, %v151
  %154 = vst [vmem:[%s152] sm:$0xf] %v153
  %s155 = scalar_lea.vmem %s0, 280
  %v156 = vld [vmem:[%s155] sm:$0xff]
  %s157 = scalar_lea.vmem %s1, 140
  %v158 = vpack.c.bf16 0.0, %v156
  %159 = vst [vmem:[%s157] sm:$0xf] %v158
  %s160 = scalar_lea.vmem %s0, 88
  %v161 = vld [vmem:[%s160] sm:$0xff]
  %s162 = scalar_lea.vmem %s1, 236
  %v163 = vpack.c.bf16 0.0, %v161
  %164 = vst [vmem:[%s162] sm:$0xf] %v163
  %s165 = scalar_lea.vmem %s0, 408
  %v166 = vld [vmem:[%s165] sm:$0xff]
  %s167 = scalar_lea.vmem %s1, 76
  %v168 = vpack.c.bf16 0.0, %v166
  %169 = vst [vmem:[%s167] sm:$0xf] %v168
  %s170 = scalar_lea.vmem %s0, 216
  %v171 = vld [vmem:[%s170] sm:$0xff]
  %s172 = scalar_lea.vmem %s1, 172
  %v173 = vpack.c.bf16 0.0, %v171
  %174 = vst [vmem:[%s172] sm:$0xf] %v173
  %s175 = scalar_lea.vmem %s0, 24
  %v176 = vld [vmem:[%s175] sm:$0xff]
  %s177 = scalar_lea.vmem %s1, 268
  %v178 = vpack.c.bf16 0.0, %v176
  %179 = vst [vmem:[%s177] sm:$0xf] %v178
  %s180 = scalar_lea.vmem %s0, 544
  %v181 = vld [vmem:[%s180] sm:$0xff]
  %s182 = scalar_lea.vmem %s1, 16
  %v183 = vpack.c.bf16 0.0, %v181
  %184 = vst [vmem:[%s182] sm:$0xf] %v183
  %s185 = scalar_lea.vmem %s0, 352
  %v186 = vld [vmem:[%s185] sm:$0xff]
  %s187 = scalar_lea.vmem %s1, 112
  %v188 = vpack.c.bf16 0.0, %v186
  %189 = vst [vmem:[%s187] sm:$0xf] %v188
  %s190 = scalar_lea.vmem %s0, 160
  %v191 = vld [vmem:[%s190] sm:$0xff]
  %s192 = scalar_lea.vmem %s1, 208
  %v193 = vpack.c.bf16 0.0, %v191
  %194 = vst [vmem:[%s192] sm:$0xf] %v193
  %s195 = scalar_lea.vmem %s0, 480
  %v196 = vld [vmem:[%s195] sm:$0xff]
  %s197 = scalar_lea.vmem %s1, 48
  %v198 = vpack.c.bf16 0.0, %v196
  %199 = vst [vmem:[%s197] sm:$0xf] %v198
  %s200 = scalar_lea.vmem %s0, 288
  %v201 = vld [vmem:[%s200] sm:$0xff]
  %s202 = scalar_lea.vmem %s1, 144
  %v203 = vpack.c.bf16 0.0, %v201
  %204 = vst [vmem:[%s202] sm:$0xf] %v203
  %s205 = scalar_lea.vmem %s0, 96
  %v206 = vld [vmem:[%s205] sm:$0xff]
  %s207 = scalar_lea.vmem %s1, 240
  %v208 = vpack.c.bf16 0.0, %v206
  %209 = vst [vmem:[%s207] sm:$0xf] %v208
  %s210 = scalar_lea.vmem %s0, 416
  %v211 = vld [vmem:[%s210] sm:$0xff]
  %s212 = scalar_lea.vmem %s1, 80
  %v213 = vpack.c.bf16 0.0, %v211
  %214 = vst [vmem:[%s212] sm:$0xf] %v213
  %s215 = scalar_lea.vmem %s0, 224
  %v216 = vld [vmem:[%s215] sm:$0xff]
  %s217 = scalar_lea.vmem %s1, 176
  %v218 = vpack.c.bf16 0.0, %v216
  %219 = vst [vmem:[%s217] sm:$0xf] %v218
  %s220 = scalar_lea.vmem %s0, 32
  %v221 = vld [vmem:[%s220] sm:$0xff]
  %s222 = scalar_lea.vmem %s1, 272
  %v223 = vpack.c.bf16 0.0, %v221
  %224 = vst [vmem:[%s222] sm:$0xf] %v223
  %s225 = scalar_lea.vmem %s0, 552
  %v226 = vld [vmem:[%s225] sm:$0xff]
  %s227 = scalar_lea.vmem %s1, 20
  %v228 = vpack.c.bf16 0.0, %v226
  %229 = vst [vmem:[%s227] sm:$0xf] %v228
  %s230 = scalar_lea.vmem %s0, 360
  %v231 = vld [vmem:[%s230] sm:$0xff]
  %s232 = scalar_lea.vmem %s1, 116
  %v233 = vpack.c.bf16 0.0, %v231
  %234 = vst [vmem:[%s232] sm:$0xf] %v233
  %s235 = scalar_lea.vmem %s0, 168
  %v236 = vld [vmem:[%s235] sm:$0xff]
  %s237 = scalar_lea.vmem %s1, 212
  %v238 = vpack.c.bf16 0.0, %v236
  %239 = vst [vmem:[%s237] sm:$0xf] %v238
  %s240 = scalar_lea.vmem %s0, 488
  %v241 = vld [vmem:[%s240] sm:$0xff]
  %s242 = scalar_lea.vmem %s1, 52
  %v243 = vpack.c.bf16 0.0, %v241
  %244 = vst [vmem:[%s242] sm:$0xf] %v243
  %s245 = scalar_lea.vmem %s0, 296
  %v246 = vld [vmem:[%s245] sm:$0xff]
  %s247 = scalar_lea.vmem %s1, 148
  %v248 = vpack.c.bf16 0.0, %v246
  %249 = vst [vmem:[%s247] sm:$0xf] %v248
  %s250 = scalar_lea.vmem %s0, 104
  %v251 = vld [vmem:[%s250] sm:$0xff]
  %s252 = scalar_lea.vmem %s1, 244
  %v253 = vpack.c.bf16 0.0, %v251
  %254 = vst [vmem:[%s252] sm:$0xf] %v253
  %s255 = scalar_lea.vmem %s0, 424
  %v256 = vld [vmem:[%s255] sm:$0xff]
  %s257 = scalar_lea.vmem %s1, 84
  %v258 = vpack.c.bf16 0.0, %v256
  %259 = vst [vmem:[%s257] sm:$0xf] %v258
  %s260 = scalar_lea.vmem %s0, 232
  %v261 = vld [vmem:[%s260] sm:$0xff]
  %s262 = scalar_lea.vmem %s1, 180
  %v263 = vpack.c.bf16 0.0, %v261
  %264 = vst [vmem:[%s262] sm:$0xf] %v263
  %s265 = scalar_lea.vmem %s0, 40
  %v266 = vld [vmem:[%s265] sm:$0xff]
  %s267 = scalar_lea.vmem %s1, 276
  %v268 = vpack.c.bf16 0.0, %v266
  %269 = vst [vmem:[%s267] sm:$0xf] %v268
  %s270 = scalar_lea.vmem %s0, 560
  %v271 = vld [vmem:[%s270] sm:$0xff]
  %s272 = scalar_lea.vmem %s1, 24
  %v273 = vpack.c.bf16 0.0, %v271
  %274 = vst [vmem:[%s272] sm:$0xf] %v273
  %s275 = scalar_lea.vmem %s0, 368
  %v276 = vld [vmem:[%s275] sm:$0xff]
  %s277 = scalar_lea.vmem %s1, 120
  %v278 = vpack.c.bf16 0.0, %v276
  %279 = vst [vmem:[%s277] sm:$0xf] %v278
  %s280 = scalar_lea.vmem %s0, 176
  %v281 = vld [vmem:[%s280] sm:$0xff]
  %s282 = scalar_lea.vmem %s1, 216
  %v283 = vpack.c.bf16 0.0, %v281
  %284 = vst [vmem:[%s282] sm:$0xf] %v283
  %s285 = scalar_lea.vmem %s0, 496
  %v286 = vld [vmem:[%s285] sm:$0xff]
  %s287 = scalar_lea.vmem %s1, 56
  %v288 = vpack.c.bf16 0.0, %v286
  %289 = vst [vmem:[%s287] sm:$0xf] %v288
  %s290 = scalar_lea.vmem %s0, 304
  %v291 = vld [vmem:[%s290] sm:$0xff]
  %s292 = scalar_lea.vmem %s1, 152
  %v293 = vpack.c.bf16 0.0, %v291
  %294 = vst [vmem:[%s292] sm:$0xf] %v293
  %s295 = scalar_lea.vmem %s0, 112
  %v296 = vld [vmem:[%s295] sm:$0xff]
  %s297 = scalar_lea.vmem %s1, 248
  %v298 = vpack.c.bf16 0.0, %v296
  %299 = vst [vmem:[%s297] sm:$0xf] %v298
  %s300 = scalar_lea.vmem %s0, 432
  %v301 = vld [vmem:[%s300] sm:$0xff]
  %s302 = scalar_lea.vmem %s1, 88
  %v303 = vpack.c.bf16 0.0, %v301
  %304 = vst [vmem:[%s302] sm:$0xf] %v303
  %s305 = scalar_lea.vmem %s0, 240
  %v306 = vld [vmem:[%s305] sm:$0xff]
  %s307 = scalar_lea.vmem %s1, 184
  %v308 = vpack.c.bf16 0.0, %v306
  %309 = vst [vmem:[%s307] sm:$0xf] %v308
  %s310 = scalar_lea.vmem %s0, 48
  %v311 = vld [vmem:[%s310] sm:$0xff]
  %s312 = scalar_lea.vmem %s1, 280
  %v313 = vpack.c.bf16 0.0, %v311
  %314 = vst [vmem:[%s312] sm:$0xf] %v313
  %s315 = scalar_lea.vmem %s0, 568
  %v316 = vld [vmem:[%s315] sm:$0xff]
  %s317 = scalar_lea.vmem %s1, 28
  %v318 = vpack.c.bf16 0.0, %v316
  %319 = vst [vmem:[%s317] sm:$0xf] %v318
  %s320 = scalar_lea.vmem %s0, 376
  %v321 = vld [vmem:[%s320] sm:$0xff]
  %s322 = scalar_lea.vmem %s1, 124
  %v323 = vpack.c.bf16 0.0, %v321
  %324 = vst [vmem:[%s322] sm:$0xf] %v323
  %s325 = scalar_lea.vmem %s0, 184
  %v326 = vld [vmem:[%s325] sm:$0xff]
  %s327 = scalar_lea.vmem %s1, 220
  %v328 = vpack.c.bf16 0.0, %v326
  %329 = vst [vmem:[%s327] sm:$0xf] %v328
  %s330 = scalar_lea.vmem %s0, 504
  %v331 = vld [vmem:[%s330] sm:$0xff]
  %s332 = scalar_lea.vmem %s1, 60
  %v333 = vpack.c.bf16 0.0, %v331
  %334 = vst [vmem:[%s332] sm:$0xf] %v333
  %s335 = scalar_lea.vmem %s0, 312
  %v336 = vld [vmem:[%s335] sm:$0xff]
  %s337 = scalar_lea.vmem %s1, 156
  %v338 = vpack.c.bf16 0.0, %v336
  %339 = vst [vmem:[%s337] sm:$0xf] %v338
  %s340 = scalar_lea.vmem %s0, 120
  %v341 = vld [vmem:[%s340] sm:$0xff]
  %s342 = scalar_lea.vmem %s1, 252
  %v343 = vpack.c.bf16 0.0, %v341
  %344 = vst [vmem:[%s342] sm:$0xf] %v343
  %s345 = scalar_lea.vmem %s0, 440
  %v346 = vld [vmem:[%s345] sm:$0xff]
  %s347 = scalar_lea.vmem %s1, 92
  %v348 = vpack.c.bf16 0.0, %v346
  %349 = vst [vmem:[%s347] sm:$0xf] %v348
  %s350 = scalar_lea.vmem %s0, 248
  %v351 = vld [vmem:[%s350] sm:$0xff]
  %s352 = scalar_lea.vmem %s1, 188
  %v353 = vpack.c.bf16 0.0, %v351
  %354 = vst [vmem:[%s352] sm:$0xf] %v353
  %s355 = scalar_lea.vmem %s0, 56
  %v356 = vld [vmem:[%s355] sm:$0xff]
  %s357 = scalar_lea.vmem %s1, 284
  %v358 = vpack.c.bf16 0.0, %v356
  %359 = vst [vmem:[%s357] sm:$0xf] %v358

// kernel: unet_forward.5
$region0: #{unet_forward.5}
  #allocation0 [shape = 'u32[]', space=smem, size = 0x4, offset = 0x4, fixed_abs, tag = 'smem constant byte address 0x4 - core index']
  #allocation1 [shape = 'u32[72,128]{1,0:T(1,128)}', space=vmem, size = 0x9000, scoped, tag = 'internal scratch']
  #allocation2 [shape = 'bf16[144,324]{1,0:T(8,128)(2,1)}', space=vmem, size = 0x1b000, scoped, tag = 'scratch operand']
  #allocation3 [shape = 'bf16[16,512]{1,0:T(8,128)(2,1)}', space=vmem, size = 0x4000, scoped, tag = 'scratch operand']
  %s0 = inlined_call_operand.vmem [shape: bf16[2,8,396], index: 0, kind: input, shape index: {}]
  %s1 = inlined_call_operand.vmem [shape: bf16[16,72], index: 1, kind: input, shape index: {}]
  %s2 = inlined_call_operand.vmem [shape: bf16[16,144], index: 2, kind: input, shape index: {}]
  %s3 = inlined_call_operand.vmem [shape: f32[1,324], index: 3, kind: input, shape index: {}]
  %s4 = inlined_call_operand.vmem [shape: bf16[2,16,324], index: 4, kind: output, shape index: {}]
  %s5 = sld [smem:[#allocation0]]
  $region49: #{unet_forward.5} parent=0
    _
  %s7 = ssub.s32 1, %s5
  %s8 = scalar_select 0, %s7, %s5
  loop: start=0, step=1, limit=4
  $region2: #{unet_forward.5} parent=0 // loop_pre_header
    _
  $region3: #{unet_forward.5} parent=0 // loop_header
    %s10 = sphi 0, %s14
    %p11 = scmp.ge.s32.totalorder %s10, 4
    %s20 = sphi 0, %s22
    %s23 = sphi 0, %s20
    %s24 = sphi 0, %s23
    %s40 = sphi 0, %s24
    %s44 = sphi 0, %s44
    %s46 = sphi 0, %s44
    %s47 = sphi 0, %s46
    %s61 = sphi 0, %s47
    %s65 = sphi 0, %s65
    %s67 = sphi 0, %s65
    %s68 = sphi 0, %s67
    %s82 = sphi 0, %s68
    %s86 = sphi 0, %s86
    %s88 = sphi 0, %s86
    %s89 = sphi 0, %s88
    %s103 = sphi 0, %s89
    %s109 = sphi 0, %s111
    %s112 = sphi 0, %s109
    %s113 = sphi 0, %s112
    %s129 = sphi 0, %s113
  $region4: #{unet_forward.5} parent=0 // loop_header_branch
    %13 = sbr.rel (%p11) target = $region8
  $region5: #{unet_forward.5} parent=0 // loop_body
    %s15 = ssub.s32 %s10, 1
    %s16 = ssub.s32 %s10, 2
    %s17 = sadd.s32 %s10, 1
    %s18 = ssub.s32 %s10, %s17
    %p19 = scmp.eq.s32.totalorder %s18, 0
    %s21 = sadd.s32 %s20, 1
    %s22 = scalar_select %p19, %s20, %s21
    %p25 = pneg %p19
    %p26 = scmp.eq.s32.totalorder %s10, 1
    %p27 = por %p25, %p26
    %p28 = scmp.ne.s32.totalorder %s20, %s23
    %p29 = scmp.eq.s32.totalorder %s10, 0
    %p30 = por %p28, %p29
    %p31 = scmp.ne.s32.totalorder %s20, %s23
    %p32 = scmp.eq.s32.totalorder %s15, 1
    %p33 = por %p31, %p32
    %p34 = scmp.ne.s32.totalorder %s23, %s24
    %p35 = scmp.eq.s32.totalorder %s15, 0
    %p36 = por %p34, %p35
    %p37 = scmp.ne.s32.totalorder %s23, %s24
    %p38 = scmp.eq.s32.totalorder %s16, 1
    %p39 = por %p37, %p38
    %p41 = scmp.ne.s32.totalorder %s24, %s40
    %p42 = scmp.eq.s32.totalorder %s16, 0
    %p43 = por %p41, %p42
    %s45 = sadd.s32 %s44, 1
    %p48 = scmp.eq.s32.totalorder %s10, 1
    %p49 = scmp.ne.s32.totalorder %s44, %s46
    %p50 = scmp.eq.s32.totalorder %s10, 0
    %p51 = por %p49, %p50
    %p52 = scmp.ne.s32.totalorder %s44, %s46
    %p53 = scmp.eq.s32.totalorder %s15, 1
    %p54 = por %p52, %p53
    %p55 = scmp.ne.s32.totalorder %s46, %s47
    %p56 = scmp.eq.s32.totalorder %s15, 0
    %p57 = por %p55, %p56
    %p58 = scmp.ne.s32.totalorder %s46, %s47
    %p59 = scmp.eq.s32.totalorder %s16, 1
    %p60 = por %p58, %p59
    %p62 = scmp.ne.s32.totalorder %s47, %s61
    %p63 = scmp.eq.s32.totalorder %s16, 0
    %p64 = por %p62, %p63
    %s66 = sadd.s32 %s65, 1
    %p69 = scmp.eq.s32.totalorder %s10, 1
    %p70 = scmp.ne.s32.totalorder %s65, %s67
    %p71 = scmp.eq.s32.totalorder %s10, 0
    %p72 = por %p70, %p71
    %p73 = scmp.ne.s32.totalorder %s65, %s67
    %p74 = scmp.eq.s32.totalorder %s15, 1
    %p75 = por %p73, %p74
    %p76 = scmp.ne.s32.totalorder %s67, %s68
    %p77 = scmp.eq.s32.totalorder %s15, 0
    %p78 = por %p76, %p77
    %p79 = scmp.ne.s32.totalorder %s67, %s68
    %p80 = scmp.eq.s32.totalorder %s16, 1
    %p81 = por %p79, %p80
    %p83 = scmp.ne.s32.totalorder %s68, %s82
    %p84 = scmp.eq.s32.totalorder %s16, 0
    %p85 = por %p83, %p84
    %s87 = sadd.s32 %s86, 1
    %p90 = scmp.eq.s32.totalorder %s10, 1
    %p91 = scmp.ne.s32.totalorder %s86, %s88
    %p92 = scmp.eq.s32.totalorder %s10, 0
    %p93 = por %p91, %p92
    %p94 = scmp.ne.s32.totalorder %s86, %s88
    %p95 = scmp.eq.s32.totalorder %s15, 1
    %p96 = por %p94, %p95
    %p97 = scmp.ne.s32.totalorder %s88, %s89
    %p98 = scmp.eq.s32.totalorder %s15, 0
    %p99 = por %p97, %p98
    %p100 = scmp.ne.s32.totalorder %s88, %s89
    %p101 = scmp.eq.s32.totalorder %s16, 1
    %p102 = por %p100, %p101
    %p104 = scmp.ne.s32.totalorder %s89, %s103
    %p105 = scmp.eq.s32.totalorder %s16, 0
    %p106 = por %p104, %p105
    %s107 = ssub.s32 %s10, %s17
    %p108 = scmp.eq.s32.totalorder %s107, 0
    %s110 = sadd.s32 %s109, 1
    %s111 = scalar_select %p108, %s109, %s110
    %p114 = pneg %p108
    %p115 = scmp.eq.s32.totalorder %s10, 1
    %p116 = por %p114, %p115
    %p117 = scmp.ne.s32.totalorder %s109, %s112
    %p118 = scmp.eq.s32.totalorder %s10, 0
    %p119 = por %p117, %p118
    %p120 = scmp.ne.s32.totalorder %s109, %s112
    %p121 = scmp.eq.s32.totalorder %s15, 1
    %p122 = por %p120, %p121
    %p123 = scmp.ne.s32.totalorder %s112, %s113
    %p124 = scmp.eq.s32.totalorder %s15, 0
    %p125 = por %p123, %p124
    %p126 = scmp.ne.s32.totalorder %s112, %s113
    %p127 = scmp.eq.s32.totalorder %s16, 1
    %p128 = por %p126, %p127
    %p130 = scmp.ne.s32.totalorder %s113, %s129
    %p131 = scmp.eq.s32.totalorder %s16, 0
    %p132 = por %p130, %p131
    %p133 = scmp.le.s32.totalorder 1, %s10
    %p134 = scmp.lt.s32.totalorder %s10, 3
    %p135 = pnand %p133, %p134
    %p136 = pneg %p135
    // Predicated region
    $region9: #{unet_forward.5} parent=5 // pred_check
      _
    $region10: #{unet_forward.5} parent=5 // pred_check_branch
      %138 = sbr.rel (%p135) target = $region12
    $region11: #{unet_forward.5} parent=5 // pred_region
      %s139 = ssub.s32 %s10, 1
      // Predicated region
      $region13: #{unet_forward.5} parent=11 // pred_check
        %p140 = pneg %p57
      $region14: #{unet_forward.5} parent=11 // pred_check_branch
        %142 = sbr.rel (%p140) target = $region16
      $region15: #{unet_forward.5} parent=11 // pred_region
        _
      $region16: #{unet_forward.5} parent=11 // pred_fallthru
        _
      // Predicated region
      $region17: #{unet_forward.5} parent=11 // pred_check
        %p143 = pneg %p78
      $region18: #{unet_forward.5} parent=11 // pred_check_branch
        %145 = sbr.rel (%p143) target = $region20
      $region19: #{unet_forward.5} parent=11 // pred_region
        _
      $region20: #{unet_forward.5} parent=11 // pred_fallthru
        _
      // Predicated region
      $region21: #{unet_forward.5} parent=11 // pred_check
        %p146 = pneg %p99
      $region22: #{unet_forward.5} parent=11 // pred_check_branch
        %148 = sbr.rel (%p146) target = $region24
      $region23: #{unet_forward.5} parent=11 // pred_region
        _
      $region24: #{unet_forward.5} parent=11 // pred_fallthru
        _
    $region12: #{unet_forward.5} parent=5 // pred_fallthru
      _
    %p149 = scmp.lt.s32.totalorder %s10, 2
    // Predicated region
    $region25: #{unet_forward.5} parent=5 // pred_check
      %p150 = pneg %p149
    $region26: #{unet_forward.5} parent=5 // pred_check_branch
      %152 = sbr.rel (%p150) target = $region28
    $region27: #{unet_forward.5} parent=5 // pred_region
      // Predicated region
      $region29: #{unet_forward.5} parent=27 // pred_check
        %p153 = pneg %p30
      $region30: #{unet_forward.5} parent=27 // pred_check_branch
        %155 = sbr.rel (%p153) target = $region32
      $region31: #{unet_forward.5} parent=27 // pred_region
        %p156 = scmp.lt.s32.totalorder %s10, 1
        %s157 = scalar_select %p156, %s10, 1
        %s158 = smul.addr %s157, 4
        %s159 = smul.addr %s158, 4
        %s160 = scalar_lea.vmem %s0, %s159
      $region32: #{unet_forward.5} parent=27 // pred_fallthru
        _
    $region28: #{unet_forward.5} parent=5 // pred_fallthru
      _
    %p161 = scmp.le.s32.totalorder 1, %s10
    %p162 = scmp.lt.s32.totalorder %s10, 3
    %p163 = pnand %p161, %p162
    %p164 = pneg %p163
    // Predicated region
    $region33: #{unet_forward.5} parent=5 // pred_check
      _
    $region34: #{unet_forward.5} parent=5 // pred_check_branch
      %166 = sbr.rel (%p163) target = $region36
    $region35: #{unet_forward.5} parent=5 // pred_region
      %s167 = ssub.s32 %s10, 1
      %p168 = scmp.lt.s32.totalorder %s15, 1
      %s169 = scalar_select %p168, %s15, 1
      %s170 = smul.addr %s169, 4
      %s171 = smul.addr %s170, 4
      %s172 = scalar_lea.vmem %s0, %s171
      %p173 = pneg %p36
      %p174 = pneg %p33
      %p175 = pneg %p57
      %p176 = pneg %p54
      %p177 = pneg %p78
      %p178 = pneg %p75
      %p179 = pneg %p99
      %p180 = pneg %p96
      %p181 = pneg %p125
      %p182 = pneg %p122
      %p183 = scmp.lt.s32.totalorder %s15, 1
      %s184 = scalar_select %p183, %s15, 1
      %s185 = smul.addr %s184, 6
      %s186 = smul.addr %s185, 4
      %s187 = scalar_lea.vmem %s4, %s186
      %p188 = scmp.lt.s32.totalorder %s15, 1
      %s189 = scalar_select %p188, %s15, 1
      %s190 = smul.addr %s189, 4
      %s191 = smul.addr %s190, 4
      %s192 = scalar_lea.vmem %s0, %s191
      %p193 = scmp.lt.s32.totalorder %s15, 1
      %s194 = scalar_select %p193, %s15, 1
      %s195 = smul.addr %s194, 6
      %s196 = smul.addr %s195, 4
      %s197 = scalar_lea.vmem %s4, %s196
      %v199 = vld [vmem:[%s3] sm:$0x7]
      %v200 = vld [vmem:[%s192] sm:$0xff]
      %v201 = vld [vmem:[%s192 + $0x8] sm:$0xf]
      %204 = vrot.lane.b32.xlu0 %v200, 111
      %v205 = vpop.permute.xlu0 %204
      %206 = vrot.lane.b32.xlu0 %v201, 111
      %v207 = vpop.permute.xlu0 %206
      %v208 = vrot.slane %v205, 4
      %v209 = vrot.slane %v207, 4
      %vm210 = vcmask 1043456
      %v211 = vsel %vm210, %v208, %v209
      %vm212 = vcmask 908288
      %v213 = vsel %vm212, %v205, %v211
      %216 = vst [vmem:[#allocation2] sm:$0xff] %v213
      %vm217 = vcmask 551936
      %218 = vst.msk [vmem:[#allocation2 + $0x8] sm:$0xf] %vm217, %v207
      %v219 = vld [vmem:[%s192] sm:$0xff]
      %v220 = vld [vmem:[%s192 + $0x8] sm:$0xf]
      %223 = vrot.lane.b32.xlu0 %v219, 110
      %v224 = vpop.permute.xlu0 %223
      %225 = vrot.lane.b32.xlu0 %v220, 110
      %v226 = vpop.permute.xlu0 %225
      %v227 = vrot.slane %v224, 4
      %v228 = vrot.slane %v226, 4
      %v229 = vsel %vm210, %v227, %v228
      %vm230 = vcmask 900096
      %v231 = vsel %vm230, %v224, %v229
      %234 = vst [vmem:[#allocation2 + $0xc] sm:$0xff] %v231
      %235 = vst.msk [vmem:[#allocation2 + $0x14] sm:$0xf] %vm217, %v226
      %v236 = vld [vmem:[%s192] sm:$0xff]
      %v237 = vld [vmem:[%s192 + $0x8] sm:$0xf]
      %240 = vrot.lane.b32.xlu0 %v236, 109
      %v241 = vpop.permute.xlu0 %240
      %242 = vrot.lane.b32.xlu0 %v237, 109
      %v243 = vpop.permute.xlu0 %242
      %v244 = vrot.slane %v241, 4
      %v245 = vrot.slane %v243, 4
      %v246 = vsel %vm210, %v244, %v245
      %vm247 = vcmask 891904
      %v248 = vsel %vm247, %v241, %v246
      %251 = vst [vmem:[#allocation2 + $0x18] sm:$0xff] %v248
      %252 = vst.msk [vmem:[#allocation2 + $0x20] sm:$0xf] %vm217, %v243
      %v253 = vld [vmem:[%s192] sm:$0xff]
      %v254 = vld [vmem:[%s192 + $0x8] sm:$0xf]
      %257 = vrot.lane.b32.xlu0 %v253, 93
      %v258 = vpop.permute.xlu0 %257
      %259 = vrot.lane.b32.xlu0 %v254, 93
      %v260 = vpop.permute.xlu0 %259
      %v261 = vrot.slane %v258, 4
      %v262 = vrot.slane %v260, 4
      %v263 = vsel %vm210, %v261, %v262
      %vm264 = vcmask 760832
      %v265 = vsel %vm264, %v258, %v263
      %268 = vst [vmem:[#allocation2 + $0x24] sm:$0xff] %v265
      %269 = vst.msk [vmem:[#allocation2 + $0x2c] sm:$0xf] %vm217, %v260
      %v270 = vld [vmem:[%s192] sm:$0xff]
      %v271 = vld [vmem:[%s192 + $0x8] sm:$0xf]
      %274 = vrot.lane.b32.xlu0 %v270, 92
      %v275 = vpop.permute.xlu0 %274
      %276 = vrot.lane.b32.xlu0 %v271, 92
      %v277 = vpop.permute.xlu0 %276
      %v278 = vrot.slane %v275, 4
      %v279 = vrot.slane %v277, 4
      %v280 = vsel %vm210, %v278, %v279
      %vm281 = vcmask 752640
      %v282 = vsel %vm281, %v275, %v280
      %285 = vst [vmem:[#allocation2 + $0x30] sm:$0xff] %v282
      %286 = vst.msk [vmem:[#allocation2 + $0x38] sm:$0xf] %vm217, %v277
      %v287 = vld [vmem:[%s192] sm:$0xff]
      %v288 = vld [vmem:[%s192 + $0x8] sm:$0xf]
      %291 = vrot.lane.b32.xlu0 %v287, 91
      %v292 = vpop.permute.xlu0 %291
      %293 = vrot.lane.b32.xlu0 %v288, 91
      %v294 = vpop.permute.xlu0 %293
      %v295 = vrot.slane %v292, 4
      %v296 = vrot.slane %v294, 4
      %v297 = vsel %vm210, %v295, %v296
      %vm298 = vcmask 744448
      %v299 = vsel %vm298, %v292, %v297
      %302 = vst [vmem:[#allocation2 + $0x3c] sm:$0xff] %v299
      %303 = vst.msk [vmem:[#allocation2 + $0x44] sm:$0xf] %vm217, %v294
      %v304 = vld [vmem:[%s192] sm:$0xff]
      %v305 = vld [vmem:[%s192 + $0x8] sm:$0xf]
      %308 = vrot.lane.b32.xlu0 %v304, 75
      %v309 = vpop.permute.xlu0 %308
      %310 = vrot.lane.b32.xlu0 %v305, 75
      %v311 = vpop.permute.xlu0 %310
      %v312 = vrot.slane %v309, 4
      %v313 = vrot.slane %v311, 4
      %v314 = vsel %vm210, %v312, %v313
      %vm315 = vcmask 613376
      %v316 = vsel %vm315, %v309, %v314
      %319 = vst [vmem:[#allocation2 + $0x48] sm:$0xff] %v316
      %320 = vst.msk [vmem:[#allocation2 + $0x50] sm:$0xf] %vm217, %v311
      %v321 = vld [vmem:[%s192] sm:$0xff]
      %v322 = vld [vmem:[%s192 + $0x8] sm:$0xf]
      %325 = vrot.lane.b32.xlu0 %v321, 74
      %v326 = vpop.permute.xlu0 %325
      %327 = vrot.lane.b32.xlu0 %v322, 74
      %v328 = vpop.permute.xlu0 %327
      %v329 = vrot.slane %v326, 4
      %v330 = vrot.slane %v328, 4
      %v331 = vsel %vm210, %v329, %v330
      %vm332 = vcmask 605184
      %v333 = vsel %vm332, %v326, %v331
      %336 = vst [vmem:[#allocation2 + $0x54] sm:$0xff] %v333
      %337 = vst.msk [vmem:[#allocation2 + $0x5c] sm:$0xf] %vm217, %v328
      %v338 = vld [vmem:[%s192] sm:$0xff]
      %v339 = vld [vmem:[%s192 + $0x8] sm:$0xf]
      %342 = vrot.lane.b32.xlu0 %v338, 73
      %v343 = vpop.permute.xlu0 %342
      %344 = vrot.lane.b32.xlu0 %v339, 73
      %v345 = vpop.permute.xlu0 %344
      %v346 = vrot.slane %v343, 4
      %v347 = vrot.slane %v345, 4
      %v348 = vsel %vm210, %v346, %v347
      %vm349 = vcmask 596992
      %v350 = vsel %vm349, %v343, %v348
      %353 = vst [vmem:[#allocation2 + $0x60] sm:$0xff] %v350
      %354 = vst.msk [vmem:[#allocation2 + $0x68] sm:$0xf] %vm217, %v345
      %v355 = vld [vmem:[%s1] sm:$0xf]
      %v356 = vld [vmem:[%s1 + $0x4] sm:$0xf]
      %v357 = vld [vmem:[#allocation2] sm:$0xff]
      %v358 = vld [vmem:[#allocation2 + $0x8] sm:$0xf]
      %v359 = vld [vmem:[#allocation2 + $0xc] sm:$0xff]
      %v360 = vld [vmem:[#allocation2 + $0x14] sm:$0xf]
      %v361 = vld [vmem:[#allocation2 + $0x18] sm:$0xff]
      %v362 = vld [vmem:[#allocation2 + $0x20] sm:$0xf]
      %v363 = vld [vmem:[#allocation2 + $0x24] sm:$0xff]
      %v364 = vld [vmem:[#allocation2 + $0x2c] sm:$0xf]
      %v365 = vld [vmem:[#allocation2 + $0x30] sm:$0xff]
      %v366 = vld [vmem:[#allocation2 + $0x38] sm:$0xf]
      %v367 = vld [vmem:[#allocation2 + $0x3c] sm:$0xff]
      %v368 = vld [vmem:[#allocation2 + $0x44] sm:$0xf]
      %v369 = vld [vmem:[#allocation2 + $0x48] sm:$0xff]
      %v370 = vld [vmem:[#allocation2 + $0x50] sm:$0xf]
      %v371 = vld [vmem:[#allocation2 + $0x54] sm:$0xff]
      %v372 = vld [vmem:[#allocation2 + $0x5c] sm:$0xf]
      %v373 = vld [vmem:[#allocation2 + $0x60] sm:$0xff]
      %v374 = vld [vmem:[#allocation2 + $0x68] sm:$0xf]
      %v377 = vunpack.c.l.b16 %v355
      %v378 = vunpack.c.l.b16 %v356
      %v379 = vpack.c.b16 %v378, %v377
      %v398 = vunpack.c.l.b16 %v357
      %v399 = vunpack.c.h.b16 %v357
      %v400 = vunpack.c.l.b16 %v358
      %v401 = vunpack.c.l.b16 %v359
      %v402 = vunpack.c.h.b16 %v359
      %v403 = vunpack.c.l.b16 %v360
      %v404 = vunpack.c.l.b16 %v361
      %v405 = vunpack.c.h.b16 %v361
      %v406 = vunpack.c.l.b16 %v362
      %v407 = vunpack.c.l.b16 %v363
      %v408 = vunpack.c.h.b16 %v363
      %v409 = vunpack.c.l.b16 %v364
      %v410 = vunpack.c.l.b16 %v365
      %v411 = vunpack.c.h.b16 %v365
      %v412 = vunpack.c.l.b16 %v366
      %v413 = vunpack.c.l.b16 %v367
      %v414 = vunpack.c.h.b16 %v367
      %v415 = vunpack.c.l.b16 %v368
      %v416 = vunpack.c.l.b16 %v369
      %v417 = vunpack.c.h.b16 %v369
      %v418 = vunpack.c.l.b16 %v370
      %v419 = vunpack.c.l.b16 %v371
      %v420 = vunpack.c.h.b16 %v371
      %v421 = vunpack.c.l.b16 %v372
      %v422 = vunpack.c.l.b16 %v373
      %v423 = vunpack.c.h.b16 %v373
      %v424 = vunpack.c.l.b16 %v374
      %v425 = vpack.c.b16 %v401, %v398
      %v426 = vpack.c.b16 %v402, %v399
      %v427 = vpack.c.b16 %v403, %v400
      %v428 = vpack.c.b16 %v407, %v404
      %v429 = vpack.c.b16 %v408, %v405
      %v430 = vpack.c.b16 %v409, %v406
      %v431 = vpack.c.b16 %v413, %v410
      %v432 = vpack.c.b16 %v414, %v411
      %v433 = vpack.c.b16 %v415, %v412
      %v434 = vpack.c.b16 %v419, %v416
      %v435 = vpack.c.b16 %v420, %v417
      %v436 = vpack.c.b16 %v421, %v418
      %v437 = vpack.c.b16 %v422, %v422
      %v438 = vpack.c.b16 %v423, %v423
      %v439 = vpack.c.b16 %v424, %v424
      %vm452 = vcmask 588800
      %v454 = vsel %vm452, %v379, 0
      %vm456 = vcmask 1043456
      %v458 = vsel %vm456, %v437, 0
      %v461 = vsel %vm456, %v438, 0
      %v464 = vsel %vm456, %v439, 0
      %466 = vmatpush.bf16.msra.mxu0 0
      %467 = vmatpush.bf16.msra.mxu0 0
      %468 = vmatpush.bf16.msra.mxu0 0
      %469 = vmatpush.bf16.msra.mxu0 %v458
      %470 = vmatpush.bf16.msra.mxu0 %v434
      %471 = vmatpush.bf16.msra.mxu0 %v431
      %472 = vmatpush.bf16.msra.mxu0 %v428
      %473 = vmatpush.bf16.msra.mxu0 %v425
      %474 = vmatmul.bf16.gmra.mxu0 %v454
      %v475 = vpop.f32.mrf.mxu0
      %v476 = vadd.f32 0.0, %v475
      %v477 = vpop.f32.mrf.mxu0
      %v478 = vadd.f32 0.0, %v477
      %479 = vdwg.mxu0
      %480 = vmatpush.bf16.msra.mxu0 0
      %481 = vmatpush.bf16.msra.mxu0 0
      %482 = vmatpush.bf16.msra.mxu0 0
      %483 = vmatpush.bf16.msra.mxu0 %v461
      %484 = vmatpush.bf16.msra.mxu0 %v435
      %485 = vmatpush.bf16.msra.mxu0 %v432
      %486 = vmatpush.bf16.msra.mxu0 %v429
      %487 = vmatpush.bf16.msra.mxu0 %v426
      %488 = vmatmul.bf16.gmra.mxu0 %v454
      %v489 = vpop.f32.mrf.mxu0
      %v490 = vadd.f32 0.0, %v489
      %v491 = vpop.f32.mrf.mxu0
      %v492 = vadd.f32 0.0, %v491
      %493 = vdwg.mxu0
      %494 = vmatpush.bf16.msra.mxu0 0
      %495 = vmatpush.bf16.msra.mxu0 0
      %496 = vmatpush.bf16.msra.mxu0 0
      %497 = vmatpush.bf16.msra.mxu0 %v464
      %498 = vmatpush.bf16.msra.mxu0 %v436
      %499 = vmatpush.bf16.msra.mxu0 %v433
      %500 = vmatpush.bf16.msra.mxu0 %v430
      %501 = vmatpush.bf16.msra.mxu0 %v427
      %502 = vmatmul.bf16.gmra.mxu0 %v454
      %v503 = vpop.f32.mrf.mxu0
      %v504 = vadd.f32 0.0, %v503
      %v505 = vpop.f32.mrf.mxu0
      %v506 = vadd.f32 0.0, %v505
      %507 = vdwg.mxu0
      %v509 = vperm.slane %v199, 0
      %v510 = vperm.slane %v199, 1
      %v511 = vperm.slane %v199, 2
      %v515 = vmul.f32 %v476, %v509
      %v516 = vmul.f32 %v490, %v510
      %v517 = vmul.f32 %v504, %v511
      %v518 = vmul.f32 %v478, %v509
      %v519 = vmul.f32 %v492, %v510
      %v520 = vmul.f32 %v506, %v511
      %v521 = vadd.f32 %v515, %v516
      %vm522 = vcmask 556032
      %v523 = vsel %vm522, %v517, 0.0
      %v524 = vadd.f32 %v521, %v523
      %525 = vadd.xlane.f32.xlu0 %v524
      %v526 = vpop.xlane.xlu0 %525
      %v527 = vadd.f32 %v518, %v519
      %v528 = vsel %vm522, %v520, 0.0
      %v529 = vadd.f32 %v527, %v528
      %530 = vadd.xlane.f32.xlu0 %v529
      %v531 = vpop.xlane.xlu0 %530
      %v532 = vmul.f32 %v526, 0.00390625
      %v533 = vmul.f32 %v531, 0.00390625
      %v534 = vsub.f32 %v476, %v532
      %v535 = vsub.f32 %v490, %v532
      %v536 = vsub.f32 %v504, %v532
      %v537 = vsub.f32 %v478, %v533
      %v538 = vsub.f32 %v492, %v533
      %v539 = vsub.f32 %v506, %v533
      %v540 = vmul.f32 %v534, %v509
      %v541 = vmul.f32 %v535, %v510
      %v542 = vmul.f32 %v536, %v511
      %v543 = vmul.f32 %v537, %v509
      %v544 = vmul.f32 %v538, %v510
      %v545 = vmul.f32 %v539, %v511
      %v546 = vmul.f32 %v540, %v540
      %v547 = vmul.f32 %v541, %v541
      %v548 = vmul.f32 %v542, %v542
      %v549 = vmul.f32 %v543, %v543
      %v550 = vmul.f32 %v544, %v544
      %v551 = vmul.f32 %v545, %v545
      %v552 = vadd.f32 %v546, %v547
      %v553 = vsel %vm522, %v548, 0.0
      %v554 = vadd.f32 %v552, %v553
      %555 = vadd.xlane.f32.xlu0 %v554
      %v556 = vpop.xlane.xlu0 %555
      %v557 = vadd.f32 %v549, %v550
      %v558 = vsel %vm522, %v551, 0.0
      %v559 = vadd.f32 %v557, %v558
      %560 = vadd.xlane.f32.xlu0 %v559
      %v561 = vpop.xlane.xlu0 %560
      %v562 = vmul.f32 %v556, 0.00390625
      %v563 = vmul.f32 %v561, 0.00390625
      %v564 = vadd.f32 %v562, 1e-05
      %v565 = vadd.f32 %v563, 1e-05
      %v566 = vrsqrt.pop %v564
      %v567 = vmul.f32 %v566, %v564
      %v568 = vmul.f32 %v567, %v566
      %v569 = vmul.f32 0.5, %v568
      %v570 = vsub.f32 1.5, %v569
      %v571 = vmul.f32 %v566, %v570
      %vm572 = vweird.f32 %v564
      %vm573 = vweird.f32 %v566
      %vm574 = vmor %vm572, %vm573
      %v575 = vsel %vm574, %v566, %v571
      %v576 = vrsqrt.pop %v565
      %v577 = vmul.f32 %v576, %v565
      %v578 = vmul.f32 %v577, %v576
      %v579 = vmul.f32 0.5, %v578
      %v580 = vsub.f32 1.5, %v579
      %v581 = vmul.f32 %v576, %v580
      %vm582 = vweird.f32 %v565
      %vm583 = vweird.f32 %v576
      %vm584 = vmor %vm582, %vm583
      %v585 = vsel %vm584, %v576, %v581
      %v586 = vmul.f32 %v540, %v575
      %v587 = vmul.f32 %v541, %v575
      %v588 = vmul.f32 %v542, %v575
      %v589 = vmul.f32 %v543, %v585
      %v590 = vmul.f32 %v544, %v585
      %v591 = vmul.f32 %v545, %v585
      %v592 = vmax.f32 %v586, 0.0
      %v593 = vmax.f32 %v587, 0.0
      %v594 = vmax.f32 %v588, 0.0
      %v595 = vmax.f32 %v589, 0.0
      %v596 = vmax.f32 %v590, 0.0
      %v597 = vmax.f32 %v591, 0.0
      %598 = vst [vmem:[#allocation3] sm:$0xf] 0
      %599 = vst [vmem:[#allocation3 + $0x10] sm:$0xf] 0
      %vm600 = vcmask 1044000
      %601 = vst.msk [vmem:[#allocation3 + $0xc] sm:$0xf] %vm600, 0
      %602 = vst.msk [vmem:[#allocation3 + $0x1c] sm:$0xf] %vm600, 0
      %v603 = vpack.c.bf16 %v593, %v592
      %v604 = vpack.c.bf16 %v594, %v594
      %v605 = vpack.c.bf16 %v596, %v595
      %v606 = vpack.c.bf16 %v597, %v597
      %607 = vst [vmem:[#allocation3 + $0x4] sm:$0xff] %v603
      %608 = vst.msk [vmem:[#allocation3 + $0xc] sm:$0xf] %vm217, %v604
      %609 = vst [vmem:[#allocation3 + $0x14] sm:$0xff] %v605
      %610 = vst.msk [vmem:[#allocation3 + $0x1c] sm:$0xf] %vm217, %v606
      %v611 = vld [vmem:[#allocation3] sm:$0xff]
      %v612 = vld [vmem:[#allocation3 + $0x8] sm:$0xff]
      %v613 = vld [vmem:[#allocation3 + $0x10] sm:$0xff]
      %v614 = vld [vmem:[#allocation3 + $0x18] sm:$0xff]
      %619 = vrot.lane.b32.xlu0 %v611, 19
      %v620 = vpop.permute.xlu0 %619
      %621 = vrot.lane.b32.xlu0 %v612, 19
      %v622 = vpop.permute.xlu0 %621
      %623 = vrot.lane.b32.xlu0 %v613, 19
      %v624 = vpop.permute.xlu0 %623
      %625 = vrot.lane.b32.xlu0 %v614, 19
      %v626 = vpop.permute.xlu0 %625
      %v627 = vrot.slane %v620, 4
      %v628 = vrot.slane %v622, 4
      %v629 = vrot.slane %v624, 4
      %v630 = vrot.slane %v626, 4
      %v631 = vsel %vm210, %v627, %v628
      %vm632 = vcmask 154624
      %v633 = vsel %vm632, %v620, %v631
      %v634 = vsel %vm632, %v622, %v628
      %v635 = vsel %vm210, %v629, %v630
      %v636 = vsel %vm632, %v624, %v635
      %v637 = vsel %vm632, %v626, %v630
      %642 = vst [vmem:[#allocation2] sm:$0xff] %v633
      %643 = vst.msk [vmem:[#allocation2 + $0x8] sm:$0xf] %vm217, %v634
      %644 = vst [vmem:[#allocation2 + $0xc] sm:$0xff] %v636
      %645 = vst.msk [vmem:[#allocation2 + $0x14] sm:$0xf] %vm217, %v637
      %v646 = vld [vmem:[#allocation3] sm:$0xff]
      %v647 = vld [vmem:[#allocation3 + $0x8] sm:$0xff]
      %v648 = vld [vmem:[#allocation3 + $0x10] sm:$0xff]
      %v649 = vld [vmem:[#allocation3 + $0x18] sm:$0xff]
      %654 = vrot.lane.b32.xlu0 %v646, 18
      %v655 = vpop.permute.xlu0 %654
      %656 = vrot.lane.b32.xlu0 %v647, 18
      %v657 = vpop.permute.xlu0 %656
      %658 = vrot.lane.b32.xlu0 %v648, 18
      %v659 = vpop.permute.xlu0 %658
      %660 = vrot.lane.b32.xlu0 %v649, 18
      %v661 = vpop.permute.xlu0 %660
      %v662 = vrot.slane %v655, 4
      %v663 = vrot.slane %v657, 4
      %v664 = vrot.slane %v659, 4
      %v665 = vrot.slane %v661, 4
      %v666 = vsel %vm210, %v662, %v663
      %vm667 = vcmask 146432
      %v668 = vsel %vm667, %v655, %v666
      %v669 = vsel %vm667, %v657, %v663
      %v670 = vsel %vm210, %v664, %v665
      %v671 = vsel %vm667, %v659, %v670
      %v672 = vsel %vm667, %v661, %v665
      %677 = vst [vmem:[#allocation2 + $0x18] sm:$0xff] %v668
      %678 = vst.msk [vmem:[#allocation2 + $0x20] sm:$0xf] %vm217, %v669
      %679 = vst [vmem:[#allocation2 + $0x24] sm:$0xff] %v671
      %680 = vst.msk [vmem:[#allocation2 + $0x2c] sm:$0xf] %vm217, %v672
      %v681 = vld [vmem:[#allocation3] sm:$0xff]
      %v682 = vld [vmem:[#allocation3 + $0x8] sm:$0xff]
      %v683 = vld [vmem:[#allocation3 + $0x10] sm:$0xff]
      %v684 = vld [vmem:[#allocation3 + $0x18] sm:$0xff]
      %689 = vrot.lane.b32.xlu0 %v681, 17
      %v690 = vpop.permute.xlu0 %689
      %691 = vrot.lane.b32.xlu0 %v682, 17
      %v692 = vpop.permute.xlu0 %691
      %693 = vrot.lane.b32.xlu0 %v683, 17
      %v694 = vpop.permute.xlu0 %693
      %695 = vrot.lane.b32.xlu0 %v684, 17
      %v696 = vpop.permute.xlu0 %695
      %v697 = vrot.slane %v690, 4
      %v698 = vrot.slane %v692, 4
      %v699 = vrot.slane %v694, 4
      %v700 = vrot.slane %v696, 4
      %v701 = vsel %vm210, %v697, %v698
      %vm702 = vcmask 138240
      %v703 = vsel %vm702, %v690, %v701
      %v704 = vsel %vm702, %v692, %v698
      %v705 = vsel %vm210, %v699, %v700
      %v706 = vsel %vm702, %v694, %v705
      %v707 = vsel %vm702, %v696, %v700
      %712 = vst [vmem:[#allocation2 + $0x30] sm:$0xff] %v703
      %713 = vst.msk [vmem:[#allocation2 + $0x38] sm:$0xf] %vm217, %v704
      %714 = vst [vmem:[#allocation2 + $0x3c] sm:$0xff] %v706
      %715 = vst.msk [vmem:[#allocation2 + $0x44] sm:$0xf] %vm217, %v707
      %v716 = vld [vmem:[#allocation3] sm:$0xff]
      %v717 = vld [vmem:[#allocation3 + $0x8] sm:$0xff]
      %v718 = vld [vmem:[#allocation3 + $0x10] sm:$0xff]
      %v719 = vld [vmem:[#allocation3 + $0x18] sm:$0xff]
      %724 = vrot.lane.b32.xlu0 %v716, 1
      %v725 = vpop.permute.xlu0 %724
      %726 = vrot.lane.b32.xlu0 %v717, 1
      %v727 = vpop.permute.xlu0 %726
      %728 = vrot.lane.b32.xlu0 %v718, 1
      %v729 = vpop.permute.xlu0 %728
      %730 = vrot.lane.b32.xlu0 %v719, 1
      %v731 = vpop.permute.xlu0 %730
      %v732 = vrot.slane %v725, 4
      %v733 = vrot.slane %v727, 4
      %v734 = vrot.slane %v729, 4
      %v735 = vrot.slane %v731, 4
      %v736 = vsel %vm210, %v732, %v733
      %vm737 = vcmask 7168
      %v738 = vsel %vm737, %v725, %v736
      %v739 = vsel %vm737, %v727, %v733
      %v740 = vsel %vm210, %v734, %v735
      %v741 = vsel %vm737, %v729, %v740
      %v742 = vsel %vm737, %v731, %v735
      %747 = vst [vmem:[#allocation2 + $0x48] sm:$0xff] %v738
      %748 = vst.msk [vmem:[#allocation2 + $0x50] sm:$0xf] %vm217, %v739
      %749 = vst [vmem:[#allocation2 + $0x54] sm:$0xff] %v741
      %750 = vst.msk [vmem:[#allocation2 + $0x5c] sm:$0xf] %vm217, %v742
      %v751 = vld [vmem:[#allocation3 + $0x4] sm:$0xff]
      %v752 = vld [vmem:[#allocation3 + $0xc] sm:$0xf]
      %v753 = vld [vmem:[#allocation3 + $0x14] sm:$0xff]
      %v754 = vld [vmem:[#allocation3 + $0x1c] sm:$0xf]
      %755 = vst [vmem:[#allocation2 + $0x60] sm:$0xff] %v751
      %756 = vst.msk [vmem:[#allocation2 + $0x68] sm:$0xf] %vm217, %v752
      %757 = vst [vmem:[#allocation2 + $0x6c] sm:$0xff] %v753
      %758 = vst.msk [vmem:[#allocation2 + $0x74] sm:$0xf] %vm217, %v754
      %v759 = vld [vmem:[#allocation3 + $0x4] sm:$0xff]
      %v760 = vld [vmem:[#allocation3 + $0xc] sm:$0xf]
      %v761 = vld [vmem:[#allocation3 + $0x14] sm:$0xff]
      %v762 = vld [vmem:[#allocation3 + $0x1c] sm:$0xf]
      %767 = vrot.lane.b32.xlu0 %v759, 127
      %v768 = vpop.permute.xlu0 %767
      %769 = vrot.lane.b32.xlu0 %v760, 127
      %v770 = vpop.permute.xlu0 %769
      %771 = vrot.lane.b32.xlu0 %v761, 127
      %v772 = vpop.permute.xlu0 %771
      %773 = vrot.lane.b32.xlu0 %v762, 127
      %v774 = vpop.permute.xlu0 %773
      %v775 = vrot.slane %v768, 4
      %v776 = vrot.slane %v770, 4
      %v777 = vrot.slane %v772, 4
      %v778 = vrot.slane %v774, 4
      %v779 = vsel %vm210, %v775, %v776
      %vm780 = vcmask 1039360
      %v781 = vsel %vm780, %v768, %v779
      %v782 = vsel %vm210, %v777, %v778
      %v783 = vsel %vm780, %v772, %v782
      %788 = vst [vmem:[#allocation2 + $0x78] sm:$0xff] %v781
      %789 = vst.msk [vmem:[#allocation2 + $0x80] sm:$0xf] %vm217, %v770
      %790 = vst [vmem:[#allocation2 + $0x84] sm:$0xff] %v783
      %791 = vst.msk [vmem:[#allocation2 + $0x8c] sm:$0xf] %vm217, %v774
      %v792 = vld [vmem:[#allocation3 + $0x4] sm:$0xff]
      %v793 = vld [vmem:[#allocation3 + $0xc] sm:$0xf]
      %v794 = vld [vmem:[#allocation3 + $0x14] sm:$0xff]
      %v795 = vld [vmem:[#allocation3 + $0x1c] sm:$0xf]
      %800 = vrot.lane.b32.xlu0 %v792, 111
      %v801 = vpop.permute.xlu0 %800
      %802 = vrot.lane.b32.xlu0 %v793, 111
      %v803 = vpop.permute.xlu0 %802
      %804 = vrot.lane.b32.xlu0 %v794, 111
      %v805 = vpop.permute.xlu0 %804
      %806 = vrot.lane.b32.xlu0 %v795, 111
      %v807 = vpop.permute.xlu0 %806
      %v808 = vrot.slane %v801, 4
      %v809 = vrot.slane %v803, 4
      %v810 = vrot.slane %v805, 4
      %v811 = vrot.slane %v807, 4
      %v812 = vsel %vm210, %v808, %v809
      %v813 = vsel %vm212, %v801, %v812
      %v814 = vsel %vm210, %v810, %v811
      %v815 = vsel %vm212, %v805, %v814
      %820 = vst [vmem:[#allocation2 + $0x90] sm:$0xff] %v813
      %821 = vst.msk [vmem:[#allocation2 + $0x98] sm:$0xf] %vm217, %v803
      %822 = vst [vmem:[#allocation2 + $0x9c] sm:$0xff] %v815
      %823 = vst.msk [vmem:[#allocation2 + $0xa4] sm:$0xf] %vm217, %v807
      %v824 = vld [vmem:[#allocation3 + $0x4] sm:$0xff]
      %v825 = vld [vmem:[#allocation3 + $0xc] sm:$0xf]
      %v826 = vld [vmem:[#allocation3 + $0x14] sm:$0xff]
      %v827 = vld [vmem:[#allocation3 + $0x1c] sm:$0xf]
      %832 = vrot.lane.b32.xlu0 %v824, 110
      %v833 = vpop.permute.xlu0 %832
      %834 = vrot.lane.b32.xlu0 %v825, 110
      %v835 = vpop.permute.xlu0 %834
      %836 = vrot.lane.b32.xlu0 %v826, 110
      %v837 = vpop.permute.xlu0 %836
      %838 = vrot.lane.b32.xlu0 %v827, 110
      %v839 = vpop.permute.xlu0 %838
      %v840 = vrot.slane %v833, 4
      %v841 = vrot.slane %v835, 4
      %v842 = vrot.slane %v837, 4
      %v843 = vrot.slane %v839, 4
      %v844 = vsel %vm210, %v840, %v841
      %v845 = vsel %vm230, %v833, %v844
      %v846 = vsel %vm210, %v842, %v843
      %v847 = vsel %vm230, %v837, %v846
      %852 = vst [vmem:[#allocation2 + $0xa8] sm:$0xff] %v845
      %853 = vst.msk [vmem:[#allocation2 + $0xb0] sm:$0xf] %vm217, %v835
      %854 = vst [vmem:[#allocation2 + $0xb4] sm:$0xff] %v847
      %855 = vst.msk [vmem:[#allocation2 + $0xbc] sm:$0xf] %vm217, %v839
      %v856 = vld [vmem:[#allocation3 + $0x4] sm:$0xff]
      %v857 = vld [vmem:[#allocation3 + $0xc] sm:$0xf]
      %v858 = vld [vmem:[#allocation3 + $0x14] sm:$0xff]
      %v859 = vld [vmem:[#allocation3 + $0x1c] sm:$0xf]
      %864 = vrot.lane.b32.xlu0 %v856, 109
      %v865 = vpop.permute.xlu0 %864
      %866 = vrot.lane.b32.xlu0 %v857, 109
      %v867 = vpop.permute.xlu0 %866
      %868 = vrot.lane.b32.xlu0 %v858, 109
      %v869 = vpop.permute.xlu0 %868
      %870 = vrot.lane.b32.xlu0 %v859, 109
      %v871 = vpop.permute.xlu0 %870
      %v872 = vrot.slane %v865, 4
      %v873 = vrot.slane %v867, 4
      %v874 = vrot.slane %v869, 4
      %v875 = vrot.slane %v871, 4
      %v876 = vsel %vm210, %v872, %v873
      %v877 = vsel %vm247, %v865, %v876
      %v878 = vsel %vm210, %v874, %v875
      %v879 = vsel %vm247, %v869, %v878
      %884 = vst [vmem:[#allocation2 + $0xc0] sm:$0xff] %v877
      %885 = vst.msk [vmem:[#allocation2 + $0xc8] sm:$0xf] %vm217, %v867
      %886 = vst [vmem:[#allocation2 + $0xcc] sm:$0xff] %v879
      %887 = vst.msk [vmem:[#allocation2 + $0xd4] sm:$0xf] %vm217, %v871
      %v888 = vld [vmem:[%s2] sm:$0xff]
      %v889 = vld [vmem:[%s2 + $0x8] sm:$0xff]
      %v890 = vld [vmem:[#allocation2] sm:$0xff]
      %v891 = vld [vmem:[#allocation2 + $0x8] sm:$0xf]
      %v892 = vld [vmem:[#allocation2 + $0xc] sm:$0xff]
      %v893 = vld [vmem:[#allocation2 + $0x14] sm:$0xf]
      %v894 = vld [vmem:[#allocation2 + $0x18] sm:$0xff]
      %v895 = vld [vmem:[#allocation2 + $0x20] sm:$0xf]
      %v896 = vld [vmem:[#allocation2 + $0x24] sm:$0xff]
      %v897 = vld [vmem:[#allocation2 + $0x2c] sm:$0xf]
      %v898 = vld [vmem:[#allocation2 + $0x30] sm:$0xff]
      %v899 = vld [vmem:[#allocation2 + $0x38] sm:$0xf]
      %v900 = vld [vmem:[#allocation2 + $0x3c] sm:$0xff]
      %v901 = vld [vmem:[#allocation2 + $0x44] sm:$0xf]
      %v902 = vld [vmem:[#allocation2 + $0x48] sm:$0xff]
      %v903 = vld [vmem:[#allocation2 + $0x50] sm:$0xf]
      %v904 = vld [vmem:[#allocation2 + $0x54] sm:$0xff]
      %v905 = vld [vmem:[#allocation2 + $0x5c] sm:$0xf]
      %v906 = vld [vmem:[#allocation2 + $0x60] sm:$0xff]
      %v907 = vld [vmem:[#allocation2 + $0x68] sm:$0xf]
      %v908 = vld [vmem:[#allocation2 + $0x6c] sm:$0xff]
      %v909 = vld [vmem:[#allocation2 + $0x74] sm:$0xf]
      %v910 = vld [vmem:[#allocation2 + $0x78] sm:$0xff]
      %v911 = vld [vmem:[#allocation2 + $0x80] sm:$0xf]
      %v912 = vld [vmem:[#allocation2 + $0x84] sm:$0xff]
      %v913 = vld [vmem:[#allocation2 + $0x8c] sm:$0xf]
      %v914 = vld [vmem:[#allocation2 + $0x90] sm:$0xff]
      %v915 = vld [vmem:[#allocation2 + $0x98] sm:$0xf]
      %v916 = vld [vmem:[#allocation2 + $0x9c] sm:$0xff]
      %v917 = vld [vmem:[#allocation2 + $0xa4] sm:$0xf]
      %v918 = vld [vmem:[#allocation2 + $0xa8] sm:$0xff]
      %v919 = vld [vmem:[#allocation2 + $0xb0] sm:$0xf]
      %v920 = vld [vmem:[#allocation2 + $0xb4] sm:$0xff]
      %v921 = vld [vmem:[#allocation2 + $0xbc] sm:$0xf]
      %v922 = vld [vmem:[#allocation2 + $0xc0] sm:$0xff]
      %v923 = vld [vmem:[#allocation2 + $0xc8] sm:$0xf]
      %v924 = vld [vmem:[#allocation2 + $0xcc] sm:$0xff]
      %v925 = vld [vmem:[#allocation2 + $0xd4] sm:$0xf]
      %v928 = vunpack.c.l.b16 %v888
      %v929 = vunpack.c.h.b16 %v888
      %v930 = vunpack.c.l.b16 %v889
      %v931 = vunpack.c.h.b16 %v889
      %v932 = vpack.c.b16 %v930, %v928
      %v933 = vpack.c.b16 %v931, %v929
      %v971 = vunpack.c.l.b16 %v890
      %v972 = vunpack.c.h.b16 %v890
      %v973 = vunpack.c.l.b16 %v891
      %v974 = vunpack.c.l.b16 %v892
      %v975 = vunpack.c.h.b16 %v892
      %v976 = vunpack.c.l.b16 %v893
      %v977 = vunpack.c.l.b16 %v894
      %v978 = vunpack.c.h.b16 %v894
      %v979 = vunpack.c.l.b16 %v895
      %v980 = vunpack.c.l.b16 %v896
      %v981 = vunpack.c.h.b16 %v896
      %v982 = vunpack.c.l.b16 %v897
      %v983 = vunpack.c.l.b16 %v898
      %v984 = vunpack.c.h.b16 %v898
      %v985 = vunpack.c.l.b16 %v899
      %v986 = vunpack.c.l.b16 %v900
      %v987 = vunpack.c.h.b16 %v900
      %v988 = vunpack.c.l.b16 %v901
      %v989 = vunpack.c.l.b16 %v902
      %v990 = vunpack.c.h.b16 %v902
      %v991 = vunpack.c.l.b16 %v903
      %v992 = vunpack.c.l.b16 %v904
      %v993 = vunpack.c.h.b16 %v904
      %v994 = vunpack.c.l.b16 %v905
      %v995 = vunpack.c.l.b16 %v906
      %v996 = vunpack.c.h.b16 %v906
      %v997 = vunpack.c.l.b16 %v907
      %v998 = vunpack.c.l.b16 %v908
      %v999 = vunpack.c.h.b16 %v908
      %v1000 = vunpack.c.l.b16 %v909
      %v1001 = vunpack.c.l.b16 %v910
      %v1002 = vunpack.c.h.b16 %v910
      %v1003 = vunpack.c.l.b16 %v911
      %v1004 = vunpack.c.l.b16 %v912
      %v1005 = vunpack.c.h.b16 %v912
      %v1006 = vunpack.c.l.b16 %v913
      %v1007 = vunpack.c.l.b16 %v914
      %v1008 = vunpack.c.h.b16 %v914
      %v1009 = vunpack.c.l.b16 %v915
      %v1010 = vunpack.c.l.b16 %v916
      %v1011 = vunpack.c.h.b16 %v916
      %v1012 = vunpack.c.l.b16 %v917
      %v1013 = vunpack.c.l.b16 %v918
      %v1014 = vunpack.c.h.b16 %v918
      %v1015 = vunpack.c.l.b16 %v919
      %v1016 = vunpack.c.l.b16 %v920
      %v1017 = vunpack.c.h.b16 %v920
      %v1018 = vunpack.c.l.b16 %v921
      %v1019 = vunpack.c.l.b16 %v922
      %v1020 = vunpack.c.h.b16 %v922
      %v1021 = vunpack.c.l.b16 %v923
      %v1022 = vunpack.c.l.b16 %v924
      %v1023 = vunpack.c.h.b16 %v924
      %v1024 = vunpack.c.l.b16 %v925
      %v1025 = vpack.c.b16 %v974, %v971
      %v1026 = vpack.c.b16 %v975, %v972
      %v1027 = vpack.c.b16 %v976, %v973
      %v1028 = vpack.c.b16 %v980, %v977
      %v1029 = vpack.c.b16 %v981, %v978
      %v1030 = vpack.c.b16 %v982, %v979
      %v1031 = vpack.c.b16 %v986, %v983
      %v1032 = vpack.c.b16 %v987, %v984
      %v1033 = vpack.c.b16 %v988, %v985
      %v1034 = vpack.c.b16 %v992, %v989
      %v1035 = vpack.c.b16 %v993, %v990
      %v1036 = vpack.c.b16 %v994, %v991
      %v1037 = vpack.c.b16 %v998, %v995
      %v1038 = vpack.c.b16 %v999, %v996
      %v1039 = vpack.c.b16 %v1000, %v997
      %v1040 = vpack.c.b16 %v1004, %v1001
      %v1041 = vpack.c.b16 %v1005, %v1002
      %v1042 = vpack.c.b16 %v1006, %v1003
      %v1043 = vpack.c.b16 %v1010, %v1007
      %v1044 = vpack.c.b16 %v1011, %v1008
      %v1045 = vpack.c.b16 %v1012, %v1009
      %v1046 = vpack.c.b16 %v1016, %v1013
      %v1047 = vpack.c.b16 %v1017, %v1014
      %v1048 = vpack.c.b16 %v1018, %v1015
      %v1049 = vpack.c.b16 %v1022, %v1019
      %v1050 = vpack.c.b16 %v1023, %v1020
      %v1051 = vpack.c.b16 %v1024, %v1021
      %vm1079 = vcmask 130048
      %v1081 = vsel %vm1079, %v933, 0
      %1083 = vmatpush.bf16.msra.mxu0 %v1046
      %1084 = vmatpush.bf16.msra.mxu0 %v1043
      %1085 = vmatpush.bf16.msra.mxu0 %v1040
      %1086 = vmatpush.bf16.msra.mxu0 %v1037
      %1087 = vmatpush.bf16.msra.mxu0 %v1034
      %1088 = vmatpush.bf16.msra.mxu0 %v1031
      %1089 = vmatpush.bf16.msra.mxu0 %v1028
      %1090 = vmatpush.bf16.msra.mxu0 %v1025
      %1091 = vmatmul.bf16.gmra.mxu0 %v932
      %v1092 = vpop.f32.mrf.mxu0
      %v1093 = vadd.f32 0.0, %v1092
      %v1094 = vpop.f32.mrf.mxu0
      %v1095 = vadd.f32 0.0, %v1094
      %1096 = vdwg.mxu0
      %1097 = vmatpush.bf16.msra.mxu0 0
      %1098 = vmatpush.bf16.msra.mxu0 0
      %1099 = vmatpush.bf16.msra.mxu0 0
      %1100 = vmatpush.bf16.msra.mxu0 0
      %1101 = vmatpush.bf16.msra.mxu0 0
      %1102 = vmatpush.bf16.msra.mxu0 0
      %1103 = vmatpush.bf16.msra.mxu0 0
      %1104 = vmatpush.bf16.msra.mxu0 %v1049
      %1105 = vmatmul.bf16.gmra.mxu0 %v1081
      %v1106 = vpop.f32.mrf.mxu0
      %v1107 = vadd.f32 %v1093, %v1106
      %v1108 = vpop.f32.mrf.mxu0
      %v1109 = vadd.f32 %v1095, %v1108
      %1110 = vdwg.mxu0
      %1111 = vmatpush.bf16.msra.mxu0 %v1047
      %1112 = vmatpush.bf16.msra.mxu0 %v1044
      %1113 = vmatpush.bf16.msra.mxu0 %v1041
      %1114 = vmatpush.bf16.msra.mxu0 %v1038
      %1115 = vmatpush.bf16.msra.mxu0 %v1035
      %1116 = vmatpush.bf16.msra.mxu0 %v1032
      %1117 = vmatpush.bf16.msra.mxu0 %v1029
      %1118 = vmatpush.bf16.msra.mxu0 %v1026
      %1119 = vmatmul.bf16.gmra.mxu0 %v932
      %v1120 = vpop.f32.mrf.mxu0
      %v1121 = vadd.f32 0.0, %v1120
      %v1122 = vpop.f32.mrf.mxu0
      %v1123 = vadd.f32 0.0, %v1122
      %1124 = vdwg.mxu0
      %1125 = vmatpush.bf16.msra.mxu0 0
      %1126 = vmatpush.bf16.msra.mxu0 0
      %1127 = vmatpush.bf16.msra.mxu0 0
      %1128 = vmatpush.bf16.msra.mxu0 0
      %1129 = vmatpush.bf16.msra.mxu0 0
      %1130 = vmatpush.bf16.msra.mxu0 0
      %1131 = vmatpush.bf16.msra.mxu0 0
      %1132 = vmatpush.bf16.msra.mxu0 %v1050
      %1133 = vmatmul.bf16.gmra.mxu0 %v1081
      %v1134 = vpop.f32.mrf.mxu0
      %v1135 = vadd.f32 %v1121, %v1134
      %v1136 = vpop.f32.mrf.mxu0
      %v1137 = vadd.f32 %v1123, %v1136
      %1138 = vdwg.mxu0
      %1139 = vmatpush.bf16.msra.mxu0 %v1048
      %1140 = vmatpush.bf16.msra.mxu0 %v1045
      %1141 = vmatpush.bf16.msra.mxu0 %v1042
      %1142 = vmatpush.bf16.msra.mxu0 %v1039
      %1143 = vmatpush.bf16.msra.mxu0 %v1036
      %1144 = vmatpush.bf16.msra.mxu0 %v1033
      %1145 = vmatpush.bf16.msra.mxu0 %v1030
      %1146 = vmatpush.bf16.msra.mxu0 %v1027
      %1147 = vmatmul.bf16.gmra.mxu0 %v932
      %v1148 = vpop.f32.mrf.mxu0
      %v1149 = vadd.f32 0.0, %v1148
      %v1150 = vpop.f32.mrf.mxu0
      %v1151 = vadd.f32 0.0, %v1150
      %1152 = vdwg.mxu0
      %1153 = vmatpush.bf16.msra.mxu0 0
      %1154 = vmatpush.bf16.msra.mxu0 0
      %1155 = vmatpush.bf16.msra.mxu0 0
      %1156 = vmatpush.bf16.msra.mxu0 0
      %1157 = vmatpush.bf16.msra.mxu0 0
      %1158 = vmatpush.bf16.msra.mxu0 0
      %1159 = vmatpush.bf16.msra.mxu0 0
      %1160 = vmatpush.bf16.msra.mxu0 %v1051
      %1161 = vmatmul.bf16.gmra.mxu0 %v1081
      %v1162 = vpop.f32.mrf.mxu0
      %v1163 = vadd.f32 %v1149, %v1162
      %v1164 = vpop.f32.mrf.mxu0
      %v1165 = vadd.f32 %v1151, %v1164
      %1166 = vdwg.mxu0
      %v1167 = vmul.f32 %v1107, %v509
      %v1168 = vmul.f32 %v1135, %v510
      %v1169 = vmul.f32 %v1163, %v511
      %v1170 = vmul.f32 %v1109, %v509
      %v1171 = vmul.f32 %v1137, %v510
      %v1172 = vmul.f32 %v1165, %v511
      %v1173 = vadd.f32 %v1167, %v1168
      %v1174 = vsel %vm522, %v1169, 0.0
      %v1175 = vadd.f32 %v1173, %v1174
      %1176 = vadd.xlane.f32.xlu0 %v1175
      %v1177 = vpop.xlane.xlu0 %1176
      %v1178 = vadd.f32 %v1170, %v1171
      %v1179 = vsel %vm522, %v1172, 0.0
      %v1180 = vadd.f32 %v1178, %v1179
      %1181 = vadd.xlane.f32.xlu0 %v1180
      %v1182 = vpop.xlane.xlu0 %1181
      %v1183 = vmul.f32 %v1177, 0.00390625
      %v1184 = vmul.f32 %v1182, 0.00390625
      %v1185 = vsub.f32 %v1107, %v1183
      %v1186 = vsub.f32 %v1135, %v1183
      %v1187 = vsub.f32 %v1163, %v1183
      %v1188 = vsub.f32 %v1109, %v1184
      %v1189 = vsub.f32 %v1137, %v1184
      %v1190 = vsub.f32 %v1165, %v1184
      %v1191 = vmul.f32 %v1185, %v509
      %v1192 = vmul.f32 %v1186, %v510
      %v1193 = vmul.f32 %v1187, %v511
      %v1194 = vmul.f32 %v1188, %v509
      %v1195 = vmul.f32 %v1189, %v510
      %v1196 = vmul.f32 %v1190, %v511
      %v1197 = vmul.f32 %v1191, %v1191
      %v1198 = vmul.f32 %v1192, %v1192
      %v1199 = vmul.f32 %v1193, %v1193
      %v1200 = vmul.f32 %v1194, %v1194
      %v1201 = vmul.f32 %v1195, %v1195
      %v1202 = vmul.f32 %v1196, %v1196
      %v1203 = vadd.f32 %v1197, %v1198
      %v1204 = vsel %vm522, %v1199, 0.0
      %v1205 = vadd.f32 %v1203, %v1204
      %1206 = vadd.xlane.f32.xlu0 %v1205
      %v1207 = vpop.xlane.xlu0 %1206
      %v1208 = vadd.f32 %v1200, %v1201
      %v1209 = vsel %vm522, %v1202, 0.0
      %v1210 = vadd.f32 %v1208, %v1209
      %1211 = vadd.xlane.f32.xlu0 %v1210
      %v1212 = vpop.xlane.xlu0 %1211
      %v1213 = vmul.f32 %v1207, 0.00390625
      %v1214 = vmul.f32 %v1212, 0.00390625
      %v1215 = vadd.f32 %v1213, 1e-05
      %v1216 = vadd.f32 %v1214, 1e-05
      %v1217 = vrsqrt.pop %v1215
      %v1218 = vmul.f32 %v1217, %v1215
      %v1219 = vmul.f32 %v1218, %v1217
      %v1220 = vmul.f32 0.5, %v1219
      %v1221 = vsub.f32 1.5, %v1220
      %v1222 = vmul.f32 %v1217, %v1221
      %vm1223 = vweird.f32 %v1215
      %vm1224 = vweird.f32 %v1217
      %vm1225 = vmor %vm1223, %vm1224
      %v1226 = vsel %vm1225, %v1217, %v1222
      %v1227 = vrsqrt.pop %v1216
      %v1228 = vmul.f32 %v1227, %v1216
      %v1229 = vmul.f32 %v1228, %v1227
      %v1230 = vmul.f32 0.5, %v1229
      %v1231 = vsub.f32 1.5, %v1230
      %v1232 = vmul.f32 %v1227, %v1231
      %vm1233 = vweird.f32 %v1216
      %vm1234 = vweird.f32 %v1227
      %vm1235 = vmor %vm1233, %vm1234
      %v1236 = vsel %vm1235, %v1227, %v1232
      %v1237 = vmul.f32 %v1191, %v1226
      %v1238 = vmul.f32 %v1192, %v1226
      %v1239 = vmul.f32 %v1193, %v1226
      %v1240 = vmul.f32 %v1194, %v1236
      %v1241 = vmul.f32 %v1195, %v1236
      %v1242 = vmul.f32 %v1196, %v1236
      %v1243 = vmax.f32 %v1237, 0.0
      %v1244 = vmax.f32 %v1238, 0.0
      %v1245 = vmax.f32 %v1239, 0.0
      %v1246 = vmax.f32 %v1240, 0.0
      %v1247 = vmax.f32 %v1241, 0.0
      %v1248 = vmax.f32 %v1242, 0.0
      %v1249 = vpack.c.bf16 %v1244, %v1243
      %v1250 = vpack.c.bf16 %v1245, %v1245
      %v1251 = vpack.c.bf16 %v1247, %v1246
      %v1252 = vpack.c.bf16 %v1248, %v1248
      %1253 = vst [vmem:[%s197] sm:$0xff] %v1249
      %1254 = vst.msk [vmem:[%s197 + $0x8] sm:$0xf] %vm217, %v1250
      %1255 = vst [vmem:[%s197 + $0xc] sm:$0xff] %v1251
      %1256 = vst.msk [vmem:[%s197 + $0x14] sm:$0xf] %vm217, %v1252
      %p1257 = scmp.lt.s32.totalorder %s15, 1
      %s1258 = scalar_select %p1257, %s15, 1
      %s1259 = smul.addr %s1258, 6
      %s1260 = smul.addr %s1259, 4
      %s1261 = scalar_lea.vmem %s4, %s1260
      // Predicated region
      $region37: #{unet_forward.5} parent=35 // pred_check
        %p1262 = pneg %p122
      $region38: #{unet_forward.5} parent=35 // pred_check_branch
        %1264 = sbr.rel (%p1262) target = $region40
      $region39: #{unet_forward.5} parent=35 // pred_region
        _
      $region40: #{unet_forward.5} parent=35 // pred_fallthru
        _
    $region36: #{unet_forward.5} parent=5 // pred_fallthru
      _
    %p1265 = scmp.le.s32.totalorder 2, %s10
    // Predicated region
    $region41: #{unet_forward.5} parent=5 // pred_check
      %p1266 = pneg %p1265
    $region42: #{unet_forward.5} parent=5 // pred_check_branch
      %1268 = sbr.rel (%p1266) target = $region44
    $region43: #{unet_forward.5} parent=5 // pred_region
      %s1269 = ssub.s32 %s10, 2
      // Predicated region
      $region45: #{unet_forward.5} parent=43 // pred_check
        %p1270 = pneg %p128
      $region46: #{unet_forward.5} parent=43 // pred_check_branch
        %1272 = sbr.rel (%p1270) target = $region48
      $region47: #{unet_forward.5} parent=43 // pred_region
        %p1273 = scmp.lt.s32.totalorder %s16, 1
        %s1274 = scalar_select %p1273, %s16, 1
        %s1275 = smul.addr %s1274, 6
        %s1276 = smul.addr %s1275, 4
        %s1277 = scalar_lea.vmem %s4, %s1276
      $region48: #{unet_forward.5} parent=43 // pred_fallthru
        _
    $region44: #{unet_forward.5} parent=5 // pred_fallthru
      _
  $region6: #{unet_forward.5} parent=0 // loop_footer
    %s14 = sadd.s32 1, %s10
  $region7: #{unet_forward.5} parent=0 // loop_footer_branch
    %9 = sbr.rel target = $region3
  $region8: #{unet_forward.5} parent=0 // loop_exit
    _

// kernel: unet_forward.6
$region0: #{unet_forward.6}
  #allocation0 [shape = 'u32[]', space=smem, size = 0x4, offset = 0x4, fixed_abs, tag = 'smem constant byte address 0x4 - core index']
  #allocation1 [shape = 'u32[72,128]{1,0:T(1,128)}', space=vmem, size = 0x9000, scoped, tag = 'internal scratch']
  #allocation2 [shape = 'bf16[288,324]{1,0:T(8,128)(2,1)}', space=vmem, size = 0x36000, scoped, tag = 'scratch operand']
  #allocation3 [shape = 'bf16[16,512]{1,0:T(8,128)(2,1)}', space=vmem, size = 0x4000, scoped, tag = 'scratch operand']
  %s0 = inlined_call_operand.vmem [shape: bf16[2,16,396], index: 0, kind: input, shape index: {}]
  %s1 = inlined_call_operand.vmem [shape: bf16[2,16,396], index: 1, kind: input, shape index: {}]
  %s2 = inlined_call_operand.vmem [shape: bf16[16,288], index: 2, kind: input, shape index: {}]
  %s3 = inlined_call_operand.vmem [shape: bf16[8,144], index: 3, kind: input, shape index: {}]
  %s4 = inlined_call_operand.vmem [shape: f32[1,324], index: 4, kind: input, shape index: {}]
  %s5 = inlined_call_operand.vmem [shape: bf16[2,8,324], index: 5, kind: output, shape index: {}]
  %s6 = sld [smem:[#allocation0]]
  $region53: #{unet_forward.6} parent=0
    _
  %s8 = ssub.s32 1, %s6
  %s9 = scalar_select 0, %s8, %s6
  loop: start=0, step=1, limit=4
  $region2: #{unet_forward.6} parent=0 // loop_pre_header
    _
  $region3: #{unet_forward.6} parent=0 // loop_header
    %s11 = sphi 0, %s15
    %p12 = scmp.ge.s32.totalorder %s11, 4
    %s21 = sphi 0, %s23
    %s24 = sphi 0, %s21
    %s25 = sphi 0, %s24
    %s41 = sphi 0, %s25
    %s47 = sphi 0, %s49
    %s50 = sphi 0, %s47
    %s51 = sphi 0, %s50
    %s67 = sphi 0, %s51
    %s71 = sphi 0, %s71
    %s73 = sphi 0, %s71
    %s74 = sphi 0, %s73
    %s88 = sphi 0, %s74
    %s92 = sphi 0, %s92
    %s94 = sphi 0, %s92
    %s95 = sphi 0, %s94
    %s109 = sphi 0, %s95
    %s113 = sphi 0, %s113
    %s115 = sphi 0, %s113
    %s116 = sphi 0, %s115
    %s130 = sphi 0, %s116
    %s136 = sphi 0, %s138
    %s139 = sphi 0, %s136
    %s140 = sphi 0, %s139
    %s156 = sphi 0, %s140
  $region4: #{unet_forward.6} parent=0 // loop_header_branch
    %14 = sbr.rel (%p12) target = $region8
  $region5: #{unet_forward.6} parent=0 // loop_body
    %s16 = ssub.s32 %s11, 1
    %s17 = ssub.s32 %s11, 2
    %s18 = sadd.s32 %s11, 1
    %s19 = ssub.s32 %s11, %s18
    %p20 = scmp.eq.s32.totalorder %s19, 0
    %s22 = sadd.s32 %s21, 1
    %s23 = scalar_select %p20, %s21, %s22
    %p26 = pneg %p20
    %p27 = scmp.eq.s32.totalorder %s11, 1
    %p28 = por %p26, %p27
    %p29 = scmp.ne.s32.totalorder %s21, %s24
    %p30 = scmp.eq.s32.totalorder %s11, 0
    %p31 = por %p29, %p30
    %p32 = scmp.ne.s32.totalorder %s21, %s24
    %p33 = scmp.eq.s32.totalorder %s16, 1
    %p34 = por %p32, %p33
    %p35 = scmp.ne.s32.totalorder %s24, %s25
    %p36 = scmp.eq.s32.totalorder %s16, 0
    %p37 = por %p35, %p36
    %p38 = scmp.ne.s32.totalorder %s24, %s25
    %p39 = scmp.eq.s32.totalorder %s17, 1
    %p40 = por %p38, %p39
    %p42 = scmp.ne.s32.totalorder %s25, %s41
    %p43 = scmp.eq.s32.totalorder %s17, 0
    %p44 = por %p42, %p43
    %s45 = ssub.s32 %s11, %s18
    %p46 = scmp.eq.s32.totalorder %s45, 0
    %s48 = sadd.s32 %s47, 1
    %s49 = scalar_select %p46, %s47, %s48
    %p52 = pneg %p46
    %p53 = scmp.eq.s32.totalorder %s11, 1
    %p54 = por %p52, %p53
    %p55 = scmp.ne.s32.totalorder %s47, %s50
    %p56 = scmp.eq.s32.totalorder %s11, 0
    %p57 = por %p55, %p56
    %p58 = scmp.ne.s32.totalorder %s47, %s50
    %p59 = scmp.eq.s32.totalorder %s16, 1
    %p60 = por %p58, %p59
    %p61 = scmp.ne.s32.totalorder %s50, %s51
    %p62 = scmp.eq.s32.totalorder %s16, 0
    %p63 = por %p61, %p62
    %p64 = scmp.ne.s32.totalorder %s50, %s51
    %p65 = scmp.eq.s32.totalorder %s17, 1
    %p66 = por %p64, %p65
    %p68 = scmp.ne.s32.totalorder %s51, %s67
    %p69 = scmp.eq.s32.totalorder %s17, 0
    %p70 = por %p68, %p69
    %s72 = sadd.s32 %s71, 1
    %p75 = scmp.eq.s32.totalorder %s11, 1
    %p76 = scmp.ne.s32.totalorder %s71, %s73
    %p77 = scmp.eq.s32.totalorder %s11, 0
    %p78 = por %p76, %p77
    %p79 = scmp.ne.s32.totalorder %s71, %s73
    %p80 = scmp.eq.s32.totalorder %s16, 1
    %p81 = por %p79, %p80
    %p82 = scmp.ne.s32.totalorder %s73, %s74
    %p83 = scmp.eq.s32.totalorder %s16, 0
    %p84 = por %p82, %p83
    %p85 = scmp.ne.s32.totalorder %s73, %s74
    %p86 = scmp.eq.s32.totalorder %s17, 1
    %p87 = por %p85, %p86
    %p89 = scmp.ne.s32.totalorder %s74, %s88
    %p90 = scmp.eq.s32.totalorder %s17, 0
    %p91 = por %p89, %p90
    %s93 = sadd.s32 %s92, 1
    %p96 = scmp.eq.s32.totalorder %s11, 1
    %p97 = scmp.ne.s32.totalorder %s92, %s94
    %p98 = scmp.eq.s32.totalorder %s11, 0
    %p99 = por %p97, %p98
    %p100 = scmp.ne.s32.totalorder %s92, %s94
    %p101 = scmp.eq.s32.totalorder %s16, 1
    %p102 = por %p100, %p101
    %p103 = scmp.ne.s32.totalorder %s94, %s95
    %p104 = scmp.eq.s32.totalorder %s16, 0
    %p105 = por %p103, %p104
    %p106 = scmp.ne.s32.totalorder %s94, %s95
    %p107 = scmp.eq.s32.totalorder %s17, 1
    %p108 = por %p106, %p107
    %p110 = scmp.ne.s32.totalorder %s95, %s109
    %p111 = scmp.eq.s32.totalorder %s17, 0
    %p112 = por %p110, %p111
    %s114 = sadd.s32 %s113, 1
    %p117 = scmp.eq.s32.totalorder %s11, 1
    %p118 = scmp.ne.s32.totalorder %s113, %s115
    %p119 = scmp.eq.s32.totalorder %s11, 0
    %p120 = por %p118, %p119
    %p121 = scmp.ne.s32.totalorder %s113, %s115
    %p122 = scmp.eq.s32.totalorder %s16, 1
    %p123 = por %p121, %p122
    %p124 = scmp.ne.s32.totalorder %s115, %s116
    %p125 = scmp.eq.s32.totalorder %s16, 0
    %p126 = por %p124, %p125
    %p127 = scmp.ne.s32.totalorder %s115, %s116
    %p128 = scmp.eq.s32.totalorder %s17, 1
    %p129 = por %p127, %p128
    %p131 = scmp.ne.s32.totalorder %s116, %s130
    %p132 = scmp.eq.s32.totalorder %s17, 0
    %p133 = por %p131, %p132
    %s134 = ssub.s32 %s11, %s18
    %p135 = scmp.eq.s32.totalorder %s134, 0
    %s137 = sadd.s32 %s136, 1
    %s138 = scalar_select %p135, %s136, %s137
    %p141 = pneg %p135
    %p142 = scmp.eq.s32.totalorder %s11, 1
    %p143 = por %p141, %p142
    %p144 = scmp.ne.s32.totalorder %s136, %s139
    %p145 = scmp.eq.s32.totalorder %s11, 0
    %p146 = por %p144, %p145
    %p147 = scmp.ne.s32.totalorder %s136, %s139
    %p148 = scmp.eq.s32.totalorder %s16, 1
    %p149 = por %p147, %p148
    %p150 = scmp.ne.s32.totalorder %s139, %s140
    %p151 = scmp.eq.s32.totalorder %s16, 0
    %p152 = por %p150, %p151
    %p153 = scmp.ne.s32.totalorder %s139, %s140
    %p154 = scmp.eq.s32.totalorder %s17, 1
    %p155 = por %p153, %p154
    %p157 = scmp.ne.s32.totalorder %s140, %s156
    %p158 = scmp.eq.s32.totalorder %s17, 0
    %p159 = por %p157, %p158
    %p160 = scmp.le.s32.totalorder 1, %s11
    %p161 = scmp.lt.s32.totalorder %s11, 3
    %p162 = pnand %p160, %p161
    %p163 = pneg %p162
    // Predicated region
    $region9: #{unet_forward.6} parent=5 // pred_check
      _
    $region10: #{unet_forward.6} parent=5 // pred_check_branch
      %165 = sbr.rel (%p162) target = $region12
    $region11: #{unet_forward.6} parent=5 // pred_region
      %s166 = ssub.s32 %s11, 1
      // Predicated region
      $region13: #{unet_forward.6} parent=11 // pred_check
        %p167 = pneg %p84
      $region14: #{unet_forward.6} parent=11 // pred_check_branch
        %169 = sbr.rel (%p167) target = $region16
      $region15: #{unet_forward.6} parent=11 // pred_region
        _
      $region16: #{unet_forward.6} parent=11 // pred_fallthru
        _
      // Predicated region
      $region17: #{unet_forward.6} parent=11 // pred_check
        %p170 = pneg %p105
      $region18: #{unet_forward.6} parent=11 // pred_check_branch
        %172 = sbr.rel (%p170) target = $region20
      $region19: #{unet_forward.6} parent=11 // pred_region
        _
      $region20: #{unet_forward.6} parent=11 // pred_fallthru
        _
      // Predicated region
      $region21: #{unet_forward.6} parent=11 // pred_check
        %p173 = pneg %p126
      $region22: #{unet_forward.6} parent=11 // pred_check_branch
        %175 = sbr.rel (%p173) target = $region24
      $region23: #{unet_forward.6} parent=11 // pred_region
        _
      $region24: #{unet_forward.6} parent=11 // pred_fallthru
        _
    $region12: #{unet_forward.6} parent=5 // pred_fallthru
      _
    %p176 = scmp.lt.s32.totalorder %s11, 2
    // Predicated region
    $region25: #{unet_forward.6} parent=5 // pred_check
      %p177 = pneg %p176
    $region26: #{unet_forward.6} parent=5 // pred_check_branch
      %179 = sbr.rel (%p177) target = $region28
    $region27: #{unet_forward.6} parent=5 // pred_region
      // Predicated region
      $region29: #{unet_forward.6} parent=27 // pred_check
        %p180 = pneg %p31
      $region30: #{unet_forward.6} parent=27 // pred_check_branch
        %182 = sbr.rel (%p180) target = $region32
      $region31: #{unet_forward.6} parent=27 // pred_region
        %p183 = scmp.lt.s32.totalorder %s11, 1
        %s184 = scalar_select %p183, %s11, 1
        %s185 = smul.addr %s184, 8
        %s186 = smul.addr %s185, 4
        %s187 = scalar_lea.vmem %s0, %s186
      $region32: #{unet_forward.6} parent=27 // pred_fallthru
        _
      // Predicated region
      $region33: #{unet_forward.6} parent=27 // pred_check
        %p188 = pneg %p57
      $region34: #{unet_forward.6} parent=27 // pred_check_branch
        %190 = sbr.rel (%p188) target = $region36
      $region35: #{unet_forward.6} parent=27 // pred_region
        %p191 = scmp.lt.s32.totalorder %s11, 1
        %s192 = scalar_select %p191, %s11, 1
        %s193 = smul.addr %s192, 8
        %s194 = smul.addr %s193, 4
        %s195 = scalar_lea.vmem %s1, %s194
      $region36: #{unet_forward.6} parent=27 // pred_fallthru
        _
    $region28: #{unet_forward.6} parent=5 // pred_fallthru
      _
    %p196 = scmp.le.s32.totalorder 1, %s11
    %p197 = scmp.lt.s32.totalorder %s11, 3
    %p198 = pnand %p196, %p197
    %p199 = pneg %p198
    // Predicated region
    $region37: #{unet_forward.6} parent=5 // pred_check
      _
    $region38: #{unet_forward.6} parent=5 // pred_check_branch
      %201 = sbr.rel (%p198) target = $region40
    $region39: #{unet_forward.6} parent=5 // pred_region
      %s202 = ssub.s32 %s11, 1
      %p203 = scmp.lt.s32.totalorder %s16, 1
      %s204 = scalar_select %p203, %s16, 1
      %s205 = smul.addr %s204, 8
      %s206 = smul.addr %s205, 4
      %s207 = scalar_lea.vmem %s0, %s206
      %p208 = pneg %p37
      %p209 = pneg %p34
      %p210 = scmp.lt.s32.totalorder %s16, 1
      %s211 = scalar_select %p210, %s16, 1
      %s212 = smul.addr %s211, 8
      %s213 = smul.addr %s212, 4
      %s214 = scalar_lea.vmem %s1, %s213
      %p215 = pneg %p63
      %p216 = pneg %p60
      %p217 = pneg %p84
      %p218 = pneg %p81
      %p219 = pneg %p105
      %p220 = pneg %p102
      %p221 = pneg %p126
      %p222 = pneg %p123
      %p223 = pneg %p152
      %p224 = pneg %p149
      %p225 = scmp.lt.s32.totalorder %s16, 1
      %s226 = scalar_select %p225, %s16, 1
      %s227 = smul.addr %s226, 3
      %s228 = smul.addr %s227, 4
      %s229 = scalar_lea.vmem %s5, %s228
      %p230 = scmp.lt.s32.totalorder %s16, 1
      %s231 = scalar_select %p230, %s16, 1
      %s232 = smul.addr %s231, 8
      %s233 = smul.addr %s232, 4
      %s234 = scalar_lea.vmem %s0, %s233
      %p235 = scmp.lt.s32.totalorder %s16, 1
      %s236 = scalar_select %p235, %s16, 1
      %s237 = smul.addr %s236, 8
      %s238 = smul.addr %s237, 4
      %s239 = scalar_lea.vmem %s1, %s238
      %p240 = scmp.lt.s32.totalorder %s16, 1
      %s241 = scalar_select %p240, %s16, 1
      %s242 = smul.addr %s241, 3
      %s243 = smul.addr %s242, 4
      %s244 = scalar_lea.vmem %s5, %s243
      %v246 = vld [vmem:[%s4] sm:$0x7]
      %v247 = vld [vmem:[%s234] sm:$0xff]
      %v248 = vld [vmem:[%s234 + $0x8] sm:$0xf]
      %v249 = vld [vmem:[%s234 + $0x10] sm:$0xff]
      %v250 = vld [vmem:[%s234 + $0x18] sm:$0xf]
      %255 = vrot.lane.b32.xlu0 %v247, 111
      %v256 = vpop.permute.xlu0 %255
      %257 = vrot.lane.b32.xlu0 %v248, 111
      %v258 = vpop.permute.xlu0 %257
      %259 = vrot.lane.b32.xlu0 %v249, 111
      %v260 = vpop.permute.xlu0 %259
      %261 = vrot.lane.b32.xlu0 %v250, 111
      %v262 = vpop.permute.xlu0 %261
      %v263 = vrot.slane %v256, 4
      %v264 = vrot.slane %v258, 4
      %v265 = vrot.slane %v260, 4
      %v266 = vrot.slane %v262, 4
      %vm267 = vcmask 1043456
      %v268 = vsel %vm267, %v263, %v264
      %vm269 = vcmask 908288
      %v270 = vsel %vm269, %v256, %v268
      %v271 = vsel %vm267, %v265, %v266
      %v272 = vsel %vm269, %v260, %v271
      %277 = vst [vmem:[#allocation2] sm:$0xff] %v270
      %vm278 = vcmask 551936
      %279 = vst.msk [vmem:[#allocation2 + $0x8] sm:$0xf] %vm278, %v258
      %280 = vst [vmem:[#allocation2 + $0xc] sm:$0xff] %v272
      %281 = vst.msk [vmem:[#allocation2 + $0x14] sm:$0xf] %vm278, %v262
      %v282 = vld [vmem:[%s234] sm:$0xff]
      %v283 = vld [vmem:[%s234 + $0x8] sm:$0xf]
      %v284 = vld [vmem:[%s234 + $0x10] sm:$0xff]
      %v285 = vld [vmem:[%s234 + $0x18] sm:$0xf]
      %290 = vrot.lane.b32.xlu0 %v282, 110
      %v291 = vpop.permute.xlu0 %290
      %292 = vrot.lane.b32.xlu0 %v283, 110
      %v293 = vpop.permute.xlu0 %292
      %294 = vrot.lane.b32.xlu0 %v284, 110
      %v295 = vpop.permute.xlu0 %294
      %296 = vrot.lane.b32.xlu0 %v285, 110
      %v297 = vpop.permute.xlu0 %296
      %v298 = vrot.slane %v291, 4
      %v299 = vrot.slane %v293, 4
      %v300 = vrot.slane %v295, 4
      %v301 = vrot.slane %v297, 4
      %v302 = vsel %vm267, %v298, %v299
      %vm303 = vcmask 900096
      %v304 = vsel %vm303, %v291, %v302
      %v305 = vsel %vm267, %v300, %v301
      %v306 = vsel %vm303, %v295, %v305
      %311 = vst [vmem:[#allocation2 + $0x18] sm:$0xff] %v304
      %312 = vst.msk [vmem:[#allocation2 + $0x20] sm:$0xf] %vm278, %v293
      %313 = vst [vmem:[#allocation2 + $0x24] sm:$0xff] %v306
      %314 = vst.msk [vmem:[#allocation2 + $0x2c] sm:$0xf] %vm278, %v297
      %v315 = vld [vmem:[%s234] sm:$0xff]
      %v316 = vld [vmem:[%s234 + $0x8] sm:$0xf]
      %v317 = vld [vmem:[%s234 + $0x10] sm:$0xff]
      %v318 = vld [vmem:[%s234 + $0x18] sm:$0xf]
      %323 = vrot.lane.b32.xlu0 %v315, 109
      %v324 = vpop.permute.xlu0 %323
      %325 = vrot.lane.b32.xlu0 %v316, 109
      %v326 = vpop.permute.xlu0 %325
      %327 = vrot.lane.b32.xlu0 %v317, 109
      %v328 = vpop.permute.xlu0 %327
      %329 = vrot.lane.b32.xlu0 %v318, 109
      %v330 = vpop.permute.xlu0 %329
      %v331 = vrot.slane %v324, 4
      %v332 = vrot.slane %v326, 4
      %v333 = vrot.slane %v328, 4
      %v334 = vrot.slane %v330, 4
      %v335 = vsel %vm267, %v331, %v332
      %vm336 = vcmask 891904
      %v337 = vsel %vm336, %v324, %v335
      %v338 = vsel %vm267, %v333, %v334
      %v339 = vsel %vm336, %v328, %v338
      %344 = vst [vmem:[#allocation2 + $0x30] sm:$0xff] %v337
      %345 = vst.msk [vmem:[#allocation2 + $0x38] sm:$0xf] %vm278, %v326
      %346 = vst [vmem:[#allocation2 + $0x3c] sm:$0xff] %v339
      %347 = vst.msk [vmem:[#allocation2 + $0x44] sm:$0xf] %vm278, %v330
      %v348 = vld [vmem:[%s234] sm:$0xff]
      %v349 = vld [vmem:[%s234 + $0x8] sm:$0xf]
      %v350 = vld [vmem:[%s234 + $0x10] sm:$0xff]
      %v351 = vld [vmem:[%s234 + $0x18] sm:$0xf]
      %356 = vrot.lane.b32.xlu0 %v348, 93
      %v357 = vpop.permute.xlu0 %356
      %358 = vrot.lane.b32.xlu0 %v349, 93
      %v359 = vpop.permute.xlu0 %358
      %360 = vrot.lane.b32.xlu0 %v350, 93
      %v361 = vpop.permute.xlu0 %360
      %362 = vrot.lane.b32.xlu0 %v351, 93
      %v363 = vpop.permute.xlu0 %362
      %v364 = vrot.slane %v357, 4
      %v365 = vrot.slane %v359, 4
      %v366 = vrot.slane %v361, 4
      %v367 = vrot.slane %v363, 4
      %v368 = vsel %vm267, %v364, %v365
      %vm369 = vcmask 760832
      %v370 = vsel %vm369, %v357, %v368
      %v371 = vsel %vm267, %v366, %v367
      %v372 = vsel %vm369, %v361, %v371
      %377 = vst [vmem:[#allocation2 + $0x48] sm:$0xff] %v370
      %378 = vst.msk [vmem:[#allocation2 + $0x50] sm:$0xf] %vm278, %v359
      %379 = vst [vmem:[#allocation2 + $0x54] sm:$0xff] %v372
      %380 = vst.msk [vmem:[#allocation2 + $0x5c] sm:$0xf] %vm278, %v363
      %v381 = vld [vmem:[%s234] sm:$0xff]
      %v382 = vld [vmem:[%s234 + $0x8] sm:$0xf]
      %v383 = vld [vmem:[%s234 + $0x10] sm:$0xff]
      %v384 = vld [vmem:[%s234 + $0x18] sm:$0xf]
      %389 = vrot.lane.b32.xlu0 %v381, 92
      %v390 = vpop.permute.xlu0 %389
      %391 = vrot.lane.b32.xlu0 %v382, 92
      %v392 = vpop.permute.xlu0 %391
      %393 = vrot.lane.b32.xlu0 %v383, 92
      %v394 = vpop.permute.xlu0 %393
      %395 = vrot.lane.b32.xlu0 %v384, 92
      %v396 = vpop.permute.xlu0 %395
      %v397 = vrot.slane %v390, 4
      %v398 = vrot.slane %v392, 4
      %v399 = vrot.slane %v394, 4
      %v400 = vrot.slane %v396, 4
      %v401 = vsel %vm267, %v397, %v398
      %vm402 = vcmask 752640
      %v403 = vsel %vm402, %v390, %v401
      %v404 = vsel %vm267, %v399, %v400
      %v405 = vsel %vm402, %v394, %v404
      %410 = vst [vmem:[#allocation2 + $0x60] sm:$0xff] %v403
      %411 = vst.msk [vmem:[#allocation2 + $0x68] sm:$0xf] %vm278, %v392
      %412 = vst [vmem:[#allocation2 + $0x6c] sm:$0xff] %v405
      %413 = vst.msk [vmem:[#allocation2 + $0x74] sm:$0xf] %vm278, %v396
      %v414 = vld [vmem:[%s234] sm:$0xff]
      %v415 = vld [vmem:[%s234 + $0x8] sm:$0xf]
      %v416 = vld [vmem:[%s234 + $0x10] sm:$0xff]
      %v417 = vld [vmem:[%s234 + $0x18] sm:$0xf]
      %422 = vrot.lane.b32.xlu0 %v414, 91
      %v423 = vpop.permute.xlu0 %422
      %424 = vrot.lane.b32.xlu0 %v415, 91
      %v425 = vpop.permute.xlu0 %424
      %426 = vrot.lane.b32.xlu0 %v416, 91
      %v427 = vpop.permute.xlu0 %426
      %428 = vrot.lane.b32.xlu0 %v417, 91
      %v429 = vpop.permute.xlu0 %428
      %v430 = vrot.slane %v423, 4
      %v431 = vrot.slane %v425, 4
      %v432 = vrot.slane %v427, 4
      %v433 = vrot.slane %v429, 4
      %v434 = vsel %vm267, %v430, %v431
      %vm435 = vcmask 744448
      %v436 = vsel %vm435, %v423, %v434
      %v437 = vsel %vm267, %v432, %v433
      %v438 = vsel %vm435, %v427, %v437
      %443 = vst [vmem:[#allocation2 + $0x78] sm:$0xff] %v436
      %444 = vst.msk [vmem:[#allocation2 + $0x80] sm:$0xf] %vm278, %v425
      %445 = vst [vmem:[#allocation2 + $0x84] sm:$0xff] %v438
      %446 = vst.msk [vmem:[#allocation2 + $0x8c] sm:$0xf] %vm278, %v429
      %v447 = vld [vmem:[%s234] sm:$0xff]
      %v448 = vld [vmem:[%s234 + $0x8] sm:$0xf]
      %v449 = vld [vmem:[%s234 + $0x10] sm:$0xff]
      %v450 = vld [vmem:[%s234 + $0x18] sm:$0xf]
      %455 = vrot.lane.b32.xlu0 %v447, 75
      %v456 = vpop.permute.xlu0 %455
      %457 = vrot.lane.b32.xlu0 %v448, 75
      %v458 = vpop.permute.xlu0 %457
      %459 = vrot.lane.b32.xlu0 %v449, 75
      %v460 = vpop.permute.xlu0 %459
      %461 = vrot.lane.b32.xlu0 %v450, 75
      %v462 = vpop.permute.xlu0 %461
      %v463 = vrot.slane %v456, 4
      %v464 = vrot.slane %v458, 4
      %v465 = vrot.slane %v460, 4
      %v466 = vrot.slane %v462, 4
      %v467 = vsel %vm267, %v463, %v464
      %vm468 = vcmask 613376
      %v469 = vsel %vm468, %v456, %v467
      %v470 = vsel %vm267, %v465, %v466
      %v471 = vsel %vm468, %v460, %v470
      %476 = vst [vmem:[#allocation2 + $0x90] sm:$0xff] %v469
      %477 = vst.msk [vmem:[#allocation2 + $0x98] sm:$0xf] %vm278, %v458
      %478 = vst [vmem:[#allocation2 + $0x9c] sm:$0xff] %v471
      %479 = vst.msk [vmem:[#allocation2 + $0xa4] sm:$0xf] %vm278, %v462
      %v480 = vld [vmem:[%s234] sm:$0xff]
      %v481 = vld [vmem:[%s234 + $0x8] sm:$0xf]
      %v482 = vld [vmem:[%s234 + $0x10] sm:$0xff]
      %v483 = vld [vmem:[%s234 + $0x18] sm:$0xf]
      %488 = vrot.lane.b32.xlu0 %v480, 74
      %v489 = vpop.permute.xlu0 %488
      %490 = vrot.lane.b32.xlu0 %v481, 74
      %v491 = vpop.permute.xlu0 %490
      %492 = vrot.lane.b32.xlu0 %v482, 74
      %v493 = vpop.permute.xlu0 %492
      %494 = vrot.lane.b32.xlu0 %v483, 74
      %v495 = vpop.permute.xlu0 %494
      %v496 = vrot.slane %v489, 4
      %v497 = vrot.slane %v491, 4
      %v498 = vrot.slane %v493, 4
      %v499 = vrot.slane %v495, 4
      %v500 = vsel %vm267, %v496, %v497
      %vm501 = vcmask 605184
      %v502 = vsel %vm501, %v489, %v500
      %v503 = vsel %vm267, %v498, %v499
      %v504 = vsel %vm501, %v493, %v503
      %509 = vst [vmem:[#allocation2 + $0xa8] sm:$0xff] %v502
      %510 = vst.msk [vmem:[#allocation2 + $0xb0] sm:$0xf] %vm278, %v491
      %511 = vst [vmem:[#allocation2 + $0xb4] sm:$0xff] %v504
      %512 = vst.msk [vmem:[#allocation2 + $0xbc] sm:$0xf] %vm278, %v495
      %v513 = vld [vmem:[%s234] sm:$0xff]
      %v514 = vld [vmem:[%s234 + $0x8] sm:$0xf]
      %v515 = vld [vmem:[%s234 + $0x10] sm:$0xff]
      %v516 = vld [vmem:[%s234 + $0x18] sm:$0xf]
      %521 = vrot.lane.b32.xlu0 %v513, 73
      %v522 = vpop.permute.xlu0 %521
      %523 = vrot.lane.b32.xlu0 %v514, 73
      %v524 = vpop.permute.xlu0 %523
      %525 = vrot.lane.b32.xlu0 %v515, 73
      %v526 = vpop.permute.xlu0 %525
      %527 = vrot.lane.b32.xlu0 %v516, 73
      %v528 = vpop.permute.xlu0 %527
      %v529 = vrot.slane %v522, 4
      %v530 = vrot.slane %v524, 4
      %v531 = vrot.slane %v526, 4
      %v532 = vrot.slane %v528, 4
      %v533 = vsel %vm267, %v529, %v530
      %vm534 = vcmask 596992
      %v535 = vsel %vm534, %v522, %v533
      %v536 = vsel %vm267, %v531, %v532
      %v537 = vsel %vm534, %v526, %v536
      %542 = vst [vmem:[#allocation2 + $0xc0] sm:$0xff] %v535
      %543 = vst.msk [vmem:[#allocation2 + $0xc8] sm:$0xf] %vm278, %v524
      %544 = vst [vmem:[#allocation2 + $0xcc] sm:$0xff] %v537
      %545 = vst.msk [vmem:[#allocation2 + $0xd4] sm:$0xf] %vm278, %v528
      %v546 = vld [vmem:[%s239] sm:$0xff]
      %v547 = vld [vmem:[%s239 + $0x8] sm:$0xf]
      %v548 = vld [vmem:[%s239 + $0x10] sm:$0xff]
      %v549 = vld [vmem:[%s239 + $0x18] sm:$0xf]
      %554 = vrot.lane.b32.xlu0 %v546, 111
      %v555 = vpop.permute.xlu0 %554
      %556 = vrot.lane.b32.xlu0 %v547, 111
      %v557 = vpop.permute.xlu0 %556
      %558 = vrot.lane.b32.xlu0 %v548, 111
      %v559 = vpop.permute.xlu0 %558
      %560 = vrot.lane.b32.xlu0 %v549, 111
      %v561 = vpop.permute.xlu0 %560
      %v562 = vrot.slane %v555, 4
      %v563 = vrot.slane %v557, 4
      %v564 = vrot.slane %v559, 4
      %v565 = vrot.slane %v561, 4
      %v566 = vsel %vm267, %v562, %v563
      %v567 = vsel %vm269, %v555, %v566
      %v568 = vsel %vm267, %v564, %v565
      %v569 = vsel %vm269, %v559, %v568
      %574 = vst [vmem:[#allocation2 + $0xd8] sm:$0xff] %v567
      %575 = vst.msk [vmem:[#allocation2 + $0xe0] sm:$0xf] %vm278, %v557
      %576 = vst [vmem:[#allocation2 + $0xe4] sm:$0xff] %v569
      %577 = vst.msk [vmem:[#allocation2 + $0xec] sm:$0xf] %vm278, %v561
      %v578 = vld [vmem:[%s239] sm:$0xff]
      %v579 = vld [vmem:[%s239 + $0x8] sm:$0xf]
      %v580 = vld [vmem:[%s239 + $0x10] sm:$0xff]
      %v581 = vld [vmem:[%s239 + $0x18] sm:$0xf]
      %586 = vrot.lane.b32.xlu0 %v578, 110
      %v587 = vpop.permute.xlu0 %586
      %588 = vrot.lane.b32.xlu0 %v579, 110
      %v589 = vpop.permute.xlu0 %588
      %590 = vrot.lane.b32.xlu0 %v580, 110
      %v591 = vpop.permute.xlu0 %590
      %592 = vrot.lane.b32.xlu0 %v581, 110
      %v593 = vpop.permute.xlu0 %592
      %v594 = vrot.slane %v587, 4
      %v595 = vrot.slane %v589, 4
      %v596 = vrot.slane %v591, 4
      %v597 = vrot.slane %v593, 4
      %v598 = vsel %vm267, %v594, %v595
      %v599 = vsel %vm303, %v587, %v598
      %v600 = vsel %vm267, %v596, %v597
      %v601 = vsel %vm303, %v591, %v600
      %606 = vst [vmem:[#allocation2 + $0xf0] sm:$0xff] %v599
      %607 = vst.msk [vmem:[#allocation2 + $0xf8] sm:$0xf] %vm278, %v589
      %608 = vst [vmem:[#allocation2 + $0xfc] sm:$0xff] %v601
      %609 = vst.msk [vmem:[#allocation2 + $0x104] sm:$0xf] %vm278, %v593
      %v610 = vld [vmem:[%s239] sm:$0xff]
      %v611 = vld [vmem:[%s239 + $0x8] sm:$0xf]
      %v612 = vld [vmem:[%s239 + $0x10] sm:$0xff]
      %v613 = vld [vmem:[%s239 + $0x18] sm:$0xf]
      %618 = vrot.lane.b32.xlu0 %v610, 109
      %v619 = vpop.permute.xlu0 %618
      %620 = vrot.lane.b32.xlu0 %v611, 109
      %v621 = vpop.permute.xlu0 %620
      %622 = vrot.lane.b32.xlu0 %v612, 109
      %v623 = vpop.permute.xlu0 %622
      %624 = vrot.lane.b32.xlu0 %v613, 109
      %v625 = vpop.permute.xlu0 %624
      %v626 = vrot.slane %v619, 4
      %v627 = vrot.slane %v621, 4
      %v628 = vrot.slane %v623, 4
      %v629 = vrot.slane %v625, 4
      %v630 = vsel %vm267, %v626, %v627
      %v631 = vsel %vm336, %v619, %v630
      %v632 = vsel %vm267, %v628, %v629
      %v633 = vsel %vm336, %v623, %v632
      %638 = vst [vmem:[#allocation2 + $0x108] sm:$0xff] %v631
      %639 = vst.msk [vmem:[#allocation2 + $0x110] sm:$0xf] %vm278, %v621
      %640 = vst [vmem:[#allocation2 + $0x114] sm:$0xff] %v633
      %641 = vst.msk [vmem:[#allocation2 + $0x11c] sm:$0xf] %vm278, %v625
      %v642 = vld [vmem:[%s239] sm:$0xff]
      %v643 = vld [vmem:[%s239 + $0x8] sm:$0xf]
      %v644 = vld [vmem:[%s239 + $0x10] sm:$0xff]
      %v645 = vld [vmem:[%s239 + $0x18] sm:$0xf]
      %650 = vrot.lane.b32.xlu0 %v642, 93
      %v651 = vpop.permute.xlu0 %650
      %652 = vrot.lane.b32.xlu0 %v643, 93
      %v653 = vpop.permute.xlu0 %652
      %654 = vrot.lane.b32.xlu0 %v644, 93
      %v655 = vpop.permute.xlu0 %654
      %656 = vrot.lane.b32.xlu0 %v645, 93
      %v657 = vpop.permute.xlu0 %656
      %v658 = vrot.slane %v651, 4
      %v659 = vrot.slane %v653, 4
      %v660 = vrot.slane %v655, 4
      %v661 = vrot.slane %v657, 4
      %v662 = vsel %vm267, %v658, %v659
      %v663 = vsel %vm369, %v651, %v662
      %v664 = vsel %vm267, %v660, %v661
      %v665 = vsel %vm369, %v655, %v664
      %670 = vst [vmem:[#allocation2 + $0x120] sm:$0xff] %v663
      %671 = vst.msk [vmem:[#allocation2 + $0x128] sm:$0xf] %vm278, %v653
      %672 = vst [vmem:[#allocation2 + $0x12c] sm:$0xff] %v665
      %673 = vst.msk [vmem:[#allocation2 + $0x134] sm:$0xf] %vm278, %v657
      %v674 = vld [vmem:[%s239] sm:$0xff]
      %v675 = vld [vmem:[%s239 + $0x8] sm:$0xf]
      %v676 = vld [vmem:[%s239 + $0x10] sm:$0xff]
      %v677 = vld [vmem:[%s239 + $0x18] sm:$0xf]
      %682 = vrot.lane.b32.xlu0 %v674, 92
      %v683 = vpop.permute.xlu0 %682
      %684 = vrot.lane.b32.xlu0 %v675, 92
      %v685 = vpop.permute.xlu0 %684
      %686 = vrot.lane.b32.xlu0 %v676, 92
      %v687 = vpop.permute.xlu0 %686
      %688 = vrot.lane.b32.xlu0 %v677, 92
      %v689 = vpop.permute.xlu0 %688
      %v690 = vrot.slane %v683, 4
      %v691 = vrot.slane %v685, 4
      %v692 = vrot.slane %v687, 4
      %v693 = vrot.slane %v689, 4
      %v694 = vsel %vm267, %v690, %v691
      %v695 = vsel %vm402, %v683, %v694
      %v696 = vsel %vm267, %v692, %v693
      %v697 = vsel %vm402, %v687, %v696
      %702 = vst [vmem:[#allocation2 + $0x138] sm:$0xff] %v695
      %703 = vst.msk [vmem:[#allocation2 + $0x140] sm:$0xf] %vm278, %v685
      %704 = vst [vmem:[#allocation2 + $0x144] sm:$0xff] %v697
      %705 = vst.msk [vmem:[#allocation2 + $0x14c] sm:$0xf] %vm278, %v689
      %v706 = vld [vmem:[%s239] sm:$0xff]
      %v707 = vld [vmem:[%s239 + $0x8] sm:$0xf]
      %v708 = vld [vmem:[%s239 + $0x10] sm:$0xff]
      %v709 = vld [vmem:[%s239 + $0x18] sm:$0xf]
      %714 = vrot.lane.b32.xlu0 %v706, 91
      %v715 = vpop.permute.xlu0 %714
      %716 = vrot.lane.b32.xlu0 %v707, 91
      %v717 = vpop.permute.xlu0 %716
      %718 = vrot.lane.b32.xlu0 %v708, 91
      %v719 = vpop.permute.xlu0 %718
      %720 = vrot.lane.b32.xlu0 %v709, 91
      %v721 = vpop.permute.xlu0 %720
      %v722 = vrot.slane %v715, 4
      %v723 = vrot.slane %v717, 4
      %v724 = vrot.slane %v719, 4
      %v725 = vrot.slane %v721, 4
      %v726 = vsel %vm267, %v722, %v723
      %v727 = vsel %vm435, %v715, %v726
      %v728 = vsel %vm267, %v724, %v725
      %v729 = vsel %vm435, %v719, %v728
      %734 = vst [vmem:[#allocation2 + $0x150] sm:$0xff] %v727
      %735 = vst.msk [vmem:[#allocation2 + $0x158] sm:$0xf] %vm278, %v717
      %736 = vst [vmem:[#allocation2 + $0x15c] sm:$0xff] %v729
      %737 = vst.msk [vmem:[#allocation2 + $0x164] sm:$0xf] %vm278, %v721
      %v738 = vld [vmem:[%s239] sm:$0xff]
      %v739 = vld [vmem:[%s239 + $0x8] sm:$0xf]
      %v740 = vld [vmem:[%s239 + $0x10] sm:$0xff]
      %v741 = vld [vmem:[%s239 + $0x18] sm:$0xf]
      %746 = vrot.lane.b32.xlu0 %v738, 75
      %v747 = vpop.permute.xlu0 %746
      %748 = vrot.lane.b32.xlu0 %v739, 75
      %v749 = vpop.permute.xlu0 %748
      %750 = vrot.lane.b32.xlu0 %v740, 75
      %v751 = vpop.permute.xlu0 %750
      %752 = vrot.lane.b32.xlu0 %v741, 75
      %v753 = vpop.permute.xlu0 %752
      %v754 = vrot.slane %v747, 4
      %v755 = vrot.slane %v749, 4
      %v756 = vrot.slane %v751, 4
      %v757 = vrot.slane %v753, 4
      %v758 = vsel %vm267, %v754, %v755
      %v759 = vsel %vm468, %v747, %v758
      %v760 = vsel %vm267, %v756, %v757
      %v761 = vsel %vm468, %v751, %v760
      %766 = vst [vmem:[#allocation2 + $0x168] sm:$0xff] %v759
      %767 = vst.msk [vmem:[#allocation2 + $0x170] sm:$0xf] %vm278, %v749
      %768 = vst [vmem:[#allocation2 + $0x174] sm:$0xff] %v761
      %769 = vst.msk [vmem:[#allocation2 + $0x17c] sm:$0xf] %vm278, %v753
      %v770 = vld [vmem:[%s239] sm:$0xff]
      %v771 = vld [vmem:[%s239 + $0x8] sm:$0xf]
      %v772 = vld [vmem:[%s239 + $0x10] sm:$0xff]
      %v773 = vld [vmem:[%s239 + $0x18] sm:$0xf]
      %778 = vrot.lane.b32.xlu0 %v770, 74
      %v779 = vpop.permute.xlu0 %778
      %780 = vrot.lane.b32.xlu0 %v771, 74
      %v781 = vpop.permute.xlu0 %780
      %782 = vrot.lane.b32.xlu0 %v772, 74
      %v783 = vpop.permute.xlu0 %782
      %784 = vrot.lane.b32.xlu0 %v773, 74
      %v785 = vpop.permute.xlu0 %784
      %v786 = vrot.slane %v779, 4
      %v787 = vrot.slane %v781, 4
      %v788 = vrot.slane %v783, 4
      %v789 = vrot.slane %v785, 4
      %v790 = vsel %vm267, %v786, %v787
      %v791 = vsel %vm501, %v779, %v790
      %v792 = vsel %vm267, %v788, %v789
      %v793 = vsel %vm501, %v783, %v792
      %798 = vst [vmem:[#allocation2 + $0x180] sm:$0xff] %v791
      %799 = vst.msk [vmem:[#allocation2 + $0x188] sm:$0xf] %vm278, %v781
      %800 = vst [vmem:[#allocation2 + $0x18c] sm:$0xff] %v793
      %801 = vst.msk [vmem:[#allocation2 + $0x194] sm:$0xf] %vm278, %v785
      %v802 = vld [vmem:[%s239] sm:$0xff]
      %v803 = vld [vmem:[%s239 + $0x8] sm:$0xf]
      %v804 = vld [vmem:[%s239 + $0x10] sm:$0xff]
      %v805 = vld [vmem:[%s239 + $0x18] sm:$0xf]
      %810 = vrot.lane.b32.xlu0 %v802, 73
      %v811 = vpop.permute.xlu0 %810
      %812 = vrot.lane.b32.xlu0 %v803, 73
      %v813 = vpop.permute.xlu0 %812
      %814 = vrot.lane.b32.xlu0 %v804, 73
      %v815 = vpop.permute.xlu0 %814
      %816 = vrot.lane.b32.xlu0 %v805, 73
      %v817 = vpop.permute.xlu0 %816
      %v818 = vrot.slane %v811, 4
      %v819 = vrot.slane %v813, 4
      %v820 = vrot.slane %v815, 4
      %v821 = vrot.slane %v817, 4
      %v822 = vsel %vm267, %v818, %v819
      %v823 = vsel %vm534, %v811, %v822
      %v824 = vsel %vm267, %v820, %v821
      %v825 = vsel %vm534, %v815, %v824
      %830 = vst [vmem:[#allocation2 + $0x198] sm:$0xff] %v823
      %831 = vst.msk [vmem:[#allocation2 + $0x1a0] sm:$0xf] %vm278, %v813
      %832 = vst [vmem:[#allocation2 + $0x1a4] sm:$0xff] %v825
      %833 = vst.msk [vmem:[#allocation2 + $0x1ac] sm:$0xf] %vm278, %v817
      %v834 = vld [vmem:[%s2] sm:$0xff]
      %v835 = vld [vmem:[%s2 + $0x8] sm:$0xf]
      %v836 = vld [vmem:[%s2 + $0xc] sm:$0xff]
      %v837 = vld [vmem:[%s2 + $0x14] sm:$0xf]
      %v838 = vld [vmem:[#allocation2] sm:$0xff]
      %v839 = vld [vmem:[#allocation2 + $0x8] sm:$0xf]
      %v840 = vld [vmem:[#allocation2 + $0xc] sm:$0xff]
      %v841 = vld [vmem:[#allocation2 + $0x14] sm:$0xf]
      %v842 = vld [vmem:[#allocation2 + $0x18] sm:$0xff]
      %v843 = vld [vmem:[#allocation2 + $0x20] sm:$0xf]
      %v844 = vld [vmem:[#allocation2 + $0x24] sm:$0xff]
      %v845 = vld [vmem:[#allocation2 + $0x2c] sm:$0xf]
      %v846 = vld [vmem:[#allocation2 + $0x30] sm:$0xff]
      %v847 = vld [vmem:[#allocation2 + $0x38] sm:$0xf]
      %v848 = vld [vmem:[#allocation2 + $0x3c] sm:$0xff]
      %v849 = vld [vmem:[#allocation2 + $0x44] sm:$0xf]
      %v850 = vld [vmem:[#allocation2 + $0x48] sm:$0xff]
      %v851 = vld [vmem:[#allocation2 + $0x50] sm:$0xf]
      %v852 = vld [vmem:[#allocation2 + $0x54] sm:$0xff]
      %v853 = vld [vmem:[#allocation2 + $0x5c] sm:$0xf]
      %v854 = vld [vmem:[#allocation2 + $0x60] sm:$0xff]
      %v855 = vld [vmem:[#allocation2 + $0x68] sm:$0xf]
      %v856 = vld [vmem:[#allocation2 + $0x6c] sm:$0xff]
      %v857 = vld [vmem:[#allocation2 + $0x74] sm:$0xf]
      %v858 = vld [vmem:[#allocation2 + $0x78] sm:$0xff]
      %v859 = vld [vmem:[#allocation2 + $0x80] sm:$0xf]
      %v860 = vld [vmem:[#allocation2 + $0x84] sm:$0xff]
      %v861 = vld [vmem:[#allocation2 + $0x8c] sm:$0xf]
      %v862 = vld [vmem:[#allocation2 + $0x90] sm:$0xff]
      %v863 = vld [vmem:[#allocation2 + $0x98] sm:$0xf]
      %v864 = vld [vmem:[#allocation2 + $0x9c] sm:$0xff]
      %v865 = vld [vmem:[#allocation2 + $0xa4] sm:$0xf]
      %v866 = vld [vmem:[#allocation2 + $0xa8] sm:$0xff]
      %v867 = vld [vmem:[#allocation2 + $0xb0] sm:$0xf]
      %v868 = vld [vmem:[#allocation2 + $0xb4] sm:$0xff]
      %v869 = vld [vmem:[#allocation2 + $0xbc] sm:$0xf]
      %v870 = vld [vmem:[#allocation2 + $0xc0] sm:$0xff]
      %v871 = vld [vmem:[#allocation2 + $0xc8] sm:$0xf]
      %v872 = vld [vmem:[#allocation2 + $0xcc] sm:$0xff]
      %v873 = vld [vmem:[#allocation2 + $0xd4] sm:$0xf]
      %v874 = vld [vmem:[#allocation2 + $0xd8] sm:$0xff]
      %v875 = vld [vmem:[#allocation2 + $0xe0] sm:$0xf]
      %v876 = vld [vmem:[#allocation2 + $0xe4] sm:$0xff]
      %v877 = vld [vmem:[#allocation2 + $0xec] sm:$0xf]
      %v878 = vld [vmem:[#allocation2 + $0xf0] sm:$0xff]
      %v879 = vld [vmem:[#allocation2 + $0xf8] sm:$0xf]
      %v880 = vld [vmem:[#allocation2 + $0xfc] sm:$0xff]
      %v881 = vld [vmem:[#allocation2 + $0x104] sm:$0xf]
      %v882 = vld [vmem:[#allocation2 + $0x108] sm:$0xff]
      %v883 = vld [vmem:[#allocation2 + $0x110] sm:$0xf]
      %v884 = vld [vmem:[#allocation2 + $0x114] sm:$0xff]
      %v885 = vld [vmem:[#allocation2 + $0x11c] sm:$0xf]
      %v886 = vld [vmem:[#allocation2 + $0x120] sm:$0xff]
      %v887 = vld [vmem:[#allocation2 + $0x128] sm:$0xf]
      %v888 = vld [vmem:[#allocation2 + $0x12c] sm:$0xff]
      %v889 = vld [vmem:[#allocation2 + $0x134] sm:$0xf]
      %v890 = vld [vmem:[#allocation2 + $0x138] sm:$0xff]
      %v891 = vld [vmem:[#allocation2 + $0x140] sm:$0xf]
      %v892 = vld [vmem:[#allocation2 + $0x144] sm:$0xff]
      %v893 = vld [vmem:[#allocation2 + $0x14c] sm:$0xf]
      %v894 = vld [vmem:[#allocation2 + $0x150] sm:$0xff]
      %v895 = vld [vmem:[#allocation2 + $0x158] sm:$0xf]
      %v896 = vld [vmem:[#allocation2 + $0x15c] sm:$0xff]
      %v897 = vld [vmem:[#allocation2 + $0x164] sm:$0xf]
      %v898 = vld [vmem:[#allocation2 + $0x168] sm:$0xff]
      %v899 = vld [vmem:[#allocation2 + $0x170] sm:$0xf]
      %v900 = vld [vmem:[#allocation2 + $0x174] sm:$0xff]
      %v901 = vld [vmem:[#allocation2 + $0x17c] sm:$0xf]
      %v902 = vld [vmem:[#allocation2 + $0x180] sm:$0xff]
      %v903 = vld [vmem:[#allocation2 + $0x188] sm:$0xf]
      %v904 = vld [vmem:[#allocation2 + $0x18c] sm:$0xff]
      %v905 = vld [vmem:[#allocation2 + $0x194] sm:$0xf]
      %v906 = vld [vmem:[#allocation2 + $0x198] sm:$0xff]
      %v907 = vld [vmem:[#allocation2 + $0x1a0] sm:$0xf]
      %v908 = vld [vmem:[#allocation2 + $0x1a4] sm:$0xff]
      %v909 = vld [vmem:[#allocation2 + $0x1ac] sm:$0xf]
      %v914 = vunpack.c.l.b16 %v834
      %v915 = vunpack.c.h.b16 %v834
      %v916 = vunpack.c.l.b16 %v835
      %v917 = vunpack.c.l.b16 %v836
      %v918 = vunpack.c.h.b16 %v836
      %v919 = vunpack.c.l.b16 %v837
      %v920 = vpack.c.b16 %v917, %v914
      %v921 = vpack.c.b16 %v918, %v915
      %v922 = vpack.c.b16 %v919, %v916
      %v997 = vunpack.c.l.b16 %v838
      %v998 = vunpack.c.h.b16 %v838
      %v999 = vunpack.c.l.b16 %v839
      %v1000 = vunpack.c.l.b16 %v840
      %v1001 = vunpack.c.h.b16 %v840
      %v1002 = vunpack.c.l.b16 %v841
      %v1003 = vunpack.c.l.b16 %v842
      %v1004 = vunpack.c.h.b16 %v842
      %v1005 = vunpack.c.l.b16 %v843
      %v1006 = vunpack.c.l.b16 %v844
      %v1007 = vunpack.c.h.b16 %v844
      %v1008 = vunpack.c.l.b16 %v845
      %v1009 = vunpack.c.l.b16 %v846
      %v1010 = vunpack.c.h.b16 %v846
      %v1011 = vunpack.c.l.b16 %v847
      %v1012 = vunpack.c.l.b16 %v848
      %v1013 = vunpack.c.h.b16 %v848
      %v1014 = vunpack.c.l.b16 %v849
      %v1015 = vunpack.c.l.b16 %v850
      %v1016 = vunpack.c.h.b16 %v850
      %v1017 = vunpack.c.l.b16 %v851
      %v1018 = vunpack.c.l.b16 %v852
      %v1019 = vunpack.c.h.b16 %v852
      %v1020 = vunpack.c.l.b16 %v853
      %v1021 = vunpack.c.l.b16 %v854
      %v1022 = vunpack.c.h.b16 %v854
      %v1023 = vunpack.c.l.b16 %v855
      %v1024 = vunpack.c.l.b16 %v856
      %v1025 = vunpack.c.h.b16 %v856
      %v1026 = vunpack.c.l.b16 %v857
      %v1027 = vunpack.c.l.b16 %v858
      %v1028 = vunpack.c.h.b16 %v858
      %v1029 = vunpack.c.l.b16 %v859
      %v1030 = vunpack.c.l.b16 %v860
      %v1031 = vunpack.c.h.b16 %v860
      %v1032 = vunpack.c.l.b16 %v861
      %v1033 = vunpack.c.l.b16 %v862
      %v1034 = vunpack.c.h.b16 %v862
      %v1035 = vunpack.c.l.b16 %v863
      %v1036 = vunpack.c.l.b16 %v864
      %v1037 = vunpack.c.h.b16 %v864
      %v1038 = vunpack.c.l.b16 %v865
      %v1039 = vunpack.c.l.b16 %v866
      %v1040 = vunpack.c.h.b16 %v866
      %v1041 = vunpack.c.l.b16 %v867
      %v1042 = vunpack.c.l.b16 %v868
      %v1043 = vunpack.c.h.b16 %v868
      %v1044 = vunpack.c.l.b16 %v869
      %v1045 = vunpack.c.l.b16 %v870
      %v1046 = vunpack.c.h.b16 %v870
      %v1047 = vunpack.c.l.b16 %v871
      %v1048 = vunpack.c.l.b16 %v872
      %v1049 = vunpack.c.h.b16 %v872
      %v1050 = vunpack.c.l.b16 %v873
      %v1051 = vunpack.c.l.b16 %v874
      %v1052 = vunpack.c.h.b16 %v874
      %v1053 = vunpack.c.l.b16 %v875
      %v1054 = vunpack.c.l.b16 %v876
      %v1055 = vunpack.c.h.b16 %v876
      %v1056 = vunpack.c.l.b16 %v877
      %v1057 = vunpack.c.l.b16 %v878
      %v1058 = vunpack.c.h.b16 %v878
      %v1059 = vunpack.c.l.b16 %v879
      %v1060 = vunpack.c.l.b16 %v880
      %v1061 = vunpack.c.h.b16 %v880
      %v1062 = vunpack.c.l.b16 %v881
      %v1063 = vunpack.c.l.b16 %v882
      %v1064 = vunpack.c.h.b16 %v882
      %v1065 = vunpack.c.l.b16 %v883
      %v1066 = vunpack.c.l.b16 %v884
      %v1067 = vunpack.c.h.b16 %v884
      %v1068 = vunpack.c.l.b16 %v885
      %v1069 = vunpack.c.l.b16 %v886
      %v1070 = vunpack.c.h.b16 %v886
      %v1071 = vunpack.c.l.b16 %v887
      %v1072 = vunpack.c.l.b16 %v888
      %v1073 = vunpack.c.h.b16 %v888
      %v1074 = vunpack.c.l.b16 %v889
      %v1075 = vunpack.c.l.b16 %v890
      %v1076 = vunpack.c.h.b16 %v890
      %v1077 = vunpack.c.l.b16 %v891
      %v1078 = vunpack.c.l.b16 %v892
      %v1079 = vunpack.c.h.b16 %v892
      %v1080 = vunpack.c.l.b16 %v893
      %v1081 = vunpack.c.l.b16 %v894
      %v1082 = vunpack.c.h.b16 %v894
      %v1083 = vunpack.c.l.b16 %v895
      %v1084 = vunpack.c.l.b16 %v896
      %v1085 = vunpack.c.h.b16 %v896
      %v1086 = vunpack.c.l.b16 %v897
      %v1087 = vunpack.c.l.b16 %v898
      %v1088 = vunpack.c.h.b16 %v898
      %v1089 = vunpack.c.l.b16 %v899
      %v1090 = vunpack.c.l.b16 %v900
      %v1091 = vunpack.c.h.b16 %v900
      %v1092 = vunpack.c.l.b16 %v901
      %v1093 = vunpack.c.l.b16 %v902
      %v1094 = vunpack.c.h.b16 %v902
      %v1095 = vunpack.c.l.b16 %v903
      %v1096 = vunpack.c.l.b16 %v904
      %v1097 = vunpack.c.h.b16 %v904
      %v1098 = vunpack.c.l.b16 %v905
      %v1099 = vunpack.c.l.b16 %v906
      %v1100 = vunpack.c.h.b16 %v906
      %v1101 = vunpack.c.l.b16 %v907
      %v1102 = vunpack.c.l.b16 %v908
      %v1103 = vunpack.c.h.b16 %v908
      %v1104 = vunpack.c.l.b16 %v909
      %v1105 = vpack.c.b16 %v1000, %v997
      %v1106 = vpack.c.b16 %v1001, %v998
      %v1107 = vpack.c.b16 %v1002, %v999
      %v1108 = vpack.c.b16 %v1006, %v1003
      %v1109 = vpack.c.b16 %v1007, %v1004
      %v1110 = vpack.c.b16 %v1008, %v1005
      %v1111 = vpack.c.b16 %v1012, %v1009
      %v1112 = vpack.c.b16 %v1013, %v1010
      %v1113 = vpack.c.b16 %v1014, %v1011
      %v1114 = vpack.c.b16 %v1018, %v1015
      %v1115 = vpack.c.b16 %v1019, %v1016
      %v1116 = vpack.c.b16 %v1020, %v1017
      %v1117 = vpack.c.b16 %v1024, %v1021
      %v1118 = vpack.c.b16 %v1025, %v1022
      %v1119 = vpack.c.b16 %v1026, %v1023
      %v1120 = vpack.c.b16 %v1030, %v1027
      %v1121 = vpack.c.b16 %v1031, %v1028
      %v1122 = vpack.c.b16 %v1032, %v1029
      %v1123 = vpack.c.b16 %v1036, %v1033
      %v1124 = vpack.c.b16 %v1037, %v1034
      %v1125 = vpack.c.b16 %v1038, %v1035
      %v1126 = vpack.c.b16 %v1042, %v1039
      %v1127 = vpack.c.b16 %v1043, %v1040
      %v1128 = vpack.c.b16 %v1044, %v1041
      %v1129 = vpack.c.b16 %v1048, %v1045
      %v1130 = vpack.c.b16 %v1049, %v1046
      %v1131 = vpack.c.b16 %v1050, %v1047
      %v1132 = vpack.c.b16 %v1054, %v1051
      %v1133 = vpack.c.b16 %v1055, %v1052
      %v1134 = vpack.c.b16 %v1056, %v1053
      %v1135 = vpack.c.b16 %v1060, %v1057
      %v1136 = vpack.c.b16 %v1061, %v1058
      %v1137 = vpack.c.b16 %v1062, %v1059
      %v1138 = vpack.c.b16 %v1066, %v1063
      %v1139 = vpack.c.b16 %v1067, %v1064
      %v1140 = vpack.c.b16 %v1068, %v1065
      %v1141 = vpack.c.b16 %v1072, %v1069
      %v1142 = vpack.c.b16 %v1073, %v1070
      %v1143 = vpack.c.b16 %v1074, %v1071
      %v1144 = vpack.c.b16 %v1078, %v1075
      %v1145 = vpack.c.b16 %v1079, %v1076
      %v1146 = vpack.c.b16 %v1080, %v1077
      %v1147 = vpack.c.b16 %v1084, %v1081
      %v1148 = vpack.c.b16 %v1085, %v1082
      %v1149 = vpack.c.b16 %v1086, %v1083
      %v1150 = vpack.c.b16 %v1090, %v1087
      %v1151 = vpack.c.b16 %v1091, %v1088
      %v1152 = vpack.c.b16 %v1092, %v1089
      %v1153 = vpack.c.b16 %v1096, %v1093
      %v1154 = vpack.c.b16 %v1097, %v1094
      %v1155 = vpack.c.b16 %v1098, %v1095
      %v1156 = vpack.c.b16 %v1102, %v1099
      %v1157 = vpack.c.b16 %v1103, %v1100
      %v1158 = vpack.c.b16 %v1104, %v1101
      %vm1213 = vcmask 261120
      %v1215 = vsel %vm1213, %v922, 0
      %1217 = vmatpush.bf16.msra.mxu0 %v1126
      %1218 = vmatpush.bf16.msra.mxu0 %v1123
      %1219 = vmatpush.bf16.msra.mxu0 %v1120
      %1220 = vmatpush.bf16.msra.mxu0 %v1117
      %1221 = vmatpush.bf16.msra.mxu0 %v1114
      %1222 = vmatpush.bf16.msra.mxu0 %v1111
      %1223 = vmatpush.bf16.msra.mxu0 %v1108
      %1224 = vmatpush.bf16.msra.mxu0 %v1105
      %1225 = vmatmul.bf16.gmra.mxu0 %v920
      %v1226 = vpop.f32.mrf.mxu0
      %v1227 = vadd.f32 0.0, %v1226
      %v1228 = vpop.f32.mrf.mxu0
      %v1229 = vadd.f32 0.0, %v1228
      %1230 = vdwg.mxu0
      %1231 = vmatpush.bf16.msra.mxu0 %v1150
      %1232 = vmatpush.bf16.msra.mxu0 %v1147
      %1233 = vmatpush.bf16.msra.mxu0 %v1144
      %1234 = vmatpush.bf16.msra.mxu0 %v1141
      %1235 = vmatpush.bf16.msra.mxu0 %v1138
      %1236 = vmatpush.bf16.msra.mxu0 %v1135
      %1237 = vmatpush.bf16.msra.mxu0 %v1132
      %1238 = vmatpush.bf16.msra.mxu0 %v1129
      %1239 = vmatmul.bf16.gmra.mxu0 %v921
      %v1240 = vpop.f32.mrf.mxu0
      %v1241 = vadd.f32 %v1227, %v1240
      %v1242 = vpop.f32.mrf.mxu0
      %v1243 = vadd.f32 %v1229, %v1242
      %1244 = vdwg.mxu0
      %1245 = vmatpush.bf16.msra.mxu0 0
      %1246 = vmatpush.bf16.msra.mxu0 0
      %1247 = vmatpush.bf16.msra.mxu0 0
      %1248 = vmatpush.bf16.msra.mxu0 0
      %1249 = vmatpush.bf16.msra.mxu0 0
      %1250 = vmatpush.bf16.msra.mxu0 0
      %1251 = vmatpush.bf16.msra.mxu0 %v1156
      %1252 = vmatpush.bf16.msra.mxu0 %v1153
      %1253 = vmatmul.bf16.gmra.mxu0 %v1215
      %v1254 = vpop.f32.mrf.mxu0
      %v1255 = vadd.f32 %v1241, %v1254
      %v1256 = vpop.f32.mrf.mxu0
      %v1257 = vadd.f32 %v1243, %v1256
      %1258 = vdwg.mxu0
      %1259 = vmatpush.bf16.msra.mxu0 %v1127
      %1260 = vmatpush.bf16.msra.mxu0 %v1124
      %1261 = vmatpush.bf16.msra.mxu0 %v1121
      %1262 = vmatpush.bf16.msra.mxu0 %v1118
      %1263 = vmatpush.bf16.msra.mxu0 %v1115
      %1264 = vmatpush.bf16.msra.mxu0 %v1112
      %1265 = vmatpush.bf16.msra.mxu0 %v1109
      %1266 = vmatpush.bf16.msra.mxu0 %v1106
      %1267 = vmatmul.bf16.gmra.mxu0 %v920
      %v1268 = vpop.f32.mrf.mxu0
      %v1269 = vadd.f32 0.0, %v1268
      %v1270 = vpop.f32.mrf.mxu0
      %v1271 = vadd.f32 0.0, %v1270
      %1272 = vdwg.mxu0
      %1273 = vmatpush.bf16.msra.mxu0 %v1151
      %1274 = vmatpush.bf16.msra.mxu0 %v1148
      %1275 = vmatpush.bf16.msra.mxu0 %v1145
      %1276 = vmatpush.bf16.msra.mxu0 %v1142
      %1277 = vmatpush.bf16.msra.mxu0 %v1139
      %1278 = vmatpush.bf16.msra.mxu0 %v1136
      %1279 = vmatpush.bf16.msra.mxu0 %v1133
      %1280 = vmatpush.bf16.msra.mxu0 %v1130
      %1281 = vmatmul.bf16.gmra.mxu0 %v921
      %v1282 = vpop.f32.mrf.mxu0
      %v1283 = vadd.f32 %v1269, %v1282
      %v1284 = vpop.f32.mrf.mxu0
      %v1285 = vadd.f32 %v1271, %v1284
      %1286 = vdwg.mxu0
      %1287 = vmatpush.bf16.msra.mxu0 0
      %1288 = vmatpush.bf16.msra.mxu0 0
      %1289 = vmatpush.bf16.msra.mxu0 0
      %1290 = vmatpush.bf16.msra.mxu0 0
      %1291 = vmatpush.bf16.msra.mxu0 0
      %1292 = vmatpush.bf16.msra.mxu0 0
      %1293 = vmatpush.bf16.msra.mxu0 %v1157
      %1294 = vmatpush.bf16.msra.mxu0 %v1154
      %1295 = vmatmul.bf16.gmra.mxu0 %v1215
      %v1296 = vpop.f32.mrf.mxu0
      %v1297 = vadd.f32 %v1283, %v1296
      %v1298 = vpop.f32.mrf.mxu0
      %v1299 = vadd.f32 %v1285, %v1298
      %1300 = vdwg.mxu0
      %1301 = vmatpush.bf16.msra.mxu0 %v1128
      %1302 = vmatpush.bf16.msra.mxu0 %v1125
      %1303 = vmatpush.bf16.msra.mxu0 %v1122
      %1304 = vmatpush.bf16.msra.mxu0 %v1119
      %1305 = vmatpush.bf16.msra.mxu0 %v1116
      %1306 = vmatpush.bf16.msra.mxu0 %v1113
      %1307 = vmatpush.bf16.msra.mxu0 %v1110
      %1308 = vmatpush.bf16.msra.mxu0 %v1107
      %1309 = vmatmul.bf16.gmra.mxu0 %v920
      %v1310 = vpop.f32.mrf.mxu0
      %v1311 = vadd.f32 0.0, %v1310
      %v1312 = vpop.f32.mrf.mxu0
      %v1313 = vadd.f32 0.0, %v1312
      %1314 = vdwg.mxu0
      %1315 = vmatpush.bf16.msra.mxu0 %v1152
      %1316 = vmatpush.bf16.msra.mxu0 %v1149
      %1317 = vmatpush.bf16.msra.mxu0 %v1146
      %1318 = vmatpush.bf16.msra.mxu0 %v1143
      %1319 = vmatpush.bf16.msra.mxu0 %v1140
      %1320 = vmatpush.bf16.msra.mxu0 %v1137
      %1321 = vmatpush.bf16.msra.mxu0 %v1134
      %1322 = vmatpush.bf16.msra.mxu0 %v1131
      %1323 = vmatmul.bf16.gmra.mxu0 %v921
      %v1324 = vpop.f32.mrf.mxu0
      %v1325 = vadd.f32 %v1311, %v1324
      %v1326 = vpop.f32.mrf.mxu0
      %v1327 = vadd.f32 %v1313, %v1326
      %1328 = vdwg.mxu0
      %1329 = vmatpush.bf16.msra.mxu0 0
      %1330 = vmatpush.bf16.msra.mxu0 0
      %1331 = vmatpush.bf16.msra.mxu0 0
      %1332 = vmatpush.bf16.msra.mxu0 0
      %1333 = vmatpush.bf16.msra.mxu0 0
      %1334 = vmatpush.bf16.msra.mxu0 0
      %1335 = vmatpush.bf16.msra.mxu0 %v1158
      %1336 = vmatpush.bf16.msra.mxu0 %v1155
      %1337 = vmatmul.bf16.gmra.mxu0 %v1215
      %v1338 = vpop.f32.mrf.mxu0
      %v1339 = vadd.f32 %v1325, %v1338
      %v1340 = vpop.f32.mrf.mxu0
      %v1341 = vadd.f32 %v1327, %v1340
      %1342 = vdwg.mxu0
      %v1344 = vperm.slane %v246, 0
      %v1345 = vperm.slane %v246, 1
      %v1346 = vperm.slane %v246, 2
      %v1350 = vmul.f32 %v1255, %v1344
      %v1351 = vmul.f32 %v1297, %v1345
      %v1352 = vmul.f32 %v1339, %v1346
      %v1353 = vmul.f32 %v1257, %v1344
      %v1354 = vmul.f32 %v1299, %v1345
      %v1355 = vmul.f32 %v1341, %v1346
      %v1356 = vadd.f32 %v1350, %v1351
      %vm1357 = vcmask 556032
      %v1358 = vsel %vm1357, %v1352, 0.0
      %v1359 = vadd.f32 %v1356, %v1358
      %1360 = vadd.xlane.f32.xlu0 %v1359
      %v1361 = vpop.xlane.xlu0 %1360
      %v1362 = vadd.f32 %v1353, %v1354
      %v1363 = vsel %vm1357, %v1355, 0.0
      %v1364 = vadd.f32 %v1362, %v1363
      %1365 = vadd.xlane.f32.xlu0 %v1364
      %v1366 = vpop.xlane.xlu0 %1365
      %v1367 = vmul.f32 %v1361, 0.00390625
      %v1368 = vmul.f32 %v1366, 0.00390625
      %v1369 = vsub.f32 %v1255, %v1367
      %v1370 = vsub.f32 %v1297, %v1367
      %v1371 = vsub.f32 %v1339, %v1367
      %v1372 = vsub.f32 %v1257, %v1368
      %v1373 = vsub.f32 %v1299, %v1368
      %v1374 = vsub.f32 %v1341, %v1368
      %v1375 = vmul.f32 %v1369, %v1344
      %v1376 = vmul.f32 %v1370, %v1345
      %v1377 = vmul.f32 %v1371, %v1346
      %v1378 = vmul.f32 %v1372, %v1344
      %v1379 = vmul.f32 %v1373, %v1345
      %v1380 = vmul.f32 %v1374, %v1346
      %v1381 = vmul.f32 %v1375, %v1375
      %v1382 = vmul.f32 %v1376, %v1376
      %v1383 = vmul.f32 %v1377, %v1377
      %v1384 = vmul.f32 %v1378, %v1378
      %v1385 = vmul.f32 %v1379, %v1379
      %v1386 = vmul.f32 %v1380, %v1380
      %v1387 = vadd.f32 %v1381, %v1382
      %v1388 = vsel %vm1357, %v1383, 0.0
      %v1389 = vadd.f32 %v1387, %v1388
      %1390 = vadd.xlane.f32.xlu0 %v1389
      %v1391 = vpop.xlane.xlu0 %1390
      %v1392 = vadd.f32 %v1384, %v1385
      %v1393 = vsel %vm1357, %v1386, 0.0
      %v1394 = vadd.f32 %v1392, %v1393
      %1395 = vadd.xlane.f32.xlu0 %v1394
      %v1396 = vpop.xlane.xlu0 %1395
      %v1397 = vmul.f32 %v1391, 0.00390625
      %v1398 = vmul.f32 %v1396, 0.00390625
      %v1399 = vadd.f32 %v1397, 1e-05
      %v1400 = vadd.f32 %v1398, 1e-05
      %v1401 = vrsqrt.pop %v1399
      %v1402 = vmul.f32 %v1401, %v1399
      %v1403 = vmul.f32 %v1402, %v1401
      %v1404 = vmul.f32 0.5, %v1403
      %v1405 = vsub.f32 1.5, %v1404
      %v1406 = vmul.f32 %v1401, %v1405
      %vm1407 = vweird.f32 %v1399
      %vm1408 = vweird.f32 %v1401
      %vm1409 = vmor %vm1407, %vm1408
      %v1410 = vsel %vm1409, %v1401, %v1406
      %v1411 = vrsqrt.pop %v1400
      %v1412 = vmul.f32 %v1411, %v1400
      %v1413 = vmul.f32 %v1412, %v1411
      %v1414 = vmul.f32 0.5, %v1413
      %v1415 = vsub.f32 1.5, %v1414
      %v1416 = vmul.f32 %v1411, %v1415
      %vm1417 = vweird.f32 %v1400
      %vm1418 = vweird.f32 %v1411
      %vm1419 = vmor %vm1417, %vm1418
      %v1420 = vsel %vm1419, %v1411, %v1416
      %v1421 = vmul.f32 %v1375, %v1410
      %v1422 = vmul.f32 %v1376, %v1410
      %v1423 = vmul.f32 %v1377, %v1410
      %v1424 = vmul.f32 %v1378, %v1420
      %v1425 = vmul.f32 %v1379, %v1420
      %v1426 = vmul.f32 %v1380, %v1420
      %v1427 = vmax.f32 %v1421, 0.0
      %v1428 = vmax.f32 %v1422, 0.0
      %v1429 = vmax.f32 %v1423, 0.0
      %v1430 = vmax.f32 %v1424, 0.0
      %v1431 = vmax.f32 %v1425, 0.0
      %v1432 = vmax.f32 %v1426, 0.0
      %1433 = vst [vmem:[#allocation3] sm:$0xf] 0
      %1434 = vst [vmem:[#allocation3 + $0x10] sm:$0xf] 0
      %vm1435 = vcmask 1044000
      %1436 = vst.msk [vmem:[#allocation3 + $0xc] sm:$0xf] %vm1435, 0
      %1437 = vst.msk [vmem:[#allocation3 + $0x1c] sm:$0xf] %vm1435, 0
      %v1438 = vpack.c.bf16 %v1428, %v1427
      %v1439 = vpack.c.bf16 %v1429, %v1429
      %v1440 = vpack.c.bf16 %v1431, %v1430
      %v1441 = vpack.c.bf16 %v1432, %v1432
      %1442 = vst [vmem:[#allocation3 + $0x4] sm:$0xff] %v1438
      %1443 = vst.msk [vmem:[#allocation3 + $0xc] sm:$0xf] %vm278, %v1439
      %1444 = vst [vmem:[#allocation3 + $0x14] sm:$0xff] %v1440
      %1445 = vst.msk [vmem:[#allocation3 + $0x1c] sm:$0xf] %vm278, %v1441
      %v1446 = vld [vmem:[#allocation3] sm:$0xff]
      %v1447 = vld [vmem:[#allocation3 + $0x8] sm:$0xff]
      %v1448 = vld [vmem:[#allocation3 + $0x10] sm:$0xff]
      %v1449 = vld [vmem:[#allocation3 + $0x18] sm:$0xff]
      %1454 = vrot.lane.b32.xlu0 %v1446, 19
      %v1455 = vpop.permute.xlu0 %1454
      %1456 = vrot.lane.b32.xlu0 %v1447, 19
      %v1457 = vpop.permute.xlu0 %1456
      %1458 = vrot.lane.b32.xlu0 %v1448, 19
      %v1459 = vpop.permute.xlu0 %1458
      %1460 = vrot.lane.b32.xlu0 %v1449, 19
      %v1461 = vpop.permute.xlu0 %1460
      %v1462 = vrot.slane %v1455, 4
      %v1463 = vrot.slane %v1457, 4
      %v1464 = vrot.slane %v1459, 4
      %v1465 = vrot.slane %v1461, 4
      %v1466 = vsel %vm267, %v1462, %v1463
      %vm1467 = vcmask 154624
      %v1468 = vsel %vm1467, %v1455, %v1466
      %v1469 = vsel %vm1467, %v1457, %v1463
      %v1470 = vsel %vm267, %v1464, %v1465
      %v1471 = vsel %vm1467, %v1459, %v1470
      %v1472 = vsel %vm1467, %v1461, %v1465
      %1477 = vst [vmem:[#allocation2] sm:$0xff] %v1468
      %1478 = vst.msk [vmem:[#allocation2 + $0x8] sm:$0xf] %vm278, %v1469
      %1479 = vst [vmem:[#allocation2 + $0xc] sm:$0xff] %v1471
      %1480 = vst.msk [vmem:[#allocation2 + $0x14] sm:$0xf] %vm278, %v1472
      %v1481 = vld [vmem:[#allocation3] sm:$0xff]
      %v1482 = vld [vmem:[#allocation3 + $0x8] sm:$0xff]
      %v1483 = vld [vmem:[#allocation3 + $0x10] sm:$0xff]
      %v1484 = vld [vmem:[#allocation3 + $0x18] sm:$0xff]
      %1489 = vrot.lane.b32.xlu0 %v1481, 18
      %v1490 = vpop.permute.xlu0 %1489
      %1491 = vrot.lane.b32.xlu0 %v1482, 18
      %v1492 = vpop.permute.xlu0 %1491
      %1493 = vrot.lane.b32.xlu0 %v1483, 18
      %v1494 = vpop.permute.xlu0 %1493
      %1495 = vrot.lane.b32.xlu0 %v1484, 18
      %v1496 = vpop.permute.xlu0 %1495
      %v1497 = vrot.slane %v1490, 4
      %v1498 = vrot.slane %v1492, 4
      %v1499 = vrot.slane %v1494, 4
      %v1500 = vrot.slane %v1496, 4
      %v1501 = vsel %vm267, %v1497, %v1498
      %vm1502 = vcmask 146432
      %v1503 = vsel %vm1502, %v1490, %v1501
      %v1504 = vsel %vm1502, %v1492, %v1498
      %v1505 = vsel %vm267, %v1499, %v1500
      %v1506 = vsel %vm1502, %v1494, %v1505
      %v1507 = vsel %vm1502, %v1496, %v1500
      %1512 = vst [vmem:[#allocation2 + $0x18] sm:$0xff] %v1503
      %1513 = vst.msk [vmem:[#allocation2 + $0x20] sm:$0xf] %vm278, %v1504
      %1514 = vst [vmem:[#allocation2 + $0x24] sm:$0xff] %v1506
      %1515 = vst.msk [vmem:[#allocation2 + $0x2c] sm:$0xf] %vm278, %v1507
      %v1516 = vld [vmem:[#allocation3] sm:$0xff]
      %v1517 = vld [vmem:[#allocation3 + $0x8] sm:$0xff]
      %v1518 = vld [vmem:[#allocation3 + $0x10] sm:$0xff]
      %v1519 = vld [vmem:[#allocation3 + $0x18] sm:$0xff]
      %1524 = vrot.lane.b32.xlu0 %v1516, 17
      %v1525 = vpop.permute.xlu0 %1524
      %1526 = vrot.lane.b32.xlu0 %v1517, 17
      %v1527 = vpop.permute.xlu0 %1526
      %1528 = vrot.lane.b32.xlu0 %v1518, 17
      %v1529 = vpop.permute.xlu0 %1528
      %1530 = vrot.lane.b32.xlu0 %v1519, 17
      %v1531 = vpop.permute.xlu0 %1530
      %v1532 = vrot.slane %v1525, 4
      %v1533 = vrot.slane %v1527, 4
      %v1534 = vrot.slane %v1529, 4
      %v1535 = vrot.slane %v1531, 4
      %v1536 = vsel %vm267, %v1532, %v1533
      %vm1537 = vcmask 138240
      %v1538 = vsel %vm1537, %v1525, %v1536
      %v1539 = vsel %vm1537, %v1527, %v1533
      %v1540 = vsel %vm267, %v1534, %v1535
      %v1541 = vsel %vm1537, %v1529, %v1540
      %v1542 = vsel %vm1537, %v1531, %v1535
      %1547 = vst [vmem:[#allocation2 + $0x30] sm:$0xff] %v1538
      %1548 = vst.msk [vmem:[#allocation2 + $0x38] sm:$0xf] %vm278, %v1539
      %1549 = vst [vmem:[#allocation2 + $0x3c] sm:$0xff] %v1541
      %1550 = vst.msk [vmem:[#allocation2 + $0x44] sm:$0xf] %vm278, %v1542
      %v1551 = vld [vmem:[#allocation3] sm:$0xff]
      %v1552 = vld [vmem:[#allocation3 + $0x8] sm:$0xff]
      %v1553 = vld [vmem:[#allocation3 + $0x10] sm:$0xff]
      %v1554 = vld [vmem:[#allocation3 + $0x18] sm:$0xff]
      %1559 = vrot.lane.b32.xlu0 %v1551, 1
      %v1560 = vpop.permute.xlu0 %1559
      %1561 = vrot.lane.b32.xlu0 %v1552, 1
      %v1562 = vpop.permute.xlu0 %1561
      %1563 = vrot.lane.b32.xlu0 %v1553, 1
      %v1564 = vpop.permute.xlu0 %1563
      %1565 = vrot.lane.b32.xlu0 %v1554, 1
      %v1566 = vpop.permute.xlu0 %1565
      %v1567 = vrot.slane %v1560, 4
      %v1568 = vrot.slane %v1562, 4
      %v1569 = vrot.slane %v1564, 4
      %v1570 = vrot.slane %v1566, 4
      %v1571 = vsel %vm267, %v1567, %v1568
      %vm1572 = vcmask 7168
      %v1573 = vsel %vm1572, %v1560, %v1571
      %v1574 = vsel %vm1572, %v1562, %v1568
      %v1575 = vsel %vm267, %v1569, %v1570
      %v1576 = vsel %vm1572, %v1564, %v1575
      %v1577 = vsel %vm1572, %v1566, %v1570
      %1582 = vst [vmem:[#allocation2 + $0x48] sm:$0xff] %v1573
      %1583 = vst.msk [vmem:[#allocation2 + $0x50] sm:$0xf] %vm278, %v1574
      %1584 = vst [vmem:[#allocation2 + $0x54] sm:$0xff] %v1576
      %1585 = vst.msk [vmem:[#allocation2 + $0x5c] sm:$0xf] %vm278, %v1577
      %v1586 = vld [vmem:[#allocation3 + $0x4] sm:$0xff]
      %v1587 = vld [vmem:[#allocation3 + $0xc] sm:$0xf]
      %v1588 = vld [vmem:[#allocation3 + $0x14] sm:$0xff]
      %v1589 = vld [vmem:[#allocation3 + $0x1c] sm:$0xf]
      %1590 = vst [vmem:[#allocation2 + $0x60] sm:$0xff] %v1586
      %1591 = vst.msk [vmem:[#allocation2 + $0x68] sm:$0xf] %vm278, %v1587
      %1592 = vst [vmem:[#allocation2 + $0x6c] sm:$0xff] %v1588
      %1593 = vst.msk [vmem:[#allocation2 + $0x74] sm:$0xf] %vm278, %v1589
      %v1594 = vld [vmem:[#allocation3 + $0x4] sm:$0xff]
      %v1595 = vld [vmem:[#allocation3 + $0xc] sm:$0xf]
      %v1596 = vld [vmem:[#allocation3 + $0x14] sm:$0xff]
      %v1597 = vld [vmem:[#allocation3 + $0x1c] sm:$0xf]
      %1602 = vrot.lane.b32.xlu0 %v1594, 127
      %v1603 = vpop.permute.xlu0 %1602
      %1604 = vrot.lane.b32.xlu0 %v1595, 127
      %v1605 = vpop.permute.xlu0 %1604
      %1606 = vrot.lane.b32.xlu0 %v1596, 127
      %v1607 = vpop.permute.xlu0 %1606
      %1608 = vrot.lane.b32.xlu0 %v1597, 127
      %v1609 = vpop.permute.xlu0 %1608
      %v1610 = vrot.slane %v1603, 4
      %v1611 = vrot.slane %v1605, 4
      %v1612 = vrot.slane %v1607, 4
      %v1613 = vrot.slane %v1609, 4
      %v1614 = vsel %vm267, %v1610, %v1611
      %vm1615 = vcmask 1039360
      %v1616 = vsel %vm1615, %v1603, %v1614
      %v1617 = vsel %vm267, %v1612, %v1613
      %v1618 = vsel %vm1615, %v1607, %v1617
      %1623 = vst [vmem:[#allocation2 + $0x78] sm:$0xff] %v1616
      %1624 = vst.msk [vmem:[#allocation2 + $0x80] sm:$0xf] %vm278, %v1605
      %1625 = vst [vmem:[#allocation2 + $0x84] sm:$0xff] %v1618
      %1626 = vst.msk [vmem:[#allocation2 + $0x8c] sm:$0xf] %vm278, %v1609
      %v1627 = vld [vmem:[#allocation3 + $0x4] sm:$0xff]
      %v1628 = vld [vmem:[#allocation3 + $0xc] sm:$0xf]
      %v1629 = vld [vmem:[#allocation3 + $0x14] sm:$0xff]
      %v1630 = vld [vmem:[#allocation3 + $0x1c] sm:$0xf]
      %1635 = vrot.lane.b32.xlu0 %v1627, 111
      %v1636 = vpop.permute.xlu0 %1635
      %1637 = vrot.lane.b32.xlu0 %v1628, 111
      %v1638 = vpop.permute.xlu0 %1637
      %1639 = vrot.lane.b32.xlu0 %v1629, 111
      %v1640 = vpop.permute.xlu0 %1639
      %1641 = vrot.lane.b32.xlu0 %v1630, 111
      %v1642 = vpop.permute.xlu0 %1641
      %v1643 = vrot.slane %v1636, 4
      %v1644 = vrot.slane %v1638, 4
      %v1645 = vrot.slane %v1640, 4
      %v1646 = vrot.slane %v1642, 4
      %v1647 = vsel %vm267, %v1643, %v1644
      %v1648 = vsel %vm269, %v1636, %v1647
      %v1649 = vsel %vm267, %v1645, %v1646
      %v1650 = vsel %vm269, %v1640, %v1649
      %1655 = vst [vmem:[#allocation2 + $0x90] sm:$0xff] %v1648
      %1656 = vst.msk [vmem:[#allocation2 + $0x98] sm:$0xf] %vm278, %v1638
      %1657 = vst [vmem:[#allocation2 + $0x9c] sm:$0xff] %v1650
      %1658 = vst.msk [vmem:[#allocation2 + $0xa4] sm:$0xf] %vm278, %v1642
      %v1659 = vld [vmem:[#allocation3 + $0x4] sm:$0xff]
      %v1660 = vld [vmem:[#allocation3 + $0xc] sm:$0xf]
      %v1661 = vld [vmem:[#allocation3 + $0x14] sm:$0xff]
      %v1662 = vld [vmem:[#allocation3 + $0x1c] sm:$0xf]
      %1667 = vrot.lane.b32.xlu0 %v1659, 110
      %v1668 = vpop.permute.xlu0 %1667
      %1669 = vrot.lane.b32.xlu0 %v1660, 110
      %v1670 = vpop.permute.xlu0 %1669
      %1671 = vrot.lane.b32.xlu0 %v1661, 110
      %v1672 = vpop.permute.xlu0 %1671
      %1673 = vrot.lane.b32.xlu0 %v1662, 110
      %v1674 = vpop.permute.xlu0 %1673
      %v1675 = vrot.slane %v1668, 4
      %v1676 = vrot.slane %v1670, 4
      %v1677 = vrot.slane %v1672, 4
      %v1678 = vrot.slane %v1674, 4
      %v1679 = vsel %vm267, %v1675, %v1676
      %v1680 = vsel %vm303, %v1668, %v1679
      %v1681 = vsel %vm267, %v1677, %v1678
      %v1682 = vsel %vm303, %v1672, %v1681
      %1687 = vst [vmem:[#allocation2 + $0xa8] sm:$0xff] %v1680
      %1688 = vst.msk [vmem:[#allocation2 + $0xb0] sm:$0xf] %vm278, %v1670
      %1689 = vst [vmem:[#allocation2 + $0xb4] sm:$0xff] %v1682
      %1690 = vst.msk [vmem:[#allocation2 + $0xbc] sm:$0xf] %vm278, %v1674
      %v1691 = vld [vmem:[#allocation3 + $0x4] sm:$0xff]
      %v1692 = vld [vmem:[#allocation3 + $0xc] sm:$0xf]
      %v1693 = vld [vmem:[#allocation3 + $0x14] sm:$0xff]
      %v1694 = vld [vmem:[#allocation3 + $0x1c] sm:$0xf]
      %1699 = vrot.lane.b32.xlu0 %v1691, 109
      %v1700 = vpop.permute.xlu0 %1699
      %1701 = vrot.lane.b32.xlu0 %v1692, 109
      %v1702 = vpop.permute.xlu0 %1701
      %1703 = vrot.lane.b32.xlu0 %v1693, 109
      %v1704 = vpop.permute.xlu0 %1703
      %1705 = vrot.lane.b32.xlu0 %v1694, 109
      %v1706 = vpop.permute.xlu0 %1705
      %v1707 = vrot.slane %v1700, 4
      %v1708 = vrot.slane %v1702, 4
      %v1709 = vrot.slane %v1704, 4
      %v1710 = vrot.slane %v1706, 4
      %v1711 = vsel %vm267, %v1707, %v1708
      %v1712 = vsel %vm336, %v1700, %v1711
      %v1713 = vsel %vm267, %v1709, %v1710
      %v1714 = vsel %vm336, %v1704, %v1713
      %1719 = vst [vmem:[#allocation2 + $0xc0] sm:$0xff] %v1712
      %1720 = vst.msk [vmem:[#allocation2 + $0xc8] sm:$0xf] %vm278, %v1702
      %1721 = vst [vmem:[#allocation2 + $0xcc] sm:$0xff] %v1714
      %1722 = vst.msk [vmem:[#allocation2 + $0xd4] sm:$0xf] %vm278, %v1706
      %v1723 = vld [vmem:[%s3] sm:$0xff]
      %v1724 = vld [vmem:[#allocation2] sm:$0xff]
      %v1725 = vld [vmem:[#allocation2 + $0x8] sm:$0xf]
      %v1726 = vld [vmem:[#allocation2 + $0xc] sm:$0xff]
      %v1727 = vld [vmem:[#allocation2 + $0x14] sm:$0xf]
      %v1728 = vld [vmem:[#allocation2 + $0x18] sm:$0xff]
      %v1729 = vld [vmem:[#allocation2 + $0x20] sm:$0xf]
      %v1730 = vld [vmem:[#allocation2 + $0x24] sm:$0xff]
      %v1731 = vld [vmem:[#allocation2 + $0x2c] sm:$0xf]
      %v1732 = vld [vmem:[#allocation2 + $0x30] sm:$0xff]
      %v1733 = vld [vmem:[#allocation2 + $0x38] sm:$0xf]
      %v1734 = vld [vmem:[#allocation2 + $0x3c] sm:$0xff]
      %v1735 = vld [vmem:[#allocation2 + $0x44] sm:$0xf]
      %v1736 = vld [vmem:[#allocation2 + $0x48] sm:$0xff]
      %v1737 = vld [vmem:[#allocation2 + $0x50] sm:$0xf]
      %v1738 = vld [vmem:[#allocation2 + $0x54] sm:$0xff]
      %v1739 = vld [vmem:[#allocation2 + $0x5c] sm:$0xf]
      %v1740 = vld [vmem:[#allocation2 + $0x60] sm:$0xff]
      %v1741 = vld [vmem:[#allocation2 + $0x68] sm:$0xf]
      %v1742 = vld [vmem:[#allocation2 + $0x6c] sm:$0xff]
      %v1743 = vld [vmem:[#allocation2 + $0x74] sm:$0xf]
      %v1744 = vld [vmem:[#allocation2 + $0x78] sm:$0xff]
      %v1745 = vld [vmem:[#allocation2 + $0x80] sm:$0xf]
      %v1746 = vld [vmem:[#allocation2 + $0x84] sm:$0xff]
      %v1747 = vld [vmem:[#allocation2 + $0x8c] sm:$0xf]
      %v1748 = vld [vmem:[#allocation2 + $0x90] sm:$0xff]
      %v1749 = vld [vmem:[#allocation2 + $0x98] sm:$0xf]
      %v1750 = vld [vmem:[#allocation2 + $0x9c] sm:$0xff]
      %v1751 = vld [vmem:[#allocation2 + $0xa4] sm:$0xf]
      %v1752 = vld [vmem:[#allocation2 + $0xa8] sm:$0xff]
      %v1753 = vld [vmem:[#allocation2 + $0xb0] sm:$0xf]
      %v1754 = vld [vmem:[#allocation2 + $0xb4] sm:$0xff]
      %v1755 = vld [vmem:[#allocation2 + $0xbc] sm:$0xf]
      %v1756 = vld [vmem:[#allocation2 + $0xc0] sm:$0xff]
      %v1757 = vld [vmem:[#allocation2 + $0xc8] sm:$0xf]
      %v1758 = vld [vmem:[#allocation2 + $0xcc] sm:$0xff]
      %v1759 = vld [vmem:[#allocation2 + $0xd4] sm:$0xf]
      %v1761 = vunpack.c.l.b16 %v1723
      %v1762 = vunpack.c.h.b16 %v1723
      %v1763 = vpack.c.b16 %v1761, %v1761
      %v1764 = vpack.c.b16 %v1762, %v1762
      %v1802 = vunpack.c.l.b16 %v1724
      %v1803 = vunpack.c.h.b16 %v1724
      %v1804 = vunpack.c.l.b16 %v1725
      %v1805 = vunpack.c.l.b16 %v1726
      %v1806 = vunpack.c.h.b16 %v1726
      %v1807 = vunpack.c.l.b16 %v1727
      %v1808 = vunpack.c.l.b16 %v1728
      %v1809 = vunpack.c.h.b16 %v1728
      %v1810 = vunpack.c.l.b16 %v1729
      %v1811 = vunpack.c.l.b16 %v1730
      %v1812 = vunpack.c.h.b16 %v1730
      %v1813 = vunpack.c.l.b16 %v1731
      %v1814 = vunpack.c.l.b16 %v1732
      %v1815 = vunpack.c.h.b16 %v1732
      %v1816 = vunpack.c.l.b16 %v1733
      %v1817 = vunpack.c.l.b16 %v1734
      %v1818 = vunpack.c.h.b16 %v1734
      %v1819 = vunpack.c.l.b16 %v1735
      %v1820 = vunpack.c.l.b16 %v1736
      %v1821 = vunpack.c.h.b16 %v1736
      %v1822 = vunpack.c.l.b16 %v1737
      %v1823 = vunpack.c.l.b16 %v1738
      %v1824 = vunpack.c.h.b16 %v1738
      %v1825 = vunpack.c.l.b16 %v1739
      %v1826 = vunpack.c.l.b16 %v1740
      %v1827 = vunpack.c.h.b16 %v1740
      %v1828 = vunpack.c.l.b16 %v1741
      %v1829 = vunpack.c.l.b16 %v1742
      %v1830 = vunpack.c.h.b16 %v1742
      %v1831 = vunpack.c.l.b16 %v1743
      %v1832 = vunpack.c.l.b16 %v1744
      %v1833 = vunpack.c.h.b16 %v1744
      %v1834 = vunpack.c.l.b16 %v1745
      %v1835 = vunpack.c.l.b16 %v1746
      %v1836 = vunpack.c.h.b16 %v1746
      %v1837 = vunpack.c.l.b16 %v1747
      %v1838 = vunpack.c.l.b16 %v1748
      %v1839 = vunpack.c.h.b16 %v1748
      %v1840 = vunpack.c.l.b16 %v1749
      %v1841 = vunpack.c.l.b16 %v1750
      %v1842 = vunpack.c.h.b16 %v1750
      %v1843 = vunpack.c.l.b16 %v1751
      %v1844 = vunpack.c.l.b16 %v1752
      %v1845 = vunpack.c.h.b16 %v1752
      %v1846 = vunpack.c.l.b16 %v1753
      %v1847 = vunpack.c.l.b16 %v1754
      %v1848 = vunpack.c.h.b16 %v1754
      %v1849 = vunpack.c.l.b16 %v1755
      %v1850 = vunpack.c.l.b16 %v1756
      %v1851 = vunpack.c.h.b16 %v1756
      %v1852 = vunpack.c.l.b16 %v1757
      %v1853 = vunpack.c.l.b16 %v1758
      %v1854 = vunpack.c.h.b16 %v1758
      %v1855 = vunpack.c.l.b16 %v1759
      %v1856 = vpack.c.b16 %v1805, %v1802
      %v1857 = vpack.c.b16 %v1806, %v1803
      %v1858 = vpack.c.b16 %v1807, %v1804
      %v1859 = vpack.c.b16 %v1811, %v1808
      %v1860 = vpack.c.b16 %v1812, %v1809
      %v1861 = vpack.c.b16 %v1813, %v1810
      %v1862 = vpack.c.b16 %v1817, %v1814
      %v1863 = vpack.c.b16 %v1818, %v1815
      %v1864 = vpack.c.b16 %v1819, %v1816
      %v1865 = vpack.c.b16 %v1823, %v1820
      %v1866 = vpack.c.b16 %v1824, %v1821
      %v1867 = vpack.c.b16 %v1825, %v1822
      %v1868 = vpack.c.b16 %v1829, %v1826
      %v1869 = vpack.c.b16 %v1830, %v1827
      %v1870 = vpack.c.b16 %v1831, %v1828
      %v1871 = vpack.c.b16 %v1835, %v1832
      %v1872 = vpack.c.b16 %v1836, %v1833
      %v1873 = vpack.c.b16 %v1837, %v1834
      %v1874 = vpack.c.b16 %v1841, %v1838
      %v1875 = vpack.c.b16 %v1842, %v1839
      %v1876 = vpack.c.b16 %v1843, %v1840
      %v1877 = vpack.c.b16 %v1847, %v1844
      %v1878 = vpack.c.b16 %v1848, %v1845
      %v1879 = vpack.c.b16 %v1849, %v1846
      %v1880 = vpack.c.b16 %v1853, %v1850
      %v1881 = vpack.c.b16 %v1854, %v1851
      %v1882 = vpack.c.b16 %v1855, %v1852
      %vm1910 = vcmask 130048
      %v1912 = vsel %vm1910, %v1764, 0
      %1914 = vmatpush.bf16.msra.mxu0 %v1877
      %1915 = vmatpush.bf16.msra.mxu0 %v1874
      %1916 = vmatpush.bf16.msra.mxu0 %v1871
      %1917 = vmatpush.bf16.msra.mxu0 %v1868
      %1918 = vmatpush.bf16.msra.mxu0 %v1865
      %1919 = vmatpush.bf16.msra.mxu0 %v1862
      %1920 = vmatpush.bf16.msra.mxu0 %v1859
      %1921 = vmatpush.bf16.msra.mxu0 %v1856
      %1922 = vmatmul.bf16.gmra.mxu0 %v1763
      %v1923 = vpop.f32.mrf.mxu0
      %v1924 = vadd.f32 0.0, %v1923
      %v1925 = vpop.f32.mrf.mxu0
      %1926 = vdwg.mxu0
      %1927 = vmatpush.bf16.msra.mxu0 0
      %1928 = vmatpush.bf16.msra.mxu0 0
      %1929 = vmatpush.bf16.msra.mxu0 0
      %1930 = vmatpush.bf16.msra.mxu0 0
      %1931 = vmatpush.bf16.msra.mxu0 0
      %1932 = vmatpush.bf16.msra.mxu0 0
      %1933 = vmatpush.bf16.msra.mxu0 0
      %1934 = vmatpush.bf16.msra.mxu0 %v1880
      %1935 = vmatmul.bf16.gmra.mxu0 %v1912
      %v1936 = vpop.f32.mrf.mxu0
      %v1937 = vadd.f32 %v1924, %v1936
      %v1938 = vpop.f32.mrf.mxu0
      %1939 = vdwg.mxu0
      %1940 = vmatpush.bf16.msra.mxu0 %v1878
      %1941 = vmatpush.bf16.msra.mxu0 %v1875
      %1942 = vmatpush.bf16.msra.mxu0 %v1872
      %1943 = vmatpush.bf16.msra.mxu0 %v1869
      %1944 = vmatpush.bf16.msra.mxu0 %v1866
      %1945 = vmatpush.bf16.msra.mxu0 %v1863
      %1946 = vmatpush.bf16.msra.mxu0 %v1860
      %1947 = vmatpush.bf16.msra.mxu0 %v1857
      %1948 = vmatmul.bf16.gmra.mxu0 %v1763
      %v1949 = vpop.f32.mrf.mxu0
      %v1950 = vadd.f32 0.0, %v1949
      %v1951 = vpop.f32.mrf.mxu0
      %1952 = vdwg.mxu0
      %1953 = vmatpush.bf16.msra.mxu0 0
      %1954 = vmatpush.bf16.msra.mxu0 0
      %1955 = vmatpush.bf16.msra.mxu0 0
      %1956 = vmatpush.bf16.msra.mxu0 0
      %1957 = vmatpush.bf16.msra.mxu0 0
      %1958 = vmatpush.bf16.msra.mxu0 0
      %1959 = vmatpush.bf16.msra.mxu0 0
      %1960 = vmatpush.bf16.msra.mxu0 %v1881
      %1961 = vmatmul.bf16.gmra.mxu0 %v1912
      %v1962 = vpop.f32.mrf.mxu0
      %v1963 = vadd.f32 %v1950, %v1962
      %v1964 = vpop.f32.mrf.mxu0
      %1965 = vdwg.mxu0
      %1966 = vmatpush.bf16.msra.mxu0 %v1879
      %1967 = vmatpush.bf16.msra.mxu0 %v1876
      %1968 = vmatpush.bf16.msra.mxu0 %v1873
      %1969 = vmatpush.bf16.msra.mxu0 %v1870
      %1970 = vmatpush.bf16.msra.mxu0 %v1867
      %1971 = vmatpush.bf16.msra.mxu0 %v1864
      %1972 = vmatpush.bf16.msra.mxu0 %v1861
      %1973 = vmatpush.bf16.msra.mxu0 %v1858
      %1974 = vmatmul.bf16.gmra.mxu0 %v1763
      %v1975 = vpop.f32.mrf.mxu0
      %v1976 = vadd.f32 0.0, %v1975
      %v1977 = vpop.f32.mrf.mxu0
      %1978 = vdwg.mxu0
      %1979 = vmatpush.bf16.msra.mxu0 0
      %1980 = vmatpush.bf16.msra.mxu0 0
      %1981 = vmatpush.bf16.msra.mxu0 0
      %1982 = vmatpush.bf16.msra.mxu0 0
      %1983 = vmatpush.bf16.msra.mxu0 0
      %1984 = vmatpush.bf16.msra.mxu0 0
      %1985 = vmatpush.bf16.msra.mxu0 0
      %1986 = vmatpush.bf16.msra.mxu0 %v1882
      %1987 = vmatmul.bf16.gmra.mxu0 %v1912
      %v1988 = vpop.f32.mrf.mxu0
      %v1989 = vadd.f32 %v1976, %v1988
      %v1990 = vpop.f32.mrf.mxu0
      %1991 = vdwg.mxu0
      %v1992 = vmul.f32 %v1937, %v1344
      %v1993 = vmul.f32 %v1963, %v1345
      %v1994 = vmul.f32 %v1989, %v1346
      %v1995 = vadd.f32 %v1992, %v1993
      %v1996 = vsel %vm1357, %v1994, 0.0
      %v1997 = vadd.f32 %v1995, %v1996
      %1998 = vadd.xlane.f32.xlu0 %v1997
      %v1999 = vpop.xlane.xlu0 %1998
      %v2000 = vmul.f32 %v1999, 0.00390625
      %v2001 = vsub.f32 %v1937, %v2000
      %v2002 = vsub.f32 %v1963, %v2000
      %v2003 = vsub.f32 %v1989, %v2000
      %v2004 = vmul.f32 %v2001, %v1344
      %v2005 = vmul.f32 %v2002, %v1345
      %v2006 = vmul.f32 %v2003, %v1346
      %v2007 = vmul.f32 %v2004, %v2004
      %v2008 = vmul.f32 %v2005, %v2005
      %v2009 = vmul.f32 %v2006, %v2006
      %v2010 = vadd.f32 %v2007, %v2008
      %v2011 = vsel %vm1357, %v2009, 0.0
      %v2012 = vadd.f32 %v2010, %v2011
      %2013 = vadd.xlane.f32.xlu0 %v2012
      %v2014 = vpop.xlane.xlu0 %2013
      %v2015 = vmul.f32 %v2014, 0.00390625
      %v2016 = vadd.f32 %v2015, 1e-05
      %v2017 = vrsqrt.pop %v2016
      %v2018 = vmul.f32 %v2017, %v2016
      %v2019 = vmul.f32 %v2018, %v2017
      %v2020 = vmul.f32 0.5, %v2019
      %v2021 = vsub.f32 1.5, %v2020
      %v2022 = vmul.f32 %v2017, %v2021
      %vm2023 = vweird.f32 %v2016
      %vm2024 = vweird.f32 %v2017
      %vm2025 = vmor %vm2023, %vm2024
      %v2026 = vsel %vm2025, %v2017, %v2022
      %v2027 = vmul.f32 %v2004, %v2026
      %v2028 = vmul.f32 %v2005, %v2026
      %v2029 = vmul.f32 %v2006, %v2026
      %v2030 = vmax.f32 %v2027, 0.0
      %v2031 = vmax.f32 %v2028, 0.0
      %v2032 = vmax.f32 %v2029, 0.0
      %v2033 = vpack.c.bf16 %v2031, %v2030
      %v2034 = vpack.c.bf16 %v2032, %v2032
      %2035 = vst [vmem:[%s244] sm:$0xff] %v2033
      %2036 = vst.msk [vmem:[%s244 + $0x8] sm:$0xf] %vm278, %v2034
      %p2037 = scmp.lt.s32.totalorder %s16, 1
      %s2038 = scalar_select %p2037, %s16, 1
      %s2039 = smul.addr %s2038, 3
      %s2040 = smul.addr %s2039, 4
      %s2041 = scalar_lea.vmem %s5, %s2040
      // Predicated region
      $region41: #{unet_forward.6} parent=39 // pred_check
        %p2042 = pneg %p149
      $region42: #{unet_forward.6} parent=39 // pred_check_branch
        %2044 = sbr.rel (%p2042) target = $region44
      $region43: #{unet_forward.6} parent=39 // pred_region
        _
      $region44: #{unet_forward.6} parent=39 // pred_fallthru
        _
    $region40: #{unet_forward.6} parent=5 // pred_fallthru
      _
    %p2045 = scmp.le.s32.totalorder 2, %s11
    // Predicated region
    $region45: #{unet_forward.6} parent=5 // pred_check
      %p2046 = pneg %p2045
    $region46: #{unet_forward.6} parent=5 // pred_check_branch
      %2048 = sbr.rel (%p2046) target = $region48
    $region47: #{unet_forward.6} parent=5 // pred_region
      %s2049 = ssub.s32 %s11, 2
      // Predicated region
      $region49: #{unet_forward.6} parent=47 // pred_check
        %p2050 = pneg %p155
      $region50: #{unet_forward.6} parent=47 // pred_check_branch
        %2052 = sbr.rel (%p2050) target = $region52
      $region51: #{unet_forward.6} parent=47 // pred_region
        %p2053 = scmp.lt.s32.totalorder %s17, 1
        %s2054 = scalar_select %p2053, %s17, 1
        %s2055 = smul.addr %s2054, 3
        %s2056 = smul.addr %s2055, 4
        %s2057 = scalar_lea.vmem %s5, %s2056
      $region52: #{unet_forward.6} parent=47 // pred_fallthru
        _
    $region48: #{unet_forward.6} parent=5 // pred_fallthru
      _
  $region6: #{unet_forward.6} parent=0 // loop_footer
    %s15 = sadd.s32 1, %s11
  $region7: #{unet_forward.6} parent=0 // loop_footer_branch
    %10 = sbr.rel target = $region3
  $region8: #{unet_forward.6} parent=0 // loop_exit
    _

// kernel: unet_forward.7
$region0: #{unet_forward.7}
  #allocation0 [shape = 'u32[]', space=smem, size = 0x4, offset = 0x4, fixed_abs, tag = 'smem constant byte address 0x4 - core index']
  #allocation1 [shape = 'u32[72,128]{1,0:T(1,128)}', space=vmem, size = 0x9000, scoped, tag = 'internal scratch']
  #allocation2 [shape = 'bf16[144,1156]{1,0:T(8,128)(2,1)}', space=vmem, size = 0x5a000, scoped, tag = 'scratch operand']
  #allocation3 [shape = 'bf16[8,1408]{1,0:T(8,128)(2,1)}', space=vmem, size = 0x5800, scoped, tag = 'scratch operand']
  #allocation4 [shape = 'f32[1,1]{1,0:T(1,128)S(1)}', space=vmem, size = 0x200, scoped, tag = 'scoped memory for unet_forward.7']
  %s0 = inlined_call_operand.vmem [shape: bf16[2,8,1292], index: 0, kind: input, shape index: {}]
  %s1 = inlined_call_operand.vmem [shape: bf16[2,8,1292], index: 1, kind: input, shape index: {}]
  %s2 = inlined_call_operand.vmem [shape: bf16[8,144], index: 2, kind: input, shape index: {}]
  %s3 = inlined_call_operand.vmem [shape: bf16[8,72], index: 3, kind: input, shape index: {}]
  %s4 = inlined_call_operand.vmem [shape: f32[1,1156], index: 4, kind: input, shape index: {}]
  %s5 = inlined_call_operand.vmem [shape: bf16[1,8], index: 5, kind: input, shape index: {}]
  %s6 = inlined_call_operand.<no memory space> [shape: f32[1,1], index: 6, kind: input, shape index: {}]
  %s7 = inlined_call_operand.vmem [shape: f32[2,1,1156], index: 7, kind: output, shape index: {}]
  %s8 = sld [smem:[#allocation0]]
  $region61: #{unet_forward.7} parent=0
    _
  %s10 = ssub.s32 1, %s8
  %s11 = scalar_select 0, %s10, %s8
  %v12 = vstv %s6
  %13 = vst [vmem:[#allocation4] sm:$0x1] %v12
  loop: start=0, step=1, limit=4
  $region2: #{unet_forward.7} parent=0 // loop_pre_header
    _
  $region3: #{unet_forward.7} parent=0 // loop_header
    %s15 = sphi 0, %s19
    %p16 = scmp.ge.s32.totalorder %s15, 4
    %s25 = sphi 0, %s27
    %s28 = sphi 0, %s25
    %s29 = sphi 0, %s28
    %s45 = sphi 0, %s29
    %s51 = sphi 0, %s53
    %s54 = sphi 0, %s51
    %s55 = sphi 0, %s54
    %s71 = sphi 0, %s55
    %s75 = sphi 0, %s75
    %s77 = sphi 0, %s75
    %s78 = sphi 0, %s77
    %s92 = sphi 0, %s78
    %s96 = sphi 0, %s96
    %s98 = sphi 0, %s96
    %s99 = sphi 0, %s98
    %s113 = sphi 0, %s99
    %s117 = sphi 0, %s117
    %s119 = sphi 0, %s117
    %s120 = sphi 0, %s119
    %s134 = sphi 0, %s120
    %s138 = sphi 0, %s138
    %s140 = sphi 0, %s138
    %s141 = sphi 0, %s140
    %s155 = sphi 0, %s141
    %s159 = sphi 0, %s159
    %s161 = sphi 0, %s159
    %s162 = sphi 0, %s161
    %s176 = sphi 0, %s162
    %s182 = sphi 0, %s184
    %s185 = sphi 0, %s182
    %s186 = sphi 0, %s185
    %s202 = sphi 0, %s186
  $region4: #{unet_forward.7} parent=0 // loop_header_branch
    %18 = sbr.rel (%p16) target = $region8
  $region5: #{unet_forward.7} parent=0 // loop_body
    %s20 = ssub.s32 %s15, 1
    %s21 = ssub.s32 %s15, 2
    %s22 = sadd.s32 %s15, 1
    %s23 = ssub.s32 %s15, %s22
    %p24 = scmp.eq.s32.totalorder %s23, 0
    %s26 = sadd.s32 %s25, 1
    %s27 = scalar_select %p24, %s25, %s26
    %p30 = pneg %p24
    %p31 = scmp.eq.s32.totalorder %s15, 1
    %p32 = por %p30, %p31
    %p33 = scmp.ne.s32.totalorder %s25, %s28
    %p34 = scmp.eq.s32.totalorder %s15, 0
    %p35 = por %p33, %p34
    %p36 = scmp.ne.s32.totalorder %s25, %s28
    %p37 = scmp.eq.s32.totalorder %s20, 1
    %p38 = por %p36, %p37
    %p39 = scmp.ne.s32.totalorder %s28, %s29
    %p40 = scmp.eq.s32.totalorder %s20, 0
    %p41 = por %p39, %p40
    %p42 = scmp.ne.s32.totalorder %s28, %s29
    %p43 = scmp.eq.s32.totalorder %s21, 1
    %p44 = por %p42, %p43
    %p46 = scmp.ne.s32.totalorder %s29, %s45
    %p47 = scmp.eq.s32.totalorder %s21, 0
    %p48 = por %p46, %p47
    %s49 = ssub.s32 %s15, %s22
    %p50 = scmp.eq.s32.totalorder %s49, 0
    %s52 = sadd.s32 %s51, 1
    %s53 = scalar_select %p50, %s51, %s52
    %p56 = pneg %p50
    %p57 = scmp.eq.s32.totalorder %s15, 1
    %p58 = por %p56, %p57
    %p59 = scmp.ne.s32.totalorder %s51, %s54
    %p60 = scmp.eq.s32.totalorder %s15, 0
    %p61 = por %p59, %p60
    %p62 = scmp.ne.s32.totalorder %s51, %s54
    %p63 = scmp.eq.s32.totalorder %s20, 1
    %p64 = por %p62, %p63
    %p65 = scmp.ne.s32.totalorder %s54, %s55
    %p66 = scmp.eq.s32.totalorder %s20, 0
    %p67 = por %p65, %p66
    %p68 = scmp.ne.s32.totalorder %s54, %s55
    %p69 = scmp.eq.s32.totalorder %s21, 1
    %p70 = por %p68, %p69
    %p72 = scmp.ne.s32.totalorder %s55, %s71
    %p73 = scmp.eq.s32.totalorder %s21, 0
    %p74 = por %p72, %p73
    %s76 = sadd.s32 %s75, 1
    %p79 = scmp.eq.s32.totalorder %s15, 1
    %p80 = scmp.ne.s32.totalorder %s75, %s77
    %p81 = scmp.eq.s32.totalorder %s15, 0
    %p82 = por %p80, %p81
    %p83 = scmp.ne.s32.totalorder %s75, %s77
    %p84 = scmp.eq.s32.totalorder %s20, 1
    %p85 = por %p83, %p84
    %p86 = scmp.ne.s32.totalorder %s77, %s78
    %p87 = scmp.eq.s32.totalorder %s20, 0
    %p88 = por %p86, %p87
    %p89 = scmp.ne.s32.totalorder %s77, %s78
    %p90 = scmp.eq.s32.totalorder %s21, 1
    %p91 = por %p89, %p90
    %p93 = scmp.ne.s32.totalorder %s78, %s92
    %p94 = scmp.eq.s32.totalorder %s21, 0
    %p95 = por %p93, %p94
    %s97 = sadd.s32 %s96, 1
    %p100 = scmp.eq.s32.totalorder %s15, 1
    %p101 = scmp.ne.s32.totalorder %s96, %s98
    %p102 = scmp.eq.s32.totalorder %s15, 0
    %p103 = por %p101, %p102
    %p104 = scmp.ne.s32.totalorder %s96, %s98
    %p105 = scmp.eq.s32.totalorder %s20, 1
    %p106 = por %p104, %p105
    %p107 = scmp.ne.s32.totalorder %s98, %s99
    %p108 = scmp.eq.s32.totalorder %s20, 0
    %p109 = por %p107, %p108
    %p110 = scmp.ne.s32.totalorder %s98, %s99
    %p111 = scmp.eq.s32.totalorder %s21, 1
    %p112 = por %p110, %p111
    %p114 = scmp.ne.s32.totalorder %s99, %s113
    %p115 = scmp.eq.s32.totalorder %s21, 0
    %p116 = por %p114, %p115
    %s118 = sadd.s32 %s117, 1
    %p121 = scmp.eq.s32.totalorder %s15, 1
    %p122 = scmp.ne.s32.totalorder %s117, %s119
    %p123 = scmp.eq.s32.totalorder %s15, 0
    %p124 = por %p122, %p123
    %p125 = scmp.ne.s32.totalorder %s117, %s119
    %p126 = scmp.eq.s32.totalorder %s20, 1
    %p127 = por %p125, %p126
    %p128 = scmp.ne.s32.totalorder %s119, %s120
    %p129 = scmp.eq.s32.totalorder %s20, 0
    %p130 = por %p128, %p129
    %p131 = scmp.ne.s32.totalorder %s119, %s120
    %p132 = scmp.eq.s32.totalorder %s21, 1
    %p133 = por %p131, %p132
    %p135 = scmp.ne.s32.totalorder %s120, %s134
    %p136 = scmp.eq.s32.totalorder %s21, 0
    %p137 = por %p135, %p136
    %s139 = sadd.s32 %s138, 1
    %p142 = scmp.eq.s32.totalorder %s15, 1
    %p143 = scmp.ne.s32.totalorder %s138, %s140
    %p144 = scmp.eq.s32.totalorder %s15, 0
    %p145 = por %p143, %p144
    %p146 = scmp.ne.s32.totalorder %s138, %s140
    %p147 = scmp.eq.s32.totalorder %s20, 1
    %p148 = por %p146, %p147
    %p149 = scmp.ne.s32.totalorder %s140, %s141
    %p150 = scmp.eq.s32.totalorder %s20, 0
    %p151 = por %p149, %p150
    %p152 = scmp.ne.s32.totalorder %s140, %s141
    %p153 = scmp.eq.s32.totalorder %s21, 1
    %p154 = por %p152, %p153
    %p156 = scmp.ne.s32.totalorder %s141, %s155
    %p157 = scmp.eq.s32.totalorder %s21, 0
    %p158 = por %p156, %p157
    %s160 = sadd.s32 %s159, 1
    %p163 = scmp.eq.s32.totalorder %s15, 1
    %p164 = scmp.ne.s32.totalorder %s159, %s161
    %p165 = scmp.eq.s32.totalorder %s15, 0
    %p166 = por %p164, %p165
    %p167 = scmp.ne.s32.totalorder %s159, %s161
    %p168 = scmp.eq.s32.totalorder %s20, 1
    %p169 = por %p167, %p168
    %p170 = scmp.ne.s32.totalorder %s161, %s162
    %p171 = scmp.eq.s32.totalorder %s20, 0
    %p172 = por %p170, %p171
    %p173 = scmp.ne.s32.totalorder %s161, %s162
    %p174 = scmp.eq.s32.totalorder %s21, 1
    %p175 = por %p173, %p174
    %p177 = scmp.ne.s32.totalorder %s162, %s176
    %p178 = scmp.eq.s32.totalorder %s21, 0
    %p179 = por %p177, %p178
    %s180 = ssub.s32 %s15, %s22
    %p181 = scmp.eq.s32.totalorder %s180, 0
    %s183 = sadd.s32 %s182, 1
    %s184 = scalar_select %p181, %s182, %s183
    %p187 = pneg %p181
    %p188 = scmp.eq.s32.totalorder %s15, 1
    %p189 = por %p187, %p188
    %p190 = scmp.ne.s32.totalorder %s182, %s185
    %p191 = scmp.eq.s32.totalorder %s15, 0
    %p192 = por %p190, %p191
    %p193 = scmp.ne.s32.totalorder %s182, %s185
    %p194 = scmp.eq.s32.totalorder %s20, 1
    %p195 = por %p193, %p194
    %p196 = scmp.ne.s32.totalorder %s185, %s186
    %p197 = scmp.eq.s32.totalorder %s20, 0
    %p198 = por %p196, %p197
    %p199 = scmp.ne.s32.totalorder %s185, %s186
    %p200 = scmp.eq.s32.totalorder %s21, 1
    %p201 = por %p199, %p200
    %p203 = scmp.ne.s32.totalorder %s186, %s202
    %p204 = scmp.eq.s32.totalorder %s21, 0
    %p205 = por %p203, %p204
    %p206 = scmp.le.s32.totalorder 1, %s15
    %p207 = scmp.lt.s32.totalorder %s15, 3
    %p208 = pnand %p206, %p207
    %p209 = pneg %p208
    // Predicated region
    $region9: #{unet_forward.7} parent=5 // pred_check
      _
    $region10: #{unet_forward.7} parent=5 // pred_check_branch
      %211 = sbr.rel (%p208) target = $region12
    $region11: #{unet_forward.7} parent=5 // pred_region
      %s212 = ssub.s32 %s15, 1
      // Predicated region
      $region13: #{unet_forward.7} parent=11 // pred_check
        %p213 = pneg %p88
      $region14: #{unet_forward.7} parent=11 // pred_check_branch
        %215 = sbr.rel (%p213) target = $region16
      $region15: #{unet_forward.7} parent=11 // pred_region
        _
      $region16: #{unet_forward.7} parent=11 // pred_fallthru
        _
      // Predicated region
      $region17: #{unet_forward.7} parent=11 // pred_check
        %p216 = pneg %p109
      $region18: #{unet_forward.7} parent=11 // pred_check_branch
        %218 = sbr.rel (%p216) target = $region20
      $region19: #{unet_forward.7} parent=11 // pred_region
        _
      $region20: #{unet_forward.7} parent=11 // pred_fallthru
        _
      // Predicated region
      $region21: #{unet_forward.7} parent=11 // pred_check
        %p219 = pneg %p130
      $region22: #{unet_forward.7} parent=11 // pred_check_branch
        %221 = sbr.rel (%p219) target = $region24
      $region23: #{unet_forward.7} parent=11 // pred_region
        _
      $region24: #{unet_forward.7} parent=11 // pred_fallthru
        _
      // Predicated region
      $region25: #{unet_forward.7} parent=11 // pred_check
        %p222 = pneg %p151
      $region26: #{unet_forward.7} parent=11 // pred_check_branch
        %224 = sbr.rel (%p222) target = $region28
      $region27: #{unet_forward.7} parent=11 // pred_region
        _
      $region28: #{unet_forward.7} parent=11 // pred_fallthru
        _
      // Predicated region
      $region29: #{unet_forward.7} parent=11 // pred_check
        %p225 = pneg %p172
      $region30: #{unet_forward.7} parent=11 // pred_check_branch
        %227 = sbr.rel (%p225) target = $region32
      $region31: #{unet_forward.7} parent=11 // pred_region
        _
      $region32: #{unet_forward.7} parent=11 // pred_fallthru
        _
    $region12: #{unet_forward.7} parent=5 // pred_fallthru
      _
    %p228 = scmp.lt.s32.totalorder %s15, 2
    // Predicated region
    $region33: #{unet_forward.7} parent=5 // pred_check
      %p229 = pneg %p228
    $region34: #{unet_forward.7} parent=5 // pred_check_branch
      %231 = sbr.rel (%p229) target = $region36
    $region35: #{unet_forward.7} parent=5 // pred_region
      // Predicated region
      $region37: #{unet_forward.7} parent=35 // pred_check
        %p232 = pneg %p35
      $region38: #{unet_forward.7} parent=35 // pred_check_branch
        %234 = sbr.rel (%p232) target = $region40
      $region39: #{unet_forward.7} parent=35 // pred_region
        %p235 = scmp.lt.s32.totalorder %s15, 1
        %s236 = scalar_select %p235, %s15, 1
        %s237 = smul.addr %s236, 11
        %s238 = smul.addr %s237, 4
        %s239 = scalar_lea.vmem %s0, %s238
      $region40: #{unet_forward.7} parent=35 // pred_fallthru
        _
      // Predicated region
      $region41: #{unet_forward.7} parent=35 // pred_check
        %p240 = pneg %p61
      $region42: #{unet_forward.7} parent=35 // pred_check_branch
        %242 = sbr.rel (%p240) target = $region44
      $region43: #{unet_forward.7} parent=35 // pred_region
        %p243 = scmp.lt.s32.totalorder %s15, 1
        %s244 = scalar_select %p243, %s15, 1
        %s245 = smul.addr %s244, 11
        %s246 = smul.addr %s245, 4
        %s247 = scalar_lea.vmem %s1, %s246
      $region44: #{unet_forward.7} parent=35 // pred_fallthru
        _
    $region36: #{unet_forward.7} parent=5 // pred_fallthru
      _
    %p248 = scmp.le.s32.totalorder 1, %s15
    %p249 = scmp.lt.s32.totalorder %s15, 3
    %p250 = pnand %p248, %p249
    %p251 = pneg %p250
    // Predicated region
    $region45: #{unet_forward.7} parent=5 // pred_check
      _
    $region46: #{unet_forward.7} parent=5 // pred_check_branch
      %253 = sbr.rel (%p250) target = $region48
    $region47: #{unet_forward.7} parent=5 // pred_region
      %s254 = ssub.s32 %s15, 1
      %p255 = scmp.lt.s32.totalorder %s20, 1
      %s256 = scalar_select %p255, %s20, 1
      %s257 = smul.addr %s256, 11
      %s258 = smul.addr %s257, 4
      %s259 = scalar_lea.vmem %s0, %s258
      %p260 = pneg %p41
      %p261 = pneg %p38
      %p262 = scmp.lt.s32.totalorder %s20, 1
      %s263 = scalar_select %p262, %s20, 1
      %s264 = smul.addr %s263, 11
      %s265 = smul.addr %s264, 4
      %s266 = scalar_lea.vmem %s1, %s265
      %p267 = pneg %p67
      %p268 = pneg %p64
      %p269 = pneg %p88
      %p270 = pneg %p85
      %p271 = pneg %p109
      %p272 = pneg %p106
      %p273 = pneg %p130
      %p274 = pneg %p127
      %p275 = pneg %p151
      %p276 = pneg %p148
      %p277 = pneg %p172
      %p278 = pneg %p169
      %p279 = pneg %p198
      %p280 = pneg %p195
      %p281 = scmp.lt.s32.totalorder %s20, 1
      %s282 = scalar_select %p281, %s20, 1
      %s283 = smul.addr %s282, 10
      %s284 = scalar_lea.vmem %s7, %s283
      %p285 = scmp.lt.s32.totalorder %s20, 1
      %s286 = scalar_select %p285, %s20, 1
      %s287 = smul.addr %s286, 11
      %s288 = smul.addr %s287, 4
      %s289 = scalar_lea.vmem %s0, %s288
      %p290 = scmp.lt.s32.totalorder %s20, 1
      %s291 = scalar_select %p290, %s20, 1
      %s292 = smul.addr %s291, 11
      %s293 = smul.addr %s292, 4
      %s294 = scalar_lea.vmem %s1, %s293
      %p295 = scmp.lt.s32.totalorder %s20, 1
      %s296 = scalar_select %p295, %s20, 1
      %s297 = smul.addr %s296, 10
      %s298 = scalar_lea.vmem %s7, %s297
      %v300 = vld [vmem:[%s4] sm:$0xff]
      %v301 = vld [vmem:[%s4 + $0x8] sm:$0x3]
      %v302 = vld [vmem:[%s289] sm:$0xff]
      %v303 = vld [vmem:[%s289 + $0x8] sm:$0xff]
      %v304 = vld [vmem:[%s289 + $0x10] sm:$0xff]
      %v305 = vld [vmem:[%s289 + $0x18] sm:$0xff]
      %v306 = vld [vmem:[%s289 + $0x20] sm:$0xff]
      %312 = vrot.lane.b32.xlu0 %v302, 95
      %v313 = vpop.permute.xlu0 %312
      %314 = vrot.lane.b32.xlu0 %v303, 95
      %v315 = vpop.permute.xlu0 %314
      %316 = vrot.lane.b32.xlu0 %v304, 95
      %v317 = vpop.permute.xlu0 %316
      %318 = vrot.lane.b32.xlu0 %v305, 95
      %v319 = vpop.permute.xlu0 %318
      %320 = vrot.lane.b32.xlu0 %v306, 95
      %v321 = vpop.permute.xlu0 %320
      %v322 = vrot.slane %v313, 4
      %v323 = vrot.slane %v315, 4
      %v324 = vrot.slane %v317, 4
      %v325 = vrot.slane %v319, 4
      %v326 = vrot.slane %v321, 4
      %vm327 = vcmask 1043456
      %v328 = vsel %vm327, %v322, %v323
      %vm329 = vcmask 777216
      %v330 = vsel %vm329, %v313, %v328
      %v331 = vsel %vm327, %v323, %v324
      %v332 = vsel %vm329, %v315, %v331
      %v333 = vsel %vm327, %v324, %v325
      %v334 = vsel %vm329, %v317, %v333
      %v335 = vsel %vm327, %v325, %v326
      %v336 = vsel %vm329, %v319, %v335
      %v337 = vsel %vm329, %v321, %v326
      %343 = vst [vmem:[#allocation2] sm:$0xff] %v330
      %344 = vst [vmem:[#allocation2 + $0x8] sm:$0xff] %v332
      %345 = vst [vmem:[#allocation2 + $0x10] sm:$0xff] %v334
      %346 = vst [vmem:[#allocation2 + $0x18] sm:$0xff] %v336
      %vm347 = vcmask 1043456
      %vm348 = vcmask 31748
      %vm349 = vmor %vm348, %vm347
      %350 = vst.msk [vmem:[#allocation2 + $0x20] sm:$0xff] %vm349, %v337
      %v351 = vld [vmem:[%s289] sm:$0xff]
      %v352 = vld [vmem:[%s289 + $0x8] sm:$0xff]
      %v353 = vld [vmem:[%s289 + $0x10] sm:$0xff]
      %v354 = vld [vmem:[%s289 + $0x18] sm:$0xff]
      %v355 = vld [vmem:[%s289 + $0x20] sm:$0xff]
      %361 = vrot.lane.b32.xlu0 %v351, 94
      %v362 = vpop.permute.xlu0 %361
      %363 = vrot.lane.b32.xlu0 %v352, 94
      %v364 = vpop.permute.xlu0 %363
      %365 = vrot.lane.b32.xlu0 %v353, 94
      %v366 = vpop.permute.xlu0 %365
      %367 = vrot.lane.b32.xlu0 %v354, 94
      %v368 = vpop.permute.xlu0 %367
      %369 = vrot.lane.b32.xlu0 %v355, 94
      %v370 = vpop.permute.xlu0 %369
      %v371 = vrot.slane %v362, 4
      %v372 = vrot.slane %v364, 4
      %v373 = vrot.slane %v366, 4
      %v374 = vrot.slane %v368, 4
      %v375 = vrot.slane %v370, 4
      %v376 = vsel %vm327, %v371, %v372
      %vm377 = vcmask 769024
      %v378 = vsel %vm377, %v362, %v376
      %v379 = vsel %vm327, %v372, %v373
      %v380 = vsel %vm377, %v364, %v379
      %v381 = vsel %vm327, %v373, %v374
      %v382 = vsel %vm377, %v366, %v381
      %v383 = vsel %vm327, %v374, %v375
      %v384 = vsel %vm377, %v368, %v383
      %v385 = vsel %vm377, %v370, %v375
      %391 = vst [vmem:[#allocation2 + $0x28] sm:$0xff] %v378
      %392 = vst [vmem:[#allocation2 + $0x30] sm:$0xff] %v380
      %393 = vst [vmem:[#allocation2 + $0x38] sm:$0xff] %v382
      %394 = vst [vmem:[#allocation2 + $0x40] sm:$0xff] %v384
      %395 = vst.msk [vmem:[#allocation2 + $0x48] sm:$0xff] %vm349, %v385
      %v396 = vld [vmem:[%s289] sm:$0xff]
      %v397 = vld [vmem:[%s289 + $0x8] sm:$0xff]
      %v398 = vld [vmem:[%s289 + $0x10] sm:$0xff]
      %v399 = vld [vmem:[%s289 + $0x18] sm:$0xff]
      %v400 = vld [vmem:[%s289 + $0x20] sm:$0xff]
      %406 = vrot.lane.b32.xlu0 %v396, 93
      %v407 = vpop.permute.xlu0 %406
      %408 = vrot.lane.b32.xlu0 %v397, 93
      %v409 = vpop.permute.xlu0 %408
      %410 = vrot.lane.b32.xlu0 %v398, 93
      %v411 = vpop.permute.xlu0 %410
      %412 = vrot.lane.b32.xlu0 %v399, 93
      %v413 = vpop.permute.xlu0 %412
      %414 = vrot.lane.b32.xlu0 %v400, 93
      %v415 = vpop.permute.xlu0 %414
      %v416 = vrot.slane %v407, 4
      %v417 = vrot.slane %v409, 4
      %v418 = vrot.slane %v411, 4
      %v419 = vrot.slane %v413, 4
      %v420 = vrot.slane %v415, 4
      %v421 = vsel %vm327, %v416, %v417
      %vm422 = vcmask 760832
      %v423 = vsel %vm422, %v407, %v421
      %v424 = vsel %vm327, %v417, %v418
      %v425 = vsel %vm422, %v409, %v424
      %v426 = vsel %vm327, %v418, %v419
      %v427 = vsel %vm422, %v411, %v426
      %v428 = vsel %vm327, %v419, %v420
      %v429 = vsel %vm422, %v413, %v428
      %v430 = vsel %vm422, %v415, %v420
      %436 = vst [vmem:[#allocation2 + $0x50] sm:$0xff] %v423
      %437 = vst [vmem:[#allocation2 + $0x58] sm:$0xff] %v425
      %438 = vst [vmem:[#allocation2 + $0x60] sm:$0xff] %v427
      %439 = vst [vmem:[#allocation2 + $0x68] sm:$0xff] %v429
      %440 = vst.msk [vmem:[#allocation2 + $0x70] sm:$0xff] %vm349, %v430
      %v441 = vld [vmem:[%s289] sm:$0xff]
      %v442 = vld [vmem:[%s289 + $0x8] sm:$0xff]
      %v443 = vld [vmem:[%s289 + $0x10] sm:$0xff]
      %v444 = vld [vmem:[%s289 + $0x18] sm:$0xff]
      %v445 = vld [vmem:[%s289 + $0x20] sm:$0xff]
      %451 = vrot.lane.b32.xlu0 %v441, 61
      %v452 = vpop.permute.xlu0 %451
      %453 = vrot.lane.b32.xlu0 %v442, 61
      %v454 = vpop.permute.xlu0 %453
      %455 = vrot.lane.b32.xlu0 %v443, 61
      %v456 = vpop.permute.xlu0 %455
      %457 = vrot.lane.b32.xlu0 %v444, 61
      %v458 = vpop.permute.xlu0 %457
      %459 = vrot.lane.b32.xlu0 %v445, 61
      %v460 = vpop.permute.xlu0 %459
      %v461 = vrot.slane %v452, 4
      %v462 = vrot.slane %v454, 4
      %v463 = vrot.slane %v456, 4
      %v464 = vrot.slane %v458, 4
      %v465 = vrot.slane %v460, 4
      %v466 = vsel %vm327, %v461, %v462
      %vm467 = vcmask 498688
      %v468 = vsel %vm467, %v452, %v466
      %v469 = vsel %vm327, %v462, %v463
      %v470 = vsel %vm467, %v454, %v469
      %v471 = vsel %vm327, %v463, %v464
      %v472 = vsel %vm467, %v456, %v471
      %v473 = vsel %vm327, %v464, %v465
      %v474 = vsel %vm467, %v458, %v473
      %v475 = vsel %vm467, %v460, %v465
      %481 = vst [vmem:[#allocation2 + $0x78] sm:$0xff] %v468
      %482 = vst [vmem:[#allocation2 + $0x80] sm:$0xff] %v470
      %483 = vst [vmem:[#allocation2 + $0x88] sm:$0xff] %v472
      %484 = vst [vmem:[#allocation2 + $0x90] sm:$0xff] %v474
      %485 = vst.msk [vmem:[#allocation2 + $0x98] sm:$0xff] %vm349, %v475
      %v486 = vld [vmem:[%s289] sm:$0xff]
      %v487 = vld [vmem:[%s289 + $0x8] sm:$0xff]
      %v488 = vld [vmem:[%s289 + $0x10] sm:$0xff]
      %v489 = vld [vmem:[%s289 + $0x18] sm:$0xff]
      %v490 = vld [vmem:[%s289 + $0x20] sm:$0xff]
      %496 = vrot.lane.b32.xlu0 %v486, 60
      %v497 = vpop.permute.xlu0 %496
      %498 = vrot.lane.b32.xlu0 %v487, 60
      %v499 = vpop.permute.xlu0 %498
      %500 = vrot.lane.b32.xlu0 %v488, 60
      %v501 = vpop.permute.xlu0 %500
      %502 = vrot.lane.b32.xlu0 %v489, 60
      %v503 = vpop.permute.xlu0 %502
      %504 = vrot.lane.b32.xlu0 %v490, 60
      %v505 = vpop.permute.xlu0 %504
      %v506 = vrot.slane %v497, 4
      %v507 = vrot.slane %v499, 4
      %v508 = vrot.slane %v501, 4
      %v509 = vrot.slane %v503, 4
      %v510 = vrot.slane %v505, 4
      %v511 = vsel %vm327, %v506, %v507
      %vm512 = vcmask 490496
      %v513 = vsel %vm512, %v497, %v511
      %v514 = vsel %vm327, %v507, %v508
      %v515 = vsel %vm512, %v499, %v514
      %v516 = vsel %vm327, %v508, %v509
      %v517 = vsel %vm512, %v501, %v516
      %v518 = vsel %vm327, %v509, %v510
      %v519 = vsel %vm512, %v503, %v518
      %v520 = vsel %vm512, %v505, %v510
      %526 = vst [vmem:[#allocation2 + $0xa0] sm:$0xff] %v513
      %527 = vst [vmem:[#allocation2 + $0xa8] sm:$0xff] %v515
      %528 = vst [vmem:[#allocation2 + $0xb0] sm:$0xff] %v517
      %529 = vst [vmem:[#allocation2 + $0xb8] sm:$0xff] %v519
      %530 = vst.msk [vmem:[#allocation2 + $0xc0] sm:$0xff] %vm349, %v520
      %v531 = vld [vmem:[%s289] sm:$0xff]
      %v532 = vld [vmem:[%s289 + $0x8] sm:$0xff]
      %v533 = vld [vmem:[%s289 + $0x10] sm:$0xff]
      %v534 = vld [vmem:[%s289 + $0x18] sm:$0xff]
      %v535 = vld [vmem:[%s289 + $0x20] sm:$0xff]
      %541 = vrot.lane.b32.xlu0 %v531, 59
      %v542 = vpop.permute.xlu0 %541
      %543 = vrot.lane.b32.xlu0 %v532, 59
      %v544 = vpop.permute.xlu0 %543
      %545 = vrot.lane.b32.xlu0 %v533, 59
      %v546 = vpop.permute.xlu0 %545
      %547 = vrot.lane.b32.xlu0 %v534, 59
      %v548 = vpop.permute.xlu0 %547
      %549 = vrot.lane.b32.xlu0 %v535, 59
      %v550 = vpop.permute.xlu0 %549
      %v551 = vrot.slane %v542, 4
      %v552 = vrot.slane %v544, 4
      %v553 = vrot.slane %v546, 4
      %v554 = vrot.slane %v548, 4
      %v555 = vrot.slane %v550, 4
      %v556 = vsel %vm327, %v551, %v552
      %vm557 = vcmask 482304
      %v558 = vsel %vm557, %v542, %v556
      %v559 = vsel %vm327, %v552, %v553
      %v560 = vsel %vm557, %v544, %v559
      %v561 = vsel %vm327, %v553, %v554
      %v562 = vsel %vm557, %v546, %v561
      %v563 = vsel %vm327, %v554, %v555
      %v564 = vsel %vm557, %v548, %v563
      %v565 = vsel %vm557, %v550, %v555
      %571 = vst [vmem:[#allocation2 + $0xc8] sm:$0xff] %v558
      %572 = vst [vmem:[#allocation2 + $0xd0] sm:$0xff] %v560
      %573 = vst [vmem:[#allocation2 + $0xd8] sm:$0xff] %v562
      %574 = vst [vmem:[#allocation2 + $0xe0] sm:$0xff] %v564
      %575 = vst.msk [vmem:[#allocation2 + $0xe8] sm:$0xff] %vm349, %v565
      %v576 = vld [vmem:[%s289] sm:$0xff]
      %v577 = vld [vmem:[%s289 + $0x8] sm:$0xff]
      %v578 = vld [vmem:[%s289 + $0x10] sm:$0xff]
      %v579 = vld [vmem:[%s289 + $0x18] sm:$0xff]
      %v580 = vld [vmem:[%s289 + $0x20] sm:$0xff]
      %586 = vrot.lane.b32.xlu0 %v576, 27
      %v587 = vpop.permute.xlu0 %586
      %588 = vrot.lane.b32.xlu0 %v577, 27
      %v589 = vpop.permute.xlu0 %588
      %590 = vrot.lane.b32.xlu0 %v578, 27
      %v591 = vpop.permute.xlu0 %590
      %592 = vrot.lane.b32.xlu0 %v579, 27
      %v593 = vpop.permute.xlu0 %592
      %594 = vrot.lane.b32.xlu0 %v580, 27
      %v595 = vpop.permute.xlu0 %594
      %v596 = vrot.slane %v587, 4
      %v597 = vrot.slane %v589, 4
      %v598 = vrot.slane %v591, 4
      %v599 = vrot.slane %v593, 4
      %v600 = vrot.slane %v595, 4
      %v601 = vsel %vm327, %v596, %v597
      %vm602 = vcmask 220160
      %v603 = vsel %vm602, %v587, %v601
      %v604 = vsel %vm327, %v597, %v598
      %v605 = vsel %vm602, %v589, %v604
      %v606 = vsel %vm327, %v598, %v599
      %v607 = vsel %vm602, %v591, %v606
      %v608 = vsel %vm327, %v599, %v600
      %v609 = vsel %vm602, %v593, %v608
      %v610 = vsel %vm602, %v595, %v600
      %616 = vst [vmem:[#allocation2 + $0xf0] sm:$0xff] %v603
      %617 = vst [vmem:[#allocation2 + $0xf8] sm:$0xff] %v605
      %618 = vst [vmem:[#allocation2 + $0x100] sm:$0xff] %v607
      %619 = vst [vmem:[#allocation2 + $0x108] sm:$0xff] %v609
      %620 = vst.msk [vmem:[#allocation2 + $0x110] sm:$0xff] %vm349, %v610
      %v621 = vld [vmem:[%s289] sm:$0xff]
      %v622 = vld [vmem:[%s289 + $0x8] sm:$0xff]
      %v623 = vld [vmem:[%s289 + $0x10] sm:$0xff]
      %v624 = vld [vmem:[%s289 + $0x18] sm:$0xff]
      %v625 = vld [vmem:[%s289 + $0x20] sm:$0xff]
      %631 = vrot.lane.b32.xlu0 %v621, 26
      %v632 = vpop.permute.xlu0 %631
      %633 = vrot.lane.b32.xlu0 %v622, 26
      %v634 = vpop.permute.xlu0 %633
      %635 = vrot.lane.b32.xlu0 %v623, 26
      %v636 = vpop.permute.xlu0 %635
      %637 = vrot.lane.b32.xlu0 %v624, 26
      %v638 = vpop.permute.xlu0 %637
      %639 = vrot.lane.b32.xlu0 %v625, 26
      %v640 = vpop.permute.xlu0 %639
      %v641 = vrot.slane %v632, 4
      %v642 = vrot.slane %v634, 4
      %v643 = vrot.slane %v636, 4
      %v644 = vrot.slane %v638, 4
      %v645 = vrot.slane %v640, 4
      %v646 = vsel %vm327, %v641, %v642
      %vm647 = vcmask 211968
      %v648 = vsel %vm647, %v632, %v646
      %v649 = vsel %vm327, %v642, %v643
      %v650 = vsel %vm647, %v634, %v649
      %v651 = vsel %vm327, %v643, %v644
      %v652 = vsel %vm647, %v636, %v651
      %v653 = vsel %vm327, %v644, %v645
      %v654 = vsel %vm647, %v638, %v653
      %v655 = vsel %vm647, %v640, %v645
      %661 = vst [vmem:[#allocation2 + $0x118] sm:$0xff] %v648
      %662 = vst [vmem:[#allocation2 + $0x120] sm:$0xff] %v650
      %663 = vst [vmem:[#allocation2 + $0x128] sm:$0xff] %v652
      %664 = vst [vmem:[#allocation2 + $0x130] sm:$0xff] %v654
      %665 = vst.msk [vmem:[#allocation2 + $0x138] sm:$0xff] %vm349, %v655
      %v666 = vld [vmem:[%s289] sm:$0xff]
      %v667 = vld [vmem:[%s289 + $0x8] sm:$0xff]
      %v668 = vld [vmem:[%s289 + $0x10] sm:$0xff]
      %v669 = vld [vmem:[%s289 + $0x18] sm:$0xff]
      %v670 = vld [vmem:[%s289 + $0x20] sm:$0xff]
      %676 = vrot.lane.b32.xlu0 %v666, 25
      %v677 = vpop.permute.xlu0 %676
      %678 = vrot.lane.b32.xlu0 %v667, 25
      %v679 = vpop.permute.xlu0 %678
      %680 = vrot.lane.b32.xlu0 %v668, 25
      %v681 = vpop.permute.xlu0 %680
      %682 = vrot.lane.b32.xlu0 %v669, 25
      %v683 = vpop.permute.xlu0 %682
      %684 = vrot.lane.b32.xlu0 %v670, 25
      %v685 = vpop.permute.xlu0 %684
      %v686 = vrot.slane %v677, 4
      %v687 = vrot.slane %v679, 4
      %v688 = vrot.slane %v681, 4
      %v689 = vrot.slane %v683, 4
      %v690 = vrot.slane %v685, 4
      %v691 = vsel %vm327, %v686, %v687
      %vm692 = vcmask 203776
      %v693 = vsel %vm692, %v677, %v691
      %v694 = vsel %vm327, %v687, %v688
      %v695 = vsel %vm692, %v679, %v694
      %v696 = vsel %vm327, %v688, %v689
      %v697 = vsel %vm692, %v681, %v696
      %v698 = vsel %vm327, %v689, %v690
      %v699 = vsel %vm692, %v683, %v698
      %v700 = vsel %vm692, %v685, %v690
      %706 = vst [vmem:[#allocation2 + $0x140] sm:$0xff] %v693
      %707 = vst [vmem:[#allocation2 + $0x148] sm:$0xff] %v695
      %708 = vst [vmem:[#allocation2 + $0x150] sm:$0xff] %v697
      %709 = vst [vmem:[#allocation2 + $0x158] sm:$0xff] %v699
      %710 = vst.msk [vmem:[#allocation2 + $0x160] sm:$0xff] %vm349, %v700
      %v711 = vld [vmem:[%s294] sm:$0xff]
      %v712 = vld [vmem:[%s294 + $0x8] sm:$0xff]
      %v713 = vld [vmem:[%s294 + $0x10] sm:$0xff]
      %v714 = vld [vmem:[%s294 + $0x18] sm:$0xff]
      %v715 = vld [vmem:[%s294 + $0x20] sm:$0xff]
      %721 = vrot.lane.b32.xlu0 %v711, 95
      %v722 = vpop.permute.xlu0 %721
      %723 = vrot.lane.b32.xlu0 %v712, 95
      %v724 = vpop.permute.xlu0 %723
      %725 = vrot.lane.b32.xlu0 %v713, 95
      %v726 = vpop.permute.xlu0 %725
      %727 = vrot.lane.b32.xlu0 %v714, 95
      %v728 = vpop.permute.xlu0 %727
      %729 = vrot.lane.b32.xlu0 %v715, 95
      %v730 = vpop.permute.xlu0 %729
      %v731 = vrot.slane %v722, 4
      %v732 = vrot.slane %v724, 4
      %v733 = vrot.slane %v726, 4
      %v734 = vrot.slane %v728, 4
      %v735 = vrot.slane %v730, 4
      %v736 = vsel %vm327, %v731, %v732
      %v737 = vsel %vm329, %v722, %v736
      %v738 = vsel %vm327, %v732, %v733
      %v739 = vsel %vm329, %v724, %v738
      %v740 = vsel %vm327, %v733, %v734
      %v741 = vsel %vm329, %v726, %v740
      %v742 = vsel %vm327, %v734, %v735
      %v743 = vsel %vm329, %v728, %v742
      %v744 = vsel %vm329, %v730, %v735
      %750 = vst [vmem:[#allocation2 + $0x168] sm:$0xff] %v737
      %751 = vst [vmem:[#allocation2 + $0x170] sm:$0xff] %v739
      %752 = vst [vmem:[#allocation2 + $0x178] sm:$0xff] %v741
      %753 = vst [vmem:[#allocation2 + $0x180] sm:$0xff] %v743
      %754 = vst.msk [vmem:[#allocation2 + $0x188] sm:$0xff] %vm349, %v744
      %v755 = vld [vmem:[%s294] sm:$0xff]
      %v756 = vld [vmem:[%s294 + $0x8] sm:$0xff]
      %v757 = vld [vmem:[%s294 + $0x10] sm:$0xff]
      %v758 = vld [vmem:[%s294 + $0x18] sm:$0xff]
      %v759 = vld [vmem:[%s294 + $0x20] sm:$0xff]
      %765 = vrot.lane.b32.xlu0 %v755, 94
      %v766 = vpop.permute.xlu0 %765
      %767 = vrot.lane.b32.xlu0 %v756, 94
      %v768 = vpop.permute.xlu0 %767
      %769 = vrot.lane.b32.xlu0 %v757, 94
      %v770 = vpop.permute.xlu0 %769
      %771 = vrot.lane.b32.xlu0 %v758, 94
      %v772 = vpop.permute.xlu0 %771
      %773 = vrot.lane.b32.xlu0 %v759, 94
      %v774 = vpop.permute.xlu0 %773
      %v775 = vrot.slane %v766, 4
      %v776 = vrot.slane %v768, 4
      %v777 = vrot.slane %v770, 4
      %v778 = vrot.slane %v772, 4
      %v779 = vrot.slane %v774, 4
      %v780 = vsel %vm327, %v775, %v776
      %v781 = vsel %vm377, %v766, %v780
      %v782 = vsel %vm327, %v776, %v777
      %v783 = vsel %vm377, %v768, %v782
      %v784 = vsel %vm327, %v777, %v778
      %v785 = vsel %vm377, %v770, %v784
      %v786 = vsel %vm327, %v778, %v779
      %v787 = vsel %vm377, %v772, %v786
      %v788 = vsel %vm377, %v774, %v779
      %794 = vst [vmem:[#allocation2 + $0x190] sm:$0xff] %v781
      %795 = vst [vmem:[#allocation2 + $0x198] sm:$0xff] %v783
      %796 = vst [vmem:[#allocation2 + $0x1a0] sm:$0xff] %v785
      %797 = vst [vmem:[#allocation2 + $0x1a8] sm:$0xff] %v787
      %798 = vst.msk [vmem:[#allocation2 + $0x1b0] sm:$0xff] %vm349, %v788
      %v799 = vld [vmem:[%s294] sm:$0xff]
      %v800 = vld [vmem:[%s294 + $0x8] sm:$0xff]
      %v801 = vld [vmem:[%s294 + $0x10] sm:$0xff]
      %v802 = vld [vmem:[%s294 + $0x18] sm:$0xff]
      %v803 = vld [vmem:[%s294 + $0x20] sm:$0xff]
      %809 = vrot.lane.b32.xlu0 %v799, 93
      %v810 = vpop.permute.xlu0 %809
      %811 = vrot.lane.b32.xlu0 %v800, 93
      %v812 = vpop.permute.xlu0 %811
      %813 = vrot.lane.b32.xlu0 %v801, 93
      %v814 = vpop.permute.xlu0 %813
      %815 = vrot.lane.b32.xlu0 %v802, 93
      %v816 = vpop.permute.xlu0 %815
      %817 = vrot.lane.b32.xlu0 %v803, 93
      %v818 = vpop.permute.xlu0 %817
      %v819 = vrot.slane %v810, 4
      %v820 = vrot.slane %v812, 4
      %v821 = vrot.slane %v814, 4
      %v822 = vrot.slane %v816, 4
      %v823 = vrot.slane %v818, 4
      %v824 = vsel %vm327, %v819, %v820
      %v825 = vsel %vm422, %v810, %v824
      %v826 = vsel %vm327, %v820, %v821
      %v827 = vsel %vm422, %v812, %v826
      %v828 = vsel %vm327, %v821, %v822
      %v829 = vsel %vm422, %v814, %v828
      %v830 = vsel %vm327, %v822, %v823
      %v831 = vsel %vm422, %v816, %v830
      %v832 = vsel %vm422, %v818, %v823
      %838 = vst [vmem:[#allocation2 + $0x1b8] sm:$0xff] %v825
      %839 = vst [vmem:[#allocation2 + $0x1c0] sm:$0xff] %v827
      %840 = vst [vmem:[#allocation2 + $0x1c8] sm:$0xff] %v829
      %841 = vst [vmem:[#allocation2 + $0x1d0] sm:$0xff] %v831
      %842 = vst.msk [vmem:[#allocation2 + $0x1d8] sm:$0xff] %vm349, %v832
      %v843 = vld [vmem:[%s294] sm:$0xff]
      %v844 = vld [vmem:[%s294 + $0x8] sm:$0xff]
      %v845 = vld [vmem:[%s294 + $0x10] sm:$0xff]
      %v846 = vld [vmem:[%s294 + $0x18] sm:$0xff]
      %v847 = vld [vmem:[%s294 + $0x20] sm:$0xff]
      %853 = vrot.lane.b32.xlu0 %v843, 61
      %v854 = vpop.permute.xlu0 %853
      %855 = vrot.lane.b32.xlu0 %v844, 61
      %v856 = vpop.permute.xlu0 %855
      %857 = vrot.lane.b32.xlu0 %v845, 61
      %v858 = vpop.permute.xlu0 %857
      %859 = vrot.lane.b32.xlu0 %v846, 61
      %v860 = vpop.permute.xlu0 %859
      %861 = vrot.lane.b32.xlu0 %v847, 61
      %v862 = vpop.permute.xlu0 %861
      %v863 = vrot.slane %v854, 4
      %v864 = vrot.slane %v856, 4
      %v865 = vrot.slane %v858, 4
      %v866 = vrot.slane %v860, 4
      %v867 = vrot.slane %v862, 4
      %v868 = vsel %vm327, %v863, %v864
      %v869 = vsel %vm467, %v854, %v868
      %v870 = vsel %vm327, %v864, %v865
      %v871 = vsel %vm467, %v856, %v870
      %v872 = vsel %vm327, %v865, %v866
      %v873 = vsel %vm467, %v858, %v872
      %v874 = vsel %vm327, %v866, %v867
      %v875 = vsel %vm467, %v860, %v874
      %v876 = vsel %vm467, %v862, %v867
      %882 = vst [vmem:[#allocation2 + $0x1e0] sm:$0xff] %v869
      %883 = vst [vmem:[#allocation2 + $0x1e8] sm:$0xff] %v871
      %884 = vst [vmem:[#allocation2 + $0x1f0] sm:$0xff] %v873
      %885 = vst [vmem:[#allocation2 + $0x1f8] sm:$0xff] %v875
      %886 = vst.msk [vmem:[#allocation2 + $0x200] sm:$0xff] %vm349, %v876
      %v887 = vld [vmem:[%s294] sm:$0xff]
      %v888 = vld [vmem:[%s294 + $0x8] sm:$0xff]
      %v889 = vld [vmem:[%s294 + $0x10] sm:$0xff]
      %v890 = vld [vmem:[%s294 + $0x18] sm:$0xff]
      %v891 = vld [vmem:[%s294 + $0x20] sm:$0xff]
      %897 = vrot.lane.b32.xlu0 %v887, 60
      %v898 = vpop.permute.xlu0 %897
      %899 = vrot.lane.b32.xlu0 %v888, 60
      %v900 = vpop.permute.xlu0 %899
      %901 = vrot.lane.b32.xlu0 %v889, 60
      %v902 = vpop.permute.xlu0 %901
      %903 = vrot.lane.b32.xlu0 %v890, 60
      %v904 = vpop.permute.xlu0 %903
      %905 = vrot.lane.b32.xlu0 %v891, 60
      %v906 = vpop.permute.xlu0 %905
      %v907 = vrot.slane %v898, 4
      %v908 = vrot.slane %v900, 4
      %v909 = vrot.slane %v902, 4
      %v910 = vrot.slane %v904, 4
      %v911 = vrot.slane %v906, 4
      %v912 = vsel %vm327, %v907, %v908
      %v913 = vsel %vm512, %v898, %v912
      %v914 = vsel %vm327, %v908, %v909
      %v915 = vsel %vm512, %v900, %v914
      %v916 = vsel %vm327, %v909, %v910
      %v917 = vsel %vm512, %v902, %v916
      %v918 = vsel %vm327, %v910, %v911
      %v919 = vsel %vm512, %v904, %v918
      %v920 = vsel %vm512, %v906, %v911
      %926 = vst [vmem:[#allocation2 + $0x208] sm:$0xff] %v913
      %927 = vst [vmem:[#allocation2 + $0x210] sm:$0xff] %v915
      %928 = vst [vmem:[#allocation2 + $0x218] sm:$0xff] %v917
      %929 = vst [vmem:[#allocation2 + $0x220] sm:$0xff] %v919
      %930 = vst.msk [vmem:[#allocation2 + $0x228] sm:$0xff] %vm349, %v920
      %v931 = vld [vmem:[%s294] sm:$0xff]
      %v932 = vld [vmem:[%s294 + $0x8] sm:$0xff]
      %v933 = vld [vmem:[%s294 + $0x10] sm:$0xff]
      %v934 = vld [vmem:[%s294 + $0x18] sm:$0xff]
      %v935 = vld [vmem:[%s294 + $0x20] sm:$0xff]
      %941 = vrot.lane.b32.xlu0 %v931, 59
      %v942 = vpop.permute.xlu0 %941
      %943 = vrot.lane.b32.xlu0 %v932, 59
      %v944 = vpop.permute.xlu0 %943
      %945 = vrot.lane.b32.xlu0 %v933, 59
      %v946 = vpop.permute.xlu0 %945
      %947 = vrot.lane.b32.xlu0 %v934, 59
      %v948 = vpop.permute.xlu0 %947
      %949 = vrot.lane.b32.xlu0 %v935, 59
      %v950 = vpop.permute.xlu0 %949
      %v951 = vrot.slane %v942, 4
      %v952 = vrot.slane %v944, 4
      %v953 = vrot.slane %v946, 4
      %v954 = vrot.slane %v948, 4
      %v955 = vrot.slane %v950, 4
      %v956 = vsel %vm327, %v951, %v952
      %v957 = vsel %vm557, %v942, %v956
      %v958 = vsel %vm327, %v952, %v953
      %v959 = vsel %vm557, %v944, %v958
      %v960 = vsel %vm327, %v953, %v954
      %v961 = vsel %vm557, %v946, %v960
      %v962 = vsel %vm327, %v954, %v955
      %v963 = vsel %vm557, %v948, %v962
      %v964 = vsel %vm557, %v950, %v955
      %970 = vst [vmem:[#allocation2 + $0x230] sm:$0xff] %v957
      %971 = vst [vmem:[#allocation2 + $0x238] sm:$0xff] %v959
      %972 = vst [vmem:[#allocation2 + $0x240] sm:$0xff] %v961
      %973 = vst [vmem:[#allocation2 + $0x248] sm:$0xff] %v963
      %974 = vst.msk [vmem:[#allocation2 + $0x250] sm:$0xff] %vm349, %v964
      %v975 = vld [vmem:[%s294] sm:$0xff]
      %v976 = vld [vmem:[%s294 + $0x8] sm:$0xff]
      %v977 = vld [vmem:[%s294 + $0x10] sm:$0xff]
      %v978 = vld [vmem:[%s294 + $0x18] sm:$0xff]
      %v979 = vld [vmem:[%s294 + $0x20] sm:$0xff]
      %985 = vrot.lane.b32.xlu0 %v975, 27
      %v986 = vpop.permute.xlu0 %985
      %987 = vrot.lane.b32.xlu0 %v976, 27
      %v988 = vpop.permute.xlu0 %987
      %989 = vrot.lane.b32.xlu0 %v977, 27
      %v990 = vpop.permute.xlu0 %989
      %991 = vrot.lane.b32.xlu0 %v978, 27
      %v992 = vpop.permute.xlu0 %991
      %993 = vrot.lane.b32.xlu0 %v979, 27
      %v994 = vpop.permute.xlu0 %993
      %v995 = vrot.slane %v986, 4
      %v996 = vrot.slane %v988, 4
      %v997 = vrot.slane %v990, 4
      %v998 = vrot.slane %v992, 4
      %v999 = vrot.slane %v994, 4
      %v1000 = vsel %vm327, %v995, %v996
      %v1001 = vsel %vm602, %v986, %v1000
      %v1002 = vsel %vm327, %v996, %v997
      %v1003 = vsel %vm602, %v988, %v1002
      %v1004 = vsel %vm327, %v997, %v998
      %v1005 = vsel %vm602, %v990, %v1004
      %v1006 = vsel %vm327, %v998, %v999
      %v1007 = vsel %vm602, %v992, %v1006
      %v1008 = vsel %vm602, %v994, %v999
      %1014 = vst [vmem:[#allocation2 + $0x258] sm:$0xff] %v1001
      %1015 = vst [vmem:[#allocation2 + $0x260] sm:$0xff] %v1003
      %1016 = vst [vmem:[#allocation2 + $0x268] sm:$0xff] %v1005
      %1017 = vst [vmem:[#allocation2 + $0x270] sm:$0xff] %v1007
      %1018 = vst.msk [vmem:[#allocation2 + $0x278] sm:$0xff] %vm349, %v1008
      %v1019 = vld [vmem:[%s294] sm:$0xff]
      %v1020 = vld [vmem:[%s294 + $0x8] sm:$0xff]
      %v1021 = vld [vmem:[%s294 + $0x10] sm:$0xff]
      %v1022 = vld [vmem:[%s294 + $0x18] sm:$0xff]
      %v1023 = vld [vmem:[%s294 + $0x20] sm:$0xff]
      %1029 = vrot.lane.b32.xlu0 %v1019, 26
      %v1030 = vpop.permute.xlu0 %1029
      %1031 = vrot.lane.b32.xlu0 %v1020, 26
      %v1032 = vpop.permute.xlu0 %1031
      %1033 = vrot.lane.b32.xlu0 %v1021, 26
      %v1034 = vpop.permute.xlu0 %1033
      %1035 = vrot.lane.b32.xlu0 %v1022, 26
      %v1036 = vpop.permute.xlu0 %1035
      %1037 = vrot.lane.b32.xlu0 %v1023, 26
      %v1038 = vpop.permute.xlu0 %1037
      %v1039 = vrot.slane %v1030, 4
      %v1040 = vrot.slane %v1032, 4
      %v1041 = vrot.slane %v1034, 4
      %v1042 = vrot.slane %v1036, 4
      %v1043 = vrot.slane %v1038, 4
      %v1044 = vsel %vm327, %v1039, %v1040
      %v1045 = vsel %vm647, %v1030, %v1044
      %v1046 = vsel %vm327, %v1040, %v1041
      %v1047 = vsel %vm647, %v1032, %v1046
      %v1048 = vsel %vm327, %v1041, %v1042
      %v1049 = vsel %vm647, %v1034, %v1048
      %v1050 = vsel %vm327, %v1042, %v1043
      %v1051 = vsel %vm647, %v1036, %v1050
      %v1052 = vsel %vm647, %v1038, %v1043
      %1058 = vst [vmem:[#allocation2 + $0x280] sm:$0xff] %v1045
      %1059 = vst [vmem:[#allocation2 + $0x288] sm:$0xff] %v1047
      %1060 = vst [vmem:[#allocation2 + $0x290] sm:$0xff] %v1049
      %1061 = vst [vmem:[#allocation2 + $0x298] sm:$0xff] %v1051
      %1062 = vst.msk [vmem:[#allocation2 + $0x2a0] sm:$0xff] %vm349, %v1052
      %v1063 = vld [vmem:[%s294] sm:$0xff]
      %v1064 = vld [vmem:[%s294 + $0x8] sm:$0xff]
      %v1065 = vld [vmem:[%s294 + $0x10] sm:$0xff]
      %v1066 = vld [vmem:[%s294 + $0x18] sm:$0xff]
      %v1067 = vld [vmem:[%s294 + $0x20] sm:$0xff]
      %1073 = vrot.lane.b32.xlu0 %v1063, 25
      %v1074 = vpop.permute.xlu0 %1073
      %1075 = vrot.lane.b32.xlu0 %v1064, 25
      %v1076 = vpop.permute.xlu0 %1075
      %1077 = vrot.lane.b32.xlu0 %v1065, 25
      %v1078 = vpop.permute.xlu0 %1077
      %1079 = vrot.lane.b32.xlu0 %v1066, 25
      %v1080 = vpop.permute.xlu0 %1079
      %1081 = vrot.lane.b32.xlu0 %v1067, 25
      %v1082 = vpop.permute.xlu0 %1081
      %v1083 = vrot.slane %v1074, 4
      %v1084 = vrot.slane %v1076, 4
      %v1085 = vrot.slane %v1078, 4
      %v1086 = vrot.slane %v1080, 4
      %v1087 = vrot.slane %v1082, 4
      %v1088 = vsel %vm327, %v1083, %v1084
      %v1089 = vsel %vm692, %v1074, %v1088
      %v1090 = vsel %vm327, %v1084, %v1085
      %v1091 = vsel %vm692, %v1076, %v1090
      %v1092 = vsel %vm327, %v1085, %v1086
      %v1093 = vsel %vm692, %v1078, %v1092
      %v1094 = vsel %vm327, %v1086, %v1087
      %v1095 = vsel %vm692, %v1080, %v1094
      %v1096 = vsel %vm692, %v1082, %v1087
      %1102 = vst [vmem:[#allocation2 + $0x2a8] sm:$0xff] %v1089
      %1103 = vst [vmem:[#allocation2 + $0x2b0] sm:$0xff] %v1091
      %1104 = vst [vmem:[#allocation2 + $0x2b8] sm:$0xff] %v1093
      %1105 = vst [vmem:[#allocation2 + $0x2c0] sm:$0xff] %v1095
      %1106 = vst.msk [vmem:[#allocation2 + $0x2c8] sm:$0xff] %vm349, %v1096
      %v1107 = vld [vmem:[%s2] sm:$0xff]
      %v1108 = vld [vmem:[#allocation2] sm:$0xff]
      %v1109 = vld [vmem:[#allocation2 + $0x8] sm:$0xff]
      %v1110 = vld [vmem:[#allocation2 + $0x10] sm:$0xff]
      %v1111 = vld [vmem:[#allocation2 + $0x18] sm:$0xff]
      %v1112 = vld [vmem:[#allocation2 + $0x20] sm:$0xff]
      %v1113 = vld [vmem:[#allocation2 + $0x28] sm:$0xff]
      %v1114 = vld [vmem:[#allocation2 + $0x30] sm:$0xff]
      %v1115 = vld [vmem:[#allocation2 + $0x38] sm:$0xff]
      %v1116 = vld [vmem:[#allocation2 + $0x40] sm:$0xff]
      %v1117 = vld [vmem:[#allocation2 + $0x48] sm:$0xff]
      %v1118 = vld [vmem:[#allocation2 + $0x50] sm:$0xff]
      %v1119 = vld [vmem:[#allocation2 + $0x58] sm:$0xff]
      %v1120 = vld [vmem:[#allocation2 + $0x60] sm:$0xff]
      %v1121 = vld [vmem:[#allocation2 + $0x68] sm:$0xff]
      %v1122 = vld [vmem:[#allocation2 + $0x70] sm:$0xff]
      %v1123 = vld [vmem:[#allocation2 + $0x78] sm:$0xff]
      %v1124 = vld [vmem:[#allocation2 + $0x80] sm:$0xff]
      %v1125 = vld [vmem:[#allocation2 + $0x88] sm:$0xff]
      %v1126 = vld [vmem:[#allocation2 + $0x90] sm:$0xff]
      %v1127 = vld [vmem:[#allocation2 + $0x98] sm:$0xff]
      %v1128 = vld [vmem:[#allocation2 + $0xa0] sm:$0xff]
      %v1129 = vld [vmem:[#allocation2 + $0xa8] sm:$0xff]
      %v1130 = vld [vmem:[#allocation2 + $0xb0] sm:$0xff]
      %v1131 = vld [vmem:[#allocation2 + $0xb8] sm:$0xff]
      %v1132 = vld [vmem:[#allocation2 + $0xc0] sm:$0xff]
      %v1133 = vld [vmem:[#allocation2 + $0xc8] sm:$0xff]
      %v1134 = vld [vmem:[#allocation2 + $0xd0] sm:$0xff]
      %v1135 = vld [vmem:[#allocation2 + $0xd8] sm:$0xff]
      %v1136 = vld [vmem:[#allocation2 + $0xe0] sm:$0xff]
      %v1137 = vld [vmem:[#allocation2 + $0xe8] sm:$0xff]
      %v1138 = vld [vmem:[#allocation2 + $0xf0] sm:$0xff]
      %v1139 = vld [vmem:[#allocation2 + $0xf8] sm:$0xff]
      %v1140 = vld [vmem:[#allocation2 + $0x100] sm:$0xff]
      %v1141 = vld [vmem:[#allocation2 + $0x108] sm:$0xff]
      %v1142 = vld [vmem:[#allocation2 + $0x110] sm:$0xff]
      %v1143 = vld [vmem:[#allocation2 + $0x118] sm:$0xff]
      %v1144 = vld [vmem:[#allocation2 + $0x120] sm:$0xff]
      %v1145 = vld [vmem:[#allocation2 + $0x128] sm:$0xff]
      %v1146 = vld [vmem:[#allocation2 + $0x130] sm:$0xff]
      %v1147 = vld [vmem:[#allocation2 + $0x138] sm:$0xff]
      %v1148 = vld [vmem:[#allocation2 + $0x140] sm:$0xff]
      %v1149 = vld [vmem:[#allocation2 + $0x148] sm:$0xff]
      %v1150 = vld [vmem:[#allocation2 + $0x150] sm:$0xff]
      %v1151 = vld [vmem:[#allocation2 + $0x158] sm:$0xff]
      %v1152 = vld [vmem:[#allocation2 + $0x160] sm:$0xff]
      %v1153 = vld [vmem:[#allocation2 + $0x168] sm:$0xff]
      %v1154 = vld [vmem:[#allocation2 + $0x170] sm:$0xff]
      %v1155 = vld [vmem:[#allocation2 + $0x178] sm:$0xff]
      %v1156 = vld [vmem:[#allocation2 + $0x180] sm:$0xff]
      %v1157 = vld [vmem:[#allocation2 + $0x188] sm:$0xff]
      %v1158 = vld [vmem:[#allocation2 + $0x190] sm:$0xff]
      %v1159 = vld [vmem:[#allocation2 + $0x198] sm:$0xff]
      %v1160 = vld [vmem:[#allocation2 + $0x1a0] sm:$0xff]
      %v1161 = vld [vmem:[#allocation2 + $0x1a8] sm:$0xff]
      %v1162 = vld [vmem:[#allocation2 + $0x1b0] sm:$0xff]
      %v1163 = vld [vmem:[#allocation2 + $0x1b8] sm:$0xff]
      %v1164 = vld [vmem:[#allocation2 + $0x1c0] sm:$0xff]
      %v1165 = vld [vmem:[#allocation2 + $0x1c8] sm:$0xff]
      %v1166 = vld [vmem:[#allocation2 + $0x1d0] sm:$0xff]
      %v1167 = vld [vmem:[#allocation2 + $0x1d8] sm:$0xff]
      %v1168 = vld [vmem:[#allocation2 + $0x1e0] sm:$0xff]
      %v1169 = vld [vmem:[#allocation2 + $0x1e8] sm:$0xff]
      %v1170 = vld [vmem:[#allocation2 + $0x1f0] sm:$0xff]
      %v1171 = vld [vmem:[#allocation2 + $0x1f8] sm:$0xff]
      %v1172 = vld [vmem:[#allocation2 + $0x200] sm:$0xff]
      %v1173 = vld [vmem:[#allocation2 + $0x208] sm:$0xff]
      %v1174 = vld [vmem:[#allocation2 + $0x210] sm:$0xff]
      %v1175 = vld [vmem:[#allocation2 + $0x218] sm:$0xff]
      %v1176 = vld [vmem:[#allocation2 + $0x220] sm:$0xff]
      %v1177 = vld [vmem:[#allocation2 + $0x228] sm:$0xff]
      %v1178 = vld [vmem:[#allocation2 + $0x230] sm:$0xff]
      %v1179 = vld [vmem:[#allocation2 + $0x238] sm:$0xff]
      %v1180 = vld [vmem:[#allocation2 + $0x240] sm:$0xff]
      %v1181 = vld [vmem:[#allocation2 + $0x248] sm:$0xff]
      %v1182 = vld [vmem:[#allocation2 + $0x250] sm:$0xff]
      %v1183 = vld [vmem:[#allocation2 + $0x258] sm:$0xff]
      %v1184 = vld [vmem:[#allocation2 + $0x260] sm:$0xff]
      %v1185 = vld [vmem:[#allocation2 + $0x268] sm:$0xff]
      %v1186 = vld [vmem:[#allocation2 + $0x270] sm:$0xff]
      %v1187 = vld [vmem:[#allocation2 + $0x278] sm:$0xff]
      %v1188 = vld [vmem:[#allocation2 + $0x280] sm:$0xff]
      %v1189 = vld [vmem:[#allocation2 + $0x288] sm:$0xff]
      %v1190 = vld [vmem:[#allocation2 + $0x290] sm:$0xff]
      %v1191 = vld [vmem:[#allocation2 + $0x298] sm:$0xff]
      %v1192 = vld [vmem:[#allocation2 + $0x2a0] sm:$0xff]
      %v1193 = vld [vmem:[#allocation2 + $0x2a8] sm:$0xff]
      %v1194 = vld [vmem:[#allocation2 + $0x2b0] sm:$0xff]
      %v1195 = vld [vmem:[#allocation2 + $0x2b8] sm:$0xff]
      %v1196 = vld [vmem:[#allocation2 + $0x2c0] sm:$0xff]
      %v1197 = vld [vmem:[#allocation2 + $0x2c8] sm:$0xff]
      %v1199 = vunpack.c.l.b16 %v1107
      %v1200 = vunpack.c.h.b16 %v1107
      %v1201 = vpack.c.b16 %v1199, %v1199
      %v1202 = vpack.c.b16 %v1200, %v1200
      %v1294 = vunpack.c.l.b16 %v1108
      %v1295 = vunpack.c.h.b16 %v1108
      %v1296 = vunpack.c.l.b16 %v1109
      %v1297 = vunpack.c.h.b16 %v1109
      %v1298 = vunpack.c.l.b16 %v1110
      %v1299 = vunpack.c.h.b16 %v1110
      %v1300 = vunpack.c.l.b16 %v1111
      %v1301 = vunpack.c.h.b16 %v1111
      %v1302 = vunpack.c.l.b16 %v1112
      %v1303 = vunpack.c.h.b16 %v1112
      %v1304 = vunpack.c.l.b16 %v1113
      %v1305 = vunpack.c.h.b16 %v1113
      %v1306 = vunpack.c.l.b16 %v1114
      %v1307 = vunpack.c.h.b16 %v1114
      %v1308 = vunpack.c.l.b16 %v1115
      %v1309 = vunpack.c.h.b16 %v1115
      %v1310 = vunpack.c.l.b16 %v1116
      %v1311 = vunpack.c.h.b16 %v1116
      %v1312 = vunpack.c.l.b16 %v1117
      %v1313 = vunpack.c.h.b16 %v1117
      %v1314 = vunpack.c.l.b16 %v1118
      %v1315 = vunpack.c.h.b16 %v1118
      %v1316 = vunpack.c.l.b16 %v1119
      %v1317 = vunpack.c.h.b16 %v1119
      %v1318 = vunpack.c.l.b16 %v1120
      %v1319 = vunpack.c.h.b16 %v1120
      %v1320 = vunpack.c.l.b16 %v1121
      %v1321 = vunpack.c.h.b16 %v1121
      %v1322 = vunpack.c.l.b16 %v1122
      %v1323 = vunpack.c.h.b16 %v1122
      %v1324 = vunpack.c.l.b16 %v1123
      %v1325 = vunpack.c.h.b16 %v1123
      %v1326 = vunpack.c.l.b16 %v1124
      %v1327 = vunpack.c.h.b16 %v1124
      %v1328 = vunpack.c.l.b16 %v1125
      %v1329 = vunpack.c.h.b16 %v1125
      %v1330 = vunpack.c.l.b16 %v1126
      %v1331 = vunpack.c.h.b16 %v1126
      %v1332 = vunpack.c.l.b16 %v1127
      %v1333 = vunpack.c.h.b16 %v1127
      %v1334 = vunpack.c.l.b16 %v1128
      %v1335 = vunpack.c.h.b16 %v1128
      %v1336 = vunpack.c.l.b16 %v1129
      %v1337 = vunpack.c.h.b16 %v1129
      %v1338 = vunpack.c.l.b16 %v1130
      %v1339 = vunpack.c.h.b16 %v1130
      %v1340 = vunpack.c.l.b16 %v1131
      %v1341 = vunpack.c.h.b16 %v1131
      %v1342 = vunpack.c.l.b16 %v1132
      %v1343 = vunpack.c.h.b16 %v1132
      %v1344 = vunpack.c.l.b16 %v1133
      %v1345 = vunpack.c.h.b16 %v1133
      %v1346 = vunpack.c.l.b16 %v1134
      %v1347 = vunpack.c.h.b16 %v1134
      %v1348 = vunpack.c.l.b16 %v1135
      %v1349 = vunpack.c.h.b16 %v1135
      %v1350 = vunpack.c.l.b16 %v1136
      %v1351 = vunpack.c.h.b16 %v1136
      %v1352 = vunpack.c.l.b16 %v1137
      %v1353 = vunpack.c.h.b16 %v1137
      %v1354 = vunpack.c.l.b16 %v1138
      %v1355 = vunpack.c.h.b16 %v1138
      %v1356 = vunpack.c.l.b16 %v1139
      %v1357 = vunpack.c.h.b16 %v1139
      %v1358 = vunpack.c.l.b16 %v1140
      %v1359 = vunpack.c.h.b16 %v1140
      %v1360 = vunpack.c.l.b16 %v1141
      %v1361 = vunpack.c.h.b16 %v1141
      %v1362 = vunpack.c.l.b16 %v1142
      %v1363 = vunpack.c.h.b16 %v1142
      %v1364 = vunpack.c.l.b16 %v1143
      %v1365 = vunpack.c.h.b16 %v1143
      %v1366 = vunpack.c.l.b16 %v1144
      %v1367 = vunpack.c.h.b16 %v1144
      %v1368 = vunpack.c.l.b16 %v1145
      %v1369 = vunpack.c.h.b16 %v1145
      %v1370 = vunpack.c.l.b16 %v1146
      %v1371 = vunpack.c.h.b16 %v1146
      %v1372 = vunpack.c.l.b16 %v1147
      %v1373 = vunpack.c.h.b16 %v1147
      %v1374 = vunpack.c.l.b16 %v1148
      %v1375 = vunpack.c.h.b16 %v1148
      %v1376 = vunpack.c.l.b16 %v1149
      %v1377 = vunpack.c.h.b16 %v1149
      %v1378 = vunpack.c.l.b16 %v1150
      %v1379 = vunpack.c.h.b16 %v1150
      %v1380 = vunpack.c.l.b16 %v1151
      %v1381 = vunpack.c.h.b16 %v1151
      %v1382 = vunpack.c.l.b16 %v1152
      %v1383 = vunpack.c.h.b16 %v1152
      %v1384 = vunpack.c.l.b16 %v1153
      %v1385 = vunpack.c.h.b16 %v1153
      %v1386 = vunpack.c.l.b16 %v1154
      %v1387 = vunpack.c.h.b16 %v1154
      %v1388 = vunpack.c.l.b16 %v1155
      %v1389 = vunpack.c.h.b16 %v1155
      %v1390 = vunpack.c.l.b16 %v1156
      %v1391 = vunpack.c.h.b16 %v1156
      %v1392 = vunpack.c.l.b16 %v1157
      %v1393 = vunpack.c.h.b16 %v1157
      %v1394 = vunpack.c.l.b16 %v1158
      %v1395 = vunpack.c.h.b16 %v1158
      %v1396 = vunpack.c.l.b16 %v1159
      %v1397 = vunpack.c.h.b16 %v1159
      %v1398 = vunpack.c.l.b16 %v1160
      %v1399 = vunpack.c.h.b16 %v1160
      %v1400 = vunpack.c.l.b16 %v1161
      %v1401 = vunpack.c.h.b16 %v1161
      %v1402 = vunpack.c.l.b16 %v1162
      %v1403 = vunpack.c.h.b16 %v1162
      %v1404 = vunpack.c.l.b16 %v1163
      %v1405 = vunpack.c.h.b16 %v1163
      %v1406 = vunpack.c.l.b16 %v1164
      %v1407 = vunpack.c.h.b16 %v1164
      %v1408 = vunpack.c.l.b16 %v1165
      %v1409 = vunpack.c.h.b16 %v1165
      %v1410 = vunpack.c.l.b16 %v1166
      %v1411 = vunpack.c.h.b16 %v1166
      %v1412 = vunpack.c.l.b16 %v1167
      %v1413 = vunpack.c.h.b16 %v1167
      %v1414 = vunpack.c.l.b16 %v1168
      %v1415 = vunpack.c.h.b16 %v1168
      %v1416 = vunpack.c.l.b16 %v1169
      %v1417 = vunpack.c.h.b16 %v1169
      %v1418 = vunpack.c.l.b16 %v1170
      %v1419 = vunpack.c.h.b16 %v1170
      %v1420 = vunpack.c.l.b16 %v1171
      %v1421 = vunpack.c.h.b16 %v1171
      %v1422 = vunpack.c.l.b16 %v1172
      %v1423 = vunpack.c.h.b16 %v1172
      %v1424 = vunpack.c.l.b16 %v1173
      %v1425 = vunpack.c.h.b16 %v1173
      %v1426 = vunpack.c.l.b16 %v1174
      %v1427 = vunpack.c.h.b16 %v1174
      %v1428 = vunpack.c.l.b16 %v1175
      %v1429 = vunpack.c.h.b16 %v1175
      %v1430 = vunpack.c.l.b16 %v1176
      %v1431 = vunpack.c.h.b16 %v1176
      %v1432 = vunpack.c.l.b16 %v1177
      %v1433 = vunpack.c.h.b16 %v1177
      %v1434 = vunpack.c.l.b16 %v1178
      %v1435 = vunpack.c.h.b16 %v1178
      %v1436 = vunpack.c.l.b16 %v1179
      %v1437 = vunpack.c.h.b16 %v1179
      %v1438 = vunpack.c.l.b16 %v1180
      %v1439 = vunpack.c.h.b16 %v1180
      %v1440 = vunpack.c.l.b16 %v1181
      %v1441 = vunpack.c.h.b16 %v1181
      %v1442 = vunpack.c.l.b16 %v1182
      %v1443 = vunpack.c.h.b16 %v1182
      %v1444 = vunpack.c.l.b16 %v1183
      %v1445 = vunpack.c.h.b16 %v1183
      %v1446 = vunpack.c.l.b16 %v1184
      %v1447 = vunpack.c.h.b16 %v1184
      %v1448 = vunpack.c.l.b16 %v1185
      %v1449 = vunpack.c.h.b16 %v1185
      %v1450 = vunpack.c.l.b16 %v1186
      %v1451 = vunpack.c.h.b16 %v1186
      %v1452 = vunpack.c.l.b16 %v1187
      %v1453 = vunpack.c.h.b16 %v1187
      %v1454 = vunpack.c.l.b16 %v1188
      %v1455 = vunpack.c.h.b16 %v1188
      %v1456 = vunpack.c.l.b16 %v1189
      %v1457 = vunpack.c.h.b16 %v1189
      %v1458 = vunpack.c.l.b16 %v1190
      %v1459 = vunpack.c.h.b16 %v1190
      %v1460 = vunpack.c.l.b16 %v1191
      %v1461 = vunpack.c.h.b16 %v1191
      %v1462 = vunpack.c.l.b16 %v1192
      %v1463 = vunpack.c.h.b16 %v1192
      %v1464 = vunpack.c.l.b16 %v1193
      %v1465 = vunpack.c.h.b16 %v1193
      %v1466 = vunpack.c.l.b16 %v1194
      %v1467 = vunpack.c.h.b16 %v1194
      %v1468 = vunpack.c.l.b16 %v1195
      %v1469 = vunpack.c.h.b16 %v1195
      %v1470 = vunpack.c.l.b16 %v1196
      %v1471 = vunpack.c.h.b16 %v1196
      %v1472 = vunpack.c.l.b16 %v1197
      %v1473 = vunpack.c.h.b16 %v1197
      %v1474 = vpack.c.b16 %v1304, %v1294
      %v1475 = vpack.c.b16 %v1305, %v1295
      %v1476 = vpack.c.b16 %v1306, %v1296
      %v1477 = vpack.c.b16 %v1307, %v1297
      %v1478 = vpack.c.b16 %v1308, %v1298
      %v1479 = vpack.c.b16 %v1309, %v1299
      %v1480 = vpack.c.b16 %v1310, %v1300
      %v1481 = vpack.c.b16 %v1311, %v1301
      %v1482 = vpack.c.b16 %v1312, %v1302
      %v1483 = vpack.c.b16 %v1313, %v1303
      %v1484 = vpack.c.b16 %v1324, %v1314
      %v1485 = vpack.c.b16 %v1325, %v1315
      %v1486 = vpack.c.b16 %v1326, %v1316
      %v1487 = vpack.c.b16 %v1327, %v1317
      %v1488 = vpack.c.b16 %v1328, %v1318
      %v1489 = vpack.c.b16 %v1329, %v1319
      %v1490 = vpack.c.b16 %v1330, %v1320
      %v1491 = vpack.c.b16 %v1331, %v1321
      %v1492 = vpack.c.b16 %v1332, %v1322
      %v1493 = vpack.c.b16 %v1333, %v1323
      %v1494 = vpack.c.b16 %v1344, %v1334
      %v1495 = vpack.c.b16 %v1345, %v1335
      %v1496 = vpack.c.b16 %v1346, %v1336
      %v1497 = vpack.c.b16 %v1347, %v1337
      %v1498 = vpack.c.b16 %v1348, %v1338
      %v1499 = vpack.c.b16 %v1349, %v1339
      %v1500 = vpack.c.b16 %v1350, %v1340
      %v1501 = vpack.c.b16 %v1351, %v1341
      %v1502 = vpack.c.b16 %v1352, %v1342
      %v1503 = vpack.c.b16 %v1353, %v1343
      %v1504 = vpack.c.b16 %v1364, %v1354
      %v1505 = vpack.c.b16 %v1365, %v1355
      %v1506 = vpack.c.b16 %v1366, %v1356
      %v1507 = vpack.c.b16 %v1367, %v1357
      %v1508 = vpack.c.b16 %v1368, %v1358
      %v1509 = vpack.c.b16 %v1369, %v1359
      %v1510 = vpack.c.b16 %v1370, %v1360
      %v1511 = vpack.c.b16 %v1371, %v1361
      %v1512 = vpack.c.b16 %v1372, %v1362
      %v1513 = vpack.c.b16 %v1373, %v1363
      %v1514 = vpack.c.b16 %v1384, %v1374
      %v1515 = vpack.c.b16 %v1385, %v1375
      %v1516 = vpack.c.b16 %v1386, %v1376
      %v1517 = vpack.c.b16 %v1387, %v1377
      %v1518 = vpack.c.b16 %v1388, %v1378
      %v1519 = vpack.c.b16 %v1389, %v1379
      %v1520 = vpack.c.b16 %v1390, %v1380
      %v1521 = vpack.c.b16 %v1391, %v1381
      %v1522 = vpack.c.b16 %v1392, %v1382
      %v1523 = vpack.c.b16 %v1393, %v1383
      %v1524 = vpack.c.b16 %v1404, %v1394
      %v1525 = vpack.c.b16 %v1405, %v1395
      %v1526 = vpack.c.b16 %v1406, %v1396
      %v1527 = vpack.c.b16 %v1407, %v1397
      %v1528 = vpack.c.b16 %v1408, %v1398
      %v1529 = vpack.c.b16 %v1409, %v1399
      %v1530 = vpack.c.b16 %v1410, %v1400
      %v1531 = vpack.c.b16 %v1411, %v1401
      %v1532 = vpack.c.b16 %v1412, %v1402
      %v1533 = vpack.c.b16 %v1413, %v1403
      %v1534 = vpack.c.b16 %v1424, %v1414
      %v1535 = vpack.c.b16 %v1425, %v1415
      %v1536 = vpack.c.b16 %v1426, %v1416
      %v1537 = vpack.c.b16 %v1427, %v1417
      %v1538 = vpack.c.b16 %v1428, %v1418
      %v1539 = vpack.c.b16 %v1429, %v1419
      %v1540 = vpack.c.b16 %v1430, %v1420
      %v1541 = vpack.c.b16 %v1431, %v1421
      %v1542 = vpack.c.b16 %v1432, %v1422
      %v1543 = vpack.c.b16 %v1433, %v1423
      %v1544 = vpack.c.b16 %v1444, %v1434
      %v1545 = vpack.c.b16 %v1445, %v1435
      %v1546 = vpack.c.b16 %v1446, %v1436
      %v1547 = vpack.c.b16 %v1447, %v1437
      %v1548 = vpack.c.b16 %v1448, %v1438
      %v1549 = vpack.c.b16 %v1449, %v1439
      %v1550 = vpack.c.b16 %v1450, %v1440
      %v1551 = vpack.c.b16 %v1451, %v1441
      %v1552 = vpack.c.b16 %v1452, %v1442
      %v1553 = vpack.c.b16 %v1453, %v1443
      %v1554 = vpack.c.b16 %v1464, %v1454
      %v1555 = vpack.c.b16 %v1465, %v1455
      %v1556 = vpack.c.b16 %v1466, %v1456
      %v1557 = vpack.c.b16 %v1467, %v1457
      %v1558 = vpack.c.b16 %v1468, %v1458
      %v1559 = vpack.c.b16 %v1469, %v1459
      %v1560 = vpack.c.b16 %v1470, %v1460
      %v1561 = vpack.c.b16 %v1471, %v1461
      %v1562 = vpack.c.b16 %v1472, %v1462
      %v1563 = vpack.c.b16 %v1473, %v1463
      %vm1654 = vcmask 130048
      %v1656 = vsel %vm1654, %v1202, 0
      %1658 = vmatpush.bf16.msra.mxu0 %v1544
      %1659 = vmatpush.bf16.msra.mxu0 %v1534
      %1660 = vmatpush.bf16.msra.mxu0 %v1524
      %1661 = vmatpush.bf16.msra.mxu0 %v1514
      %1662 = vmatpush.bf16.msra.mxu0 %v1504
      %1663 = vmatpush.bf16.msra.mxu0 %v1494
      %1664 = vmatpush.bf16.msra.mxu0 %v1484
      %1665 = vmatpush.bf16.msra.mxu0 %v1474
      %1666 = vmatmul.bf16.gmra.mxu0 %v1201
      %v1667 = vpop.f32.mrf.mxu0
      %v1668 = vadd.f32 0.0, %v1667
      %v1669 = vpop.f32.mrf.mxu0
      %1670 = vdwg.mxu0
      %1671 = vmatpush.bf16.msra.mxu0 0
      %1672 = vmatpush.bf16.msra.mxu0 0
      %1673 = vmatpush.bf16.msra.mxu0 0
      %1674 = vmatpush.bf16.msra.mxu0 0
      %1675 = vmatpush.bf16.msra.mxu0 0
      %1676 = vmatpush.bf16.msra.mxu0 0
      %1677 = vmatpush.bf16.msra.mxu0 0
      %1678 = vmatpush.bf16.msra.mxu0 %v1554
      %1679 = vmatmul.bf16.gmra.mxu0 %v1656
      %v1680 = vpop.f32.mrf.mxu0
      %v1681 = vadd.f32 %v1668, %v1680
      %v1682 = vpop.f32.mrf.mxu0
      %1683 = vdwg.mxu0
      %1684 = vmatpush.bf16.msra.mxu0 %v1545
      %1685 = vmatpush.bf16.msra.mxu0 %v1535
      %1686 = vmatpush.bf16.msra.mxu0 %v1525
      %1687 = vmatpush.bf16.msra.mxu0 %v1515
      %1688 = vmatpush.bf16.msra.mxu0 %v1505
      %1689 = vmatpush.bf16.msra.mxu0 %v1495
      %1690 = vmatpush.bf16.msra.mxu0 %v1485
      %1691 = vmatpush.bf16.msra.mxu0 %v1475
      %1692 = vmatmul.bf16.gmra.mxu0 %v1201
      %v1693 = vpop.f32.mrf.mxu0
      %v1694 = vadd.f32 0.0, %v1693
      %v1695 = vpop.f32.mrf.mxu0
      %1696 = vdwg.mxu0
      %1697 = vmatpush.bf16.msra.mxu0 0
      %1698 = vmatpush.bf16.msra.mxu0 0
      %1699 = vmatpush.bf16.msra.mxu0 0
      %1700 = vmatpush.bf16.msra.mxu0 0
      %1701 = vmatpush.bf16.msra.mxu0 0
      %1702 = vmatpush.bf16.msra.mxu0 0
      %1703 = vmatpush.bf16.msra.mxu0 0
      %1704 = vmatpush.bf16.msra.mxu0 %v1555
      %1705 = vmatmul.bf16.gmra.mxu0 %v1656
      %v1706 = vpop.f32.mrf.mxu0
      %v1707 = vadd.f32 %v1694, %v1706
      %v1708 = vpop.f32.mrf.mxu0
      %1709 = vdwg.mxu0
      %1710 = vmatpush.bf16.msra.mxu0 %v1546
      %1711 = vmatpush.bf16.msra.mxu0 %v1536
      %1712 = vmatpush.bf16.msra.mxu0 %v1526
      %1713 = vmatpush.bf16.msra.mxu0 %v1516
      %1714 = vmatpush.bf16.msra.mxu0 %v1506
      %1715 = vmatpush.bf16.msra.mxu0 %v1496
      %1716 = vmatpush.bf16.msra.mxu0 %v1486
      %1717 = vmatpush.bf16.msra.mxu0 %v1476
      %1718 = vmatmul.bf16.gmra.mxu0 %v1201
      %v1719 = vpop.f32.mrf.mxu0
      %v1720 = vadd.f32 0.0, %v1719
      %v1721 = vpop.f32.mrf.mxu0
      %1722 = vdwg.mxu0
      %1723 = vmatpush.bf16.msra.mxu0 0
      %1724 = vmatpush.bf16.msra.mxu0 0
      %1725 = vmatpush.bf16.msra.mxu0 0
      %1726 = vmatpush.bf16.msra.mxu0 0
      %1727 = vmatpush.bf16.msra.mxu0 0
      %1728 = vmatpush.bf16.msra.mxu0 0
      %1729 = vmatpush.bf16.msra.mxu0 0
      %1730 = vmatpush.bf16.msra.mxu0 %v1556
      %1731 = vmatmul.bf16.gmra.mxu0 %v1656
      %v1732 = vpop.f32.mrf.mxu0
      %v1733 = vadd.f32 %v1720, %v1732
      %v1734 = vpop.f32.mrf.mxu0
      %1735 = vdwg.mxu0
      %1736 = vmatpush.bf16.msra.mxu0 %v1547
      %1737 = vmatpush.bf16.msra.mxu0 %v1537
      %1738 = vmatpush.bf16.msra.mxu0 %v1527
      %1739 = vmatpush.bf16.msra.mxu0 %v1517
      %1740 = vmatpush.bf16.msra.mxu0 %v1507
      %1741 = vmatpush.bf16.msra.mxu0 %v1497
      %1742 = vmatpush.bf16.msra.mxu0 %v1487
      %1743 = vmatpush.bf16.msra.mxu0 %v1477
      %1744 = vmatmul.bf16.gmra.mxu0 %v1201
      %v1745 = vpop.f32.mrf.mxu0
      %v1746 = vadd.f32 0.0, %v1745
      %v1747 = vpop.f32.mrf.mxu0
      %1748 = vdwg.mxu0
      %1749 = vmatpush.bf16.msra.mxu0 0
      %1750 = vmatpush.bf16.msra.mxu0 0
      %1751 = vmatpush.bf16.msra.mxu0 0
      %1752 = vmatpush.bf16.msra.mxu0 0
      %1753 = vmatpush.bf16.msra.mxu0 0
      %1754 = vmatpush.bf16.msra.mxu0 0
      %1755 = vmatpush.bf16.msra.mxu0 0
      %1756 = vmatpush.bf16.msra.mxu0 %v1557
      %1757 = vmatmul.bf16.gmra.mxu0 %v1656
      %v1758 = vpop.f32.mrf.mxu0
      %v1759 = vadd.f32 %v1746, %v1758
      %v1760 = vpop.f32.mrf.mxu0
      %1761 = vdwg.mxu0
      %1762 = vmatpush.bf16.msra.mxu0 %v1548
      %1763 = vmatpush.bf16.msra.mxu0 %v1538
      %1764 = vmatpush.bf16.msra.mxu0 %v1528
      %1765 = vmatpush.bf16.msra.mxu0 %v1518
      %1766 = vmatpush.bf16.msra.mxu0 %v1508
      %1767 = vmatpush.bf16.msra.mxu0 %v1498
      %1768 = vmatpush.bf16.msra.mxu0 %v1488
      %1769 = vmatpush.bf16.msra.mxu0 %v1478
      %1770 = vmatmul.bf16.gmra.mxu0 %v1201
      %v1771 = vpop.f32.mrf.mxu0
      %v1772 = vadd.f32 0.0, %v1771
      %v1773 = vpop.f32.mrf.mxu0
      %1774 = vdwg.mxu0
      %1775 = vmatpush.bf16.msra.mxu0 0
      %1776 = vmatpush.bf16.msra.mxu0 0
      %1777 = vmatpush.bf16.msra.mxu0 0
      %1778 = vmatpush.bf16.msra.mxu0 0
      %1779 = vmatpush.bf16.msra.mxu0 0
      %1780 = vmatpush.bf16.msra.mxu0 0
      %1781 = vmatpush.bf16.msra.mxu0 0
      %1782 = vmatpush.bf16.msra.mxu0 %v1558
      %1783 = vmatmul.bf16.gmra.mxu0 %v1656
      %v1784 = vpop.f32.mrf.mxu0
      %v1785 = vadd.f32 %v1772, %v1784
      %v1786 = vpop.f32.mrf.mxu0
      %1787 = vdwg.mxu0
      %1788 = vmatpush.bf16.msra.mxu0 %v1549
      %1789 = vmatpush.bf16.msra.mxu0 %v1539
      %1790 = vmatpush.bf16.msra.mxu0 %v1529
      %1791 = vmatpush.bf16.msra.mxu0 %v1519
      %1792 = vmatpush.bf16.msra.mxu0 %v1509
      %1793 = vmatpush.bf16.msra.mxu0 %v1499
      %1794 = vmatpush.bf16.msra.mxu0 %v1489
      %1795 = vmatpush.bf16.msra.mxu0 %v1479
      %1796 = vmatmul.bf16.gmra.mxu0 %v1201
      %v1797 = vpop.f32.mrf.mxu0
      %v1798 = vadd.f32 0.0, %v1797
      %v1799 = vpop.f32.mrf.mxu0
      %1800 = vdwg.mxu0
      %1801 = vmatpush.bf16.msra.mxu0 0
      %1802 = vmatpush.bf16.msra.mxu0 0
      %1803 = vmatpush.bf16.msra.mxu0 0
      %1804 = vmatpush.bf16.msra.mxu0 0
      %1805 = vmatpush.bf16.msra.mxu0 0
      %1806 = vmatpush.bf16.msra.mxu0 0
      %1807 = vmatpush.bf16.msra.mxu0 0
      %1808 = vmatpush.bf16.msra.mxu0 %v1559
      %1809 = vmatmul.bf16.gmra.mxu0 %v1656
      %v1810 = vpop.f32.mrf.mxu0
      %v1811 = vadd.f32 %v1798, %v1810
      %v1812 = vpop.f32.mrf.mxu0
      %1813 = vdwg.mxu0
      %1814 = vmatpush.bf16.msra.mxu0 %v1550
      %1815 = vmatpush.bf16.msra.mxu0 %v1540
      %1816 = vmatpush.bf16.msra.mxu0 %v1530
      %1817 = vmatpush.bf16.msra.mxu0 %v1520
      %1818 = vmatpush.bf16.msra.mxu0 %v1510
      %1819 = vmatpush.bf16.msra.mxu0 %v1500
      %1820 = vmatpush.bf16.msra.mxu0 %v1490
      %1821 = vmatpush.bf16.msra.mxu0 %v1480
      %1822 = vmatmul.bf16.gmra.mxu0 %v1201
      %v1823 = vpop.f32.mrf.mxu0
      %v1824 = vadd.f32 0.0, %v1823
      %v1825 = vpop.f32.mrf.mxu0
      %1826 = vdwg.mxu0
      %1827 = vmatpush.bf16.msra.mxu0 0
      %1828 = vmatpush.bf16.msra.mxu0 0
      %1829 = vmatpush.bf16.msra.mxu0 0
      %1830 = vmatpush.bf16.msra.mxu0 0
      %1831 = vmatpush.bf16.msra.mxu0 0
      %1832 = vmatpush.bf16.msra.mxu0 0
      %1833 = vmatpush.bf16.msra.mxu0 0
      %1834 = vmatpush.bf16.msra.mxu0 %v1560
      %1835 = vmatmul.bf16.gmra.mxu0 %v1656
      %v1836 = vpop.f32.mrf.mxu0
      %v1837 = vadd.f32 %v1824, %v1836
      %v1838 = vpop.f32.mrf.mxu0
      %1839 = vdwg.mxu0
      %1840 = vmatpush.bf16.msra.mxu0 %v1551
      %1841 = vmatpush.bf16.msra.mxu0 %v1541
      %1842 = vmatpush.bf16.msra.mxu0 %v1531
      %1843 = vmatpush.bf16.msra.mxu0 %v1521
      %1844 = vmatpush.bf16.msra.mxu0 %v1511
      %1845 = vmatpush.bf16.msra.mxu0 %v1501
      %1846 = vmatpush.bf16.msra.mxu0 %v1491
      %1847 = vmatpush.bf16.msra.mxu0 %v1481
      %1848 = vmatmul.bf16.gmra.mxu0 %v1201
      %v1849 = vpop.f32.mrf.mxu0
      %v1850 = vadd.f32 0.0, %v1849
      %v1851 = vpop.f32.mrf.mxu0
      %1852 = vdwg.mxu0
      %1853 = vmatpush.bf16.msra.mxu0 0
      %1854 = vmatpush.bf16.msra.mxu0 0
      %1855 = vmatpush.bf16.msra.mxu0 0
      %1856 = vmatpush.bf16.msra.mxu0 0
      %1857 = vmatpush.bf16.msra.mxu0 0
      %1858 = vmatpush.bf16.msra.mxu0 0
      %1859 = vmatpush.bf16.msra.mxu0 0
      %1860 = vmatpush.bf16.msra.mxu0 %v1561
      %1861 = vmatmul.bf16.gmra.mxu0 %v1656
      %v1862 = vpop.f32.mrf.mxu0
      %v1863 = vadd.f32 %v1850, %v1862
      %v1864 = vpop.f32.mrf.mxu0
      %1865 = vdwg.mxu0
      %1866 = vmatpush.bf16.msra.mxu0 %v1552
      %1867 = vmatpush.bf16.msra.mxu0 %v1542
      %1868 = vmatpush.bf16.msra.mxu0 %v1532
      %1869 = vmatpush.bf16.msra.mxu0 %v1522
      %1870 = vmatpush.bf16.msra.mxu0 %v1512
      %1871 = vmatpush.bf16.msra.mxu0 %v1502
      %1872 = vmatpush.bf16.msra.mxu0 %v1492
      %1873 = vmatpush.bf16.msra.mxu0 %v1482
      %1874 = vmatmul.bf16.gmra.mxu0 %v1201
      %v1875 = vpop.f32.mrf.mxu0
      %v1876 = vadd.f32 0.0, %v1875
      %v1877 = vpop.f32.mrf.mxu0
      %1878 = vdwg.mxu0
      %1879 = vmatpush.bf16.msra.mxu0 0
      %1880 = vmatpush.bf16.msra.mxu0 0
      %1881 = vmatpush.bf16.msra.mxu0 0
      %1882 = vmatpush.bf16.msra.mxu0 0
      %1883 = vmatpush.bf16.msra.mxu0 0
      %1884 = vmatpush.bf16.msra.mxu0 0
      %1885 = vmatpush.bf16.msra.mxu0 0
      %1886 = vmatpush.bf16.msra.mxu0 %v1562
      %1887 = vmatmul.bf16.gmra.mxu0 %v1656
      %v1888 = vpop.f32.mrf.mxu0
      %v1889 = vadd.f32 %v1876, %v1888
      %v1890 = vpop.f32.mrf.mxu0
      %1891 = vdwg.mxu0
      %1892 = vmatpush.bf16.msra.mxu0 %v1553
      %1893 = vmatpush.bf16.msra.mxu0 %v1543
      %1894 = vmatpush.bf16.msra.mxu0 %v1533
      %1895 = vmatpush.bf16.msra.mxu0 %v1523
      %1896 = vmatpush.bf16.msra.mxu0 %v1513
      %1897 = vmatpush.bf16.msra.mxu0 %v1503
      %1898 = vmatpush.bf16.msra.mxu0 %v1493
      %1899 = vmatpush.bf16.msra.mxu0 %v1483
      %1900 = vmatmul.bf16.gmra.mxu0 %v1201
      %v1901 = vpop.f32.mrf.mxu0
      %v1902 = vadd.f32 0.0, %v1901
      %v1903 = vpop.f32.mrf.mxu0
      %1904 = vdwg.mxu0
      %1905 = vmatpush.bf16.msra.mxu0 0
      %1906 = vmatpush.bf16.msra.mxu0 0
      %1907 = vmatpush.bf16.msra.mxu0 0
      %1908 = vmatpush.bf16.msra.mxu0 0
      %1909 = vmatpush.bf16.msra.mxu0 0
      %1910 = vmatpush.bf16.msra.mxu0 0
      %1911 = vmatpush.bf16.msra.mxu0 0
      %1912 = vmatpush.bf16.msra.mxu0 %v1563
      %1913 = vmatmul.bf16.gmra.mxu0 %v1656
      %v1914 = vpop.f32.mrf.mxu0
      %v1915 = vadd.f32 %v1902, %v1914
      %v1916 = vpop.f32.mrf.mxu0
      %1917 = vdwg.mxu0
      %v1920 = vperm.slane %v300, 0
      %v1921 = vperm.slane %v300, 1
      %v1922 = vperm.slane %v300, 2
      %v1923 = vperm.slane %v300, 3
      %v1924 = vperm.slane %v300, 4
      %v1925 = vperm.slane %v300, 5
      %v1926 = vperm.slane %v300, 6
      %v1927 = vperm.slane %v300, 7
      %v1928 = vperm.slane %v301, 0
      %v1929 = vperm.slane %v301, 1
      %v1940 = vmul.f32 %v1681, %v1920
      %v1941 = vmul.f32 %v1707, %v1921
      %v1942 = vmul.f32 %v1733, %v1922
      %v1943 = vmul.f32 %v1759, %v1923
      %v1944 = vmul.f32 %v1785, %v1924
      %v1945 = vmul.f32 %v1811, %v1925
      %v1946 = vmul.f32 %v1837, %v1926
      %v1947 = vmul.f32 %v1863, %v1927
      %v1948 = vmul.f32 %v1889, %v1928
      %v1949 = vmul.f32 %v1915, %v1929
      %v1950 = vadd.f32 %v1940, %v1941
      %v1951 = vadd.f32 %v1950, %v1942
      %v1952 = vadd.f32 %v1951, %v1943
      %v1953 = vadd.f32 %v1952, %v1944
      %v1954 = vadd.f32 %v1953, %v1945
      %v1955 = vadd.f32 %v1954, %v1946
      %v1956 = vadd.f32 %v1955, %v1947
      %v1957 = vadd.f32 %v1956, %v1948
      %vm1958 = vcmask 31744
      %v1959 = vsel %vm1958, %v1949, 0.0
      %v1960 = vadd.f32 %v1957, %v1959
      %1961 = vadd.xlane.f32.xlu0 %v1960
      %v1962 = vpop.xlane.xlu0 %1961
      %v1963 = vmul.f32 %v1962, 0.0009765625
      %v1964 = vsub.f32 %v1681, %v1963
      %v1965 = vsub.f32 %v1707, %v1963
      %v1966 = vsub.f32 %v1733, %v1963
      %v1967 = vsub.f32 %v1759, %v1963
      %v1968 = vsub.f32 %v1785, %v1963
      %v1969 = vsub.f32 %v1811, %v1963
      %v1970 = vsub.f32 %v1837, %v1963
      %v1971 = vsub.f32 %v1863, %v1963
      %v1972 = vsub.f32 %v1889, %v1963
      %v1973 = vsub.f32 %v1915, %v1963
      %v1974 = vmul.f32 %v1964, %v1920
      %v1975 = vmul.f32 %v1965, %v1921
      %v1976 = vmul.f32 %v1966, %v1922
      %v1977 = vmul.f32 %v1967, %v1923
      %v1978 = vmul.f32 %v1968, %v1924
      %v1979 = vmul.f32 %v1969, %v1925
      %v1980 = vmul.f32 %v1970, %v1926
      %v1981 = vmul.f32 %v1971, %v1927
      %v1982 = vmul.f32 %v1972, %v1928
      %v1983 = vmul.f32 %v1973, %v1929
      %v1984 = vmul.f32 %v1974, %v1974
      %v1985 = vmul.f32 %v1975, %v1975
      %v1986 = vmul.f32 %v1976, %v1976
      %v1987 = vmul.f32 %v1977, %v1977
      %v1988 = vmul.f32 %v1978, %v1978
      %v1989 = vmul.f32 %v1979, %v1979
      %v1990 = vmul.f32 %v1980, %v1980
      %v1991 = vmul.f32 %v1981, %v1981
      %v1992 = vmul.f32 %v1982, %v1982
      %v1993 = vmul.f32 %v1983, %v1983
      %v1994 = vadd.f32 %v1984, %v1985
      %v1995 = vadd.f32 %v1994, %v1986
      %v1996 = vadd.f32 %v1995, %v1987
      %v1997 = vadd.f32 %v1996, %v1988
      %v1998 = vadd.f32 %v1997, %v1989
      %v1999 = vadd.f32 %v1998, %v1990
      %v2000 = vadd.f32 %v1999, %v1991
      %v2001 = vadd.f32 %v2000, %v1992
      %v2002 = vsel %vm1958, %v1993, 0.0
      %v2003 = vadd.f32 %v2001, %v2002
      %2004 = vadd.xlane.f32.xlu0 %v2003
      %v2005 = vpop.xlane.xlu0 %2004
      %v2006 = vmul.f32 %v2005, 0.0009765625
      %v2007 = vadd.f32 %v2006, 1e-05
      %v2008 = vrsqrt.pop %v2007
      %v2009 = vmul.f32 %v2008, %v2007
      %v2010 = vmul.f32 %v2009, %v2008
      %v2011 = vmul.f32 0.5, %v2010
      %v2012 = vsub.f32 1.5, %v2011
      %v2013 = vmul.f32 %v2008, %v2012
      %vm2014 = vweird.f32 %v2007
      %vm2015 = vweird.f32 %v2008
      %vm2016 = vmor %vm2014, %vm2015
      %v2017 = vsel %vm2016, %v2008, %v2013
      %v2018 = vmul.f32 %v1974, %v2017
      %v2019 = vmul.f32 %v1975, %v2017
      %v2020 = vmul.f32 %v1976, %v2017
      %v2021 = vmul.f32 %v1977, %v2017
      %v2022 = vmul.f32 %v1978, %v2017
      %v2023 = vmul.f32 %v1979, %v2017
      %v2024 = vmul.f32 %v1980, %v2017
      %v2025 = vmul.f32 %v1981, %v2017
      %v2026 = vmul.f32 %v1982, %v2017
      %v2027 = vmul.f32 %v1983, %v2017
      %v2028 = vmax.f32 %v2018, 0.0
      %v2029 = vmax.f32 %v2019, 0.0
      %v2030 = vmax.f32 %v2020, 0.0
      %v2031 = vmax.f32 %v2021, 0.0
      %v2032 = vmax.f32 %v2022, 0.0
      %v2033 = vmax.f32 %v2023, 0.0
      %v2034 = vmax.f32 %v2024, 0.0
      %v2035 = vmax.f32 %v2025, 0.0
      %v2036 = vmax.f32 %v2026, 0.0
      %v2037 = vmax.f32 %v2027, 0.0
      %2038 = vst [vmem:[#allocation3] sm:$0xf] 0
      %vm2039 = vcmask 1043488
      %2040 = vst.msk [vmem:[#allocation3 + $0x28] sm:$0xf] %vm2039, 0
      %v2041 = vpack.c.bf16 %v2029, %v2028
      %v2042 = vpack.c.bf16 %v2031, %v2030
      %v2043 = vpack.c.bf16 %v2033, %v2032
      %v2044 = vpack.c.bf16 %v2035, %v2034
      %v2045 = vpack.c.bf16 %v2037, %v2036
      %2046 = vst [vmem:[#allocation3 + $0x4] sm:$0xff] %v2041
      %2047 = vst [vmem:[#allocation3 + $0xc] sm:$0xff] %v2042
      %2048 = vst [vmem:[#allocation3 + $0x14] sm:$0xff] %v2043
      %2049 = vst [vmem:[#allocation3 + $0x1c] sm:$0xff] %v2044
      %2050 = vst.msk [vmem:[#allocation3 + $0x24] sm:$0xff] %vm349, %v2045
      %v2051 = vld [vmem:[#allocation3] sm:$0xff]
      %v2052 = vld [vmem:[#allocation3 + $0x8] sm:$0xff]
      %v2053 = vld [vmem:[#allocation3 + $0x10] sm:$0xff]
      %v2054 = vld [vmem:[#allocation3 + $0x18] sm:$0xff]
      %v2055 = vld [vmem:[#allocation3 + $0x20] sm:$0xff]
      %2061 = vrot.lane.b32.xlu0 %v2051, 35
      %v2062 = vpop.permute.xlu0 %2061
      %2063 = vrot.lane.b32.xlu0 %v2052, 35
      %v2064 = vpop.permute.xlu0 %2063
      %2065 = vrot.lane.b32.xlu0 %v2053, 35
      %v2066 = vpop.permute.xlu0 %2065
      %2067 = vrot.lane.b32.xlu0 %v2054, 35
      %v2068 = vpop.permute.xlu0 %2067
      %2069 = vrot.lane.b32.xlu0 %v2055, 35
      %v2070 = vpop.permute.xlu0 %2069
      %v2071 = vrot.slane %v2062, 4
      %v2072 = vrot.slane %v2064, 4
      %v2073 = vrot.slane %v2066, 4
      %v2074 = vrot.slane %v2068, 4
      %v2075 = vrot.slane %v2070, 4
      %v2076 = vsel %vm327, %v2071, %v2072
      %vm2077 = vcmask 285696
      %v2078 = vsel %vm2077, %v2062, %v2076
      %v2079 = vsel %vm327, %v2072, %v2073
      %v2080 = vsel %vm2077, %v2064, %v2079
      %v2081 = vsel %vm327, %v2073, %v2074
      %v2082 = vsel %vm2077, %v2066, %v2081
      %v2083 = vsel %vm327, %v2074, %v2075
      %v2084 = vsel %vm2077, %v2068, %v2083
      %v2085 = vsel %vm2077, %v2070, %v2075
      %2091 = vst [vmem:[#allocation2] sm:$0xff] %v2078
      %2092 = vst [vmem:[#allocation2 + $0x8] sm:$0xff] %v2080
      %2093 = vst [vmem:[#allocation2 + $0x10] sm:$0xff] %v2082
      %2094 = vst [vmem:[#allocation2 + $0x18] sm:$0xff] %v2084
      %2095 = vst.msk [vmem:[#allocation2 + $0x20] sm:$0xff] %vm349, %v2085
      %v2096 = vld [vmem:[#allocation3] sm:$0xff]
      %v2097 = vld [vmem:[#allocation3 + $0x8] sm:$0xff]
      %v2098 = vld [vmem:[#allocation3 + $0x10] sm:$0xff]
      %v2099 = vld [vmem:[#allocation3 + $0x18] sm:$0xff]
      %v2100 = vld [vmem:[#allocation3 + $0x20] sm:$0xff]
      %2106 = vrot.lane.b32.xlu0 %v2096, 34
      %v2107 = vpop.permute.xlu0 %2106
      %2108 = vrot.lane.b32.xlu0 %v2097, 34
      %v2109 = vpop.permute.xlu0 %2108
      %2110 = vrot.lane.b32.xlu0 %v2098, 34
      %v2111 = vpop.permute.xlu0 %2110
      %2112 = vrot.lane.b32.xlu0 %v2099, 34
      %v2113 = vpop.permute.xlu0 %2112
      %2114 = vrot.lane.b32.xlu0 %v2100, 34
      %v2115 = vpop.permute.xlu0 %2114
      %v2116 = vrot.slane %v2107, 4
      %v2117 = vrot.slane %v2109, 4
      %v2118 = vrot.slane %v2111, 4
      %v2119 = vrot.slane %v2113, 4
      %v2120 = vrot.slane %v2115, 4
      %v2121 = vsel %vm327, %v2116, %v2117
      %vm2122 = vcmask 277504
      %v2123 = vsel %vm2122, %v2107, %v2121
      %v2124 = vsel %vm327, %v2117, %v2118
      %v2125 = vsel %vm2122, %v2109, %v2124
      %v2126 = vsel %vm327, %v2118, %v2119
      %v2127 = vsel %vm2122, %v2111, %v2126
      %v2128 = vsel %vm327, %v2119, %v2120
      %v2129 = vsel %vm2122, %v2113, %v2128
      %v2130 = vsel %vm2122, %v2115, %v2120
      %2136 = vst [vmem:[#allocation2 + $0x28] sm:$0xff] %v2123
      %2137 = vst [vmem:[#allocation2 + $0x30] sm:$0xff] %v2125
      %2138 = vst [vmem:[#allocation2 + $0x38] sm:$0xff] %v2127
      %2139 = vst [vmem:[#allocation2 + $0x40] sm:$0xff] %v2129
      %2140 = vst.msk [vmem:[#allocation2 + $0x48] sm:$0xff] %vm349, %v2130
      %v2141 = vld [vmem:[#allocation3] sm:$0xff]
      %v2142 = vld [vmem:[#allocation3 + $0x8] sm:$0xff]
      %v2143 = vld [vmem:[#allocation3 + $0x10] sm:$0xff]
      %v2144 = vld [vmem:[#allocation3 + $0x18] sm:$0xff]
      %v2145 = vld [vmem:[#allocation3 + $0x20] sm:$0xff]
      %2151 = vrot.lane.b32.xlu0 %v2141, 33
      %v2152 = vpop.permute.xlu0 %2151
      %2153 = vrot.lane.b32.xlu0 %v2142, 33
      %v2154 = vpop.permute.xlu0 %2153
      %2155 = vrot.lane.b32.xlu0 %v2143, 33
      %v2156 = vpop.permute.xlu0 %2155
      %2157 = vrot.lane.b32.xlu0 %v2144, 33
      %v2158 = vpop.permute.xlu0 %2157
      %2159 = vrot.lane.b32.xlu0 %v2145, 33
      %v2160 = vpop.permute.xlu0 %2159
      %v2161 = vrot.slane %v2152, 4
      %v2162 = vrot.slane %v2154, 4
      %v2163 = vrot.slane %v2156, 4
      %v2164 = vrot.slane %v2158, 4
      %v2165 = vrot.slane %v2160, 4
      %v2166 = vsel %vm327, %v2161, %v2162
      %vm2167 = vcmask 269312
      %v2168 = vsel %vm2167, %v2152, %v2166
      %v2169 = vsel %vm327, %v2162, %v2163
      %v2170 = vsel %vm2167, %v2154, %v2169
      %v2171 = vsel %vm327, %v2163, %v2164
      %v2172 = vsel %vm2167, %v2156, %v2171
      %v2173 = vsel %vm327, %v2164, %v2165
      %v2174 = vsel %vm2167, %v2158, %v2173
      %v2175 = vsel %vm2167, %v2160, %v2165
      %2181 = vst [vmem:[#allocation2 + $0x50] sm:$0xff] %v2168
      %2182 = vst [vmem:[#allocation2 + $0x58] sm:$0xff] %v2170
      %2183 = vst [vmem:[#allocation2 + $0x60] sm:$0xff] %v2172
      %2184 = vst [vmem:[#allocation2 + $0x68] sm:$0xff] %v2174
      %2185 = vst.msk [vmem:[#allocation2 + $0x70] sm:$0xff] %vm349, %v2175
      %v2186 = vld [vmem:[#allocation3] sm:$0xff]
      %v2187 = vld [vmem:[#allocation3 + $0x8] sm:$0xff]
      %v2188 = vld [vmem:[#allocation3 + $0x10] sm:$0xff]
      %v2189 = vld [vmem:[#allocation3 + $0x18] sm:$0xff]
      %v2190 = vld [vmem:[#allocation3 + $0x20] sm:$0xff]
      %v2191 = vld [vmem:[#allocation3 + $0x28] sm:$0xf]
      %2198 = vrot.lane.b32.xlu0 %v2186, 1
      %v2199 = vpop.permute.xlu0 %2198
      %2200 = vrot.lane.b32.xlu0 %v2187, 1
      %v2201 = vpop.permute.xlu0 %2200
      %2202 = vrot.lane.b32.xlu0 %v2188, 1
      %v2203 = vpop.permute.xlu0 %2202
      %2204 = vrot.lane.b32.xlu0 %v2189, 1
      %v2205 = vpop.permute.xlu0 %2204
      %2206 = vrot.lane.b32.xlu0 %v2190, 1
      %v2207 = vpop.permute.xlu0 %2206
      %2208 = vrot.lane.b32.xlu0 %v2191, 1
      %v2209 = vpop.permute.xlu0 %2208
      %v2210 = vrot.slane %v2199, 4
      %v2211 = vrot.slane %v2201, 4
      %v2212 = vrot.slane %v2203, 4
      %v2213 = vrot.slane %v2205, 4
      %v2214 = vrot.slane %v2207, 4
      %v2215 = vrot.slane %v2209, 4
      %v2216 = vsel %vm327, %v2210, %v2211
      %vm2217 = vcmask 7168
      %v2218 = vsel %vm2217, %v2199, %v2216
      %v2219 = vsel %vm327, %v2211, %v2212
      %v2220 = vsel %vm2217, %v2201, %v2219
      %v2221 = vsel %vm327, %v2212, %v2213
      %v2222 = vsel %vm2217, %v2203, %v2221
      %v2223 = vsel %vm327, %v2213, %v2214
      %v2224 = vsel %vm2217, %v2205, %v2223
      %v2225 = vsel %vm327, %v2214, %v2215
      %v2226 = vsel %vm2217, %v2207, %v2225
      %2232 = vst [vmem:[#allocation2 + $0x78] sm:$0xff] %v2218
      %2233 = vst [vmem:[#allocation2 + $0x80] sm:$0xff] %v2220
      %2234 = vst [vmem:[#allocation2 + $0x88] sm:$0xff] %v2222
      %2235 = vst [vmem:[#allocation2 + $0x90] sm:$0xff] %v2224
      %2236 = vst.msk [vmem:[#allocation2 + $0x98] sm:$0xff] %vm349, %v2226
      %v2237 = vld [vmem:[#allocation3 + $0x4] sm:$0xff]
      %v2238 = vld [vmem:[#allocation3 + $0xc] sm:$0xff]
      %v2239 = vld [vmem:[#allocation3 + $0x14] sm:$0xff]
      %v2240 = vld [vmem:[#allocation3 + $0x1c] sm:$0xff]
      %v2241 = vld [vmem:[#allocation3 + $0x24] sm:$0xff]
      %2242 = vst [vmem:[#allocation2 + $0xa0] sm:$0xff] %v2237
      %2243 = vst [vmem:[#allocation2 + $0xa8] sm:$0xff] %v2238
      %2244 = vst [vmem:[#allocation2 + $0xb0] sm:$0xff] %v2239
      %2245 = vst [vmem:[#allocation2 + $0xb8] sm:$0xff] %v2240
      %2246 = vst.msk [vmem:[#allocation2 + $0xc0] sm:$0xff] %vm349, %v2241
      %v2247 = vld [vmem:[#allocation3 + $0x4] sm:$0xff]
      %v2248 = vld [vmem:[#allocation3 + $0xc] sm:$0xff]
      %v2249 = vld [vmem:[#allocation3 + $0x14] sm:$0xff]
      %v2250 = vld [vmem:[#allocation3 + $0x1c] sm:$0xff]
      %v2251 = vld [vmem:[#allocation3 + $0x24] sm:$0xff]
      %2257 = vrot.lane.b32.xlu0 %v2247, 127
      %v2258 = vpop.permute.xlu0 %2257
      %2259 = vrot.lane.b32.xlu0 %v2248, 127
      %v2260 = vpop.permute.xlu0 %2259
      %2261 = vrot.lane.b32.xlu0 %v2249, 127
      %v2262 = vpop.permute.xlu0 %2261
      %2263 = vrot.lane.b32.xlu0 %v2250, 127
      %v2264 = vpop.permute.xlu0 %2263
      %2265 = vrot.lane.b32.xlu0 %v2251, 127
      %v2266 = vpop.permute.xlu0 %2265
      %v2267 = vrot.slane %v2258, 4
      %v2268 = vrot.slane %v2260, 4
      %v2269 = vrot.slane %v2262, 4
      %v2270 = vrot.slane %v2264, 4
      %v2271 = vrot.slane %v2266, 4
      %v2272 = vsel %vm327, %v2267, %v2268
      %vm2273 = vcmask 1039360
      %v2274 = vsel %vm2273, %v2258, %v2272
      %v2275 = vsel %vm327, %v2268, %v2269
      %v2276 = vsel %vm2273, %v2260, %v2275
      %v2277 = vsel %vm327, %v2269, %v2270
      %v2278 = vsel %vm2273, %v2262, %v2277
      %v2279 = vsel %vm327, %v2270, %v2271
      %v2280 = vsel %vm2273, %v2264, %v2279
      %v2281 = vsel %vm2273, %v2266, %v2271
      %2287 = vst [vmem:[#allocation2 + $0xc8] sm:$0xff] %v2274
      %2288 = vst [vmem:[#allocation2 + $0xd0] sm:$0xff] %v2276
      %2289 = vst [vmem:[#allocation2 + $0xd8] sm:$0xff] %v2278
      %2290 = vst [vmem:[#allocation2 + $0xe0] sm:$0xff] %v2280
      %2291 = vst.msk [vmem:[#allocation2 + $0xe8] sm:$0xff] %vm349, %v2281
      %v2292 = vld [vmem:[#allocation3 + $0x4] sm:$0xff]
      %v2293 = vld [vmem:[#allocation3 + $0xc] sm:$0xff]
      %v2294 = vld [vmem:[#allocation3 + $0x14] sm:$0xff]
      %v2295 = vld [vmem:[#allocation3 + $0x1c] sm:$0xff]
      %v2296 = vld [vmem:[#allocation3 + $0x24] sm:$0xff]
      %2302 = vrot.lane.b32.xlu0 %v2292, 95
      %v2303 = vpop.permute.xlu0 %2302
      %2304 = vrot.lane.b32.xlu0 %v2293, 95
      %v2305 = vpop.permute.xlu0 %2304
      %2306 = vrot.lane.b32.xlu0 %v2294, 95
      %v2307 = vpop.permute.xlu0 %2306
      %2308 = vrot.lane.b32.xlu0 %v2295, 95
      %v2309 = vpop.permute.xlu0 %2308
      %2310 = vrot.lane.b32.xlu0 %v2296, 95
      %v2311 = vpop.permute.xlu0 %2310
      %v2312 = vrot.slane %v2303, 4
      %v2313 = vrot.slane %v2305, 4
      %v2314 = vrot.slane %v2307, 4
      %v2315 = vrot.slane %v2309, 4
      %v2316 = vrot.slane %v2311, 4
      %v2317 = vsel %vm327, %v2312, %v2313
      %v2318 = vsel %vm329, %v2303, %v2317
      %v2319 = vsel %vm327, %v2313, %v2314
      %v2320 = vsel %vm329, %v2305, %v2319
      %v2321 = vsel %vm327, %v2314, %v2315
      %v2322 = vsel %vm329, %v2307, %v2321
      %v2323 = vsel %vm327, %v2315, %v2316
      %v2324 = vsel %vm329, %v2309, %v2323
      %v2325 = vsel %vm329, %v2311, %v2316
      %2331 = vst [vmem:[#allocation2 + $0xf0] sm:$0xff] %v2318
      %2332 = vst [vmem:[#allocation2 + $0xf8] sm:$0xff] %v2320
      %2333 = vst [vmem:[#allocation2 + $0x100] sm:$0xff] %v2322
      %2334 = vst [vmem:[#allocation2 + $0x108] sm:$0xff] %v2324
      %2335 = vst.msk [vmem:[#allocation2 + $0x110] sm:$0xff] %vm349, %v2325
      %v2336 = vld [vmem:[#allocation3 + $0x4] sm:$0xff]
      %v2337 = vld [vmem:[#allocation3 + $0xc] sm:$0xff]
      %v2338 = vld [vmem:[#allocation3 + $0x14] sm:$0xff]
      %v2339 = vld [vmem:[#allocation3 + $0x1c] sm:$0xff]
      %v2340 = vld [vmem:[#allocation3 + $0x24] sm:$0xff]
      %2346 = vrot.lane.b32.xlu0 %v2336, 94
      %v2347 = vpop.permute.xlu0 %2346
      %2348 = vrot.lane.b32.xlu0 %v2337, 94
      %v2349 = vpop.permute.xlu0 %2348
      %2350 = vrot.lane.b32.xlu0 %v2338, 94
      %v2351 = vpop.permute.xlu0 %2350
      %2352 = vrot.lane.b32.xlu0 %v2339, 94
      %v2353 = vpop.permute.xlu0 %2352
      %2354 = vrot.lane.b32.xlu0 %v2340, 94
      %v2355 = vpop.permute.xlu0 %2354
      %v2356 = vrot.slane %v2347, 4
      %v2357 = vrot.slane %v2349, 4
      %v2358 = vrot.slane %v2351, 4
      %v2359 = vrot.slane %v2353, 4
      %v2360 = vrot.slane %v2355, 4
      %v2361 = vsel %vm327, %v2356, %v2357
      %v2362 = vsel %vm377, %v2347, %v2361
      %v2363 = vsel %vm327, %v2357, %v2358
      %v2364 = vsel %vm377, %v2349, %v2363
      %v2365 = vsel %vm327, %v2358, %v2359
      %v2366 = vsel %vm377, %v2351, %v2365
      %v2367 = vsel %vm327, %v2359, %v2360
      %v2368 = vsel %vm377, %v2353, %v2367
      %v2369 = vsel %vm377, %v2355, %v2360
      %2375 = vst [vmem:[#allocation2 + $0x118] sm:$0xff] %v2362
      %2376 = vst [vmem:[#allocation2 + $0x120] sm:$0xff] %v2364
      %2377 = vst [vmem:[#allocation2 + $0x128] sm:$0xff] %v2366
      %2378 = vst [vmem:[#allocation2 + $0x130] sm:$0xff] %v2368
      %2379 = vst.msk [vmem:[#allocation2 + $0x138] sm:$0xff] %vm349, %v2369
      %v2380 = vld [vmem:[#allocation3 + $0x4] sm:$0xff]
      %v2381 = vld [vmem:[#allocation3 + $0xc] sm:$0xff]
      %v2382 = vld [vmem:[#allocation3 + $0x14] sm:$0xff]
      %v2383 = vld [vmem:[#allocation3 + $0x1c] sm:$0xff]
      %v2384 = vld [vmem:[#allocation3 + $0x24] sm:$0xff]
      %2390 = vrot.lane.b32.xlu0 %v2380, 93
      %v2391 = vpop.permute.xlu0 %2390
      %2392 = vrot.lane.b32.xlu0 %v2381, 93
      %v2393 = vpop.permute.xlu0 %2392
      %2394 = vrot.lane.b32.xlu0 %v2382, 93
      %v2395 = vpop.permute.xlu0 %2394
      %2396 = vrot.lane.b32.xlu0 %v2383, 93
      %v2397 = vpop.permute.xlu0 %2396
      %2398 = vrot.lane.b32.xlu0 %v2384, 93
      %v2399 = vpop.permute.xlu0 %2398
      %v2400 = vrot.slane %v2391, 4
      %v2401 = vrot.slane %v2393, 4
      %v2402 = vrot.slane %v2395, 4
      %v2403 = vrot.slane %v2397, 4
      %v2404 = vrot.slane %v2399, 4
      %v2405 = vsel %vm327, %v2400, %v2401
      %v2406 = vsel %vm422, %v2391, %v2405
      %v2407 = vsel %vm327, %v2401, %v2402
      %v2408 = vsel %vm422, %v2393, %v2407
      %v2409 = vsel %vm327, %v2402, %v2403
      %v2410 = vsel %vm422, %v2395, %v2409
      %v2411 = vsel %vm327, %v2403, %v2404
      %v2412 = vsel %vm422, %v2397, %v2411
      %v2413 = vsel %vm422, %v2399, %v2404
      %2419 = vst [vmem:[#allocation2 + $0x140] sm:$0xff] %v2406
      %2420 = vst [vmem:[#allocation2 + $0x148] sm:$0xff] %v2408
      %2421 = vst [vmem:[#allocation2 + $0x150] sm:$0xff] %v2410
      %2422 = vst [vmem:[#allocation2 + $0x158] sm:$0xff] %v2412
      %2423 = vst.msk [vmem:[#allocation2 + $0x160] sm:$0xff] %vm349, %v2413
      %v2424 = vld [vmem:[%s3] sm:$0xf]
      %v2425 = vld [vmem:[#allocation2] sm:$0xff]
      %v2426 = vld [vmem:[#allocation2 + $0x8] sm:$0xff]
      %v2427 = vld [vmem:[#allocation2 + $0x10] sm:$0xff]
      %v2428 = vld [vmem:[#allocation2 + $0x18] sm:$0xff]
      %v2429 = vld [vmem:[#allocation2 + $0x20] sm:$0xff]
      %v2430 = vld [vmem:[#allocation2 + $0x28] sm:$0xff]
      %v2431 = vld [vmem:[#allocation2 + $0x30] sm:$0xff]
      %v2432 = vld [vmem:[#allocation2 + $0x38] sm:$0xff]
      %v2433 = vld [vmem:[#allocation2 + $0x40] sm:$0xff]
      %v2434 = vld [vmem:[#allocation2 + $0x48] sm:$0xff]
      %v2435 = vld [vmem:[#allocation2 + $0x50] sm:$0xff]
      %v2436 = vld [vmem:[#allocation2 + $0x58] sm:$0xff]
      %v2437 = vld [vmem:[#allocation2 + $0x60] sm:$0xff]
      %v2438 = vld [vmem:[#allocation2 + $0x68] sm:$0xff]
      %v2439 = vld [vmem:[#allocation2 + $0x70] sm:$0xff]
      %v2440 = vld [vmem:[#allocation2 + $0x78] sm:$0xff]
      %v2441 = vld [vmem:[#allocation2 + $0x80] sm:$0xff]
      %v2442 = vld [vmem:[#allocation2 + $0x88] sm:$0xff]
      %v2443 = vld [vmem:[#allocation2 + $0x90] sm:$0xff]
      %v2444 = vld [vmem:[#allocation2 + $0x98] sm:$0xff]
      %v2445 = vld [vmem:[#allocation2 + $0xa0] sm:$0xff]
      %v2446 = vld [vmem:[#allocation2 + $0xa8] sm:$0xff]
      %v2447 = vld [vmem:[#allocation2 + $0xb0] sm:$0xff]
      %v2448 = vld [vmem:[#allocation2 + $0xb8] sm:$0xff]
      %v2449 = vld [vmem:[#allocation2 + $0xc0] sm:$0xff]
      %v2450 = vld [vmem:[#allocation2 + $0xc8] sm:$0xff]
      %v2451 = vld [vmem:[#allocation2 + $0xd0] sm:$0xff]
      %v2452 = vld [vmem:[#allocation2 + $0xd8] sm:$0xff]
      %v2453 = vld [vmem:[#allocation2 + $0xe0] sm:$0xff]
      %v2454 = vld [vmem:[#allocation2 + $0xe8] sm:$0xff]
      %v2455 = vld [vmem:[#allocation2 + $0xf0] sm:$0xff]
      %v2456 = vld [vmem:[#allocation2 + $0xf8] sm:$0xff]
      %v2457 = vld [vmem:[#allocation2 + $0x100] sm:$0xff]
      %v2458 = vld [vmem:[#allocation2 + $0x108] sm:$0xff]
      %v2459 = vld [vmem:[#allocation2 + $0x110] sm:$0xff]
      %v2460 = vld [vmem:[#allocation2 + $0x118] sm:$0xff]
      %v2461 = vld [vmem:[#allocation2 + $0x120] sm:$0xff]
      %v2462 = vld [vmem:[#allocation2 + $0x128] sm:$0xff]
      %v2463 = vld [vmem:[#allocation2 + $0x130] sm:$0xff]
      %v2464 = vld [vmem:[#allocation2 + $0x138] sm:$0xff]
      %v2465 = vld [vmem:[#allocation2 + $0x140] sm:$0xff]
      %v2466 = vld [vmem:[#allocation2 + $0x148] sm:$0xff]
      %v2467 = vld [vmem:[#allocation2 + $0x150] sm:$0xff]
      %v2468 = vld [vmem:[#allocation2 + $0x158] sm:$0xff]
      %v2469 = vld [vmem:[#allocation2 + $0x160] sm:$0xff]
      %v2515 = vunpack.c.l.b16 %v2425
      %v2516 = vunpack.c.h.b16 %v2425
      %v2517 = vunpack.c.l.b16 %v2426
      %v2518 = vunpack.c.h.b16 %v2426
      %v2519 = vunpack.c.l.b16 %v2427
      %v2520 = vunpack.c.h.b16 %v2427
      %v2521 = vunpack.c.l.b16 %v2428
      %v2522 = vunpack.c.h.b16 %v2428
      %v2523 = vunpack.c.l.b16 %v2429
      %v2524 = vunpack.c.h.b16 %v2429
      %v2525 = vunpack.c.l.b16 %v2430
      %v2526 = vunpack.c.h.b16 %v2430
      %v2527 = vunpack.c.l.b16 %v2431
      %v2528 = vunpack.c.h.b16 %v2431
      %v2529 = vunpack.c.l.b16 %v2432
      %v2530 = vunpack.c.h.b16 %v2432
      %v2531 = vunpack.c.l.b16 %v2433
      %v2532 = vunpack.c.h.b16 %v2433
      %v2533 = vunpack.c.l.b16 %v2434
      %v2534 = vunpack.c.h.b16 %v2434
      %v2535 = vunpack.c.l.b16 %v2435
      %v2536 = vunpack.c.h.b16 %v2435
      %v2537 = vunpack.c.l.b16 %v2436
      %v2538 = vunpack.c.h.b16 %v2436
      %v2539 = vunpack.c.l.b16 %v2437
      %v2540 = vunpack.c.h.b16 %v2437
      %v2541 = vunpack.c.l.b16 %v2438
      %v2542 = vunpack.c.h.b16 %v2438
      %v2543 = vunpack.c.l.b16 %v2439
      %v2544 = vunpack.c.h.b16 %v2439
      %v2545 = vunpack.c.l.b16 %v2440
      %v2546 = vunpack.c.h.b16 %v2440
      %v2547 = vunpack.c.l.b16 %v2441
      %v2548 = vunpack.c.h.b16 %v2441
      %v2549 = vunpack.c.l.b16 %v2442
      %v2550 = vunpack.c.h.b16 %v2442
      %v2551 = vunpack.c.l.b16 %v2443
      %v2552 = vunpack.c.h.b16 %v2443
      %v2553 = vunpack.c.l.b16 %v2444
      %v2554 = vunpack.c.h.b16 %v2444
      %v2555 = vunpack.c.l.b16 %v2445
      %v2556 = vunpack.c.h.b16 %v2445
      %v2557 = vunpack.c.l.b16 %v2446
      %v2558 = vunpack.c.h.b16 %v2446
      %v2559 = vunpack.c.l.b16 %v2447
      %v2560 = vunpack.c.h.b16 %v2447
      %v2561 = vunpack.c.l.b16 %v2448
      %v2562 = vunpack.c.h.b16 %v2448
      %v2563 = vunpack.c.l.b16 %v2449
      %v2564 = vunpack.c.h.b16 %v2449
      %v2565 = vunpack.c.l.b16 %v2450
      %v2566 = vunpack.c.h.b16 %v2450
      %v2567 = vunpack.c.l.b16 %v2451
      %v2568 = vunpack.c.h.b16 %v2451
      %v2569 = vunpack.c.l.b16 %v2452
      %v2570 = vunpack.c.h.b16 %v2452
      %v2571 = vunpack.c.l.b16 %v2453
      %v2572 = vunpack.c.h.b16 %v2453
      %v2573 = vunpack.c.l.b16 %v2454
      %v2574 = vunpack.c.h.b16 %v2454
      %v2575 = vunpack.c.l.b16 %v2455
      %v2576 = vunpack.c.h.b16 %v2455
      %v2577 = vunpack.c.l.b16 %v2456
      %v2578 = vunpack.c.h.b16 %v2456
      %v2579 = vunpack.c.l.b16 %v2457
      %v2580 = vunpack.c.h.b16 %v2457
      %v2581 = vunpack.c.l.b16 %v2458
      %v2582 = vunpack.c.h.b16 %v2458
      %v2583 = vunpack.c.l.b16 %v2459
      %v2584 = vunpack.c.h.b16 %v2459
      %v2585 = vunpack.c.l.b16 %v2460
      %v2586 = vunpack.c.h.b16 %v2460
      %v2587 = vunpack.c.l.b16 %v2461
      %v2588 = vunpack.c.h.b16 %v2461
      %v2589 = vunpack.c.l.b16 %v2462
      %v2590 = vunpack.c.h.b16 %v2462
      %v2591 = vunpack.c.l.b16 %v2463
      %v2592 = vunpack.c.h.b16 %v2463
      %v2593 = vunpack.c.l.b16 %v2464
      %v2594 = vunpack.c.h.b16 %v2464
      %v2595 = vunpack.c.l.b16 %v2465
      %v2596 = vunpack.c.h.b16 %v2465
      %v2597 = vunpack.c.l.b16 %v2466
      %v2598 = vunpack.c.h.b16 %v2466
      %v2599 = vunpack.c.l.b16 %v2467
      %v2600 = vunpack.c.h.b16 %v2467
      %v2601 = vunpack.c.l.b16 %v2468
      %v2602 = vunpack.c.h.b16 %v2468
      %v2603 = vunpack.c.l.b16 %v2469
      %v2604 = vunpack.c.h.b16 %v2469
      %v2605 = vpack.c.b16 %v2525, %v2515
      %v2606 = vpack.c.b16 %v2526, %v2516
      %v2607 = vpack.c.b16 %v2527, %v2517
      %v2608 = vpack.c.b16 %v2528, %v2518
      %v2609 = vpack.c.b16 %v2529, %v2519
      %v2610 = vpack.c.b16 %v2530, %v2520
      %v2611 = vpack.c.b16 %v2531, %v2521
      %v2612 = vpack.c.b16 %v2532, %v2522
      %v2613 = vpack.c.b16 %v2533, %v2523
      %v2614 = vpack.c.b16 %v2534, %v2524
      %v2615 = vpack.c.b16 %v2545, %v2535
      %v2616 = vpack.c.b16 %v2546, %v2536
      %v2617 = vpack.c.b16 %v2547, %v2537
      %v2618 = vpack.c.b16 %v2548, %v2538
      %v2619 = vpack.c.b16 %v2549, %v2539
      %v2620 = vpack.c.b16 %v2550, %v2540
      %v2621 = vpack.c.b16 %v2551, %v2541
      %v2622 = vpack.c.b16 %v2552, %v2542
      %v2623 = vpack.c.b16 %v2553, %v2543
      %v2624 = vpack.c.b16 %v2554, %v2544
      %v2625 = vpack.c.b16 %v2565, %v2555
      %v2626 = vpack.c.b16 %v2566, %v2556
      %v2627 = vpack.c.b16 %v2567, %v2557
      %v2628 = vpack.c.b16 %v2568, %v2558
      %v2629 = vpack.c.b16 %v2569, %v2559
      %v2630 = vpack.c.b16 %v2570, %v2560
      %v2631 = vpack.c.b16 %v2571, %v2561
      %v2632 = vpack.c.b16 %v2572, %v2562
      %v2633 = vpack.c.b16 %v2573, %v2563
      %v2634 = vpack.c.b16 %v2574, %v2564
      %v2635 = vpack.c.b16 %v2585, %v2575
      %v2636 = vpack.c.b16 %v2586, %v2576
      %v2637 = vpack.c.b16 %v2587, %v2577
      %v2638 = vpack.c.b16 %v2588, %v2578
      %v2639 = vpack.c.b16 %v2589, %v2579
      %v2640 = vpack.c.b16 %v2590, %v2580
      %v2641 = vpack.c.b16 %v2591, %v2581
      %v2642 = vpack.c.b16 %v2592, %v2582
      %v2643 = vpack.c.b16 %v2593, %v2583
      %v2644 = vpack.c.b16 %v2594, %v2584
      %v2645 = vpack.c.b16 %v2595, %v2595
      %v2646 = vpack.c.b16 %v2596, %v2596
      %v2647 = vpack.c.b16 %v2597, %v2597
      %v2648 = vpack.c.b16 %v2598, %v2598
      %v2649 = vpack.c.b16 %v2599, %v2599
      %v2650 = vpack.c.b16 %v2600, %v2600
      %v2651 = vpack.c.b16 %v2601, %v2601
      %v2652 = vpack.c.b16 %v2602, %v2602
      %v2653 = vpack.c.b16 %v2603, %v2603
      %v2654 = vpack.c.b16 %v2604, %v2604
      %vm2695 = vcmask 588800
      %v2697 = vsel %vm2695, %v2424, 0
      %v2700 = vsel %vm347, %v2645, 0
      %v2703 = vsel %vm347, %v2646, 0
      %v2706 = vsel %vm347, %v2647, 0
      %v2709 = vsel %vm347, %v2648, 0
      %v2712 = vsel %vm347, %v2649, 0
      %v2715 = vsel %vm347, %v2650, 0
      %v2718 = vsel %vm347, %v2651, 0
      %v2721 = vsel %vm347, %v2652, 0
      %v2724 = vsel %vm347, %v2653, 0
      %v2727 = vsel %vm347, %v2654, 0
      %2729 = vmatpush.bf16.msra.mxu0 0
      %2730 = vmatpush.bf16.msra.mxu0 0
      %2731 = vmatpush.bf16.msra.mxu0 0
      %2732 = vmatpush.bf16.msra.mxu0 %v2700
      %2733 = vmatpush.bf16.msra.mxu0 %v2635
      %2734 = vmatpush.bf16.msra.mxu0 %v2625
      %2735 = vmatpush.bf16.msra.mxu0 %v2615
      %2736 = vmatpush.bf16.msra.mxu0 %v2605
      %2737 = vmatmul.bf16.gmra.mxu0 %v2697
      %v2738 = vpop.f32.mrf.mxu0
      %v2739 = vadd.f32 0.0, %v2738
      %v2740 = vpop.f32.mrf.mxu0
      %2741 = vdwg.mxu0
      %2742 = vmatpush.bf16.msra.mxu0 0
      %2743 = vmatpush.bf16.msra.mxu0 0
      %2744 = vmatpush.bf16.msra.mxu0 0
      %2745 = vmatpush.bf16.msra.mxu0 %v2703
      %2746 = vmatpush.bf16.msra.mxu0 %v2636
      %2747 = vmatpush.bf16.msra.mxu0 %v2626
      %2748 = vmatpush.bf16.msra.mxu0 %v2616
      %2749 = vmatpush.bf16.msra.mxu0 %v2606
      %2750 = vmatmul.bf16.gmra.mxu0 %v2697
      %v2751 = vpop.f32.mrf.mxu0
      %v2752 = vadd.f32 0.0, %v2751
      %v2753 = vpop.f32.mrf.mxu0
      %2754 = vdwg.mxu0
      %2755 = vmatpush.bf16.msra.mxu0 0
      %2756 = vmatpush.bf16.msra.mxu0 0
      %2757 = vmatpush.bf16.msra.mxu0 0
      %2758 = vmatpush.bf16.msra.mxu0 %v2706
      %2759 = vmatpush.bf16.msra.mxu0 %v2637
      %2760 = vmatpush.bf16.msra.mxu0 %v2627
      %2761 = vmatpush.bf16.msra.mxu0 %v2617
      %2762 = vmatpush.bf16.msra.mxu0 %v2607
      %2763 = vmatmul.bf16.gmra.mxu0 %v2697
      %v2764 = vpop.f32.mrf.mxu0
      %v2765 = vadd.f32 0.0, %v2764
      %v2766 = vpop.f32.mrf.mxu0
      %2767 = vdwg.mxu0
      %2768 = vmatpush.bf16.msra.mxu0 0
      %2769 = vmatpush.bf16.msra.mxu0 0
      %2770 = vmatpush.bf16.msra.mxu0 0
      %2771 = vmatpush.bf16.msra.mxu0 %v2709
      %2772 = vmatpush.bf16.msra.mxu0 %v2638
      %2773 = vmatpush.bf16.msra.mxu0 %v2628
      %2774 = vmatpush.bf16.msra.mxu0 %v2618
      %2775 = vmatpush.bf16.msra.mxu0 %v2608
      %2776 = vmatmul.bf16.gmra.mxu0 %v2697
      %v2777 = vpop.f32.mrf.mxu0
      %v2778 = vadd.f32 0.0, %v2777
      %v2779 = vpop.f32.mrf.mxu0
      %2780 = vdwg.mxu0
      %2781 = vmatpush.bf16.msra.mxu0 0
      %2782 = vmatpush.bf16.msra.mxu0 0
      %2783 = vmatpush.bf16.msra.mxu0 0
      %2784 = vmatpush.bf16.msra.mxu0 %v2712
      %2785 = vmatpush.bf16.msra.mxu0 %v2639
      %2786 = vmatpush.bf16.msra.mxu0 %v2629
      %2787 = vmatpush.bf16.msra.mxu0 %v2619
      %2788 = vmatpush.bf16.msra.mxu0 %v2609
      %2789 = vmatmul.bf16.gmra.mxu0 %v2697
      %v2790 = vpop.f32.mrf.mxu0
      %v2791 = vadd.f32 0.0, %v2790
      %v2792 = vpop.f32.mrf.mxu0
      %2793 = vdwg.mxu0
      %2794 = vmatpush.bf16.msra.mxu0 0
      %2795 = vmatpush.bf16.msra.mxu0 0
      %2796 = vmatpush.bf16.msra.mxu0 0
      %2797 = vmatpush.bf16.msra.mxu0 %v2715
      %2798 = vmatpush.bf16.msra.mxu0 %v2640
      %2799 = vmatpush.bf16.msra.mxu0 %v2630
      %2800 = vmatpush.bf16.msra.mxu0 %v2620
      %2801 = vmatpush.bf16.msra.mxu0 %v2610
      %2802 = vmatmul.bf16.gmra.mxu0 %v2697
      %v2803 = vpop.f32.mrf.mxu0
      %v2804 = vadd.f32 0.0, %v2803
      %v2805 = vpop.f32.mrf.mxu0
      %2806 = vdwg.mxu0
      %2807 = vmatpush.bf16.msra.mxu0 0
      %2808 = vmatpush.bf16.msra.mxu0 0
      %2809 = vmatpush.bf16.msra.mxu0 0
      %2810 = vmatpush.bf16.msra.mxu0 %v2718
      %2811 = vmatpush.bf16.msra.mxu0 %v2641
      %2812 = vmatpush.bf16.msra.mxu0 %v2631
      %2813 = vmatpush.bf16.msra.mxu0 %v2621
      %2814 = vmatpush.bf16.msra.mxu0 %v2611
      %2815 = vmatmul.bf16.gmra.mxu0 %v2697
      %v2816 = vpop.f32.mrf.mxu0
      %v2817 = vadd.f32 0.0, %v2816
      %v2818 = vpop.f32.mrf.mxu0
      %2819 = vdwg.mxu0
      %2820 = vmatpush.bf16.msra.mxu0 0
      %2821 = vmatpush.bf16.msra.mxu0 0
      %2822 = vmatpush.bf16.msra.mxu0 0
      %2823 = vmatpush.bf16.msra.mxu0 %v2721
      %2824 = vmatpush.bf16.msra.mxu0 %v2642
      %2825 = vmatpush.bf16.msra.mxu0 %v2632
      %2826 = vmatpush.bf16.msra.mxu0 %v2622
      %2827 = vmatpush.bf16.msra.mxu0 %v2612
      %2828 = vmatmul.bf16.gmra.mxu0 %v2697
      %v2829 = vpop.f32.mrf.mxu0
      %v2830 = vadd.f32 0.0, %v2829
      %v2831 = vpop.f32.mrf.mxu0
      %2832 = vdwg.mxu0
      %2833 = vmatpush.bf16.msra.mxu0 0
      %2834 = vmatpush.bf16.msra.mxu0 0
      %2835 = vmatpush.bf16.msra.mxu0 0
      %2836 = vmatpush.bf16.msra.mxu0 %v2724
      %2837 = vmatpush.bf16.msra.mxu0 %v2643
      %2838 = vmatpush.bf16.msra.mxu0 %v2633
      %2839 = vmatpush.bf16.msra.mxu0 %v2623
      %2840 = vmatpush.bf16.msra.mxu0 %v2613
      %2841 = vmatmul.bf16.gmra.mxu0 %v2697
      %v2842 = vpop.f32.mrf.mxu0
      %v2843 = vadd.f32 0.0, %v2842
      %v2844 = vpop.f32.mrf.mxu0
      %2845 = vdwg.mxu0
      %2846 = vmatpush.bf16.msra.mxu0 0
      %2847 = vmatpush.bf16.msra.mxu0 0
      %2848 = vmatpush.bf16.msra.mxu0 0
      %2849 = vmatpush.bf16.msra.mxu0 %v2727
      %2850 = vmatpush.bf16.msra.mxu0 %v2644
      %2851 = vmatpush.bf16.msra.mxu0 %v2634
      %2852 = vmatpush.bf16.msra.mxu0 %v2624
      %2853 = vmatpush.bf16.msra.mxu0 %v2614
      %2854 = vmatmul.bf16.gmra.mxu0 %v2697
      %v2855 = vpop.f32.mrf.mxu0
      %v2856 = vadd.f32 0.0, %v2855
      %v2857 = vpop.f32.mrf.mxu0
      %2858 = vdwg.mxu0
      %v2859 = vmul.f32 %v2739, %v1920
      %v2860 = vmul.f32 %v2752, %v1921
      %v2861 = vmul.f32 %v2765, %v1922
      %v2862 = vmul.f32 %v2778, %v1923
      %v2863 = vmul.f32 %v2791, %v1924
      %v2864 = vmul.f32 %v2804, %v1925
      %v2865 = vmul.f32 %v2817, %v1926
      %v2866 = vmul.f32 %v2830, %v1927
      %v2867 = vmul.f32 %v2843, %v1928
      %v2868 = vmul.f32 %v2856, %v1929
      %v2869 = vadd.f32 %v2859, %v2860
      %v2870 = vadd.f32 %v2869, %v2861
      %v2871 = vadd.f32 %v2870, %v2862
      %v2872 = vadd.f32 %v2871, %v2863
      %v2873 = vadd.f32 %v2872, %v2864
      %v2874 = vadd.f32 %v2873, %v2865
      %v2875 = vadd.f32 %v2874, %v2866
      %v2876 = vadd.f32 %v2875, %v2867
      %v2877 = vsel %vm1958, %v2868, 0.0
      %v2878 = vadd.f32 %v2876, %v2877
      %2879 = vadd.xlane.f32.xlu0 %v2878
      %v2880 = vpop.xlane.xlu0 %2879
      %v2881 = vmul.f32 %v2880, 0.0009765625
      %v2882 = vsub.f32 %v2739, %v2881
      %v2883 = vsub.f32 %v2752, %v2881
      %v2884 = vsub.f32 %v2765, %v2881
      %v2885 = vsub.f32 %v2778, %v2881
      %v2886 = vsub.f32 %v2791, %v2881
      %v2887 = vsub.f32 %v2804, %v2881
      %v2888 = vsub.f32 %v2817, %v2881
      %v2889 = vsub.f32 %v2830, %v2881
      %v2890 = vsub.f32 %v2843, %v2881
      %v2891 = vsub.f32 %v2856, %v2881
      %v2892 = vmul.f32 %v2882, %v1920
      %v2893 = vmul.f32 %v2883, %v1921
      %v2894 = vmul.f32 %v2884, %v1922
      %v2895 = vmul.f32 %v2885, %v1923
      %v2896 = vmul.f32 %v2886, %v1924
      %v2897 = vmul.f32 %v2887, %v1925
      %v2898 = vmul.f32 %v2888, %v1926
      %v2899 = vmul.f32 %v2889, %v1927
      %v2900 = vmul.f32 %v2890, %v1928
      %v2901 = vmul.f32 %v2891, %v1929
      %v2902 = vmul.f32 %v2892, %v2892
      %v2903 = vmul.f32 %v2893, %v2893
      %v2904 = vmul.f32 %v2894, %v2894
      %v2905 = vmul.f32 %v2895, %v2895
      %v2906 = vmul.f32 %v2896, %v2896
      %v2907 = vmul.f32 %v2897, %v2897
      %v2908 = vmul.f32 %v2898, %v2898
      %v2909 = vmul.f32 %v2899, %v2899
      %v2910 = vmul.f32 %v2900, %v2900
      %v2911 = vmul.f32 %v2901, %v2901
      %v2912 = vadd.f32 %v2902, %v2903
      %v2913 = vadd.f32 %v2912, %v2904
      %v2914 = vadd.f32 %v2913, %v2905
      %v2915 = vadd.f32 %v2914, %v2906
      %v2916 = vadd.f32 %v2915, %v2907
      %v2917 = vadd.f32 %v2916, %v2908
      %v2918 = vadd.f32 %v2917, %v2909
      %v2919 = vadd.f32 %v2918, %v2910
      %v2920 = vsel %vm1958, %v2911, 0.0
      %v2921 = vadd.f32 %v2919, %v2920
      %2922 = vadd.xlane.f32.xlu0 %v2921
      %v2923 = vpop.xlane.xlu0 %2922
      %v2924 = vmul.f32 %v2923, 0.0009765625
      %v2925 = vadd.f32 %v2924, 1e-05
      %v2926 = vrsqrt.pop %v2925
      %v2927 = vmul.f32 %v2926, %v2925
      %v2928 = vmul.f32 %v2927, %v2926
      %v2929 = vmul.f32 0.5, %v2928
      %v2930 = vsub.f32 1.5, %v2929
      %v2931 = vmul.f32 %v2926, %v2930
      %vm2932 = vweird.f32 %v2925
      %vm2933 = vweird.f32 %v2926
      %vm2934 = vmor %vm2932, %vm2933
      %v2935 = vsel %vm2934, %v2926, %v2931
      %v2936 = vmul.f32 %v2892, %v2935
      %v2937 = vmul.f32 %v2893, %v2935
      %v2938 = vmul.f32 %v2894, %v2935
      %v2939 = vmul.f32 %v2895, %v2935
      %v2940 = vmul.f32 %v2896, %v2935
      %v2941 = vmul.f32 %v2897, %v2935
      %v2942 = vmul.f32 %v2898, %v2935
      %v2943 = vmul.f32 %v2899, %v2935
      %v2944 = vmul.f32 %v2900, %v2935
      %v2945 = vmul.f32 %v2901, %v2935
      %v2946 = vmax.f32 %v2936, 0.0
      %v2947 = vmax.f32 %v2937, 0.0
      %v2948 = vmax.f32 %v2938, 0.0
      %v2949 = vmax.f32 %v2939, 0.0
      %v2950 = vmax.f32 %v2940, 0.0
      %v2951 = vmax.f32 %v2941, 0.0
      %v2952 = vmax.f32 %v2942, 0.0
      %v2953 = vmax.f32 %v2943, 0.0
      %v2954 = vmax.f32 %v2944, 0.0
      %v2955 = vmax.f32 %v2945, 0.0
      %v2956 = vld [vmem:[%s5] sm:$0x1]
      %v2957 = vpack.c.bf16 %v2946, %v2946
      %v2958 = vpack.c.bf16 %v2947, %v2947
      %v2959 = vpack.c.bf16 %v2948, %v2948
      %v2960 = vpack.c.bf16 %v2949, %v2949
      %v2961 = vpack.c.bf16 %v2950, %v2950
      %v2962 = vpack.c.bf16 %v2951, %v2951
      %v2963 = vpack.c.bf16 %v2952, %v2952
      %v2964 = vpack.c.bf16 %v2953, %v2953
      %v2965 = vpack.c.bf16 %v2954, %v2954
      %v2966 = vpack.c.bf16 %v2955, %v2955
      %v2967 = vld [vmem:[#allocation4] sm:$0x1]
      %2969 = vset.pattern.permute.xlu0 0
      %2970 = vperm.xlu0 %2969, %v2967
      %v2971 = vpop.permute.xlu0 %2970
      %v2973 = vperm.slane %v2971, 0
      %vm2974 = vcmask 64512
      %v2976 = vsel %vm2974, %v2956, 0
      %v2979 = vsel %vm347, %v2957, 0
      %v2982 = vsel %vm347, %v2958, 0
      %v2985 = vsel %vm347, %v2959, 0
      %v2988 = vsel %vm347, %v2960, 0
      %v2991 = vsel %vm347, %v2961, 0
      %v2994 = vsel %vm347, %v2962, 0
      %v2997 = vsel %vm347, %v2963, 0
      %v3000 = vsel %vm347, %v2964, 0
      %v3003 = vsel %vm347, %v2965, 0
      %v3006 = vsel %vm347, %v2966, 0
      %3008 = vmatpush.bf16.msra.mxu0 0
      %3009 = vmatpush.bf16.msra.mxu0 0
      %3010 = vmatpush.bf16.msra.mxu0 0
      %3011 = vmatpush.bf16.msra.mxu0 0
      %3012 = vmatpush.bf16.msra.mxu0 0
      %3013 = vmatpush.bf16.msra.mxu0 0
      %3014 = vmatpush.bf16.msra.mxu0 0
      %3015 = vmatpush.bf16.msra.mxu0 %v2979
      %3016 = vmatmul.bf16.gmra.mxu0 %v2976
      %v3017 = vpop.f32.mrf.mxu0
      %v3018 = vadd.f32 %v2973, %v3017
      %v3019 = vpop.f32.mrf.mxu0
      %3020 = vdwg.mxu0
      %3021 = vmatpush.bf16.msra.mxu0 0
      %3022 = vmatpush.bf16.msra.mxu0 0
      %3023 = vmatpush.bf16.msra.mxu0 0
      %3024 = vmatpush.bf16.msra.mxu0 0
      %3025 = vmatpush.bf16.msra.mxu0 0
      %3026 = vmatpush.bf16.msra.mxu0 0
      %3027 = vmatpush.bf16.msra.mxu0 0
      %3028 = vmatpush.bf16.msra.mxu0 %v2982
      %3029 = vmatmul.bf16.gmra.mxu0 %v2976
      %v3030 = vpop.f32.mrf.mxu0
      %v3031 = vadd.f32 %v2973, %v3030
      %v3032 = vpop.f32.mrf.mxu0
      %3033 = vdwg.mxu0
      %3034 = vmatpush.bf16.msra.mxu0 0
      %3035 = vmatpush.bf16.msra.mxu0 0
      %3036 = vmatpush.bf16.msra.mxu0 0
      %3037 = vmatpush.bf16.msra.mxu0 0
      %3038 = vmatpush.bf16.msra.mxu0 0
      %3039 = vmatpush.bf16.msra.mxu0 0
      %3040 = vmatpush.bf16.msra.mxu0 0
      %3041 = vmatpush.bf16.msra.mxu0 %v2985
      %3042 = vmatmul.bf16.gmra.mxu0 %v2976
      %v3043 = vpop.f32.mrf.mxu0
      %v3044 = vadd.f32 %v2973, %v3043
      %v3045 = vpop.f32.mrf.mxu0
      %3046 = vdwg.mxu0
      %3047 = vmatpush.bf16.msra.mxu0 0
      %3048 = vmatpush.bf16.msra.mxu0 0
      %3049 = vmatpush.bf16.msra.mxu0 0
      %3050 = vmatpush.bf16.msra.mxu0 0
      %3051 = vmatpush.bf16.msra.mxu0 0
      %3052 = vmatpush.bf16.msra.mxu0 0
      %3053 = vmatpush.bf16.msra.mxu0 0
      %3054 = vmatpush.bf16.msra.mxu0 %v2988
      %3055 = vmatmul.bf16.gmra.mxu0 %v2976
      %v3056 = vpop.f32.mrf.mxu0
      %v3057 = vadd.f32 %v2973, %v3056
      %v3058 = vpop.f32.mrf.mxu0
      %3059 = vdwg.mxu0
      %3060 = vmatpush.bf16.msra.mxu0 0
      %3061 = vmatpush.bf16.msra.mxu0 0
      %3062 = vmatpush.bf16.msra.mxu0 0
      %3063 = vmatpush.bf16.msra.mxu0 0
      %3064 = vmatpush.bf16.msra.mxu0 0
      %3065 = vmatpush.bf16.msra.mxu0 0
      %3066 = vmatpush.bf16.msra.mxu0 0
      %3067 = vmatpush.bf16.msra.mxu0 %v2991
      %3068 = vmatmul.bf16.gmra.mxu0 %v2976
      %v3069 = vpop.f32.mrf.mxu0
      %v3070 = vadd.f32 %v2973, %v3069
      %v3071 = vpop.f32.mrf.mxu0
      %3072 = vdwg.mxu0
      %3073 = vmatpush.bf16.msra.mxu0 0
      %3074 = vmatpush.bf16.msra.mxu0 0
      %3075 = vmatpush.bf16.msra.mxu0 0
      %3076 = vmatpush.bf16.msra.mxu0 0
      %3077 = vmatpush.bf16.msra.mxu0 0
      %3078 = vmatpush.bf16.msra.mxu0 0
      %3079 = vmatpush.bf16.msra.mxu0 0
      %3080 = vmatpush.bf16.msra.mxu0 %v2994
      %3081 = vmatmul.bf16.gmra.mxu0 %v2976
      %v3082 = vpop.f32.mrf.mxu0
      %v3083 = vadd.f32 %v2973, %v3082
      %v3084 = vpop.f32.mrf.mxu0
      %3085 = vdwg.mxu0
      %3086 = vmatpush.bf16.msra.mxu0 0
      %3087 = vmatpush.bf16.msra.mxu0 0
      %3088 = vmatpush.bf16.msra.mxu0 0
      %3089 = vmatpush.bf16.msra.mxu0 0
      %3090 = vmatpush.bf16.msra.mxu0 0
      %3091 = vmatpush.bf16.msra.mxu0 0
      %3092 = vmatpush.bf16.msra.mxu0 0
      %3093 = vmatpush.bf16.msra.mxu0 %v2997
      %3094 = vmatmul.bf16.gmra.mxu0 %v2976
      %v3095 = vpop.f32.mrf.mxu0
      %v3096 = vadd.f32 %v2973, %v3095
      %v3097 = vpop.f32.mrf.mxu0
      %3098 = vdwg.mxu0
      %3099 = vmatpush.bf16.msra.mxu0 0
      %3100 = vmatpush.bf16.msra.mxu0 0
      %3101 = vmatpush.bf16.msra.mxu0 0
      %3102 = vmatpush.bf16.msra.mxu0 0
      %3103 = vmatpush.bf16.msra.mxu0 0
      %3104 = vmatpush.bf16.msra.mxu0 0
      %3105 = vmatpush.bf16.msra.mxu0 0
      %3106 = vmatpush.bf16.msra.mxu0 %v3000
      %3107 = vmatmul.bf16.gmra.mxu0 %v2976
      %v3108 = vpop.f32.mrf.mxu0
      %v3109 = vadd.f32 %v2973, %v3108
      %v3110 = vpop.f32.mrf.mxu0
      %3111 = vdwg.mxu0
      %3112 = vmatpush.bf16.msra.mxu0 0
      %3113 = vmatpush.bf16.msra.mxu0 0
      %3114 = vmatpush.bf16.msra.mxu0 0
      %3115 = vmatpush.bf16.msra.mxu0 0
      %3116 = vmatpush.bf16.msra.mxu0 0
      %3117 = vmatpush.bf16.msra.mxu0 0
      %3118 = vmatpush.bf16.msra.mxu0 0
      %3119 = vmatpush.bf16.msra.mxu0 %v3003
      %3120 = vmatmul.bf16.gmra.mxu0 %v2976
      %v3121 = vpop.f32.mrf.mxu0
      %v3122 = vadd.f32 %v2973, %v3121
      %v3123 = vpop.f32.mrf.mxu0
      %3124 = vdwg.mxu0
      %3125 = vmatpush.bf16.msra.mxu0 0
      %3126 = vmatpush.bf16.msra.mxu0 0
      %3127 = vmatpush.bf16.msra.mxu0 0
      %3128 = vmatpush.bf16.msra.mxu0 0
      %3129 = vmatpush.bf16.msra.mxu0 0
      %3130 = vmatpush.bf16.msra.mxu0 0
      %3131 = vmatpush.bf16.msra.mxu0 0
      %3132 = vmatpush.bf16.msra.mxu0 %v3006
      %3133 = vmatmul.bf16.gmra.mxu0 %v2976
      %v3134 = vpop.f32.mrf.mxu0
      %v3135 = vadd.f32 %v2973, %v3134
      %v3136 = vpop.f32.mrf.mxu0
      %3137 = vdwg.mxu0
      %v3138 = vtanh.pop %v3018
      %v3139 = vtanh.pop %v3031
      %v3140 = vtanh.pop %v3044
      %v3141 = vtanh.pop %v3057
      %v3142 = vtanh.pop %v3070
      %v3143 = vtanh.pop %v3083
      %v3144 = vtanh.pop %v3096
      %v3145 = vtanh.pop %v3109
      %v3146 = vtanh.pop %v3122
      %v3147 = vtanh.pop %v3135
      %v3158 = vrot.slane %v3139, 7
      %v3159 = vrot.slane %v3140, 6
      %v3160 = vrot.slane %v3141, 5
      %v3161 = vrot.slane %v3142, 4
      %v3162 = vrot.slane %v3143, 3
      %v3163 = vrot.slane %v3144, 2
      %v3164 = vrot.slane %v3145, 1
      %v3165 = vrot.slane %v3147, 7
      %vm3166 = vcmask 1040384
      %v3167 = vsel %vm3166, %v3138, %v3158
      %vm3168 = vcmask 1042434
      %v3169 = vsel %vm3168, %v3159, %v3160
      %vm3170 = vcmask 1041408
      %v3171 = vsel %vm3170, %v3167, %v3169
      %vm3172 = vcmask 1044484
      %v3173 = vsel %vm3172, %v3161, %v3162
      %vm3174 = vcmask 1046534
      %v3175 = vsel %vm3174, %v3163, %v3164
      %vm3176 = vcmask 1045508
      %v3177 = vsel %vm3176, %v3173, %v3175
      %v3178 = vsel %vm347, %v3171, %v3177
      %v3179 = vsel %vm3166, %v3146, %v3165
      %3182 = vst [vmem:[%s298] sm:$0xff] %v3178
      %v3183 = vlaneseq
      %vm3184 = vcmp.ge.s32.totalorder %v3183, 0
      %vm3185 = vcmp.lt.s32.totalorder %v3183, 132
      %vm3186 = vmand %vm3184, %vm3185
      %3187 = vst.msk [vmem:[%s298 + $0x8] sm:$0x3] %vm3186, %v3179
      %p3188 = scmp.lt.s32.totalorder %s20, 1
      %s3189 = scalar_select %p3188, %s20, 1
      %s3190 = smul.addr %s3189, 10
      %s3191 = scalar_lea.vmem %s7, %s3190
      // Predicated region
      $region49: #{unet_forward.7} parent=47 // pred_check
        %p3192 = pneg %p195
      $region50: #{unet_forward.7} parent=47 // pred_check_branch
        %3194 = sbr.rel (%p3192) target = $region52
      $region51: #{unet_forward.7} parent=47 // pred_region
        _
      $region52: #{unet_forward.7} parent=47 // pred_fallthru
        _
    $region48: #{unet_forward.7} parent=5 // pred_fallthru
      _
    %p3195 = scmp.le.s32.totalorder 2, %s15
    // Predicated region
    $region53: #{unet_forward.7} parent=5 // pred_check
      %p3196 = pneg %p3195
    $region54: #{unet_forward.7} parent=5 // pred_check_branch
      %3198 = sbr.rel (%p3196) target = $region56
    $region55: #{unet_forward.7} parent=5 // pred_region
      %s3199 = ssub.s32 %s15, 2
      // Predicated region
      $region57: #{unet_forward.7} parent=55 // pred_check
        %p3200 = pneg %p201
      $region58: #{unet_forward.7} parent=55 // pred_check_branch
        %3202 = sbr.rel (%p3200) target = $region60
      $region59: #{unet_forward.7} parent=55 // pred_region
        %p3203 = scmp.lt.s32.totalorder %s21, 1
        %s3204 = scalar_select %p3203, %s21, 1
        %s3205 = smul.addr %s3204, 10
        %s3206 = scalar_lea.vmem %s7, %s3205
      $region60: #{unet_forward.7} parent=55 // pred_fallthru
        _
    $region56: #{unet_forward.7} parent=5 // pred_fallthru
      _
  $region6: #{unet_forward.7} parent=0 // loop_footer
    %s19 = sadd.s32 1, %s15
  $region7: #{unet_forward.7} parent=0 // loop_footer_branch
    %14 = sbr.rel target = $region3
  $region8: #{unet_forward.7} parent=0 // loop_exit
    _

</llo_original>
